<compile_context>
chip_gen: v7x
topology: tpu7x:2x2x1
jax: 0.10.0
libtpu: 0.0.40
codegen_flags: <defaults>
</compile_context>

<pallas_src>
import functools

import jax
import jax.numpy as jnp
from jax.experimental import pallas as pl
from jax.experimental.pallas import tpu as pltpu


def _largest_divisor(n, candidates):
    for c in candidates:
        if n % c == 0:
            return c
    return n


def _leaky_relu(v, slope=0.2):
    return jnp.where(v >= 0.0, v, slope * v)


# ----------------------------------------------------------------------------
# Kernel 1: tiled pairwise squared distances in feature space (knn hot path),
# self-loop mask folded in.
# ----------------------------------------------------------------------------
def _pdist_kernel(xr_ref, xc_ref, d_ref, *, tm, tn):
    i = pl.program_id(0)
    j = pl.program_id(1)
    xr = xr_ref[...].astype(jnp.float32)                      # (tm, C)
    xc = xc_ref[...].astype(jnp.float32)                      # (tn, C)
    sq_r = jnp.sum(xr * xr, axis=-1, keepdims=True)           # (tm, 1)
    sq_c = jnp.sum(xc * xc, axis=-1, keepdims=True)           # (tn, 1)
    # f32 on purpose: keeps the knn neighbour ordering identical to reference.
    gram = jax.lax.dot_general(xr, xc, (((1,), (1,)), ((), ())),
                               preferred_element_type=jnp.float32)
    dist = sq_r + sq_c.T - 2.0 * gram                         # (tm, tn)
    row = i * tm + jax.lax.broadcasted_iota(jnp.int32, (tm, tn), 0)
    col = j * tn + jax.lax.broadcasted_iota(jnp.int32, (tm, tn), 1)
    d_ref[...] = jnp.where(row == col, jnp.float32(1e9), dist)


def pairwise_sq_dist(x):
    n, c = x.shape
    tm = _largest_divisor(n, (128, 64, 32, 16, 8))
    tn = _largest_divisor(n, (512, 256, 128))                  # lane-dense stores
    kernel = functools.partial(_pdist_kernel, tm=tm, tn=tn)
    return pl.pallas_call(
        kernel,
        out_shape=jax.ShapeDtypeStruct((n, n), jnp.float32),
        grid=(n // tm, n // tn),
        in_specs=[
            pl.BlockSpec((tm, c), lambda i, j: (i, 0)),
            pl.BlockSpec((tn, c), lambda i, j: (j, 0)),
        ],
        out_specs=pl.BlockSpec((tm, tn), lambda i, j: (i, j)),
        compiler_params=pltpu.CompilerParams(
            dimension_semantics=("parallel", "parallel"),
            vmem_limit_bytes=32 * 1024 * 1024,
        ),
    )(x, x)


def knn_indices(x, k_max):
    """knn_graph(x, k=k_max, loop=False): k_max nearest neighbours per node."""
    d = pairwise_sq_dist(x)
    _, idx = jax.lax.top_k(-d, k_max)                          # nearest first
    return idx.astype(jnp.int32)                               # (N, k_max)


# ----------------------------------------------------------------------------
# Kernel 2: fused per-node projections — one wide bf16 matmul producing
#   [ (g_d | gv_d) x D  |  a_1..a_D  |  pq_1..pq_D  |  h2_pre ]
# with
#   g_d  = x@wsrc_d + pos@wpos_d + bsrc_d            (gathered, logit term)
#   gv_d = pos@wpos_d - (x@wlin_d + blin_d)          (gathered, value term)
#   a_d  = x@wdst_d + pos@wpos_d + bdst_d + bpos_d   (query-side logit term)
#   pq_d = pos@wpos_d + bpos_d                       (query-side value term)
#   h2_pre = x@wg_x + pos@wg_p + bg                  (lin_global pre-act)
# so that  logits_ij = a_i - g_j  and  value_ij = pq_i - gv_j  exactly
# reproduce q_i - k_j + delta_ij and v_j + delta_ij of v1.
# ----------------------------------------------------------------------------
def _project_kernel(xp_ref, w_ref, b_ref, t_ref):
    xp = xp_ref[...].astype(jnp.bfloat16)                      # (tb, C+3)
    t_ref[...] = (
        jnp.dot(xp, w_ref[...], preferred_element_type=jnp.float32)
        + b_ref[...]
    )


def fused_projection(xp, w_bf16, bias, tb):
    n, cin = xp.shape
    f = w_bf16.shape[1]
    return pl.pallas_call(
        _project_kernel,
        out_shape=jax.ShapeDtypeStruct((n, f), jnp.float32),
        grid=(n // tb,),
        in_specs=[
            pl.BlockSpec((tb, cin), lambda i: (i, 0)),
            pl.BlockSpec((cin, f), lambda i: (0, 0)),
            pl.BlockSpec((1, f), lambda i: (0, 0)),
        ],
        out_specs=pl.BlockSpec((tb, f), lambda i: (i, 0)),
        compiler_params=pltpu.CompilerParams(
            dimension_semantics=("parallel",),
            vmem_limit_bytes=32 * 1024 * 1024,
        ),
    )(xp, w_bf16, bias)


def _build_fused_weights(params, c, num_dil):
    cols_x, cols_p, cols_b = [], [], []
    # SRC region (gathered): per dilation [g_d | gv_d]
    for d in range(num_dil):
        cols_x += [params["wsrc"][d], -params["wlin"][d]]
        cols_p += [params["wpos"][d], params["wpos"][d]]
        cols_b += [params["bsrc"][d], -params["blin"][d]]
    # QRY region: [a_1 .. a_D | pq_1 .. pq_D]
    for d in range(num_dil):
        cols_x.append(params["wdst"][d])
        cols_p.append(params["wpos"][d])
        cols_b.append(params["bdst"][d] + params["bpos"][d])
    for d in range(num_dil):
        cols_x.append(jnp.zeros((c, c), jnp.float32))
        cols_p.append(params["wpos"][d])
        cols_b.append(params["bpos"][d])
    # lin_global pre-activation
    cols_x.append(params["wg_x"])
    cols_p.append(params["wg_p"])
    cols_b.append(params["bg"])

    wx = jnp.concatenate(cols_x, axis=1)                       # (C, F)
    wp = jnp.concatenate(cols_p, axis=1)                       # (3, F)
    w = jnp.concatenate([wx, wp], axis=0).astype(jnp.bfloat16)  # (C+3, F)
    b = jnp.concatenate(cols_b, axis=1)                        # (1, F) f32
    return w, b


# ----------------------------------------------------------------------------
# Kernel 3: per-node-block vector attention over the k neighbours (all
# dilations handled at once in the lane dimension), lin_global residual and
# the final MLP, storing a lane-dense (TB, 128) slab.
# ----------------------------------------------------------------------------
def _attn_kernel(qa_ref, qpq_ref, h2p_ref, gl_ref, gv_ref,
                 w1_ref, b1_ref, w2_ref, b2_ref, out_ref, *, c, num_dil):
    qa = qa_ref[...]                                           # (tb, D*C) f32
    qpq = qpq_ref[...]                                         # (tb, D*C)
    gl = gl_ref[...]                                           # (tb, k, D*C)
    gv = gv_ref[...]                                           # (tb, k, D*C)

    logits = qa[:, None, :] - gl                               # q_i - k_j + delta
    vals = qpq[:, None, :] - gv                                # v_j + delta

    m = jnp.max(logits, axis=1, keepdims=True)                 # softmax over k
    e = jnp.exp(logits - m)
    denom = jnp.sum(e, axis=1, keepdims=True)
    alpha = e * pl.reciprocal(denom, approx=True)
    h_dc = jnp.sum(alpha * vals, axis=1)                       # (tb, D*C)

    # sum the per-dilation conv outputs
    h = h_dc[:, :c]
    for d in range(1, num_dil):
        h = h + h_dc[:, d * c:(d + 1) * c]

    # lin_global: LeakyReLU(0.2) of the fused pre-activation, residual add
    h = h + _leaky_relu(h2p_ref[...])

    # lin: Linear(C->C) + LeakyReLU(0.2) + Linear(C->3) (zero-padded to 128)
    t1 = _leaky_relu(
        jnp.dot(h.astype(jnp.bfloat16), w1_ref[...],
                preferred_element_type=jnp.float32) + b1_ref[...])
    out_ref[...] = (
        jnp.dot(t1.astype(jnp.bfloat16), w2_ref[...],
                preferred_element_type=jnp.float32) + b2_ref[...])


def attention_mlp(qa, qpq, h2p, gl, gv, w1, b1, w2p, b2p, tb):
    n, dc = qa.shape
    k = gl.shape[1]
    c = h2p.shape[1]
    num_dil = dc // c
    outp = w2p.shape[1]                                        # 128 padded lanes
    kernel = functools.partial(_attn_kernel, c=c, num_dil=num_dil)
    return pl.pallas_call(
        kernel,
        out_shape=jax.ShapeDtypeStruct((n, outp), jnp.float32),
        grid=(n // tb,),
        in_specs=[
            pl.BlockSpec((tb, dc), lambda i: (i, 0)),
            pl.BlockSpec((tb, dc), lambda i: (i, 0)),
            pl.BlockSpec((tb, c), lambda i: (i, 0)),
            pl.BlockSpec((tb, k, dc), lambda i: (i, 0, 0)),
            pl.BlockSpec((tb, k, dc), lambda i: (i, 0, 0)),
            pl.BlockSpec((c, c), lambda i: (0, 0)),
            pl.BlockSpec((1, c), lambda i: (0, 0)),
            pl.BlockSpec((c, outp), lambda i: (0, 0)),
            pl.BlockSpec((1, outp), lambda i: (0, 0)),
        ],
        out_specs=pl.BlockSpec((tb, outp), lambda i: (i, 0)),
        compiler_params=pltpu.CompilerParams(
            dimension_semantics=("parallel",),
            vmem_limit_bytes=32 * 1024 * 1024,
        ),
    )(qa, qpq, h2p, gl, gv, w1, b1, w2p, b2p)


# ----------------------------------------------------------------------------
# Refiner forward
# ----------------------------------------------------------------------------
def refiner_forward(x, pos, params, *, k, dilations, add_points=True):
    n, c = x.shape
    num_dil = len(dilations)
    dc = num_dil * c
    tb = _largest_divisor(n, (128, 64, 32, 16, 8))

    # 1) knn graph in feature space (matches reference: knn_graph(x, ...))
    k_max = k * max(dilations)
    idx = knn_indices(x, k_max)                                # (N, k_max)
    # get_dilated_k_fast (hierarchical=False): every d-th neighbour, first k
    idx_all = [idx[:, ::d][:, :k] for d in dilations]          # D x (N, k)

    # 2) one fused wide projection for all dilations + lin_global
    w_fused, b_fused = _build_fused_weights(params, c, num_dil)
    xp = jnp.concatenate([x, pos], axis=-1)                    # (N, C+3)
    table = fused_projection(xp, w_fused, b_fused, tb)         # (N, 4*D*C + C)

    src = table[:, : 2 * dc]                                   # [g_d | gv_d] * D
    qa = table[:, 2 * dc: 3 * dc]                              # (N, D*C)
    qpq = table[:, 3 * dc: 4 * dc]                             # (N, D*C)
    h2p = table[:, 4 * dc: 4 * dc + c]                         # (N, C)

    # 3) neighbour gather as XLA glue: one row gather of width 2C per dilation
    gl_parts, gv_parts = [], []
    for di in range(num_dil):
        chunk = src[:, di * 2 * c:(di + 1) * 2 * c]            # (N, 2C)
        gathered = jnp.take(chunk, idx_all[di], axis=0)        # (N, k, 2C)
        gl_parts.append(gathered[..., :c])
        gv_parts.append(gathered[..., c:])
    gl = jnp.concatenate(gl_parts, axis=-1)                    # (N, k, D*C)
    gv = jnp.concatenate(gv_parts, axis=-1)                    # (N, k, D*C)

    # 4) attention + lin_global residual + final MLP (padded 128-lane slab)
    w1 = params["w1"].astype(jnp.bfloat16)
    b1 = params["b1"]
    w2p = jnp.zeros((c, 128), jnp.float32).at[:, :3].set(params["w2"])
    w2p = w2p.astype(jnp.bfloat16)
    b2p = jnp.zeros((1, 128), jnp.float32).at[:, :3].set(params["b2"])
    out_pad = attention_mlp(qa, qpq, h2p, gl, gv, w1, b1, w2p, b2p, tb)

    res = out_pad[:, :3]
    if add_points:
        res = res + pos
    return res


# ----------------------------------------------------------------------------
# Deterministic parameter construction (shapes follow Refiner.__init__)
# ----------------------------------------------------------------------------
def init_params(key, c, num_dilations):
    keys = iter(jax.random.split(key, 64))

    def w(shape, fan_in):
        return jax.random.normal(next(keys), shape, jnp.float32) / jnp.sqrt(float(fan_in))

    def stack(shape, fan_in):
        return jnp.stack([w(shape, fan_in) for _ in range(num_dilations)], axis=0)

    return dict(
        # per-dilation PointTransformerConv weights (GraphConv layers)
        wsrc=stack((c, c), c), bsrc=stack((1, c), c),
        wdst=stack((c, c), c), bdst=stack((1, c), c),
        wlin=stack((c, c), c), blin=stack((1, c), c),
        wpos=stack((3, c), 3), bpos=stack((1, c), 3),
        # lin_global: Linear(C+3 -> C) split into the x-part and pos-part
        wg_x=w((c, c), c + 3), wg_p=w((3, c), c + 3), bg=w((1, c), c + 3),
        # lin: Linear(C -> C), Linear(C -> 3)
        w1=w((c, c), c), b1=w((1, c), c),
        w2=w((c, 3), c), b2=w((1, 3), c),
    )


if __name__ == "__main__":
    N, C, K = 256, 32, 4
    DILATIONS = (1, 2)

    key = jax.random.PRNGKey(0)
    kx, kp, kw = jax.random.split(key, 3)
    x = jax.random.normal(kx, (N, C), jnp.float32)
    pos = jax.random.normal(kp, (N, 3), jnp.float32)
    params = init_params(kw, C, len(DILATIONS))

    fwd = jax.jit(functools.partial(
        refiner_forward, k=K, dilations=DILATIONS, add_points=True))
    out = jax.block_until_ready(fwd(x, pos, params))

    assert out.shape == (N, 3) and out.dtype == jnp.float32
    assert bool(jnp.all(jnp.isfinite(out)))
    print("KERNEL_OK")
</pallas_src>

<mosaic_0001>
module attributes {stable_mosaic.version = 11 : i64} {
  func.func @_project_kernel(%arg0: i32, %arg1: memref<128x35xf32, #tpu.memory_space<vmem>>, %arg2: memref<35x288xbf16, #tpu.memory_space<vmem>>, %arg3: memref<1x288xf32, #tpu.memory_space<vmem>>, %arg4: memref<128x288xf32, #tpu.memory_space<vmem>>) attributes {dimension_semantics = [#tpu.dimension_semantics<parallel>], iteration_bounds = array<i64: 2>, scalar_prefetch = 0 : i64, scratch_operands = 0 : i64, tpu.core_type = #tpu.core_type<tc>, window_params = [{transform_indices = @transform_0, window_bounds = array<i64: 128, 35>}, {pipeline_mode = #tpu.pipeline_mode<synchronous>, transform_indices = @transform_1, window_bounds = array<i64: 35, 288>}, {pipeline_mode = #tpu.pipeline_mode<synchronous>, transform_indices = @transform_2, window_bounds = array<i64: 1, 288>}, {transform_indices = @transform_3, window_bounds = array<i64: 128, 288>}]} {
    %c0 = arith.constant 0 : index
    %c0_0 = arith.constant 0 : index
    %0 = vector.load %arg1[%c0, %c0_0] : memref<128x35xf32, #tpu.memory_space<vmem>>, vector<128x35xf32>
    %1 = arith.truncf %0 : vector<128x35xf32> to vector<128x35xbf16>
    %c0_1 = arith.constant 0 : index
    %c0_2 = arith.constant 0 : index
    %2 = vector.load %arg2[%c0_1, %c0_2] : memref<35x288xbf16, #tpu.memory_space<vmem>>, vector<35x288xbf16>
    %cst = arith.constant dense<0.000000e+00> : vector<128x288xf32>
    %3 = tpu.matmul %1, %2, %cst {dimension_numbers = #tpu.dot_dimension_numbers<[1], [0], [0], [1], [0, 0, 1, 1], [], []>} : vector<128x35xbf16>, vector<35x288xbf16>, vector<128x288xf32> -> vector<128x288xf32>
    %c0_3 = arith.constant 0 : index
    %c0_4 = arith.constant 0 : index
    %4 = vector.load %arg3[%c0_3, %c0_4] : memref<1x288xf32, #tpu.memory_space<vmem>>, vector<1x288xf32>
    %5 = vector.broadcast %4 : vector<1x288xf32> to vector<128x288xf32>
    %6 = arith.addf %3, %5 : vector<128x288xf32>
    %c0_5 = arith.constant 0 : index
    %c0_6 = arith.constant 0 : index
    %7 = vector.load %arg4[%c0_5, %c0_6] : memref<128x288xf32, #tpu.memory_space<vmem>>, vector<128x288xf32>
    tpu.vector_store %arg4[%c0_5, %c0_6], %6 {strides = array<i32>} : memref<128x288xf32, #tpu.memory_space<vmem>>, vector<128x288xf32>,
    return
  }
  func.func @transform_0(%arg0: i32) -> (i32, i32) {
    %c0_i32 = arith.constant 0 : i32
    %c0_i32_0 = arith.constant 0 : i32
    return %arg0, %c0_i32 : i32, i32
  }
  func.func @transform_1(%arg0: i32) -> (i32, i32) {
    %c0_i32 = arith.constant 0 : i32
    %c0_i32_0 = arith.constant 0 : i32
    %c0_i32_1 = arith.constant 0 : i32
    return %c0_i32, %c0_i32_0 : i32, i32
  }
  func.func @transform_2(%arg0: i32) -> (i32, i32) {
    %c0_i32 = arith.constant 0 : i32
    %c0_i32_0 = arith.constant 0 : i32
    %c0_i32_1 = arith.constant 0 : i32
    return %c0_i32, %c0_i32_0 : i32, i32
  }
  func.func @transform_3(%arg0: i32) -> (i32, i32) {
    %c0_i32 = arith.constant 0 : i32
    %c0_i32_0 = arith.constant 0 : i32
    return %arg0, %c0_i32 : i32, i32
  }
}

module attributes {stable_mosaic.version = 11 : i64} {
  func.func @_pdist_kernel(%arg0: i32, %arg1: i32, %arg2: memref<128x32xf32, #tpu.memory_space<vmem>>, %arg3: memref<256x32xf32, #tpu.memory_space<vmem>>, %arg4: memref<128x256xf32, #tpu.memory_space<vmem>>) attributes {dimension_semantics = [#tpu.dimension_semantics<parallel>, #tpu.dimension_semantics<parallel>], iteration_bounds = array<i64: 2, 1>, scalar_prefetch = 0 : i64, scratch_operands = 0 : i64, tpu.core_type = #tpu.core_type<tc>, window_params = [{transform_indices = @transform_0, window_bounds = array<i64: 128, 32>}, {transform_indices = @transform_1, window_bounds = array<i64: 256, 32>}, {transform_indices = @transform_2, window_bounds = array<i64: 128, 256>}]} {
    %c0 = arith.constant 0 : index
    %c0_0 = arith.constant 0 : index
    %0 = vector.load %arg2[%c0, %c0_0] : memref<128x32xf32, #tpu.memory_space<vmem>>, vector<128x32xf32>
    %c0_1 = arith.constant 0 : index
    %c0_2 = arith.constant 0 : index
    %1 = vector.load %arg3[%c0_1, %c0_2] : memref<256x32xf32, #tpu.memory_space<vmem>>, vector<256x32xf32>
    %2 = arith.mulf %0, %0 : vector<128x32xf32>
    %cst = arith.constant dense<0.000000e+00> : vector<128xf32>
    %3 = vector.multi_reduction <add>, %2, %cst [1] : vector<128x32xf32> to vector<128xf32>
    %4 = vector.shape_cast %3 : vector<128xf32> to vector<128x1xf32>
    %5 = arith.mulf %1, %1 : vector<256x32xf32>
    %cst_3 = arith.constant dense<0.000000e+00> : vector<256xf32>
    %6 = vector.multi_reduction <add>, %5, %cst_3 [1] : vector<256x32xf32> to vector<256xf32>
    %7 = vector.shape_cast %6 : vector<256xf32> to vector<256x1xf32>
    %cst_4 = arith.constant dense<0.000000e+00> : vector<128x256xf32>
    %8 = tpu.matmul %0, %1, %cst_4 {dimension_numbers = #tpu.dot_dimension_numbers<[1], [1], [0], [0], [0, 0, 1, 0], [], []>} : vector<128x32xf32>, vector<256x32xf32>, vector<128x256xf32> -> vector<128x256xf32>
    %9 = tpu.transpose %7, [1, 0] : vector<256x1xf32> -> vector<1x256xf32>
    %10 = vector.broadcast %4 : vector<128x1xf32> to vector<128x256xf32>
    %11 = vector.broadcast %9 : vector<1x256xf32> to vector<128x256xf32>
    %12 = arith.addf %10, %11 : vector<128x256xf32>
    %cst_5 = arith.constant 2.000000e+00 : f32
    %13 = vector.broadcast %cst_5 : f32 to vector<128x256xf32>
    %14 = arith.mulf %13, %8 : vector<128x256xf32>
    %15 = arith.subf %12, %14 : vector<128x256xf32>
    %c128_i32 = arith.constant 128 : i32
    %16 = arith.muli %arg0, %c128_i32 : i32
    %17 = tpu.iota {dimensions = array<i32: 0>} : vector<128x256xi32>
    %18 = vector.broadcast %16 : i32 to vector<128x256xi32>
    %19 = arith.addi %18, %17 : vector<128x256xi32>
    %c256_i32 = arith.constant 256 : i32
    %20 = arith.muli %arg1, %c256_i32 : i32
    %21 = tpu.iota {dimensions = array<i32: 1>} : vector<128x256xi32>
    %22 = vector.broadcast %20 : i32 to vector<128x256xi32>
    %23 = arith.addi %22, %21 : vector<128x256xi32>
    %24 = arith.cmpi eq, %19, %23 : vector<128x256xi32>
    %cst_6 = arith.constant 1.000000e+09 : f32
    %25 = vector.broadcast %cst_6 : f32 to vector<128x256xf32>
    %26 = arith.select %24, %25, %15 : vector<128x256xi1>, vector<128x256xf32>
    %c0_7 = arith.constant 0 : index
    %c0_8 = arith.constant 0 : index
    %27 = vector.load %arg4[%c0_7, %c0_8] : memref<128x256xf32, #tpu.memory_space<vmem>>, vector<128x256xf32>
    tpu.vector_store %arg4[%c0_7, %c0_8], %26 {strides = array<i32>} : memref<128x256xf32, #tpu.memory_space<vmem>>, vector<128x256xf32>,
    return
  }
  func.func @transform_0(%arg0: i32, %arg1: i32) -> (i32, i32) {
    %c0_i32 = arith.constant 0 : i32
    %c0_i32_0 = arith.constant 0 : i32
    return %arg0, %c0_i32 : i32, i32
  }
  func.func @transform_1(%arg0: i32, %arg1: i32) -> (i32, i32) {
    %c0_i32 = arith.constant 0 : i32
    %c0_i32_0 = arith.constant 0 : i32
    return %arg1, %c0_i32 : i32, i32
  }
  func.func @transform_2(%arg0: i32, %arg1: i32) -> (i32, i32) {
    %c0_i32 = arith.constant 0 : i32
    return %arg0, %arg1 : i32, i32
  }
}

module attributes {stable_mosaic.version = 11 : i64} {
  func.func @_attn_kernel(%arg0: i32, %arg1: memref<128x64xf32, #tpu.memory_space<vmem>>, %arg2: memref<128x64xf32, #tpu.memory_space<vmem>>, %arg3: memref<128x32xf32, #tpu.memory_space<vmem>>, %arg4: memref<128x4x64xf32, #tpu.memory_space<vmem>>, %arg5: memref<128x4x64xf32, #tpu.memory_space<vmem>>, %arg6: memref<32x32xbf16, #tpu.memory_space<vmem>>, %arg7: memref<1x32xf32, #tpu.memory_space<vmem>>, %arg8: memref<32x128xbf16, #tpu.memory_space<vmem>>, %arg9: memref<1x128xf32, #tpu.memory_space<vmem>>, %arg10: memref<128x128xf32, #tpu.memory_space<vmem>>) attributes {dimension_semantics = [#tpu.dimension_semantics<parallel>], iteration_bounds = array<i64: 2>, scalar_prefetch = 0 : i64, scratch_operands = 0 : i64, tpu.core_type = #tpu.core_type<tc>, window_params = [{transform_indices = @transform_0, window_bounds = array<i64: 128, 64>}, {transform_indices = @transform_1, window_bounds = array<i64: 128, 64>}, {transform_indices = @transform_2, window_bounds = array<i64: 128, 32>}, {transform_indices = @transform_3, window_bounds = array<i64: 128, 4, 64>}, {transform_indices = @transform_4, window_bounds = array<i64: 128, 4, 64>}, {pipeline_mode = #tpu.pipeline_mode<synchronous>, transform_indices = @transform_5, window_bounds = array<i64: 32, 32>}, {pipeline_mode = #tpu.pipeline_mode<synchronous>, transform_indices = @transform_6, window_bounds = array<i64: 1, 32>}, {pipeline_mode = #tpu.pipeline_mode<synchronous>, transform_indices = @transform_7, window_bounds = array<i64: 32, 128>}, {pipeline_mode = #tpu.pipeline_mode<synchronous>, transform_indices = @transform_8, window_bounds = array<i64: 1, 128>}, {transform_indices = @transform_9, window_bounds = array<i64: 128, 128>}]} {
    %c0 = arith.constant 0 : index
    %c0_0 = arith.constant 0 : index
    %0 = vector.load %arg1[%c0, %c0_0] : memref<128x64xf32, #tpu.memory_space<vmem>>, vector<128x64xf32>
    %c0_1 = arith.constant 0 : index
    %c0_2 = arith.constant 0 : index
    %1 = vector.load %arg2[%c0_1, %c0_2] : memref<128x64xf32, #tpu.memory_space<vmem>>, vector<128x64xf32>
    %c0_3 = arith.constant 0 : index
    %c0_4 = arith.constant 0 : index
    %c0_5 = arith.constant 0 : index
    %2 = vector.load %arg4[%c0_3, %c0_4, %c0_5] : memref<128x4x64xf32, #tpu.memory_space<vmem>>, vector<128x4x64xf32>
    %c0_6 = arith.constant 0 : index
    %c0_7 = arith.constant 0 : index
    %c0_8 = arith.constant 0 : index
    %3 = vector.load %arg5[%c0_6, %c0_7, %c0_8] : memref<128x4x64xf32, #tpu.memory_space<vmem>>, vector<128x4x64xf32>
    %4 = vector.shape_cast %0 : vector<128x64xf32> to vector<128x1x64xf32>
    %5 = vector.broadcast %4 : vector<128x1x64xf32> to vector<128x4x64xf32>
    %6 = arith.subf %5, %2 : vector<128x4x64xf32>
    %7 = vector.shape_cast %1 : vector<128x64xf32> to vector<128x1x64xf32>
    %8 = vector.broadcast %7 : vector<128x1x64xf32> to vector<128x4x64xf32>
    %9 = arith.subf %8, %3 : vector<128x4x64xf32>
    %cst = arith.constant dense<0xFF800000> : vector<128x64xf32>
    %10 = vector.multi_reduction <maximumf>, %6, %cst [1] : vector<128x4x64xf32> to vector<128x64xf32>
    %11 = vector.shape_cast %10 : vector<128x64xf32> to vector<128x1x64xf32>
    %12 = vector.broadcast %11 : vector<128x1x64xf32> to vector<128x4x64xf32>
    %13 = arith.subf %6, %12 : vector<128x4x64xf32>
    %14 = math.exp %13 : vector<128x4x64xf32>
    %cst_9 = arith.constant dense<0.000000e+00> : vector<128x64xf32>
    %15 = vector.multi_reduction <add>, %14, %cst_9 [1] : vector<128x4x64xf32> to vector<128x64xf32>
    %16 = vector.shape_cast %15 : vector<128x64xf32> to vector<128x1x64xf32>
    %17 = tpu.reciprocal %16 {approx = true} : vector<128x1x64xf32> -> vector<128x1x64xf32>
    %18 = vector.broadcast %17 : vector<128x1x64xf32> to vector<128x4x64xf32>
    %19 = arith.mulf %14, %18 : vector<128x4x64xf32>
    %20 = arith.mulf %19, %9 : vector<128x4x64xf32>
    %cst_10 = arith.constant dense<0.000000e+00> : vector<128x64xf32>
    %21 = vector.multi_reduction <add>, %20, %cst_10 [1] : vector<128x4x64xf32> to vector<128x64xf32>
    %22 = vector.extract_strided_slice %21 {offsets = [0, 0], sizes = [128, 32], strides = [1, 1]} : vector<128x64xf32> to vector<128x32xf32>
    %23 = vector.extract_strided_slice %21 {offsets = [0, 32], sizes = [128, 32], strides = [1, 1]} : vector<128x64xf32> to vector<128x32xf32>
    %24 = arith.addf %22, %23 : vector<128x32xf32>
    %c0_11 = arith.constant 0 : index
    %c0_12 = arith.constant 0 : index
    %25 = vector.load %arg3[%c0_11, %c0_12] : memref<128x32xf32, #tpu.memory_space<vmem>>, vector<128x32xf32>
    %cst_13 = arith.constant 0.000000e+00 : f32
    %26 = vector.broadcast %cst_13 : f32 to vector<128x32xf32>
    %27 = arith.cmpf oge, %25, %26 : vector<128x32xf32>
    %cst_14 = arith.constant 2.000000e-01 : f32
    %28 = vector.broadcast %cst_14 : f32 to vector<128x32xf32>
    %29 = arith.mulf %28, %25 : vector<128x32xf32>
    %30 = arith.select %27, %25, %29 : vector<128x32xi1>, vector<128x32xf32>
    %31 = arith.addf %24, %30 : vector<128x32xf32>
    %32 = arith.truncf %31 : vector<128x32xf32> to vector<128x32xbf16>
    %c0_15 = arith.constant 0 : index
    %c0_16 = arith.constant 0 : index
    %33 = vector.load %arg6[%c0_15, %c0_16] : memref<32x32xbf16, #tpu.memory_space<vmem>>, vector<32x32xbf16>
    %cst_17 = arith.constant dense<0.000000e+00> : vector<128x32xf32>
    %34 = tpu.matmul %32, %33, %cst_17 {dimension_numbers = #tpu.dot_dimension_numbers<[1], [0], [0], [1], [0, 0, 1, 1], [], []>} : vector<128x32xbf16>, vector<32x32xbf16>, vector<128x32xf32> -> vector<128x32xf32>
    %c0_18 = arith.constant 0 : index
    %c0_19 = arith.constant 0 : index
    %35 = vector.load %arg7[%c0_18, %c0_19] : memref<1x32xf32, #tpu.memory_space<vmem>>, vector<1x32xf32>
    %36 = vector.broadcast %35 : vector<1x32xf32> to vector<128x32xf32>
    %37 = arith.addf %34, %36 : vector<128x32xf32>
    %cst_20 = arith.constant 0.000000e+00 : f32
    %38 = vector.broadcast %cst_20 : f32 to vector<128x32xf32>
    %39 = arith.cmpf oge, %37, %38 : vector<128x32xf32>
    %cst_21 = arith.constant 2.000000e-01 : f32
    %40 = vector.broadcast %cst_21 : f32 to vector<128x32xf32>
    %41 = arith.mulf %40, %37 : vector<128x32xf32>
    %42 = arith.select %39, %37, %41 : vector<128x32xi1>, vector<128x32xf32>
    %43 = arith.truncf %42 : vector<128x32xf32> to vector<128x32xbf16>
    %c0_22 = arith.constant 0 : index
    %c0_23 = arith.constant 0 : index
    %44 = vector.load %arg8[%c0_22, %c0_23] : memref<32x128xbf16, #tpu.memory_space<vmem>>, vector<32x128xbf16>
    %cst_24 = arith.constant dense<0.000000e+00> : vector<128x128xf32>
    %45 = tpu.matmul %43, %44, %cst_24 {dimension_numbers = #tpu.dot_dimension_numbers<[1], [0], [0], [1], [0, 0, 1, 1], [], []>} : vector<128x32xbf16>, vector<32x128xbf16>, vector<128x128xf32> -> vector<128x128xf32>
    %c0_25 = arith.constant 0 : index
    %c0_26 = arith.constant 0 : index
    %46 = vector.load %arg9[%c0_25, %c0_26] : memref<1x128xf32, #tpu.memory_space<vmem>>, vector<1x128xf32>
    %47 = vector.broadcast %46 : vector<1x128xf32> to vector<128x128xf32>
    %48 = arith.addf %45, %47 : vector<128x128xf32>
    %c0_27 = arith.constant 0 : index
    %c0_28 = arith.constant 0 : index
    %49 = vector.load %arg10[%c0_27, %c0_28] : memref<128x128xf32, #tpu.memory_space<vmem>>, vector<128x128xf32>
    tpu.vector_store %arg10[%c0_27, %c0_28], %48 {strides = array<i32>} : memref<128x128xf32, #tpu.memory_space<vmem>>, vector<128x128xf32>,
    return
  }
  func.func @transform_0(%arg0: i32) -> (i32, i32) {
    %c0_i32 = arith.constant 0 : i32
    %c0_i32_0 = arith.constant 0 : i32
    return %arg0, %c0_i32 : i32, i32
  }
  func.func @transform_1(%arg0: i32) -> (i32, i32) {
    %c0_i32 = arith.constant 0 : i32
    %c0_i32_0 = arith.constant 0 : i32
    return %arg0, %c0_i32 : i32, i32
  }
  func.func @transform_2(%arg0: i32) -> (i32, i32) {
    %c0_i32 = arith.constant 0 : i32
    %c0_i32_0 = arith.constant 0 : i32
    return %arg0, %c0_i32 : i32, i32
  }
  func.func @transform_3(%arg0: i32) -> (i32, i32, i32) {
    %c0_i32 = arith.constant 0 : i32
    %c0_i32_0 = arith.constant 0 : i32
    %c0_i32_1 = arith.constant 0 : i32
    return %arg0, %c0_i32, %c0_i32_0 : i32, i32, i32
  }
  func.func @transform_4(%arg0: i32) -> (i32, i32, i32) {
    %c0_i32 = arith.constant 0 : i32
    %c0_i32_0 = arith.constant 0 : i32
    %c0_i32_1 = arith.constant 0 : i32
    return %arg0, %c0_i32, %c0_i32_0 : i32, i32, i32
  }
  func.func @transform_5(%arg0: i32) -> (i32, i32) {
    %c0_i32 = arith.constant 0 : i32
    %c0_i32_0 = arith.constant 0 : i32
    %c0_i32_1 = arith.constant 0 : i32
    return %c0_i32, %c0_i32_0 : i32, i32
  }
  func.func @transform_6(%arg0: i32) -> (i32, i32) {
    %c0_i32 = arith.constant 0 : i32
    %c0_i32_0 = arith.constant 0 : i32
    %c0_i32_1 = arith.constant 0 : i32
    return %c0_i32, %c0_i32_0 : i32, i32
  }
  func.func @transform_7(%arg0: i32) -> (i32, i32) {
    %c0_i32 = arith.constant 0 : i32
    %c0_i32_0 = arith.constant 0 : i32
    %c0_i32_1 = arith.constant 0 : i32
    return %c0_i32, %c0_i32_0 : i32, i32
  }
  func.func @transform_8(%arg0: i32) -> (i32, i32) {
    %c0_i32 = arith.constant 0 : i32
    %c0_i32_0 = arith.constant 0 : i32
    %c0_i32_1 = arith.constant 0 : i32
    return %c0_i32, %c0_i32_0 : i32, i32
  }
  func.func @transform_9(%arg0: i32) -> (i32, i32) {
    %c0_i32 = arith.constant 0 : i32
    %c0_i32_0 = arith.constant 0 : i32
    return %arg0, %c0_i32 : i32, i32
  }
}

</mosaic_0001>

<llo_original>
// kernel: neg.5
$region0: #{neg.5}
  #allocation0 [shape = 's32[1]{0}', space=sflag, size = 0x4, scoped, tag = 'scoped memory for neg.5']
  %s0 = inlined_call_operand.vmem [shape: f32[256,256], index: 0, kind: input, shape index: {}]
  %s1 = inlined_call_operand.vmem [shape: f32[256,256], index: 1, kind: output, shape index: {}]
  %v2 = vld [vmem:[%s0] sm:$0xff]
  %3 = xla_tuple %v2
  %4 = xla_tuple %3
  %v5 = vxor.u32 %v2, 2147483648
  %6 = xla_tuple %v5
  %7 = vst [vmem:[%s1] sm:$0xff] %v5
  %s8 = scalar_lea.vmem %s0, 16
  %v9 = vld [vmem:[%s8] sm:$0xff]
  %10 = xla_tuple %v9
  %11 = xla_tuple %10
  %v12 = vxor.u32 %v9, 2147483648
  %13 = xla_tuple %v12
  %s14 = scalar_lea.vmem %s1, 16
  %15 = vst [vmem:[%s14] sm:$0xff] %v12
  %s16 = scalar_lea.vmem %s0, 32
  %v17 = vld [vmem:[%s16] sm:$0xff]
  %18 = xla_tuple %v17
  %19 = xla_tuple %18
  %v20 = vxor.u32 %v17, 2147483648
  %21 = xla_tuple %v20
  %s22 = scalar_lea.vmem %s1, 32
  %23 = vst [vmem:[%s22] sm:$0xff] %v20
  %s24 = scalar_lea.vmem %s0, 48
  %v25 = vld [vmem:[%s24] sm:$0xff]
  %26 = xla_tuple %v25
  %27 = xla_tuple %26
  %v28 = vxor.u32 %v25, 2147483648
  %29 = xla_tuple %v28
  %s30 = scalar_lea.vmem %s1, 48
  %31 = vst [vmem:[%s30] sm:$0xff] %v28
  %s32 = scalar_lea.vmem %s0, 64
  %v33 = vld [vmem:[%s32] sm:$0xff]
  %34 = xla_tuple %v33
  %35 = xla_tuple %34
  %v36 = vxor.u32 %v33, 2147483648
  %37 = xla_tuple %v36
  %s38 = scalar_lea.vmem %s1, 64
  %39 = vst [vmem:[%s38] sm:$0xff] %v36
  %s40 = scalar_lea.vmem %s0, 80
  %v41 = vld [vmem:[%s40] sm:$0xff]
  %42 = xla_tuple %v41
  %43 = xla_tuple %42
  %v44 = vxor.u32 %v41, 2147483648
  %45 = xla_tuple %v44
  %s46 = scalar_lea.vmem %s1, 80
  %47 = vst [vmem:[%s46] sm:$0xff] %v44
  %s48 = scalar_lea.vmem %s0, 96
  %v49 = vld [vmem:[%s48] sm:$0xff]
  %50 = xla_tuple %v49
  %51 = xla_tuple %50
  %v52 = vxor.u32 %v49, 2147483648
  %53 = xla_tuple %v52
  %s54 = scalar_lea.vmem %s1, 96
  %55 = vst [vmem:[%s54] sm:$0xff] %v52
  %s56 = scalar_lea.vmem %s0, 112
  %v57 = vld [vmem:[%s56] sm:$0xff]
  %58 = xla_tuple %v57
  %59 = xla_tuple %58
  %v60 = vxor.u32 %v57, 2147483648
  %61 = xla_tuple %v60
  %s62 = scalar_lea.vmem %s1, 112
  %63 = vst [vmem:[%s62] sm:$0xff] %v60
  %s64 = scalar_lea.vmem %s0, 128
  %v65 = vld [vmem:[%s64] sm:$0xff]
  %66 = xla_tuple %v65
  %67 = xla_tuple %66
  %v68 = vxor.u32 %v65, 2147483648
  %69 = xla_tuple %v68
  %s70 = scalar_lea.vmem %s1, 128
  %71 = vst [vmem:[%s70] sm:$0xff] %v68
  %s72 = scalar_lea.vmem %s0, 144
  %v73 = vld [vmem:[%s72] sm:$0xff]
  %74 = xla_tuple %v73
  %75 = xla_tuple %74
  %v76 = vxor.u32 %v73, 2147483648
  %77 = xla_tuple %v76
  %s78 = scalar_lea.vmem %s1, 144
  %79 = vst [vmem:[%s78] sm:$0xff] %v76
  %s80 = scalar_lea.vmem %s0, 160
  %v81 = vld [vmem:[%s80] sm:$0xff]
  %82 = xla_tuple %v81
  %83 = xla_tuple %82
  %v84 = vxor.u32 %v81, 2147483648
  %85 = xla_tuple %v84
  %s86 = scalar_lea.vmem %s1, 160
  %87 = vst [vmem:[%s86] sm:$0xff] %v84
  %s88 = scalar_lea.vmem %s0, 176
  %v89 = vld [vmem:[%s88] sm:$0xff]
  %90 = xla_tuple %v89
  %91 = xla_tuple %90
  %v92 = vxor.u32 %v89, 2147483648
  %93 = xla_tuple %v92
  %s94 = scalar_lea.vmem %s1, 176
  %95 = vst [vmem:[%s94] sm:$0xff] %v92
  %s96 = scalar_lea.vmem %s0, 192
  %v97 = vld [vmem:[%s96] sm:$0xff]
  %98 = xla_tuple %v97
  %99 = xla_tuple %98
  %v100 = vxor.u32 %v97, 2147483648
  %101 = xla_tuple %v100
  %s102 = scalar_lea.vmem %s1, 192
  %103 = vst [vmem:[%s102] sm:$0xff] %v100
  %s104 = scalar_lea.vmem %s0, 208
  %v105 = vld [vmem:[%s104] sm:$0xff]
  %106 = xla_tuple %v105
  %107 = xla_tuple %106
  %v108 = vxor.u32 %v105, 2147483648
  %109 = xla_tuple %v108
  %s110 = scalar_lea.vmem %s1, 208
  %111 = vst [vmem:[%s110] sm:$0xff] %v108
  %s112 = scalar_lea.vmem %s0, 224
  %v113 = vld [vmem:[%s112] sm:$0xff]
  %114 = xla_tuple %v113
  %115 = xla_tuple %114
  %v116 = vxor.u32 %v113, 2147483648
  %117 = xla_tuple %v116
  %s118 = scalar_lea.vmem %s1, 224
  %119 = vst [vmem:[%s118] sm:$0xff] %v116
  %s120 = scalar_lea.vmem %s0, 240
  %v121 = vld [vmem:[%s120] sm:$0xff]
  %122 = xla_tuple %v121
  %123 = xla_tuple %122
  %v124 = vxor.u32 %v121, 2147483648
  %125 = xla_tuple %v124
  %s126 = scalar_lea.vmem %s1, 240
  %127 = vst [vmem:[%s126] sm:$0xff] %v124
  %s128 = scalar_lea.vmem %s0, 256
  %v129 = vld [vmem:[%s128] sm:$0xff]
  %130 = xla_tuple %v129
  %131 = xla_tuple %130
  %v132 = vxor.u32 %v129, 2147483648
  %133 = xla_tuple %v132
  %s134 = scalar_lea.vmem %s1, 256
  %135 = vst [vmem:[%s134] sm:$0xff] %v132
  %s136 = scalar_lea.vmem %s0, 272
  %v137 = vld [vmem:[%s136] sm:$0xff]
  %138 = xla_tuple %v137
  %139 = xla_tuple %138
  %v140 = vxor.u32 %v137, 2147483648
  %141 = xla_tuple %v140
  %s142 = scalar_lea.vmem %s1, 272
  %143 = vst [vmem:[%s142] sm:$0xff] %v140
  %s144 = scalar_lea.vmem %s0, 288
  %v145 = vld [vmem:[%s144] sm:$0xff]
  %146 = xla_tuple %v145
  %147 = xla_tuple %146
  %v148 = vxor.u32 %v145, 2147483648
  %149 = xla_tuple %v148
  %s150 = scalar_lea.vmem %s1, 288
  %151 = vst [vmem:[%s150] sm:$0xff] %v148
  %s152 = scalar_lea.vmem %s0, 304
  %v153 = vld [vmem:[%s152] sm:$0xff]
  %154 = xla_tuple %v153
  %155 = xla_tuple %154
  %v156 = vxor.u32 %v153, 2147483648
  %157 = xla_tuple %v156
  %s158 = scalar_lea.vmem %s1, 304
  %159 = vst [vmem:[%s158] sm:$0xff] %v156
  %s160 = scalar_lea.vmem %s0, 320
  %v161 = vld [vmem:[%s160] sm:$0xff]
  %162 = xla_tuple %v161
  %163 = xla_tuple %162
  %v164 = vxor.u32 %v161, 2147483648
  %165 = xla_tuple %v164
  %s166 = scalar_lea.vmem %s1, 320
  %167 = vst [vmem:[%s166] sm:$0xff] %v164
  %s168 = scalar_lea.vmem %s0, 336
  %v169 = vld [vmem:[%s168] sm:$0xff]
  %170 = xla_tuple %v169
  %171 = xla_tuple %170
  %v172 = vxor.u32 %v169, 2147483648
  %173 = xla_tuple %v172
  %s174 = scalar_lea.vmem %s1, 336
  %175 = vst [vmem:[%s174] sm:$0xff] %v172
  %s176 = scalar_lea.vmem %s0, 352
  %v177 = vld [vmem:[%s176] sm:$0xff]
  %178 = xla_tuple %v177
  %179 = xla_tuple %178
  %v180 = vxor.u32 %v177, 2147483648
  %181 = xla_tuple %v180
  %s182 = scalar_lea.vmem %s1, 352
  %183 = vst [vmem:[%s182] sm:$0xff] %v180
  %s184 = scalar_lea.vmem %s0, 368
  %v185 = vld [vmem:[%s184] sm:$0xff]
  %186 = xla_tuple %v185
  %187 = xla_tuple %186
  %v188 = vxor.u32 %v185, 2147483648
  %189 = xla_tuple %v188
  %s190 = scalar_lea.vmem %s1, 368
  %191 = vst [vmem:[%s190] sm:$0xff] %v188
  %s192 = scalar_lea.vmem %s0, 384
  %v193 = vld [vmem:[%s192] sm:$0xff]
  %194 = xla_tuple %v193
  %195 = xla_tuple %194
  %v196 = vxor.u32 %v193, 2147483648
  %197 = xla_tuple %v196
  %s198 = scalar_lea.vmem %s1, 384
  %199 = vst [vmem:[%s198] sm:$0xff] %v196
  %s200 = scalar_lea.vmem %s0, 400
  %v201 = vld [vmem:[%s200] sm:$0xff]
  %202 = xla_tuple %v201
  %203 = xla_tuple %202
  %v204 = vxor.u32 %v201, 2147483648
  %205 = xla_tuple %v204
  %s206 = scalar_lea.vmem %s1, 400
  %207 = vst [vmem:[%s206] sm:$0xff] %v204
  %s208 = scalar_lea.vmem %s0, 416
  %v209 = vld [vmem:[%s208] sm:$0xff]
  %210 = xla_tuple %v209
  %211 = xla_tuple %210
  %v212 = vxor.u32 %v209, 2147483648
  %213 = xla_tuple %v212
  %s214 = scalar_lea.vmem %s1, 416
  %215 = vst [vmem:[%s214] sm:$0xff] %v212
  %s216 = scalar_lea.vmem %s0, 432
  %v217 = vld [vmem:[%s216] sm:$0xff]
  %218 = xla_tuple %v217
  %219 = xla_tuple %218
  %v220 = vxor.u32 %v217, 2147483648
  %221 = xla_tuple %v220
  %s222 = scalar_lea.vmem %s1, 432
  %223 = vst [vmem:[%s222] sm:$0xff] %v220
  %s224 = scalar_lea.vmem %s0, 448
  %v225 = vld [vmem:[%s224] sm:$0xff]
  %226 = xla_tuple %v225
  %227 = xla_tuple %226
  %v228 = vxor.u32 %v225, 2147483648
  %229 = xla_tuple %v228
  %s230 = scalar_lea.vmem %s1, 448
  %231 = vst [vmem:[%s230] sm:$0xff] %v228
  %s232 = scalar_lea.vmem %s0, 464
  %v233 = vld [vmem:[%s232] sm:$0xff]
  %234 = xla_tuple %v233
  %235 = xla_tuple %234
  %v236 = vxor.u32 %v233, 2147483648
  %237 = xla_tuple %v236
  %s238 = scalar_lea.vmem %s1, 464
  %239 = vst [vmem:[%s238] sm:$0xff] %v236
  %s240 = scalar_lea.vmem %s0, 480
  %v241 = vld [vmem:[%s240] sm:$0xff]
  %242 = xla_tuple %v241
  %243 = xla_tuple %242
  %v244 = vxor.u32 %v241, 2147483648
  %245 = xla_tuple %v244
  %s246 = scalar_lea.vmem %s1, 480
  %247 = vst [vmem:[%s246] sm:$0xff] %v244
  %s248 = scalar_lea.vmem %s0, 496
  %v249 = vld [vmem:[%s248] sm:$0xff]
  %250 = xla_tuple %v249
  %251 = xla_tuple %250
  %v252 = vxor.u32 %v249, 2147483648
  %253 = xla_tuple %v252
  %s254 = scalar_lea.vmem %s1, 496
  %255 = vst [vmem:[%s254] sm:$0xff] %v252
  %s256 = scalar_lea.vmem %s0, 8
  %v257 = vld [vmem:[%s256] sm:$0xff]
  %258 = xla_tuple %v257
  %259 = xla_tuple %258
  %v260 = vxor.u32 %v257, 2147483648
  %261 = xla_tuple %v260
  %s262 = scalar_lea.vmem %s1, 8
  %263 = vst [vmem:[%s262] sm:$0xff] %v260
  %s264 = scalar_lea.vmem %s0, 24
  %v265 = vld [vmem:[%s264] sm:$0xff]
  %266 = xla_tuple %v265
  %267 = xla_tuple %266
  %v268 = vxor.u32 %v265, 2147483648
  %269 = xla_tuple %v268
  %s270 = scalar_lea.vmem %s1, 24
  %271 = vst [vmem:[%s270] sm:$0xff] %v268
  %s272 = scalar_lea.vmem %s0, 40
  %v273 = vld [vmem:[%s272] sm:$0xff]
  %274 = xla_tuple %v273
  %275 = xla_tuple %274
  %v276 = vxor.u32 %v273, 2147483648
  %277 = xla_tuple %v276
  %s278 = scalar_lea.vmem %s1, 40
  %279 = vst [vmem:[%s278] sm:$0xff] %v276
  %s280 = scalar_lea.vmem %s0, 56
  %v281 = vld [vmem:[%s280] sm:$0xff]
  %282 = xla_tuple %v281
  %283 = xla_tuple %282
  %v284 = vxor.u32 %v281, 2147483648
  %285 = xla_tuple %v284
  %s286 = scalar_lea.vmem %s1, 56
  %287 = vst [vmem:[%s286] sm:$0xff] %v284
  %s288 = scalar_lea.vmem %s0, 72
  %v289 = vld [vmem:[%s288] sm:$0xff]
  %290 = xla_tuple %v289
  %291 = xla_tuple %290
  %v292 = vxor.u32 %v289, 2147483648
  %293 = xla_tuple %v292
  %s294 = scalar_lea.vmem %s1, 72
  %295 = vst [vmem:[%s294] sm:$0xff] %v292
  %s296 = scalar_lea.vmem %s0, 88
  %v297 = vld [vmem:[%s296] sm:$0xff]
  %298 = xla_tuple %v297
  %299 = xla_tuple %298
  %v300 = vxor.u32 %v297, 2147483648
  %301 = xla_tuple %v300
  %s302 = scalar_lea.vmem %s1, 88
  %303 = vst [vmem:[%s302] sm:$0xff] %v300
  %s304 = scalar_lea.vmem %s0, 104
  %v305 = vld [vmem:[%s304] sm:$0xff]
  %306 = xla_tuple %v305
  %307 = xla_tuple %306
  %v308 = vxor.u32 %v305, 2147483648
  %309 = xla_tuple %v308
  %s310 = scalar_lea.vmem %s1, 104
  %311 = vst [vmem:[%s310] sm:$0xff] %v308
  %s312 = scalar_lea.vmem %s0, 120
  %v313 = vld [vmem:[%s312] sm:$0xff]
  %314 = xla_tuple %v313
  %315 = xla_tuple %314
  %v316 = vxor.u32 %v313, 2147483648
  %317 = xla_tuple %v316
  %s318 = scalar_lea.vmem %s1, 120
  %319 = vst [vmem:[%s318] sm:$0xff] %v316
  %s320 = scalar_lea.vmem %s0, 136
  %v321 = vld [vmem:[%s320] sm:$0xff]
  %322 = xla_tuple %v321
  %323 = xla_tuple %322
  %v324 = vxor.u32 %v321, 2147483648
  %325 = xla_tuple %v324
  %s326 = scalar_lea.vmem %s1, 136
  %327 = vst [vmem:[%s326] sm:$0xff] %v324
  %s328 = scalar_lea.vmem %s0, 152
  %v329 = vld [vmem:[%s328] sm:$0xff]
  %330 = xla_tuple %v329
  %331 = xla_tuple %330
  %v332 = vxor.u32 %v329, 2147483648
  %333 = xla_tuple %v332
  %s334 = scalar_lea.vmem %s1, 152
  %335 = vst [vmem:[%s334] sm:$0xff] %v332
  %s336 = scalar_lea.vmem %s0, 168
  %v337 = vld [vmem:[%s336] sm:$0xff]
  %338 = xla_tuple %v337
  %339 = xla_tuple %338
  %v340 = vxor.u32 %v337, 2147483648
  %341 = xla_tuple %v340
  %s342 = scalar_lea.vmem %s1, 168
  %343 = vst [vmem:[%s342] sm:$0xff] %v340
  %s344 = scalar_lea.vmem %s0, 184
  %v345 = vld [vmem:[%s344] sm:$0xff]
  %346 = xla_tuple %v345
  %347 = xla_tuple %346
  %v348 = vxor.u32 %v345, 2147483648
  %349 = xla_tuple %v348
  %s350 = scalar_lea.vmem %s1, 184
  %351 = vst [vmem:[%s350] sm:$0xff] %v348
  %s352 = scalar_lea.vmem %s0, 200
  %v353 = vld [vmem:[%s352] sm:$0xff]
  %354 = xla_tuple %v353
  %355 = xla_tuple %354
  %v356 = vxor.u32 %v353, 2147483648
  %357 = xla_tuple %v356
  %s358 = scalar_lea.vmem %s1, 200
  %359 = vst [vmem:[%s358] sm:$0xff] %v356
  %s360 = scalar_lea.vmem %s0, 216
  %v361 = vld [vmem:[%s360] sm:$0xff]
  %362 = xla_tuple %v361
  %363 = xla_tuple %362
  %v364 = vxor.u32 %v361, 2147483648
  %365 = xla_tuple %v364
  %s366 = scalar_lea.vmem %s1, 216
  %367 = vst [vmem:[%s366] sm:$0xff] %v364
  %s368 = scalar_lea.vmem %s0, 232
  %v369 = vld [vmem:[%s368] sm:$0xff]
  %370 = xla_tuple %v369
  %371 = xla_tuple %370
  %v372 = vxor.u32 %v369, 2147483648
  %373 = xla_tuple %v372
  %s374 = scalar_lea.vmem %s1, 232
  %375 = vst [vmem:[%s374] sm:$0xff] %v372
  %s376 = scalar_lea.vmem %s0, 248
  %v377 = vld [vmem:[%s376] sm:$0xff]
  %378 = xla_tuple %v377
  %379 = xla_tuple %378
  %v380 = vxor.u32 %v377, 2147483648
  %381 = xla_tuple %v380
  %s382 = scalar_lea.vmem %s1, 248
  %383 = vst [vmem:[%s382] sm:$0xff] %v380
  %s384 = scalar_lea.vmem %s0, 264
  %v385 = vld [vmem:[%s384] sm:$0xff]
  %386 = xla_tuple %v385
  %387 = xla_tuple %386
  %v388 = vxor.u32 %v385, 2147483648
  %389 = xla_tuple %v388
  %s390 = scalar_lea.vmem %s1, 264
  %391 = vst [vmem:[%s390] sm:$0xff] %v388
  %s392 = scalar_lea.vmem %s0, 280
  %v393 = vld [vmem:[%s392] sm:$0xff]
  %394 = xla_tuple %v393
  %395 = xla_tuple %394
  %v396 = vxor.u32 %v393, 2147483648
  %397 = xla_tuple %v396
  %s398 = scalar_lea.vmem %s1, 280
  %399 = vst [vmem:[%s398] sm:$0xff] %v396
  %s400 = scalar_lea.vmem %s0, 296
  %v401 = vld [vmem:[%s400] sm:$0xff]
  %402 = xla_tuple %v401
  %403 = xla_tuple %402
  %v404 = vxor.u32 %v401, 2147483648
  %405 = xla_tuple %v404
  %s406 = scalar_lea.vmem %s1, 296
  %407 = vst [vmem:[%s406] sm:$0xff] %v404
  %s408 = scalar_lea.vmem %s0, 312
  %v409 = vld [vmem:[%s408] sm:$0xff]
  %410 = xla_tuple %v409
  %411 = xla_tuple %410
  %v412 = vxor.u32 %v409, 2147483648
  %413 = xla_tuple %v412
  %s414 = scalar_lea.vmem %s1, 312
  %415 = vst [vmem:[%s414] sm:$0xff] %v412
  %s416 = scalar_lea.vmem %s0, 328
  %v417 = vld [vmem:[%s416] sm:$0xff]
  %418 = xla_tuple %v417
  %419 = xla_tuple %418
  %v420 = vxor.u32 %v417, 2147483648
  %421 = xla_tuple %v420
  %s422 = scalar_lea.vmem %s1, 328
  %423 = vst [vmem:[%s422] sm:$0xff] %v420
  %s424 = scalar_lea.vmem %s0, 344
  %v425 = vld [vmem:[%s424] sm:$0xff]
  %426 = xla_tuple %v425
  %427 = xla_tuple %426
  %v428 = vxor.u32 %v425, 2147483648
  %429 = xla_tuple %v428
  %s430 = scalar_lea.vmem %s1, 344
  %431 = vst [vmem:[%s430] sm:$0xff] %v428
  %s432 = scalar_lea.vmem %s0, 360
  %v433 = vld [vmem:[%s432] sm:$0xff]
  %434 = xla_tuple %v433
  %435 = xla_tuple %434
  %v436 = vxor.u32 %v433, 2147483648
  %437 = xla_tuple %v436
  %s438 = scalar_lea.vmem %s1, 360
  %439 = vst [vmem:[%s438] sm:$0xff] %v436
  %s440 = scalar_lea.vmem %s0, 376
  %v441 = vld [vmem:[%s440] sm:$0xff]
  %442 = xla_tuple %v441
  %443 = xla_tuple %442
  %v444 = vxor.u32 %v441, 2147483648
  %445 = xla_tuple %v444
  %s446 = scalar_lea.vmem %s1, 376
  %447 = vst [vmem:[%s446] sm:$0xff] %v444
  %s448 = scalar_lea.vmem %s0, 392
  %v449 = vld [vmem:[%s448] sm:$0xff]
  %450 = xla_tuple %v449
  %451 = xla_tuple %450
  %v452 = vxor.u32 %v449, 2147483648
  %453 = xla_tuple %v452
  %s454 = scalar_lea.vmem %s1, 392
  %455 = vst [vmem:[%s454] sm:$0xff] %v452
  %s456 = scalar_lea.vmem %s0, 408
  %v457 = vld [vmem:[%s456] sm:$0xff]
  %458 = xla_tuple %v457
  %459 = xla_tuple %458
  %v460 = vxor.u32 %v457, 2147483648
  %461 = xla_tuple %v460
  %s462 = scalar_lea.vmem %s1, 408
  %463 = vst [vmem:[%s462] sm:$0xff] %v460
  %s464 = scalar_lea.vmem %s0, 424
  %v465 = vld [vmem:[%s464] sm:$0xff]
  %466 = xla_tuple %v465
  %467 = xla_tuple %466
  %v468 = vxor.u32 %v465, 2147483648
  %469 = xla_tuple %v468
  %s470 = scalar_lea.vmem %s1, 424
  %471 = vst [vmem:[%s470] sm:$0xff] %v468
  %s472 = scalar_lea.vmem %s0, 440
  %v473 = vld [vmem:[%s472] sm:$0xff]
  %474 = xla_tuple %v473
  %475 = xla_tuple %474
  %v476 = vxor.u32 %v473, 2147483648
  %477 = xla_tuple %v476
  %s478 = scalar_lea.vmem %s1, 440
  %479 = vst [vmem:[%s478] sm:$0xff] %v476
  %s480 = scalar_lea.vmem %s0, 456
  %v481 = vld [vmem:[%s480] sm:$0xff]
  %482 = xla_tuple %v481
  %483 = xla_tuple %482
  %v484 = vxor.u32 %v481, 2147483648
  %485 = xla_tuple %v484
  %s486 = scalar_lea.vmem %s1, 456
  %487 = vst [vmem:[%s486] sm:$0xff] %v484
  %s488 = scalar_lea.vmem %s0, 472
  %v489 = vld [vmem:[%s488] sm:$0xff]
  %490 = xla_tuple %v489
  %491 = xla_tuple %490
  %v492 = vxor.u32 %v489, 2147483648
  %493 = xla_tuple %v492
  %s494 = scalar_lea.vmem %s1, 472
  %495 = vst [vmem:[%s494] sm:$0xff] %v492
  %s496 = scalar_lea.vmem %s0, 488
  %v497 = vld [vmem:[%s496] sm:$0xff]
  %498 = xla_tuple %v497
  %499 = xla_tuple %498
  %v500 = vxor.u32 %v497, 2147483648
  %501 = xla_tuple %v500
  %s502 = scalar_lea.vmem %s1, 488
  %503 = vst [vmem:[%s502] sm:$0xff] %v500
  %s504 = scalar_lea.vmem %s0, 504
  %v505 = vld [vmem:[%s504] sm:$0xff]
  %506 = xla_tuple %v505
  %507 = xla_tuple %506
  %v508 = vxor.u32 %v505, 2147483648
  %509 = xla_tuple %v508
  %s510 = scalar_lea.vmem %s1, 504
  %511 = vst [vmem:[%s510] sm:$0xff] %v508

// kernel: refiner_forward.4
$region0: #{refiner_forward.4}
  #allocation0 [shape = 'u32[]', space=smem, size = 0x4, offset = 0x4, fixed_abs, tag = 'smem constant byte address 0x4 - core index']
  #allocation1 [shape = 'u32[144,128]{1,0:T(1,128)}', space=vmem, size = 0x12000, scoped, tag = 'internal scratch']
  %s0 = inlined_call_operand.vmem [shape: f32[256,35], index: 0, kind: input, shape index: {}]
  %s1 = inlined_call_operand.vmem [shape: bf16[35,288], index: 1, kind: input, shape index: {}]
  %s2 = inlined_call_operand.vmem [shape: f32[1,288], index: 2, kind: input, shape index: {}]
  %s3 = inlined_call_operand.vmem [shape: f32[256,288], index: 3, kind: output, shape index: {}]
  %s4 = sld [smem:[#allocation0]]
  $region45: #{refiner_forward.4} parent=0
    _
  %s6 = ssub.s32 1, %s4
  %s7 = scalar_select 0, %s6, %s4
  loop: start=0, step=1, limit=4
  $region2: #{refiner_forward.4} parent=0 // loop_pre_header
    _
  $region3: #{refiner_forward.4} parent=0 // loop_header
    %s9 = sphi 0, %s13
    %p10 = scmp.ge.s32.totalorder %s9, 4
    %s19 = sphi 0, %s21
    %s22 = sphi 0, %s19
    %s23 = sphi 0, %s22
    %s39 = sphi 0, %s23
    %s43 = sphi 0, %s43
    %s45 = sphi 0, %s43
    %s46 = sphi 0, %s45
    %s60 = sphi 0, %s46
    %s64 = sphi 0, %s64
    %s66 = sphi 0, %s64
    %s67 = sphi 0, %s66
    %s81 = sphi 0, %s67
    %s87 = sphi 0, %s89
    %s90 = sphi 0, %s87
    %s91 = sphi 0, %s90
    %s107 = sphi 0, %s91
  $region4: #{refiner_forward.4} parent=0 // loop_header_branch
    %12 = sbr.rel (%p10) target = $region8
  $region5: #{refiner_forward.4} parent=0 // loop_body
    %s14 = ssub.s32 %s9, 1
    %s15 = ssub.s32 %s9, 2
    %s16 = sadd.s32 %s9, 1
    %s17 = ssub.s32 %s9, %s16
    %p18 = scmp.eq.s32.totalorder %s17, 0
    %s20 = sadd.s32 %s19, 1
    %s21 = scalar_select %p18, %s19, %s20
    %p24 = pneg %p18
    %p25 = scmp.eq.s32.totalorder %s9, 1
    %p26 = por %p24, %p25
    %p27 = scmp.ne.s32.totalorder %s19, %s22
    %p28 = scmp.eq.s32.totalorder %s9, 0
    %p29 = por %p27, %p28
    %p30 = scmp.ne.s32.totalorder %s19, %s22
    %p31 = scmp.eq.s32.totalorder %s14, 1
    %p32 = por %p30, %p31
    %p33 = scmp.ne.s32.totalorder %s22, %s23
    %p34 = scmp.eq.s32.totalorder %s14, 0
    %p35 = por %p33, %p34
    %p36 = scmp.ne.s32.totalorder %s22, %s23
    %p37 = scmp.eq.s32.totalorder %s15, 1
    %p38 = por %p36, %p37
    %p40 = scmp.ne.s32.totalorder %s23, %s39
    %p41 = scmp.eq.s32.totalorder %s15, 0
    %p42 = por %p40, %p41
    %s44 = sadd.s32 %s43, 1
    %p47 = scmp.eq.s32.totalorder %s9, 1
    %p48 = scmp.ne.s32.totalorder %s43, %s45
    %p49 = scmp.eq.s32.totalorder %s9, 0
    %p50 = por %p48, %p49
    %p51 = scmp.ne.s32.totalorder %s43, %s45
    %p52 = scmp.eq.s32.totalorder %s14, 1
    %p53 = por %p51, %p52
    %p54 = scmp.ne.s32.totalorder %s45, %s46
    %p55 = scmp.eq.s32.totalorder %s14, 0
    %p56 = por %p54, %p55
    %p57 = scmp.ne.s32.totalorder %s45, %s46
    %p58 = scmp.eq.s32.totalorder %s15, 1
    %p59 = por %p57, %p58
    %p61 = scmp.ne.s32.totalorder %s46, %s60
    %p62 = scmp.eq.s32.totalorder %s15, 0
    %p63 = por %p61, %p62
    %s65 = sadd.s32 %s64, 1
    %p68 = scmp.eq.s32.totalorder %s9, 1
    %p69 = scmp.ne.s32.totalorder %s64, %s66
    %p70 = scmp.eq.s32.totalorder %s9, 0
    %p71 = por %p69, %p70
    %p72 = scmp.ne.s32.totalorder %s64, %s66
    %p73 = scmp.eq.s32.totalorder %s14, 1
    %p74 = por %p72, %p73
    %p75 = scmp.ne.s32.totalorder %s66, %s67
    %p76 = scmp.eq.s32.totalorder %s14, 0
    %p77 = por %p75, %p76
    %p78 = scmp.ne.s32.totalorder %s66, %s67
    %p79 = scmp.eq.s32.totalorder %s15, 1
    %p80 = por %p78, %p79
    %p82 = scmp.ne.s32.totalorder %s67, %s81
    %p83 = scmp.eq.s32.totalorder %s15, 0
    %p84 = por %p82, %p83
    %s85 = ssub.s32 %s9, %s16
    %p86 = scmp.eq.s32.totalorder %s85, 0
    %s88 = sadd.s32 %s87, 1
    %s89 = scalar_select %p86, %s87, %s88
    %p92 = pneg %p86
    %p93 = scmp.eq.s32.totalorder %s9, 1
    %p94 = por %p92, %p93
    %p95 = scmp.ne.s32.totalorder %s87, %s90
    %p96 = scmp.eq.s32.totalorder %s9, 0
    %p97 = por %p95, %p96
    %p98 = scmp.ne.s32.totalorder %s87, %s90
    %p99 = scmp.eq.s32.totalorder %s14, 1
    %p100 = por %p98, %p99
    %p101 = scmp.ne.s32.totalorder %s90, %s91
    %p102 = scmp.eq.s32.totalorder %s14, 0
    %p103 = por %p101, %p102
    %p104 = scmp.ne.s32.totalorder %s90, %s91
    %p105 = scmp.eq.s32.totalorder %s15, 1
    %p106 = por %p104, %p105
    %p108 = scmp.ne.s32.totalorder %s91, %s107
    %p109 = scmp.eq.s32.totalorder %s15, 0
    %p110 = por %p108, %p109
    %p111 = scmp.le.s32.totalorder 1, %s9
    %p112 = scmp.lt.s32.totalorder %s9, 3
    %p113 = pnand %p111, %p112
    %p114 = pneg %p113
    // Predicated region
    $region9: #{refiner_forward.4} parent=5 // pred_check
      _
    $region10: #{refiner_forward.4} parent=5 // pred_check_branch
      %116 = sbr.rel (%p113) target = $region12
    $region11: #{refiner_forward.4} parent=5 // pred_region
      %s117 = ssub.s32 %s9, 1
      // Predicated region
      $region13: #{refiner_forward.4} parent=11 // pred_check
        %p118 = pneg %p56
      $region14: #{refiner_forward.4} parent=11 // pred_check_branch
        %120 = sbr.rel (%p118) target = $region16
      $region15: #{refiner_forward.4} parent=11 // pred_region
        _
      $region16: #{refiner_forward.4} parent=11 // pred_fallthru
        _
      // Predicated region
      $region17: #{refiner_forward.4} parent=11 // pred_check
        %p121 = pneg %p77
      $region18: #{refiner_forward.4} parent=11 // pred_check_branch
        %123 = sbr.rel (%p121) target = $region20
      $region19: #{refiner_forward.4} parent=11 // pred_region
        _
      $region20: #{refiner_forward.4} parent=11 // pred_fallthru
        _
    $region12: #{refiner_forward.4} parent=5 // pred_fallthru
      _
    %p124 = scmp.lt.s32.totalorder %s9, 2
    // Predicated region
    $region21: #{refiner_forward.4} parent=5 // pred_check
      %p125 = pneg %p124
    $region22: #{refiner_forward.4} parent=5 // pred_check_branch
      %127 = sbr.rel (%p125) target = $region24
    $region23: #{refiner_forward.4} parent=5 // pred_region
      // Predicated region
      $region25: #{refiner_forward.4} parent=23 // pred_check
        %p128 = pneg %p29
      $region26: #{refiner_forward.4} parent=23 // pred_check_branch
        %130 = sbr.rel (%p128) target = $region28
      $region27: #{refiner_forward.4} parent=23 // pred_region
        %s131 = smul.u32 16, %s9
        %p132 = scmp.lt.s32.totalorder %s131, 31
        %s133 = scalar_select %p132, %s131, 31
        %s134 = smul.addr %s133, 8
        %s135 = scalar_lea.vmem %s0, %s134
        %s136 = smul.u32 16, %s9
      $region28: #{refiner_forward.4} parent=23 // pred_fallthru
        _
    $region24: #{refiner_forward.4} parent=5 // pred_fallthru
      _
    %p137 = scmp.le.s32.totalorder 1, %s9
    %p138 = scmp.lt.s32.totalorder %s9, 3
    %p139 = pnand %p137, %p138
    %p140 = pneg %p139
    // Predicated region
    $region29: #{refiner_forward.4} parent=5 // pred_check
      _
    $region30: #{refiner_forward.4} parent=5 // pred_check_branch
      %142 = sbr.rel (%p139) target = $region32
    $region31: #{refiner_forward.4} parent=5 // pred_region
      %s143 = ssub.s32 %s9, 1
      %s144 = smul.u32 16, %s14
      %p145 = scmp.lt.s32.totalorder %s144, 31
      %s146 = scalar_select %p145, %s144, 31
      %s147 = smul.addr %s146, 8
      %s148 = scalar_lea.vmem %s0, %s147
      %p149 = pneg %p35
      %p150 = pneg %p32
      %p151 = pneg %p56
      %p152 = pneg %p53
      %p153 = pneg %p77
      %p154 = pneg %p74
      %p155 = pneg %p103
      %p156 = pneg %p100
      %s157 = smul.u32 16, %s14
      %p158 = scmp.lt.s32.totalorder %s157, 31
      %s159 = scalar_select %p158, %s157, 31
      %s160 = smul.addr %s159, 3
      %s161 = smul.addr %s160, 8
      %s162 = scalar_lea.vmem %s3, %s161
      %s163 = smul.u32 16, %s14
      %p164 = scmp.lt.s32.totalorder %s163, 31
      %s165 = scalar_select %p164, %s163, 31
      %s166 = smul.addr %s165, 8
      %s167 = scalar_lea.vmem %s0, %s166
      %s168 = smul.u32 16, %s14
      %s169 = smul.u32 16, %s14
      %p170 = scmp.lt.s32.totalorder %s169, 31
      %s171 = scalar_select %p170, %s169, 31
      %s172 = smul.addr %s171, 3
      %s173 = smul.addr %s172, 8
      %s174 = scalar_lea.vmem %s3, %s173
      %s175 = smul.u32 16, %s14
      %v177 = vld [vmem:[%s167] sm:$0xff]
      %v178 = vld [vmem:[%s167 + $0x8] sm:$0xff]
      %v179 = vld [vmem:[%s167 + $0x10] sm:$0xff]
      %v180 = vld [vmem:[%s167 + $0x18] sm:$0xff]
      %v181 = vld [vmem:[%s167 + $0x20] sm:$0xff]
      %v182 = vld [vmem:[%s167 + $0x28] sm:$0xff]
      %v183 = vld [vmem:[%s167 + $0x30] sm:$0xff]
      %v184 = vld [vmem:[%s167 + $0x38] sm:$0xff]
      %v185 = vld [vmem:[%s167 + $0x40] sm:$0xff]
      %v186 = vld [vmem:[%s167 + $0x48] sm:$0xff]
      %v187 = vld [vmem:[%s167 + $0x50] sm:$0xff]
      %v188 = vld [vmem:[%s167 + $0x58] sm:$0xff]
      %v189 = vld [vmem:[%s167 + $0x60] sm:$0xff]
      %v190 = vld [vmem:[%s167 + $0x68] sm:$0xff]
      %v191 = vld [vmem:[%s167 + $0x70] sm:$0xff]
      %v192 = vld [vmem:[%s167 + $0x78] sm:$0xff]
      %v193 = vpack.c.bf16 %v178, %v177
      %v194 = vpack.c.bf16 %v180, %v179
      %v195 = vpack.c.bf16 %v182, %v181
      %v196 = vpack.c.bf16 %v184, %v183
      %v197 = vpack.c.bf16 %v186, %v185
      %v198 = vpack.c.bf16 %v188, %v187
      %v199 = vpack.c.bf16 %v190, %v189
      %v200 = vpack.c.bf16 %v192, %v191
      %v201 = vld [vmem:[%s1] sm:$0xff]
      %v202 = vld [vmem:[%s1 + $0x8] sm:$0xf]
      %v203 = vld [vmem:[%s1 + $0xc] sm:$0xff]
      %v204 = vld [vmem:[%s1 + $0x14] sm:$0xf]
      %v205 = vld [vmem:[%s1 + $0x18] sm:$0xff]
      %v206 = vld [vmem:[%s1 + $0x20] sm:$0xf]
      %v207 = vld [vmem:[%s1 + $0x24] sm:$0xff]
      %v208 = vld [vmem:[%s1 + $0x2c] sm:$0xf]
      %v209 = vld [vmem:[%s1 + $0x30] sm:$0x33]
      %v210 = vld [vmem:[%s1 + $0x38] sm:$0x3]
      %v211 = vld [vmem:[%s2] sm:$0x7]
      %v213 = vlaneseq
      %v214 = vshrl.u32 %v213, 7
      %v215 = vsub.s32 0, %v214
      %v216 = vrot.slane %v211, %v215
      %v217 = vlaneseq
      %v218 = vshrl.u32 %v217, 7
      %v219 = vsub.s32 1, %v218
      %v220 = vrot.slane %v211, %v219
      %v221 = vlaneseq
      %v222 = vshrl.u32 %v221, 7
      %v223 = vsub.s32 2, %v222
      %v224 = vrot.slane %v211, %v223
      %v238 = vunpack.c.l.b16 %v201
      %v239 = vunpack.c.h.b16 %v201
      %v240 = vunpack.c.l.b16 %v202
      %v241 = vunpack.c.l.b16 %v203
      %v242 = vunpack.c.h.b16 %v203
      %v243 = vunpack.c.l.b16 %v204
      %v244 = vunpack.c.l.b16 %v205
      %v245 = vunpack.c.h.b16 %v205
      %v246 = vunpack.c.l.b16 %v206
      %v247 = vunpack.c.l.b16 %v207
      %v248 = vunpack.c.h.b16 %v207
      %v249 = vunpack.c.l.b16 %v208
      %v250 = vunpack.c.l.b16 %v209
      %v251 = vunpack.c.h.b16 %v209
      %v252 = vunpack.c.l.b16 %v210
      %v253 = vpack.c.b16 %v241, %v238
      %v254 = vpack.c.b16 %v242, %v239
      %v255 = vpack.c.b16 %v243, %v240
      %v256 = vpack.c.b16 %v247, %v244
      %v257 = vpack.c.b16 %v248, %v245
      %v258 = vpack.c.b16 %v249, %v246
      %v259 = vpack.c.b16 %v250, %v250
      %v260 = vpack.c.b16 %v251, %v251
      %v261 = vpack.c.b16 %v252, %v252
      %vm268 = vcmask 285696
      %v270 = vsel %vm268, %v193, 0
      %v273 = vsel %vm268, %v194, 0
      %v276 = vsel %vm268, %v195, 0
      %v279 = vsel %vm268, %v196, 0
      %v282 = vsel %vm268, %v197, 0
      %v285 = vsel %vm268, %v198, 0
      %v288 = vsel %vm268, %v199, 0
      %v291 = vsel %vm268, %v200, 0
      %vm293 = vcmask 1040384
      %vm294 = vcmask 1041408
      %v295 = vsel %vm293, 4294967295, 65535
      %v296 = vsel %vm294, %v295, 0
      %v298 = vand.u32 %v259, %v296
      %v301 = vand.u32 %v260, %v296
      %v304 = vand.u32 %v261, %v296
      %306 = vmatprep.subr.bf16.mxu0 %v254
      %307 = vmatpush1.bf16.msra.mxu0 %v253
      %308 = vmatprep.subr.bf16.mxu0 %v257
      %309 = vmatpush1.bf16.msra.mxu0 %v256
      %310 = vmatprep.subr.bf16.mxu0 %v301
      %311 = vmatpush1.bf16.msra.mxu0 %v298
      %312 = vmatprep.subr.bf16.mxu0 0
      %313 = vmatpush1.bf16.msra.mxu0 0
      %314 = vmatprep.subr.bf16.mxu0 0
      %315 = vmatpush1.bf16.msra.mxu0 0
      %316 = vmatprep.subr.bf16.mxu0 0
      %317 = vmatpush1.bf16.msra.mxu0 0
      %318 = vmatprep.subr.bf16.mxu0 0
      %319 = vmatpush1.bf16.msra.mxu0 0
      %320 = vmatprep.subr.bf16.mxu0 0
      %321 = vmatpush1.bf16.msra.mxu0 0
      %322 = vmatprep.subr.bf16.mxu0 0
      %323 = vmatpush1.bf16.msra.mxu0 0
      %324 = vmatprep.subr.bf16.mxu0 0
      %325 = vmatpush1.bf16.msra.mxu0 0
      %326 = vmatprep.subr.bf16.mxu0 0
      %327 = vmatpush1.bf16.msra.mxu0 0
      %328 = vmatprep.subr.bf16.mxu0 0
      %329 = vmatpush1.bf16.msra.mxu0 0
      %330 = vmatprep.subr.bf16.mxu0 0
      %331 = vmatpush1.bf16.msra.mxu0 0
      %332 = vmatprep.subr.bf16.mxu0 0
      %333 = vmatpush1.bf16.msra.mxu0 0
      %334 = vmatprep.subr.bf16.mxu0 0
      %335 = vmatpush1.bf16.msra.mxu0 0
      %336 = vmatprep.subr.bf16.mxu0 0
      %337 = vmatpush1.bf16.msra.mxu0 0
      %338 = vmatprep.mubr.bf16.mxu0 0
      %339 = vmatmul.mubr.bf16.gmra.mrb[0].mxu0 %v270
      %v340 = vpop.f32.mrb[0].mxu0
      %v341 = vadd.f32 %v216, %v340
      %v342 = vpop.f32.mrb[0].mxu0
      %v343 = vadd.f32 %v220, %v342
      %v344 = vpop.f32.mrb[0].mxu0
      %v345 = vadd.f32 %v216, %v344
      %v346 = vpop.f32.mrb[0].mxu0
      %v347 = vadd.f32 %v220, %v346
      %348 = vmatprep.mubr.bf16.mxu0 0
      %349 = vmatmul.mubr.bf16.gmra.mrb[0].mxu0 %v273
      %v350 = vpop.f32.mrb[0].mxu0
      %v351 = vadd.f32 %v216, %v350
      %v352 = vpop.f32.mrb[0].mxu0
      %v353 = vadd.f32 %v220, %v352
      %v354 = vpop.f32.mrb[0].mxu0
      %v355 = vadd.f32 %v216, %v354
      %v356 = vpop.f32.mrb[0].mxu0
      %v357 = vadd.f32 %v220, %v356
      %358 = vmatprep.mubr.bf16.mxu0 0
      %359 = vmatmul.mubr.bf16.gmra.mrb[0].mxu0 %v276
      %v360 = vpop.f32.mrb[0].mxu0
      %v361 = vadd.f32 %v216, %v360
      %v362 = vpop.f32.mrb[0].mxu0
      %v363 = vadd.f32 %v220, %v362
      %v364 = vpop.f32.mrb[0].mxu0
      %v365 = vadd.f32 %v216, %v364
      %v366 = vpop.f32.mrb[0].mxu0
      %v367 = vadd.f32 %v220, %v366
      %368 = vmatprep.mubr.bf16.mxu0 0
      %369 = vmatmul.mubr.bf16.gmra.mrb[0].mxu0 %v279
      %v370 = vpop.f32.mrb[0].mxu0
      %v371 = vadd.f32 %v216, %v370
      %v372 = vpop.f32.mrb[0].mxu0
      %v373 = vadd.f32 %v220, %v372
      %v374 = vpop.f32.mrb[0].mxu0
      %v375 = vadd.f32 %v216, %v374
      %v376 = vpop.f32.mrb[0].mxu0
      %v377 = vadd.f32 %v220, %v376
      %378 = vmatprep.mubr.bf16.mxu0 0
      %379 = vmatmul.mubr.bf16.gmra.mrb[0].mxu0 %v282
      %v380 = vpop.f32.mrb[0].mxu0
      %v381 = vadd.f32 %v216, %v380
      %v382 = vpop.f32.mrb[0].mxu0
      %v383 = vadd.f32 %v220, %v382
      %v384 = vpop.f32.mrb[0].mxu0
      %v385 = vadd.f32 %v216, %v384
      %v386 = vpop.f32.mrb[0].mxu0
      %v387 = vadd.f32 %v220, %v386
      %388 = vmatprep.mubr.bf16.mxu0 0
      %389 = vmatmul.mubr.bf16.gmra.mrb[0].mxu0 %v285
      %v390 = vpop.f32.mrb[0].mxu0
      %v391 = vadd.f32 %v216, %v390
      %v392 = vpop.f32.mrb[0].mxu0
      %v393 = vadd.f32 %v220, %v392
      %v394 = vpop.f32.mrb[0].mxu0
      %v395 = vadd.f32 %v216, %v394
      %v396 = vpop.f32.mrb[0].mxu0
      %v397 = vadd.f32 %v220, %v396
      %398 = vmatprep.mubr.bf16.mxu0 0
      %399 = vmatmul.mubr.bf16.gmra.mrb[0].mxu0 %v288
      %v400 = vpop.f32.mrb[0].mxu0
      %v401 = vadd.f32 %v216, %v400
      %v402 = vpop.f32.mrb[0].mxu0
      %v403 = vadd.f32 %v220, %v402
      %v404 = vpop.f32.mrb[0].mxu0
      %v405 = vadd.f32 %v216, %v404
      %v406 = vpop.f32.mrb[0].mxu0
      %v407 = vadd.f32 %v220, %v406
      %408 = vmatprep.mubr.bf16.mxu0 0
      %409 = vmatmul.mubr.bf16.gmra.mrb[0].mxu0 %v291
      %v410 = vpop.f32.mrb[0].mxu0
      %v411 = vadd.f32 %v216, %v410
      %v412 = vpop.f32.mrb[0].mxu0
      %v413 = vadd.f32 %v220, %v412
      %v414 = vpop.f32.mrb[0].mxu0
      %v415 = vadd.f32 %v216, %v414
      %v416 = vpop.f32.mrb[0].mxu0
      %v417 = vadd.f32 %v220, %v416
      %418 = vdwg.mxu0
      %419 = vmatprep.subr.bf16.mxu0 0
      %420 = vmatpush1.bf16.msra.mxu0 %v255
      %421 = vmatprep.subr.bf16.mxu0 0
      %422 = vmatpush1.bf16.msra.mxu0 %v258
      %423 = vmatprep.subr.bf16.mxu0 0
      %424 = vmatpush1.bf16.msra.mxu0 %v304
      %425 = vmatprep.subr.bf16.mxu0 0
      %426 = vmatpush1.bf16.msra.mxu0 0
      %427 = vmatprep.subr.bf16.mxu0 0
      %428 = vmatpush1.bf16.msra.mxu0 0
      %429 = vmatprep.subr.bf16.mxu0 0
      %430 = vmatpush1.bf16.msra.mxu0 0
      %431 = vmatprep.subr.bf16.mxu0 0
      %432 = vmatpush1.bf16.msra.mxu0 0
      %433 = vmatprep.subr.bf16.mxu0 0
      %434 = vmatpush1.bf16.msra.mxu0 0
      %435 = vmatprep.subr.bf16.mxu0 0
      %436 = vmatpush1.bf16.msra.mxu0 0
      %437 = vmatprep.subr.bf16.mxu0 0
      %438 = vmatpush1.bf16.msra.mxu0 0
      %439 = vmatprep.subr.bf16.mxu0 0
      %440 = vmatpush1.bf16.msra.mxu0 0
      %441 = vmatprep.subr.bf16.mxu0 0
      %442 = vmatpush1.bf16.msra.mxu0 0
      %443 = vmatprep.subr.bf16.mxu0 0
      %444 = vmatpush1.bf16.msra.mxu0 0
      %445 = vmatprep.subr.bf16.mxu0 0
      %446 = vmatpush1.bf16.msra.mxu0 0
      %447 = vmatprep.subr.bf16.mxu0 0
      %448 = vmatpush1.bf16.msra.mxu0 0
      %449 = vmatprep.subr.bf16.mxu0 0
      %450 = vmatpush1.bf16.msra.mxu0 0
      %451 = vmatprep.mubr.bf16.mxu0 0
      %452 = vmatmul.mubr.bf16.gmra.mrb[0].mxu0 %v270
      %v453 = vpop.f32.mrb[0].mxu0
      %v454 = vadd.f32 %v224, %v453
      %v455 = vpop.f32.mrb[0].mxu0
      %v456 = vpop.f32.mrb[0].mxu0
      %v457 = vadd.f32 %v224, %v456
      %v458 = vpop.f32.mrb[0].mxu0
      %459 = vmatprep.mubr.bf16.mxu0 0
      %460 = vmatmul.mubr.bf16.gmra.mrb[0].mxu0 %v273
      %v461 = vpop.f32.mrb[0].mxu0
      %v462 = vadd.f32 %v224, %v461
      %v463 = vpop.f32.mrb[0].mxu0
      %v464 = vpop.f32.mrb[0].mxu0
      %v465 = vadd.f32 %v224, %v464
      %v466 = vpop.f32.mrb[0].mxu0
      %467 = vmatprep.mubr.bf16.mxu0 0
      %468 = vmatmul.mubr.bf16.gmra.mrb[0].mxu0 %v276
      %v469 = vpop.f32.mrb[0].mxu0
      %v470 = vadd.f32 %v224, %v469
      %v471 = vpop.f32.mrb[0].mxu0
      %v472 = vpop.f32.mrb[0].mxu0
      %v473 = vadd.f32 %v224, %v472
      %v474 = vpop.f32.mrb[0].mxu0
      %475 = vmatprep.mubr.bf16.mxu0 0
      %476 = vmatmul.mubr.bf16.gmra.mrb[0].mxu0 %v279
      %v477 = vpop.f32.mrb[0].mxu0
      %v478 = vadd.f32 %v224, %v477
      %v479 = vpop.f32.mrb[0].mxu0
      %v480 = vpop.f32.mrb[0].mxu0
      %v481 = vadd.f32 %v224, %v480
      %v482 = vpop.f32.mrb[0].mxu0
      %483 = vmatprep.mubr.bf16.mxu0 0
      %484 = vmatmul.mubr.bf16.gmra.mrb[0].mxu0 %v282
      %v485 = vpop.f32.mrb[0].mxu0
      %v486 = vadd.f32 %v224, %v485
      %v487 = vpop.f32.mrb[0].mxu0
      %v488 = vpop.f32.mrb[0].mxu0
      %v489 = vadd.f32 %v224, %v488
      %v490 = vpop.f32.mrb[0].mxu0
      %491 = vmatprep.mubr.bf16.mxu0 0
      %492 = vmatmul.mubr.bf16.gmra.mrb[0].mxu0 %v285
      %v493 = vpop.f32.mrb[0].mxu0
      %v494 = vadd.f32 %v224, %v493
      %v495 = vpop.f32.mrb[0].mxu0
      %v496 = vpop.f32.mrb[0].mxu0
      %v497 = vadd.f32 %v224, %v496
      %v498 = vpop.f32.mrb[0].mxu0
      %499 = vmatprep.mubr.bf16.mxu0 0
      %500 = vmatmul.mubr.bf16.gmra.mrb[0].mxu0 %v288
      %v501 = vpop.f32.mrb[0].mxu0
      %v502 = vadd.f32 %v224, %v501
      %v503 = vpop.f32.mrb[0].mxu0
      %v504 = vpop.f32.mrb[0].mxu0
      %v505 = vadd.f32 %v224, %v504
      %v506 = vpop.f32.mrb[0].mxu0
      %507 = vmatprep.mubr.bf16.mxu0 0
      %508 = vmatmul.mubr.bf16.gmra.mrb[0].mxu0 %v291
      %v509 = vpop.f32.mrb[0].mxu0
      %v510 = vadd.f32 %v224, %v509
      %v511 = vpop.f32.mrb[0].mxu0
      %v512 = vpop.f32.mrb[0].mxu0
      %v513 = vadd.f32 %v224, %v512
      %v514 = vpop.f32.mrb[0].mxu0
      %515 = vdwg.mxu0
      %516 = vst [vmem:[%s174] sm:$0xff] %v341
      %517 = vst [vmem:[%s174 + $0x8] sm:$0xff] %v343
      %vm518 = vcmask 261120
      %519 = vst.msk [vmem:[%s174 + $0x10] sm:$0xff] %vm518, %v454
      %520 = vst [vmem:[%s174 + $0x18] sm:$0xff] %v345
      %521 = vst [vmem:[%s174 + $0x20] sm:$0xff] %v347
      %522 = vst.msk [vmem:[%s174 + $0x28] sm:$0xff] %vm518, %v457
      %523 = vst [vmem:[%s174 + $0x30] sm:$0xff] %v351
      %524 = vst [vmem:[%s174 + $0x38] sm:$0xff] %v353
      %525 = vst.msk [vmem:[%s174 + $0x40] sm:$0xff] %vm518, %v462
      %526 = vst [vmem:[%s174 + $0x48] sm:$0xff] %v355
      %527 = vst [vmem:[%s174 + $0x50] sm:$0xff] %v357
      %528 = vst.msk [vmem:[%s174 + $0x58] sm:$0xff] %vm518, %v465
      %529 = vst [vmem:[%s174 + $0x60] sm:$0xff] %v361
      %530 = vst [vmem:[%s174 + $0x68] sm:$0xff] %v363
      %531 = vst.msk [vmem:[%s174 + $0x70] sm:$0xff] %vm518, %v470
      %532 = vst [vmem:[%s174 + $0x78] sm:$0xff] %v365
      %533 = vst [vmem:[%s174 + $0x80] sm:$0xff] %v367
      %534 = vst.msk [vmem:[%s174 + $0x88] sm:$0xff] %vm518, %v473
      %535 = vst [vmem:[%s174 + $0x90] sm:$0xff] %v371
      %536 = vst [vmem:[%s174 + $0x98] sm:$0xff] %v373
      %537 = vst.msk [vmem:[%s174 + $0xa0] sm:$0xff] %vm518, %v478
      %538 = vst [vmem:[%s174 + $0xa8] sm:$0xff] %v375
      %539 = vst [vmem:[%s174 + $0xb0] sm:$0xff] %v377
      %540 = vst.msk [vmem:[%s174 + $0xb8] sm:$0xff] %vm518, %v481
      %541 = vst [vmem:[%s174 + $0xc0] sm:$0xff] %v381
      %542 = vst [vmem:[%s174 + $0xc8] sm:$0xff] %v383
      %543 = vst.msk [vmem:[%s174 + $0xd0] sm:$0xff] %vm518, %v486
      %544 = vst [vmem:[%s174 + $0xd8] sm:$0xff] %v385
      %545 = vst [vmem:[%s174 + $0xe0] sm:$0xff] %v387
      %546 = vst.msk [vmem:[%s174 + $0xe8] sm:$0xff] %vm518, %v489
      %547 = vst [vmem:[%s174 + $0xf0] sm:$0xff] %v391
      %548 = vst [vmem:[%s174 + $0xf8] sm:$0xff] %v393
      %549 = vst.msk [vmem:[%s174 + $0x100] sm:$0xff] %vm518, %v494
      %550 = vst [vmem:[%s174 + $0x108] sm:$0xff] %v395
      %551 = vst [vmem:[%s174 + $0x110] sm:$0xff] %v397
      %552 = vst.msk [vmem:[%s174 + $0x118] sm:$0xff] %vm518, %v497
      %553 = vst [vmem:[%s174 + $0x120] sm:$0xff] %v401
      %554 = vst [vmem:[%s174 + $0x128] sm:$0xff] %v403
      %555 = vst.msk [vmem:[%s174 + $0x130] sm:$0xff] %vm518, %v502
      %556 = vst [vmem:[%s174 + $0x138] sm:$0xff] %v405
      %557 = vst [vmem:[%s174 + $0x140] sm:$0xff] %v407
      %558 = vst.msk [vmem:[%s174 + $0x148] sm:$0xff] %vm518, %v505
      %559 = vst [vmem:[%s174 + $0x150] sm:$0xff] %v411
      %560 = vst [vmem:[%s174 + $0x158] sm:$0xff] %v413
      %561 = vst.msk [vmem:[%s174 + $0x160] sm:$0xff] %vm518, %v510
      %562 = vst [vmem:[%s174 + $0x168] sm:$0xff] %v415
      %563 = vst [vmem:[%s174 + $0x170] sm:$0xff] %v417
      %564 = vst.msk [vmem:[%s174 + $0x178] sm:$0xff] %vm518, %v513
      %s565 = smul.u32 16, %s14
      %p566 = scmp.lt.s32.totalorder %s565, 31
      %s567 = scalar_select %p566, %s565, 31
      %s568 = smul.addr %s567, 3
      %s569 = smul.addr %s568, 8
      %s570 = scalar_lea.vmem %s3, %s569
      // Predicated region
      $region33: #{refiner_forward.4} parent=31 // pred_check
        %p571 = pneg %p100
      $region34: #{refiner_forward.4} parent=31 // pred_check_branch
        %573 = sbr.rel (%p571) target = $region36
      $region35: #{refiner_forward.4} parent=31 // pred_region
        %s574 = smul.u32 16, %s14
      $region36: #{refiner_forward.4} parent=31 // pred_fallthru
        _
    $region32: #{refiner_forward.4} parent=5 // pred_fallthru
      _
    %p575 = scmp.le.s32.totalorder 2, %s9
    // Predicated region
    $region37: #{refiner_forward.4} parent=5 // pred_check
      %p576 = pneg %p575
    $region38: #{refiner_forward.4} parent=5 // pred_check_branch
      %578 = sbr.rel (%p576) target = $region40
    $region39: #{refiner_forward.4} parent=5 // pred_region
      %s579 = ssub.s32 %s9, 2
      // Predicated region
      $region41: #{refiner_forward.4} parent=39 // pred_check
        %p580 = pneg %p106
      $region42: #{refiner_forward.4} parent=39 // pred_check_branch
        %582 = sbr.rel (%p580) target = $region44
      $region43: #{refiner_forward.4} parent=39 // pred_region
        %s583 = smul.u32 16, %s15
        %p584 = scmp.lt.s32.totalorder %s583, 31
        %s585 = scalar_select %p584, %s583, 31
        %s586 = smul.addr %s585, 3
        %s587 = smul.addr %s586, 8
        %s588 = scalar_lea.vmem %s3, %s587
      $region44: #{refiner_forward.4} parent=39 // pred_fallthru
        _
    $region40: #{refiner_forward.4} parent=5 // pred_fallthru
      _
  $region6: #{refiner_forward.4} parent=0 // loop_footer
    %s13 = sadd.s32 1, %s9
  $region7: #{refiner_forward.4} parent=0 // loop_footer_branch
    %8 = sbr.rel target = $region3
  $region8: #{refiner_forward.4} parent=0 // loop_exit
    _

// kernel: refiner_forward.3
$region0: #{refiner_forward.3}
  #allocation0 [shape = 'u32[]', space=smem, size = 0x4, offset = 0x4, fixed_abs, tag = 'smem constant byte address 0x4 - core index']
  #allocation1 [shape = 'u32[144,128]{1,0:T(1,128)}', space=vmem, size = 0x12000, scoped, tag = 'internal scratch']
  %s0 = inlined_call_operand.vmem [shape: f32[256,32], index: 0, kind: input, shape index: {}, may-alias: {0,1}]
  %s1 = inlined_call_operand.vmem [shape: f32[256,32], index: 1, kind: input, shape index: {}, may-alias: {0,1}]
  %s2 = inlined_call_operand.vmem [shape: f32[256,256], index: 2, kind: output, shape index: {}]
  %s3 = sld [smem:[#allocation0]]
  $region41: #{refiner_forward.3} parent=0
    _
  %s5 = ssub.s32 1, %s3
  %s6 = scalar_select 0, %s5, %s3
  loop: start=0, step=1, limit=4
  $region2: #{refiner_forward.3} parent=0 // loop_pre_header
    _
  $region3: #{refiner_forward.3} parent=0 // loop_header
    %s8 = sphi 0, %s12
    %p9 = scmp.ge.s32.totalorder %s8, 4
    %s15 = sphi 0, %s27
    %s16 = sphi 0, %s23
    %s17 = sphi 0, %s15
    %s18 = sphi 0, %s16
    %s19 = sphi 0, %s17
    %s20 = sphi 0, %s18
    %s30 = sphi 0, %s32
    %s33 = sphi 0, %s30
    %s34 = sphi 0, %s33
    %s50 = sphi 0, %s34
    %s56 = sphi 0, %s58
    %s59 = sphi 0, %s56
    %s60 = sphi 0, %s59
    %s76 = sphi 0, %s60
    %s84 = sphi 0, %s86
    %s87 = sphi 0, %s84
    %s88 = sphi 0, %s87
    %s104 = sphi 0, %s88
  $region4: #{refiner_forward.3} parent=0 // loop_header_branch
    %11 = sbr.rel (%p9) target = $region8
  $region5: #{refiner_forward.3} parent=0 // loop_body
    %s13 = ssub.s32 %s8, 1
    %s14 = ssub.s32 %s8, 2
    %s21 = sadd.s32 1, %s16
    %p22 = scmp.ge.s32.totalorder %s21, 1
    %s23 = scalar_select %p22, 0, %s21
    %s24 = sadd.s32 1, %s15
    %s25 = scalar_select %p22, %s24, %s15
    %p26 = scmp.ge.s32.totalorder %s25, 2
    %s27 = scalar_select %p26, 0, %s25
    %s28 = ssub.s32 %s15, %s27
    %p29 = scmp.eq.s32.totalorder %s28, 0
    %s31 = sadd.s32 %s30, 1
    %s32 = scalar_select %p29, %s30, %s31
    %p35 = pneg %p29
    %p36 = scmp.eq.s32.totalorder %s8, 1
    %p37 = por %p35, %p36
    %p38 = scmp.ne.s32.totalorder %s30, %s33
    %p39 = scmp.eq.s32.totalorder %s8, 0
    %p40 = por %p38, %p39
    %p41 = scmp.ne.s32.totalorder %s30, %s33
    %p42 = scmp.eq.s32.totalorder %s13, 1
    %p43 = por %p41, %p42
    %p44 = scmp.ne.s32.totalorder %s33, %s34
    %p45 = scmp.eq.s32.totalorder %s13, 0
    %p46 = por %p44, %p45
    %p47 = scmp.ne.s32.totalorder %s33, %s34
    %p48 = scmp.eq.s32.totalorder %s14, 1
    %p49 = por %p47, %p48
    %p51 = scmp.ne.s32.totalorder %s34, %s50
    %p52 = scmp.eq.s32.totalorder %s14, 0
    %p53 = por %p51, %p52
    %s54 = ssub.s32 %s16, %s23
    %p55 = scmp.eq.s32.totalorder %s54, 0
    %s57 = sadd.s32 %s56, 1
    %s58 = scalar_select %p55, %s56, %s57
    %p61 = pneg %p55
    %p62 = scmp.eq.s32.totalorder %s8, 1
    %p63 = por %p61, %p62
    %p64 = scmp.ne.s32.totalorder %s56, %s59
    %p65 = scmp.eq.s32.totalorder %s8, 0
    %p66 = por %p64, %p65
    %p67 = scmp.ne.s32.totalorder %s56, %s59
    %p68 = scmp.eq.s32.totalorder %s13, 1
    %p69 = por %p67, %p68
    %p70 = scmp.ne.s32.totalorder %s59, %s60
    %p71 = scmp.eq.s32.totalorder %s13, 0
    %p72 = por %p70, %p71
    %p73 = scmp.ne.s32.totalorder %s59, %s60
    %p74 = scmp.eq.s32.totalorder %s14, 1
    %p75 = por %p73, %p74
    %p77 = scmp.ne.s32.totalorder %s60, %s76
    %p78 = scmp.eq.s32.totalorder %s14, 0
    %p79 = por %p77, %p78
    %s80 = ssub.s32 %s15, %s27
    %s81 = ssub.s32 %s16, %s23
    %s82 = sor.u32 %s80, %s81
    %p83 = scmp.eq.s32.totalorder %s82, 0
    %s85 = sadd.s32 %s84, 1
    %s86 = scalar_select %p83, %s84, %s85
    %p89 = pneg %p83
    %p90 = scmp.eq.s32.totalorder %s8, 1
    %p91 = por %p89, %p90
    %p92 = scmp.ne.s32.totalorder %s84, %s87
    %p93 = scmp.eq.s32.totalorder %s8, 0
    %p94 = por %p92, %p93
    %p95 = scmp.ne.s32.totalorder %s84, %s87
    %p96 = scmp.eq.s32.totalorder %s13, 1
    %p97 = por %p95, %p96
    %p98 = scmp.ne.s32.totalorder %s87, %s88
    %p99 = scmp.eq.s32.totalorder %s13, 0
    %p100 = por %p98, %p99
    %p101 = scmp.ne.s32.totalorder %s87, %s88
    %p102 = scmp.eq.s32.totalorder %s14, 1
    %p103 = por %p101, %p102
    %p105 = scmp.ne.s32.totalorder %s88, %s104
    %p106 = scmp.eq.s32.totalorder %s14, 0
    %p107 = por %p105, %p106
    %p108 = scmp.le.s32.totalorder 1, %s8
    %p109 = scmp.lt.s32.totalorder %s8, 3
    %p110 = pnand %p108, %p109
    %p111 = pneg %p110
    // Predicated region
    $region9: #{refiner_forward.3} parent=5 // pred_check
      _
    $region10: #{refiner_forward.3} parent=5 // pred_check_branch
      %113 = sbr.rel (%p110) target = $region12
    $region11: #{refiner_forward.3} parent=5 // pred_region
      %s114 = ssub.s32 %s8, 1
      // Predicated region
      $region13: #{refiner_forward.3} parent=11 // pred_check
        %p115 = pneg %p72
      $region14: #{refiner_forward.3} parent=11 // pred_check_branch
        %117 = sbr.rel (%p115) target = $region16
      $region15: #{refiner_forward.3} parent=11 // pred_region
        %s118 = smul.u32 32, %s18
        %p119 = scmp.lt.s32.totalorder %s118, 31
        %s120 = scalar_select %p119, %s118, 31
        %s121 = smul.addr %s120, 8
        %s122 = scalar_lea.vmem %s1, %s121
        %s123 = smul.u32 32, %s18
      $region16: #{refiner_forward.3} parent=11 // pred_fallthru
        _
    $region12: #{refiner_forward.3} parent=5 // pred_fallthru
      _
    %p124 = scmp.lt.s32.totalorder %s8, 2
    // Predicated region
    $region17: #{refiner_forward.3} parent=5 // pred_check
      %p125 = pneg %p124
    $region18: #{refiner_forward.3} parent=5 // pred_check_branch
      %127 = sbr.rel (%p125) target = $region20
    $region19: #{refiner_forward.3} parent=5 // pred_region
      // Predicated region
      $region21: #{refiner_forward.3} parent=19 // pred_check
        %p128 = pneg %p40
      $region22: #{refiner_forward.3} parent=19 // pred_check_branch
        %130 = sbr.rel (%p128) target = $region24
      $region23: #{refiner_forward.3} parent=19 // pred_region
        %s131 = smul.u32 16, %s15
        %p132 = scmp.lt.s32.totalorder %s131, 31
        %s133 = scalar_select %p132, %s131, 31
        %s134 = smul.addr %s133, 8
        %s135 = scalar_lea.vmem %s0, %s134
        %s136 = smul.u32 16, %s15
      $region24: #{refiner_forward.3} parent=19 // pred_fallthru
        _
    $region20: #{refiner_forward.3} parent=5 // pred_fallthru
      _
    %p137 = scmp.le.s32.totalorder 1, %s8
    %p138 = scmp.lt.s32.totalorder %s8, 3
    %p139 = pnand %p137, %p138
    %p140 = pneg %p139
    // Predicated region
    $region25: #{refiner_forward.3} parent=5 // pred_check
      _
    $region26: #{refiner_forward.3} parent=5 // pred_check_branch
      %142 = sbr.rel (%p139) target = $region28
    $region27: #{refiner_forward.3} parent=5 // pred_region
      %s143 = ssub.s32 %s8, 1
      %s144 = smul.u32 16, %s17
      %p145 = scmp.lt.s32.totalorder %s144, 31
      %s146 = scalar_select %p145, %s144, 31
      %s147 = smul.addr %s146, 8
      %s148 = scalar_lea.vmem %s0, %s147
      %p149 = pneg %p46
      %p150 = pneg %p43
      %s151 = smul.u32 32, %s18
      %p152 = scmp.lt.s32.totalorder %s151, 31
      %s153 = scalar_select %p152, %s151, 31
      %s154 = smul.addr %s153, 8
      %s155 = scalar_lea.vmem %s1, %s154
      %p156 = pneg %p72
      %p157 = pneg %p69
      %p158 = pneg %p100
      %p159 = pneg %p97
      %s160 = smul.u32 16, %s17
      %s161 = smul.u32 2, %s18
      %p162 = scmp.lt.s32.totalorder %s160, 31
      %s163 = scalar_select %p162, %s160, 31
      %p164 = scmp.lt.s32.totalorder %s161, 1
      %s165 = scalar_select %p164, %s161, 1
      %s166 = smul.addr %s163, 2
      %s167 = sadd.s32 %s165, %s166
      %s168 = smul.addr %s167, 8
      %s169 = scalar_lea.vmem %s2, %s168
      %s170 = smul.u32 16, %s17
      %p171 = scmp.lt.s32.totalorder %s170, 31
      %s172 = scalar_select %p171, %s170, 31
      %s173 = smul.addr %s172, 8
      %s174 = scalar_lea.vmem %s0, %s173
      %s175 = smul.u32 16, %s17
      %s176 = smul.u32 32, %s18
      %p177 = scmp.lt.s32.totalorder %s176, 31
      %s178 = scalar_select %p177, %s176, 31
      %s179 = smul.addr %s178, 8
      %s180 = scalar_lea.vmem %s1, %s179
      %s181 = smul.u32 32, %s18
      %s182 = smul.u32 16, %s17
      %s183 = smul.u32 2, %s18
      %p184 = scmp.lt.s32.totalorder %s182, 31
      %s185 = scalar_select %p184, %s182, 31
      %p186 = scmp.lt.s32.totalorder %s183, 1
      %s187 = scalar_select %p186, %s183, 1
      %s188 = smul.addr %s185, 2
      %s189 = sadd.s32 %s187, %s188
      %s190 = smul.addr %s189, 8
      %s191 = scalar_lea.vmem %s2, %s190
      %s192 = smul.u32 16, %s17
      %s193 = smul.u32 2, %s18
      %v194 = vld [vmem:[%s174] sm:$0xff]
      %v195 = vld [vmem:[%s174 + $0x8] sm:$0xff]
      %v196 = vld [vmem:[%s174 + $0x10] sm:$0xff]
      %v197 = vld [vmem:[%s174 + $0x18] sm:$0xff]
      %v198 = vld [vmem:[%s174 + $0x20] sm:$0xff]
      %v199 = vld [vmem:[%s174 + $0x28] sm:$0xff]
      %v200 = vld [vmem:[%s174 + $0x30] sm:$0xff]
      %v201 = vld [vmem:[%s174 + $0x38] sm:$0xff]
      %v202 = vld [vmem:[%s174 + $0x40] sm:$0xff]
      %v203 = vld [vmem:[%s174 + $0x48] sm:$0xff]
      %v204 = vld [vmem:[%s174 + $0x50] sm:$0xff]
      %v205 = vld [vmem:[%s174 + $0x58] sm:$0xff]
      %v206 = vld [vmem:[%s174 + $0x60] sm:$0xff]
      %v207 = vld [vmem:[%s174 + $0x68] sm:$0xff]
      %v208 = vld [vmem:[%s174 + $0x70] sm:$0xff]
      %v209 = vld [vmem:[%s174 + $0x78] sm:$0xff]
      %v210 = vld [vmem:[%s180] sm:$0xff]
      %v211 = vld [vmem:[%s180 + $0x8] sm:$0xff]
      %v212 = vld [vmem:[%s180 + $0x10] sm:$0xff]
      %v213 = vld [vmem:[%s180 + $0x18] sm:$0xff]
      %v214 = vld [vmem:[%s180 + $0x20] sm:$0xff]
      %v215 = vld [vmem:[%s180 + $0x28] sm:$0xff]
      %v216 = vld [vmem:[%s180 + $0x30] sm:$0xff]
      %v217 = vld [vmem:[%s180 + $0x38] sm:$0xff]
      %v218 = vld [vmem:[%s180 + $0x40] sm:$0xff]
      %v219 = vld [vmem:[%s180 + $0x48] sm:$0xff]
      %v220 = vld [vmem:[%s180 + $0x50] sm:$0xff]
      %v221 = vld [vmem:[%s180 + $0x58] sm:$0xff]
      %v222 = vld [vmem:[%s180 + $0x60] sm:$0xff]
      %v223 = vld [vmem:[%s180 + $0x68] sm:$0xff]
      %v224 = vld [vmem:[%s180 + $0x70] sm:$0xff]
      %v225 = vld [vmem:[%s180 + $0x78] sm:$0xff]
      %v226 = vld [vmem:[%s180 + $0x80] sm:$0xff]
      %v227 = vld [vmem:[%s180 + $0x88] sm:$0xff]
      %v228 = vld [vmem:[%s180 + $0x90] sm:$0xff]
      %v229 = vld [vmem:[%s180 + $0x98] sm:$0xff]
      %v230 = vld [vmem:[%s180 + $0xa0] sm:$0xff]
      %v231 = vld [vmem:[%s180 + $0xa8] sm:$0xff]
      %v232 = vld [vmem:[%s180 + $0xb0] sm:$0xff]
      %v233 = vld [vmem:[%s180 + $0xb8] sm:$0xff]
      %v234 = vld [vmem:[%s180 + $0xc0] sm:$0xff]
      %v235 = vld [vmem:[%s180 + $0xc8] sm:$0xff]
      %v236 = vld [vmem:[%s180 + $0xd0] sm:$0xff]
      %v237 = vld [vmem:[%s180 + $0xd8] sm:$0xff]
      %v238 = vld [vmem:[%s180 + $0xe0] sm:$0xff]
      %v239 = vld [vmem:[%s180 + $0xe8] sm:$0xff]
      %v240 = vld [vmem:[%s180 + $0xf0] sm:$0xff]
      %v241 = vld [vmem:[%s180 + $0xf8] sm:$0xff]
      %v242 = vmul.f32 %v194, %v194
      %v243 = vmul.f32 %v195, %v195
      %v244 = vmul.f32 %v196, %v196
      %v245 = vmul.f32 %v197, %v197
      %v246 = vmul.f32 %v198, %v198
      %v247 = vmul.f32 %v199, %v199
      %v248 = vmul.f32 %v200, %v200
      %v249 = vmul.f32 %v201, %v201
      %v250 = vmul.f32 %v202, %v202
      %v251 = vmul.f32 %v203, %v203
      %v252 = vmul.f32 %v204, %v204
      %v253 = vmul.f32 %v205, %v205
      %v254 = vmul.f32 %v206, %v206
      %v255 = vmul.f32 %v207, %v207
      %v256 = vmul.f32 %v208, %v208
      %v257 = vmul.f32 %v209, %v209
      %vm258 = vcmask 261120
      %v259 = vsel %vm258, %v242, 0.0
      %260 = vadd.xlane.f32.xlu0 %v259
      %v261 = vpop.xlane.xlu0 %260
      %v262 = vsel %vm258, %v243, 0.0
      %263 = vadd.xlane.f32.xlu0 %v262
      %v264 = vpop.xlane.xlu0 %263
      %v265 = vsel %vm258, %v244, 0.0
      %266 = vadd.xlane.f32.xlu0 %v265
      %v267 = vpop.xlane.xlu0 %266
      %v268 = vsel %vm258, %v245, 0.0
      %269 = vadd.xlane.f32.xlu0 %v268
      %v270 = vpop.xlane.xlu0 %269
      %v271 = vsel %vm258, %v246, 0.0
      %272 = vadd.xlane.f32.xlu0 %v271
      %v273 = vpop.xlane.xlu0 %272
      %v274 = vsel %vm258, %v247, 0.0
      %275 = vadd.xlane.f32.xlu0 %v274
      %v276 = vpop.xlane.xlu0 %275
      %v277 = vsel %vm258, %v248, 0.0
      %278 = vadd.xlane.f32.xlu0 %v277
      %v279 = vpop.xlane.xlu0 %278
      %v280 = vsel %vm258, %v249, 0.0
      %281 = vadd.xlane.f32.xlu0 %v280
      %v282 = vpop.xlane.xlu0 %281
      %v283 = vsel %vm258, %v250, 0.0
      %284 = vadd.xlane.f32.xlu0 %v283
      %v285 = vpop.xlane.xlu0 %284
      %v286 = vsel %vm258, %v251, 0.0
      %287 = vadd.xlane.f32.xlu0 %v286
      %v288 = vpop.xlane.xlu0 %287
      %v289 = vsel %vm258, %v252, 0.0
      %290 = vadd.xlane.f32.xlu0 %v289
      %v291 = vpop.xlane.xlu0 %290
      %v292 = vsel %vm258, %v253, 0.0
      %293 = vadd.xlane.f32.xlu0 %v292
      %v294 = vpop.xlane.xlu0 %293
      %v295 = vsel %vm258, %v254, 0.0
      %296 = vadd.xlane.f32.xlu0 %v295
      %v297 = vpop.xlane.xlu0 %296
      %v298 = vsel %vm258, %v255, 0.0
      %299 = vadd.xlane.f32.xlu0 %v298
      %v300 = vpop.xlane.xlu0 %299
      %v301 = vsel %vm258, %v256, 0.0
      %302 = vadd.xlane.f32.xlu0 %v301
      %v303 = vpop.xlane.xlu0 %302
      %v304 = vsel %vm258, %v257, 0.0
      %305 = vadd.xlane.f32.xlu0 %v304
      %v306 = vpop.xlane.xlu0 %305
      %v307 = vmul.f32 %v210, %v210
      %v308 = vmul.f32 %v211, %v211
      %v309 = vmul.f32 %v212, %v212
      %v310 = vmul.f32 %v213, %v213
      %v311 = vmul.f32 %v214, %v214
      %v312 = vmul.f32 %v215, %v215
      %v313 = vmul.f32 %v216, %v216
      %v314 = vmul.f32 %v217, %v217
      %v315 = vmul.f32 %v218, %v218
      %v316 = vmul.f32 %v219, %v219
      %v317 = vmul.f32 %v220, %v220
      %v318 = vmul.f32 %v221, %v221
      %v319 = vmul.f32 %v222, %v222
      %v320 = vmul.f32 %v223, %v223
      %v321 = vmul.f32 %v224, %v224
      %v322 = vmul.f32 %v225, %v225
      %v323 = vmul.f32 %v226, %v226
      %v324 = vmul.f32 %v227, %v227
      %v325 = vmul.f32 %v228, %v228
      %v326 = vmul.f32 %v229, %v229
      %v327 = vmul.f32 %v230, %v230
      %v328 = vmul.f32 %v231, %v231
      %v329 = vmul.f32 %v232, %v232
      %v330 = vmul.f32 %v233, %v233
      %v331 = vmul.f32 %v234, %v234
      %v332 = vmul.f32 %v235, %v235
      %v333 = vmul.f32 %v236, %v236
      %v334 = vmul.f32 %v237, %v237
      %v335 = vmul.f32 %v238, %v238
      %v336 = vmul.f32 %v239, %v239
      %v337 = vmul.f32 %v240, %v240
      %v338 = vmul.f32 %v241, %v241
      %v339 = vsel %vm258, %v307, 0.0
      %340 = vadd.xlane.f32.xlu0 %v339
      %v341 = vpop.xlane.xlu0 %340
      %v342 = vsel %vm258, %v308, 0.0
      %343 = vadd.xlane.f32.xlu0 %v342
      %v344 = vpop.xlane.xlu0 %343
      %v345 = vsel %vm258, %v309, 0.0
      %346 = vadd.xlane.f32.xlu0 %v345
      %v347 = vpop.xlane.xlu0 %346
      %v348 = vsel %vm258, %v310, 0.0
      %349 = vadd.xlane.f32.xlu0 %v348
      %v350 = vpop.xlane.xlu0 %349
      %v351 = vsel %vm258, %v311, 0.0
      %352 = vadd.xlane.f32.xlu0 %v351
      %v353 = vpop.xlane.xlu0 %352
      %v354 = vsel %vm258, %v312, 0.0
      %355 = vadd.xlane.f32.xlu0 %v354
      %v356 = vpop.xlane.xlu0 %355
      %v357 = vsel %vm258, %v313, 0.0
      %358 = vadd.xlane.f32.xlu0 %v357
      %v359 = vpop.xlane.xlu0 %358
      %v360 = vsel %vm258, %v314, 0.0
      %361 = vadd.xlane.f32.xlu0 %v360
      %v362 = vpop.xlane.xlu0 %361
      %v363 = vsel %vm258, %v315, 0.0
      %364 = vadd.xlane.f32.xlu0 %v363
      %v365 = vpop.xlane.xlu0 %364
      %v366 = vsel %vm258, %v316, 0.0
      %367 = vadd.xlane.f32.xlu0 %v366
      %v368 = vpop.xlane.xlu0 %367
      %v369 = vsel %vm258, %v317, 0.0
      %370 = vadd.xlane.f32.xlu0 %v369
      %v371 = vpop.xlane.xlu0 %370
      %v372 = vsel %vm258, %v318, 0.0
      %373 = vadd.xlane.f32.xlu0 %v372
      %v374 = vpop.xlane.xlu0 %373
      %v375 = vsel %vm258, %v319, 0.0
      %376 = vadd.xlane.f32.xlu0 %v375
      %v377 = vpop.xlane.xlu0 %376
      %v378 = vsel %vm258, %v320, 0.0
      %379 = vadd.xlane.f32.xlu0 %v378
      %v380 = vpop.xlane.xlu0 %379
      %v381 = vsel %vm258, %v321, 0.0
      %382 = vadd.xlane.f32.xlu0 %v381
      %v383 = vpop.xlane.xlu0 %382
      %v384 = vsel %vm258, %v322, 0.0
      %385 = vadd.xlane.f32.xlu0 %v384
      %v386 = vpop.xlane.xlu0 %385
      %v387 = vsel %vm258, %v323, 0.0
      %388 = vadd.xlane.f32.xlu0 %v387
      %v389 = vpop.xlane.xlu0 %388
      %v390 = vsel %vm258, %v324, 0.0
      %391 = vadd.xlane.f32.xlu0 %v390
      %v392 = vpop.xlane.xlu0 %391
      %v393 = vsel %vm258, %v325, 0.0
      %394 = vadd.xlane.f32.xlu0 %v393
      %v395 = vpop.xlane.xlu0 %394
      %v396 = vsel %vm258, %v326, 0.0
      %397 = vadd.xlane.f32.xlu0 %v396
      %v398 = vpop.xlane.xlu0 %397
      %v399 = vsel %vm258, %v327, 0.0
      %400 = vadd.xlane.f32.xlu0 %v399
      %v401 = vpop.xlane.xlu0 %400
      %v402 = vsel %vm258, %v328, 0.0
      %403 = vadd.xlane.f32.xlu0 %v402
      %v404 = vpop.xlane.xlu0 %403
      %v405 = vsel %vm258, %v329, 0.0
      %406 = vadd.xlane.f32.xlu0 %v405
      %v407 = vpop.xlane.xlu0 %406
      %v408 = vsel %vm258, %v330, 0.0
      %409 = vadd.xlane.f32.xlu0 %v408
      %v410 = vpop.xlane.xlu0 %409
      %v411 = vsel %vm258, %v331, 0.0
      %412 = vadd.xlane.f32.xlu0 %v411
      %v413 = vpop.xlane.xlu0 %412
      %v414 = vsel %vm258, %v332, 0.0
      %415 = vadd.xlane.f32.xlu0 %v414
      %v416 = vpop.xlane.xlu0 %415
      %v417 = vsel %vm258, %v333, 0.0
      %418 = vadd.xlane.f32.xlu0 %v417
      %v419 = vpop.xlane.xlu0 %418
      %v420 = vsel %vm258, %v334, 0.0
      %421 = vadd.xlane.f32.xlu0 %v420
      %v422 = vpop.xlane.xlu0 %421
      %v423 = vsel %vm258, %v335, 0.0
      %424 = vadd.xlane.f32.xlu0 %v423
      %v425 = vpop.xlane.xlu0 %424
      %v426 = vsel %vm258, %v336, 0.0
      %427 = vadd.xlane.f32.xlu0 %v426
      %v428 = vpop.xlane.xlu0 %427
      %v429 = vsel %vm258, %v337, 0.0
      %430 = vadd.xlane.f32.xlu0 %v429
      %v431 = vpop.xlane.xlu0 %430
      %v432 = vsel %vm258, %v338, 0.0
      %433 = vadd.xlane.f32.xlu0 %v432
      %v434 = vpop.xlane.xlu0 %433
      %v436 = vsel %vm258, %v194, 0
      %v439 = vsel %vm258, %v195, 0
      %v442 = vsel %vm258, %v196, 0
      %v445 = vsel %vm258, %v197, 0
      %v448 = vsel %vm258, %v198, 0
      %v451 = vsel %vm258, %v199, 0
      %v454 = vsel %vm258, %v200, 0
      %v457 = vsel %vm258, %v201, 0
      %v460 = vsel %vm258, %v202, 0
      %v463 = vsel %vm258, %v203, 0
      %v466 = vsel %vm258, %v204, 0
      %v469 = vsel %vm258, %v205, 0
      %v472 = vsel %vm258, %v206, 0
      %v475 = vsel %vm258, %v207, 0
      %v478 = vsel %vm258, %v208, 0
      %v481 = vsel %vm258, %v209, 0
      %v484 = vsel %vm258, %v210, 0
      %v487 = vsel %vm258, %v211, 0
      %v490 = vsel %vm258, %v212, 0
      %v493 = vsel %vm258, %v213, 0
      %v496 = vsel %vm258, %v214, 0
      %v499 = vsel %vm258, %v215, 0
      %v502 = vsel %vm258, %v216, 0
      %v505 = vsel %vm258, %v217, 0
      %v508 = vsel %vm258, %v218, 0
      %v511 = vsel %vm258, %v219, 0
      %v514 = vsel %vm258, %v220, 0
      %v517 = vsel %vm258, %v221, 0
      %v520 = vsel %vm258, %v222, 0
      %v523 = vsel %vm258, %v223, 0
      %v526 = vsel %vm258, %v224, 0
      %v529 = vsel %vm258, %v225, 0
      %v532 = vsel %vm258, %v226, 0
      %v535 = vsel %vm258, %v227, 0
      %v538 = vsel %vm258, %v228, 0
      %v541 = vsel %vm258, %v229, 0
      %v544 = vsel %vm258, %v230, 0
      %v547 = vsel %vm258, %v231, 0
      %v550 = vsel %vm258, %v232, 0
      %v553 = vsel %vm258, %v233, 0
      %v556 = vsel %vm258, %v234, 0
      %v559 = vsel %vm258, %v235, 0
      %v562 = vsel %vm258, %v236, 0
      %v565 = vsel %vm258, %v237, 0
      %v568 = vsel %vm258, %v238, 0
      %v571 = vsel %vm258, %v239, 0
      %v574 = vsel %vm258, %v240, 0
      %v577 = vsel %vm258, %v241, 0
      %579 = vmatprep.subr.mxu0 0.0
      %580 = vmatpush1.xpose.msra.mxu0 %v484
      %581 = vmatprep.subr.mxu0 0.0
      %582 = vmatpush1.xpose.msra.mxu0 %v487
      %583 = vmatprep.subr.mxu0 0.0
      %584 = vmatpush1.xpose.msra.mxu0 %v490
      %585 = vmatprep.subr.mxu0 0.0
      %586 = vmatpush1.xpose.msra.mxu0 %v493
      %587 = vmatprep.subr.mxu0 0.0
      %588 = vmatpush1.xpose.msra.mxu0 %v496
      %589 = vmatprep.subr.mxu0 0.0
      %590 = vmatpush1.xpose.msra.mxu0 %v499
      %591 = vmatprep.subr.mxu0 0.0
      %592 = vmatpush1.xpose.msra.mxu0 %v502
      %593 = vmatprep.subr.mxu0 0.0
      %594 = vmatpush1.xpose.msra.mxu0 %v505
      %595 = vmatprep.subr.mxu0 0.0
      %596 = vmatpush1.xpose.msra.mxu0 %v508
      %597 = vmatprep.subr.mxu0 0.0
      %598 = vmatpush1.xpose.msra.mxu0 %v511
      %599 = vmatprep.subr.mxu0 0.0
      %600 = vmatpush1.xpose.msra.mxu0 %v514
      %601 = vmatprep.subr.mxu0 0.0
      %602 = vmatpush1.xpose.msra.mxu0 %v517
      %603 = vmatprep.subr.mxu0 0.0
      %604 = vmatpush1.xpose.msra.mxu0 %v520
      %605 = vmatprep.subr.mxu0 0.0
      %606 = vmatpush1.xpose.msra.mxu0 %v523
      %607 = vmatprep.subr.mxu0 0.0
      %608 = vmatpush1.xpose.msra.mxu0 %v526
      %609 = vmatprep.subr.mxu0 0.0
      %610 = vmatpush1.xpose.msra.mxu0 %v529
      %611 = vmatprep.subr.mxu0 0.0
      %612 = vmatpush1.xpose.msra.mxu0 %v532
      %613 = vmatprep.subr.mxu0 0.0
      %614 = vmatpush1.xpose.msra.mxu0 %v535
      %615 = vmatprep.subr.mxu0 0.0
      %616 = vmatpush1.xpose.msra.mxu0 %v538
      %617 = vmatprep.subr.mxu0 0.0
      %618 = vmatpush1.xpose.msra.mxu0 %v541
      %619 = vmatprep.subr.mxu0 0.0
      %620 = vmatpush1.xpose.msra.mxu0 %v544
      %621 = vmatprep.subr.mxu0 0.0
      %622 = vmatpush1.xpose.msra.mxu0 %v547
      %623 = vmatprep.subr.mxu0 0.0
      %624 = vmatpush1.xpose.msra.mxu0 %v550
      %625 = vmatprep.subr.mxu0 0.0
      %626 = vmatpush1.xpose.msra.mxu0 %v553
      %627 = vmatprep.subr.mxu0 0.0
      %628 = vmatpush1.xpose.msra.mxu0 %v556
      %629 = vmatprep.subr.mxu0 0.0
      %630 = vmatpush1.xpose.msra.mxu0 %v559
      %631 = vmatprep.subr.mxu0 0.0
      %632 = vmatpush1.xpose.msra.mxu0 %v562
      %633 = vmatprep.subr.mxu0 0.0
      %634 = vmatpush1.xpose.msra.mxu0 %v565
      %635 = vmatprep.subr.mxu0 0.0
      %636 = vmatpush1.xpose.msra.mxu0 %v568
      %637 = vmatprep.subr.mxu0 0.0
      %638 = vmatpush1.xpose.msra.mxu0 %v571
      %639 = vmatprep.subr.mxu0 0.0
      %640 = vmatpush1.xpose.msra.mxu0 %v574
      %641 = vmatprep.subr.mxu0 0.0
      %642 = vmatpush1.xpose.msra.mxu0 %v577
      %643 = vmatprep.mubr.f32.mxu0 0.0
      %644 = vmatmul.mubr.f32.gmra.mrb[0].mxu0 %v436
      %v645 = vpop.f32.mrb[0].mxu0
      %v646 = vadd.f32 0.0, %v645
      %v647 = vpop.f32.mrb[0].mxu0
      %v648 = vadd.f32 0.0, %v647
      %649 = vmatprep.mubr.f32.mxu0 0.0
      %650 = vmatmul.mubr.f32.gmra.mrb[0].mxu0 %v439
      %v651 = vpop.f32.mrb[0].mxu0
      %v652 = vadd.f32 0.0, %v651
      %v653 = vpop.f32.mrb[0].mxu0
      %v654 = vadd.f32 0.0, %v653
      %655 = vmatprep.mubr.f32.mxu0 0.0
      %656 = vmatmul.mubr.f32.gmra.mrb[0].mxu0 %v442
      %v657 = vpop.f32.mrb[0].mxu0
      %v658 = vadd.f32 0.0, %v657
      %v659 = vpop.f32.mrb[0].mxu0
      %v660 = vadd.f32 0.0, %v659
      %661 = vmatprep.mubr.f32.mxu0 0.0
      %662 = vmatmul.mubr.f32.gmra.mrb[0].mxu0 %v445
      %v663 = vpop.f32.mrb[0].mxu0
      %v664 = vadd.f32 0.0, %v663
      %v665 = vpop.f32.mrb[0].mxu0
      %v666 = vadd.f32 0.0, %v665
      %667 = vmatprep.mubr.f32.mxu0 0.0
      %668 = vmatmul.mubr.f32.gmra.mrb[0].mxu0 %v448
      %v669 = vpop.f32.mrb[0].mxu0
      %v670 = vadd.f32 0.0, %v669
      %v671 = vpop.f32.mrb[0].mxu0
      %v672 = vadd.f32 0.0, %v671
      %673 = vmatprep.mubr.f32.mxu0 0.0
      %674 = vmatmul.mubr.f32.gmra.mrb[0].mxu0 %v451
      %v675 = vpop.f32.mrb[0].mxu0
      %v676 = vadd.f32 0.0, %v675
      %v677 = vpop.f32.mrb[0].mxu0
      %v678 = vadd.f32 0.0, %v677
      %679 = vmatprep.mubr.f32.mxu0 0.0
      %680 = vmatmul.mubr.f32.gmra.mrb[0].mxu0 %v454
      %v681 = vpop.f32.mrb[0].mxu0
      %v682 = vadd.f32 0.0, %v681
      %v683 = vpop.f32.mrb[0].mxu0
      %v684 = vadd.f32 0.0, %v683
      %685 = vmatprep.mubr.f32.mxu0 0.0
      %686 = vmatmul.mubr.f32.gmra.mrb[0].mxu0 %v457
      %v687 = vpop.f32.mrb[0].mxu0
      %v688 = vadd.f32 0.0, %v687
      %v689 = vpop.f32.mrb[0].mxu0
      %v690 = vadd.f32 0.0, %v689
      %691 = vmatprep.mubr.f32.mxu0 0.0
      %692 = vmatmul.mubr.f32.gmra.mrb[0].mxu0 %v460
      %v693 = vpop.f32.mrb[0].mxu0
      %v694 = vadd.f32 0.0, %v693
      %v695 = vpop.f32.mrb[0].mxu0
      %v696 = vadd.f32 0.0, %v695
      %697 = vmatprep.mubr.f32.mxu0 0.0
      %698 = vmatmul.mubr.f32.gmra.mrb[0].mxu0 %v463
      %v699 = vpop.f32.mrb[0].mxu0
      %v700 = vadd.f32 0.0, %v699
      %v701 = vpop.f32.mrb[0].mxu0
      %v702 = vadd.f32 0.0, %v701
      %703 = vmatprep.mubr.f32.mxu0 0.0
      %704 = vmatmul.mubr.f32.gmra.mrb[0].mxu0 %v466
      %v705 = vpop.f32.mrb[0].mxu0
      %v706 = vadd.f32 0.0, %v705
      %v707 = vpop.f32.mrb[0].mxu0
      %v708 = vadd.f32 0.0, %v707
      %709 = vmatprep.mubr.f32.mxu0 0.0
      %710 = vmatmul.mubr.f32.gmra.mrb[0].mxu0 %v469
      %v711 = vpop.f32.mrb[0].mxu0
      %v712 = vadd.f32 0.0, %v711
      %v713 = vpop.f32.mrb[0].mxu0
      %v714 = vadd.f32 0.0, %v713
      %715 = vmatprep.mubr.f32.mxu0 0.0
      %716 = vmatmul.mubr.f32.gmra.mrb[0].mxu0 %v472
      %v717 = vpop.f32.mrb[0].mxu0
      %v718 = vadd.f32 0.0, %v717
      %v719 = vpop.f32.mrb[0].mxu0
      %v720 = vadd.f32 0.0, %v719
      %721 = vmatprep.mubr.f32.mxu0 0.0
      %722 = vmatmul.mubr.f32.gmra.mrb[0].mxu0 %v475
      %v723 = vpop.f32.mrb[0].mxu0
      %v724 = vadd.f32 0.0, %v723
      %v725 = vpop.f32.mrb[0].mxu0
      %v726 = vadd.f32 0.0, %v725
      %727 = vmatprep.mubr.f32.mxu0 0.0
      %728 = vmatmul.mubr.f32.gmra.mrb[0].mxu0 %v478
      %v729 = vpop.f32.mrb[0].mxu0
      %v730 = vadd.f32 0.0, %v729
      %v731 = vpop.f32.mrb[0].mxu0
      %v732 = vadd.f32 0.0, %v731
      %733 = vmatprep.mubr.f32.mxu0 0.0
      %734 = vmatmul.mubr.f32.gmra.mrb[0].mxu0 %v481
      %v735 = vpop.f32.mrb[0].mxu0
      %v736 = vadd.f32 0.0, %v735
      %v737 = vpop.f32.mrb[0].mxu0
      %v738 = vadd.f32 0.0, %v737
      %739 = vdwg.mxu0
      %740 = vxpose.xlu0.b32.start [1/16] %v341, 128
      %741 = vxpose.xlu0.b32.cont [2/16] %v344, 128
      %742 = vxpose.xlu0.b32.cont [3/16] %v347, 128
      %743 = vxpose.xlu0.b32.cont [4/16] %v350, 128
      %744 = vxpose.xlu0.b32.cont [5/16] %v353, 128
      %745 = vxpose.xlu0.b32.cont [6/16] %v356, 128
      %746 = vxpose.xlu0.b32.cont [7/16] %v359, 128
      %747 = vxpose.xlu0.b32.cont [8/16] %v362, 128
      %748 = vxpose.xlu0.b32.cont [9/16] %v365, 128
      %749 = vxpose.xlu0.b32.cont [10/16] %v368, 128
      %750 = vxpose.xlu0.b32.cont [11/16] %v371, 128
      %751 = vxpose.xlu0.b32.cont [12/16] %v374, 128
      %752 = vxpose.xlu0.b32.cont [13/16] %v377, 128
      %753 = vxpose.xlu0.b32.cont [14/16] %v380, 128
      %754 = vxpose.xlu0.b32.cont [15/16] %v383, 128
      %755 = vxpose.xlu0.b32.end [16/16] %v386, 128
      %v756 = vpop.trf.xlu0
      %v757 = vpop.trf.xlu0
      %v758 = vpop.trf.xlu0
      %v759 = vpop.trf.xlu0
      %v760 = vpop.trf.xlu0
      %v761 = vpop.trf.xlu0
      %v762 = vpop.trf.xlu0
      %v763 = vpop.trf.xlu0
      %v764 = vpop.trf.xlu0
      %v765 = vpop.trf.xlu0
      %v766 = vpop.trf.xlu0
      %v767 = vpop.trf.xlu0
      %v768 = vpop.trf.xlu0
      %v769 = vpop.trf.xlu0
      %v770 = vpop.trf.xlu0
      %v771 = vpop.trf.xlu0
      %772 = vxpose.xlu0.b32.start [1/16] %v389, 128
      %773 = vxpose.xlu0.b32.cont [2/16] %v392, 128
      %774 = vxpose.xlu0.b32.cont [3/16] %v395, 128
      %775 = vxpose.xlu0.b32.cont [4/16] %v398, 128
      %776 = vxpose.xlu0.b32.cont [5/16] %v401, 128
      %777 = vxpose.xlu0.b32.cont [6/16] %v404, 128
      %778 = vxpose.xlu0.b32.cont [7/16] %v407, 128
      %779 = vxpose.xlu0.b32.cont [8/16] %v410, 128
      %780 = vxpose.xlu0.b32.cont [9/16] %v413, 128
      %781 = vxpose.xlu0.b32.cont [10/16] %v416, 128
      %782 = vxpose.xlu0.b32.cont [11/16] %v419, 128
      %783 = vxpose.xlu0.b32.cont [12/16] %v422, 128
      %784 = vxpose.xlu0.b32.cont [13/16] %v425, 128
      %785 = vxpose.xlu0.b32.cont [14/16] %v428, 128
      %786 = vxpose.xlu0.b32.cont [15/16] %v431, 128
      %787 = vxpose.xlu0.b32.end [16/16] %v434, 128
      %v788 = vpop.trf.xlu0
      %v789 = vpop.trf.xlu0
      %v790 = vpop.trf.xlu0
      %v791 = vpop.trf.xlu0
      %v792 = vpop.trf.xlu0
      %v793 = vpop.trf.xlu0
      %v794 = vpop.trf.xlu0
      %v795 = vpop.trf.xlu0
      %v796 = vpop.trf.xlu0
      %v797 = vpop.trf.xlu0
      %v798 = vpop.trf.xlu0
      %v799 = vpop.trf.xlu0
      %v800 = vpop.trf.xlu0
      %v801 = vpop.trf.xlu0
      %v802 = vpop.trf.xlu0
      %v803 = vpop.trf.xlu0
      %v804 = vlaneseq
      %v805 = vshrl.u32 %v804, 7
      %v806 = vsub.s32 0, %v805
      %v807 = vrot.slane %v756, %v806
      %v808 = vlaneseq
      %v809 = vshrl.u32 %v808, 7
      %v810 = vsub.s32 0, %v809
      %v811 = vrot.slane %v788, %v810
      %v812 = vadd.f32 %v261, %v807
      %v813 = vadd.f32 %v261, %v811
      %v814 = vadd.f32 %v264, %v807
      %v815 = vadd.f32 %v264, %v811
      %v816 = vadd.f32 %v267, %v807
      %v817 = vadd.f32 %v267, %v811
      %v818 = vadd.f32 %v270, %v807
      %v819 = vadd.f32 %v270, %v811
      %v820 = vadd.f32 %v273, %v807
      %v821 = vadd.f32 %v273, %v811
      %v822 = vadd.f32 %v276, %v807
      %v823 = vadd.f32 %v276, %v811
      %v824 = vadd.f32 %v279, %v807
      %v825 = vadd.f32 %v279, %v811
      %v826 = vadd.f32 %v282, %v807
      %v827 = vadd.f32 %v282, %v811
      %v828 = vadd.f32 %v285, %v807
      %v829 = vadd.f32 %v285, %v811
      %v830 = vadd.f32 %v288, %v807
      %v831 = vadd.f32 %v288, %v811
      %v832 = vadd.f32 %v291, %v807
      %v833 = vadd.f32 %v291, %v811
      %v834 = vadd.f32 %v294, %v807
      %v835 = vadd.f32 %v294, %v811
      %v836 = vadd.f32 %v297, %v807
      %v837 = vadd.f32 %v297, %v811
      %v838 = vadd.f32 %v300, %v807
      %v839 = vadd.f32 %v300, %v811
      %v840 = vadd.f32 %v303, %v807
      %v841 = vadd.f32 %v303, %v811
      %v842 = vadd.f32 %v306, %v807
      %v843 = vadd.f32 %v306, %v811
      %v844 = vmul.f32 %v646, 2.0
      %v845 = vmul.f32 %v648, 2.0
      %v846 = vmul.f32 %v652, 2.0
      %v847 = vmul.f32 %v654, 2.0
      %v848 = vmul.f32 %v658, 2.0
      %v849 = vmul.f32 %v660, 2.0
      %v850 = vmul.f32 %v664, 2.0
      %v851 = vmul.f32 %v666, 2.0
      %v852 = vmul.f32 %v670, 2.0
      %v853 = vmul.f32 %v672, 2.0
      %v854 = vmul.f32 %v676, 2.0
      %v855 = vmul.f32 %v678, 2.0
      %v856 = vmul.f32 %v682, 2.0
      %v857 = vmul.f32 %v684, 2.0
      %v858 = vmul.f32 %v688, 2.0
      %v859 = vmul.f32 %v690, 2.0
      %v860 = vmul.f32 %v694, 2.0
      %v861 = vmul.f32 %v696, 2.0
      %v862 = vmul.f32 %v700, 2.0
      %v863 = vmul.f32 %v702, 2.0
      %v864 = vmul.f32 %v706, 2.0
      %v865 = vmul.f32 %v708, 2.0
      %v866 = vmul.f32 %v712, 2.0
      %v867 = vmul.f32 %v714, 2.0
      %v868 = vmul.f32 %v718, 2.0
      %v869 = vmul.f32 %v720, 2.0
      %v870 = vmul.f32 %v724, 2.0
      %v871 = vmul.f32 %v726, 2.0
      %v872 = vmul.f32 %v730, 2.0
      %v873 = vmul.f32 %v732, 2.0
      %v874 = vmul.f32 %v736, 2.0
      %v875 = vmul.f32 %v738, 2.0
      %v876 = vsub.f32 %v812, %v844
      %v877 = vsub.f32 %v813, %v845
      %v878 = vsub.f32 %v814, %v846
      %v879 = vsub.f32 %v815, %v847
      %v880 = vsub.f32 %v816, %v848
      %v881 = vsub.f32 %v817, %v849
      %v882 = vsub.f32 %v818, %v850
      %v883 = vsub.f32 %v819, %v851
      %v884 = vsub.f32 %v820, %v852
      %v885 = vsub.f32 %v821, %v853
      %v886 = vsub.f32 %v822, %v854
      %v887 = vsub.f32 %v823, %v855
      %v888 = vsub.f32 %v824, %v856
      %v889 = vsub.f32 %v825, %v857
      %v890 = vsub.f32 %v826, %v858
      %v891 = vsub.f32 %v827, %v859
      %v892 = vsub.f32 %v828, %v860
      %v893 = vsub.f32 %v829, %v861
      %v894 = vsub.f32 %v830, %v862
      %v895 = vsub.f32 %v831, %v863
      %v896 = vsub.f32 %v832, %v864
      %v897 = vsub.f32 %v833, %v865
      %v898 = vsub.f32 %v834, %v866
      %v899 = vsub.f32 %v835, %v867
      %v900 = vsub.f32 %v836, %v868
      %v901 = vsub.f32 %v837, %v869
      %v902 = vsub.f32 %v838, %v870
      %v903 = vsub.f32 %v839, %v871
      %v904 = vsub.f32 %v840, %v872
      %v905 = vsub.f32 %v841, %v873
      %v906 = vsub.f32 %v842, %v874
      %v907 = vsub.f32 %v843, %v875
      %s908 = smul.u32 %s17, 128
      %v909 = vlaneseq
      %v910 = vshrl.u32 %v909, 7
      %v911 = vadd.s32 %v910, 8
      %v912 = vadd.s32 %v910, 16
      %v913 = vadd.s32 %v910, 24
      %v914 = vadd.s32 %v910, 32
      %v915 = vadd.s32 %v910, 40
      %v916 = vadd.s32 %v910, 48
      %v917 = vadd.s32 %v910, 56
      %v918 = vadd.s32 %v910, 64
      %v919 = vadd.s32 %v910, 72
      %v920 = vadd.s32 %v910, 80
      %v921 = vadd.s32 %v910, 88
      %v922 = vadd.s32 %v910, 96
      %v923 = vadd.s32 %v910, 104
      %v924 = vadd.s32 %v910, 112
      %v925 = vadd.s32 %v910, 120
      %v926 = vstv %s908
      %v927 = vadd.s32 %v926, %v910
      %v928 = vadd.s32 %v926, %v911
      %v929 = vadd.s32 %v926, %v912
      %v930 = vadd.s32 %v926, %v913
      %v931 = vadd.s32 %v926, %v914
      %v932 = vadd.s32 %v926, %v915
      %v933 = vadd.s32 %v926, %v916
      %v934 = vadd.s32 %v926, %v917
      %v935 = vadd.s32 %v926, %v918
      %v936 = vadd.s32 %v926, %v919
      %v937 = vadd.s32 %v926, %v920
      %v938 = vadd.s32 %v926, %v921
      %v939 = vadd.s32 %v926, %v922
      %v940 = vadd.s32 %v926, %v923
      %v941 = vadd.s32 %v926, %v924
      %v942 = vadd.s32 %v926, %v925
      %s943 = smul.u32 %s18, 256
      %v944 = vlaneseq
      %v945 = vand.u32 %v944, 127
      %v946 = vadd.s32 %v945, 128
      %v947 = vstv %s943
      %v948 = vadd.s32 %v947, %v945
      %v949 = vadd.s32 %v947, %v946
      %vm950 = vcmp.eq.s32.totalorder %v927, %v948
      %vm951 = vcmp.eq.s32.totalorder %v927, %v949
      %vm952 = vcmp.eq.s32.totalorder %v928, %v948
      %vm953 = vcmp.eq.s32.totalorder %v928, %v949
      %vm954 = vcmp.eq.s32.totalorder %v929, %v948
      %vm955 = vcmp.eq.s32.totalorder %v929, %v949
      %vm956 = vcmp.eq.s32.totalorder %v930, %v948
      %vm957 = vcmp.eq.s32.totalorder %v930, %v949
      %vm958 = vcmp.eq.s32.totalorder %v931, %v948
      %vm959 = vcmp.eq.s32.totalorder %v931, %v949
      %vm960 = vcmp.eq.s32.totalorder %v932, %v948
      %vm961 = vcmp.eq.s32.totalorder %v932, %v949
      %vm962 = vcmp.eq.s32.totalorder %v933, %v948
      %vm963 = vcmp.eq.s32.totalorder %v933, %v949
      %vm964 = vcmp.eq.s32.totalorder %v934, %v948
      %vm965 = vcmp.eq.s32.totalorder %v934, %v949
      %vm966 = vcmp.eq.s32.totalorder %v935, %v948
      %vm967 = vcmp.eq.s32.totalorder %v935, %v949
      %vm968 = vcmp.eq.s32.totalorder %v936, %v948
      %vm969 = vcmp.eq.s32.totalorder %v936, %v949
      %vm970 = vcmp.eq.s32.totalorder %v937, %v948
      %vm971 = vcmp.eq.s32.totalorder %v937, %v949
      %vm972 = vcmp.eq.s32.totalorder %v938, %v948
      %vm973 = vcmp.eq.s32.totalorder %v938, %v949
      %vm974 = vcmp.eq.s32.totalorder %v939, %v948
      %vm975 = vcmp.eq.s32.totalorder %v939, %v949
      %vm976 = vcmp.eq.s32.totalorder %v940, %v948
      %vm977 = vcmp.eq.s32.totalorder %v940, %v949
      %vm978 = vcmp.eq.s32.totalorder %v941, %v948
      %vm979 = vcmp.eq.s32.totalorder %v941, %v949
      %vm980 = vcmp.eq.s32.totalorder %v942, %v948
      %vm981 = vcmp.eq.s32.totalorder %v942, %v949
      %v982 = vsel %vm950, 1e+09, %v876
      %v983 = vsel %vm951, 1e+09, %v877
      %v984 = vsel %vm952, 1e+09, %v878
      %v985 = vsel %vm953, 1e+09, %v879
      %v986 = vsel %vm954, 1e+09, %v880
      %v987 = vsel %vm955, 1e+09, %v881
      %v988 = vsel %vm956, 1e+09, %v882
      %v989 = vsel %vm957, 1e+09, %v883
      %v990 = vsel %vm958, 1e+09, %v884
      %v991 = vsel %vm959, 1e+09, %v885
      %v992 = vsel %vm960, 1e+09, %v886
      %v993 = vsel %vm961, 1e+09, %v887
      %v994 = vsel %vm962, 1e+09, %v888
      %v995 = vsel %vm963, 1e+09, %v889
      %v996 = vsel %vm964, 1e+09, %v890
      %v997 = vsel %vm965, 1e+09, %v891
      %v998 = vsel %vm966, 1e+09, %v892
      %v999 = vsel %vm967, 1e+09, %v893
      %v1000 = vsel %vm968, 1e+09, %v894
      %v1001 = vsel %vm969, 1e+09, %v895
      %v1002 = vsel %vm970, 1e+09, %v896
      %v1003 = vsel %vm971, 1e+09, %v897
      %v1004 = vsel %vm972, 1e+09, %v898
      %v1005 = vsel %vm973, 1e+09, %v899
      %v1006 = vsel %vm974, 1e+09, %v900
      %v1007 = vsel %vm975, 1e+09, %v901
      %v1008 = vsel %vm976, 1e+09, %v902
      %v1009 = vsel %vm977, 1e+09, %v903
      %v1010 = vsel %vm978, 1e+09, %v904
      %v1011 = vsel %vm979, 1e+09, %v905
      %v1012 = vsel %vm980, 1e+09, %v906
      %v1013 = vsel %vm981, 1e+09, %v907
      %1014 = vst [vmem:[%s191] sm:$0xff] %v982
      %1015 = vst [vmem:[%s191 + $0x8] sm:$0xff] %v983
      %1016 = vst [vmem:[%s191 + $0x10] sm:$0xff] %v984
      %1017 = vst [vmem:[%s191 + $0x18] sm:$0xff] %v985
      %1018 = vst [vmem:[%s191 + $0x20] sm:$0xff] %v986
      %1019 = vst [vmem:[%s191 + $0x28] sm:$0xff] %v987
      %1020 = vst [vmem:[%s191 + $0x30] sm:$0xff] %v988
      %1021 = vst [vmem:[%s191 + $0x38] sm:$0xff] %v989
      %1022 = vst [vmem:[%s191 + $0x40] sm:$0xff] %v990
      %1023 = vst [vmem:[%s191 + $0x48] sm:$0xff] %v991
      %1024 = vst [vmem:[%s191 + $0x50] sm:$0xff] %v992
      %1025 = vst [vmem:[%s191 + $0x58] sm:$0xff] %v993
      %1026 = vst [vmem:[%s191 + $0x60] sm:$0xff] %v994
      %1027 = vst [vmem:[%s191 + $0x68] sm:$0xff] %v995
      %1028 = vst [vmem:[%s191 + $0x70] sm:$0xff] %v996
      %1029 = vst [vmem:[%s191 + $0x78] sm:$0xff] %v997
      %1030 = vst [vmem:[%s191 + $0x80] sm:$0xff] %v998
      %1031 = vst [vmem:[%s191 + $0x88] sm:$0xff] %v999
      %1032 = vst [vmem:[%s191 + $0x90] sm:$0xff] %v1000
      %1033 = vst [vmem:[%s191 + $0x98] sm:$0xff] %v1001
      %1034 = vst [vmem:[%s191 + $0xa0] sm:$0xff] %v1002
      %1035 = vst [vmem:[%s191 + $0xa8] sm:$0xff] %v1003
      %1036 = vst [vmem:[%s191 + $0xb0] sm:$0xff] %v1004
      %1037 = vst [vmem:[%s191 + $0xb8] sm:$0xff] %v1005
      %1038 = vst [vmem:[%s191 + $0xc0] sm:$0xff] %v1006
      %1039 = vst [vmem:[%s191 + $0xc8] sm:$0xff] %v1007
      %1040 = vst [vmem:[%s191 + $0xd0] sm:$0xff] %v1008
      %1041 = vst [vmem:[%s191 + $0xd8] sm:$0xff] %v1009
      %1042 = vst [vmem:[%s191 + $0xe0] sm:$0xff] %v1010
      %1043 = vst [vmem:[%s191 + $0xe8] sm:$0xff] %v1011
      %1044 = vst [vmem:[%s191 + $0xf0] sm:$0xff] %v1012
      %1045 = vst [vmem:[%s191 + $0xf8] sm:$0xff] %v1013
      %s1046 = smul.u32 16, %s17
      %s1047 = smul.u32 2, %s18
      %p1048 = scmp.lt.s32.totalorder %s1046, 31
      %s1049 = scalar_select %p1048, %s1046, 31
      %p1050 = scmp.lt.s32.totalorder %s1047, 1
      %s1051 = scalar_select %p1050, %s1047, 1
      %s1052 = smul.addr %s1049, 2
      %s1053 = sadd.s32 %s1051, %s1052
      %s1054 = smul.addr %s1053, 8
      %s1055 = scalar_lea.vmem %s2, %s1054
      // Predicated region
      $region29: #{refiner_forward.3} parent=27 // pred_check
        %p1056 = pneg %p97
      $region30: #{refiner_forward.3} parent=27 // pred_check_branch
        %1058 = sbr.rel (%p1056) target = $region32
      $region31: #{refiner_forward.3} parent=27 // pred_region
        %s1059 = smul.u32 16, %s17
        %s1060 = smul.u32 2, %s18
      $region32: #{refiner_forward.3} parent=27 // pred_fallthru
        _
    $region28: #{refiner_forward.3} parent=5 // pred_fallthru
      _
    %p1061 = scmp.le.s32.totalorder 2, %s8
    // Predicated region
    $region33: #{refiner_forward.3} parent=5 // pred_check
      %p1062 = pneg %p1061
    $region34: #{refiner_forward.3} parent=5 // pred_check_branch
      %1064 = sbr.rel (%p1062) target = $region36
    $region35: #{refiner_forward.3} parent=5 // pred_region
      %s1065 = ssub.s32 %s8, 2
      // Predicated region
      $region37: #{refiner_forward.3} parent=35 // pred_check
        %p1066 = pneg %p103
      $region38: #{refiner_forward.3} parent=35 // pred_check_branch
        %1068 = sbr.rel (%p1066) target = $region40
      $region39: #{refiner_forward.3} parent=35 // pred_region
        %s1069 = smul.u32 16, %s19
        %s1070 = smul.u32 2, %s20
        %p1071 = scmp.lt.s32.totalorder %s1069, 31
        %s1072 = scalar_select %p1071, %s1069, 31
        %p1073 = scmp.lt.s32.totalorder %s1070, 1
        %s1074 = scalar_select %p1073, %s1070, 1
        %s1075 = smul.addr %s1072, 2
        %s1076 = sadd.s32 %s1074, %s1075
        %s1077 = smul.addr %s1076, 8
        %s1078 = scalar_lea.vmem %s2, %s1077
      $region40: #{refiner_forward.3} parent=35 // pred_fallthru
        _
    $region36: #{refiner_forward.3} parent=5 // pred_fallthru
      _
  $region6: #{refiner_forward.3} parent=0 // loop_footer
    %s12 = sadd.s32 1, %s8
  $region7: #{refiner_forward.3} parent=0 // loop_footer_branch
    %7 = sbr.rel target = $region3
  $region8: #{refiner_forward.3} parent=0 // loop_exit
    _

// kernel: refiner_forward.5
$region0: #{refiner_forward.5}
  #allocation0 [shape = 'u32[]', space=smem, size = 0x4, offset = 0x4, fixed_abs, tag = 'smem constant byte address 0x4 - core index']
  #allocation1 [shape = 'u32[144,128]{1,0:T(1,128)}', space=vmem, size = 0x12000, scoped, tag = 'internal scratch']
  %s0 = inlined_call_operand.vmem [shape: f32[256,64], index: 0, kind: input, shape index: {}]
  %s1 = inlined_call_operand.vmem [shape: f32[256,64], index: 1, kind: input, shape index: {}]
  %s2 = inlined_call_operand.vmem [shape: f32[256,32], index: 2, kind: input, shape index: {}]
  %s3 = inlined_call_operand.vmem [shape: f32[256,4,64], index: 3, kind: input, shape index: {}]
  %s4 = inlined_call_operand.vmem [shape: f32[256,4,64], index: 4, kind: input, shape index: {}]
  %s5 = inlined_call_operand.vmem [shape: bf16[32,32], index: 5, kind: input, shape index: {}]
  %s6 = inlined_call_operand.vmem [shape: f32[1,32], index: 6, kind: input, shape index: {}]
  %s7 = inlined_call_operand.vmem [shape: bf16[32,128], index: 7, kind: input, shape index: {}]
  %s8 = inlined_call_operand.vmem [shape: f32[1,128], index: 8, kind: input, shape index: {}]
  %s9 = inlined_call_operand.vmem [shape: f32[256,128], index: 9, kind: output, shape index: {}]
  %s10 = sld [smem:[#allocation0]]
  $region69: #{refiner_forward.5} parent=0
    _
  %s12 = ssub.s32 1, %s10
  %s13 = scalar_select 0, %s12, %s10
  loop: start=0, step=1, limit=4
  $region2: #{refiner_forward.5} parent=0 // loop_pre_header
    _
  $region3: #{refiner_forward.5} parent=0 // loop_header
    %s15 = sphi 0, %s19
    %p16 = scmp.ge.s32.totalorder %s15, 4
    %s25 = sphi 0, %s27
    %s28 = sphi 0, %s25
    %s29 = sphi 0, %s28
    %s45 = sphi 0, %s29
    %s51 = sphi 0, %s53
    %s54 = sphi 0, %s51
    %s55 = sphi 0, %s54
    %s71 = sphi 0, %s55
    %s77 = sphi 0, %s79
    %s80 = sphi 0, %s77
    %s81 = sphi 0, %s80
    %s97 = sphi 0, %s81
    %s103 = sphi 0, %s105
    %s106 = sphi 0, %s103
    %s107 = sphi 0, %s106
    %s123 = sphi 0, %s107
    %s129 = sphi 0, %s131
    %s132 = sphi 0, %s129
    %s133 = sphi 0, %s132
    %s149 = sphi 0, %s133
    %s153 = sphi 0, %s153
    %s155 = sphi 0, %s153
    %s156 = sphi 0, %s155
    %s170 = sphi 0, %s156
    %s174 = sphi 0, %s174
    %s176 = sphi 0, %s174
    %s177 = sphi 0, %s176
    %s191 = sphi 0, %s177
    %s195 = sphi 0, %s195
    %s197 = sphi 0, %s195
    %s198 = sphi 0, %s197
    %s212 = sphi 0, %s198
    %s216 = sphi 0, %s216
    %s218 = sphi 0, %s216
    %s219 = sphi 0, %s218
    %s233 = sphi 0, %s219
    %s239 = sphi 0, %s241
    %s242 = sphi 0, %s239
    %s243 = sphi 0, %s242
    %s259 = sphi 0, %s243
  $region4: #{refiner_forward.5} parent=0 // loop_header_branch
    %18 = sbr.rel (%p16) target = $region8
  $region5: #{refiner_forward.5} parent=0 // loop_body
    %s20 = ssub.s32 %s15, 1
    %s21 = ssub.s32 %s15, 2
    %s22 = sadd.s32 %s15, 1
    %s23 = ssub.s32 %s15, %s22
    %p24 = scmp.eq.s32.totalorder %s23, 0
    %s26 = sadd.s32 %s25, 1
    %s27 = scalar_select %p24, %s25, %s26
    %p30 = pneg %p24
    %p31 = scmp.eq.s32.totalorder %s15, 1
    %p32 = por %p30, %p31
    %p33 = scmp.ne.s32.totalorder %s25, %s28
    %p34 = scmp.eq.s32.totalorder %s15, 0
    %p35 = por %p33, %p34
    %p36 = scmp.ne.s32.totalorder %s25, %s28
    %p37 = scmp.eq.s32.totalorder %s20, 1
    %p38 = por %p36, %p37
    %p39 = scmp.ne.s32.totalorder %s28, %s29
    %p40 = scmp.eq.s32.totalorder %s20, 0
    %p41 = por %p39, %p40
    %p42 = scmp.ne.s32.totalorder %s28, %s29
    %p43 = scmp.eq.s32.totalorder %s21, 1
    %p44 = por %p42, %p43
    %p46 = scmp.ne.s32.totalorder %s29, %s45
    %p47 = scmp.eq.s32.totalorder %s21, 0
    %p48 = por %p46, %p47
    %s49 = ssub.s32 %s15, %s22
    %p50 = scmp.eq.s32.totalorder %s49, 0
    %s52 = sadd.s32 %s51, 1
    %s53 = scalar_select %p50, %s51, %s52
    %p56 = pneg %p50
    %p57 = scmp.eq.s32.totalorder %s15, 1
    %p58 = por %p56, %p57
    %p59 = scmp.ne.s32.totalorder %s51, %s54
    %p60 = scmp.eq.s32.totalorder %s15, 0
    %p61 = por %p59, %p60
    %p62 = scmp.ne.s32.totalorder %s51, %s54
    %p63 = scmp.eq.s32.totalorder %s20, 1
    %p64 = por %p62, %p63
    %p65 = scmp.ne.s32.totalorder %s54, %s55
    %p66 = scmp.eq.s32.totalorder %s20, 0
    %p67 = por %p65, %p66
    %p68 = scmp.ne.s32.totalorder %s54, %s55
    %p69 = scmp.eq.s32.totalorder %s21, 1
    %p70 = por %p68, %p69
    %p72 = scmp.ne.s32.totalorder %s55, %s71
    %p73 = scmp.eq.s32.totalorder %s21, 0
    %p74 = por %p72, %p73
    %s75 = ssub.s32 %s15, %s22
    %p76 = scmp.eq.s32.totalorder %s75, 0
    %s78 = sadd.s32 %s77, 1
    %s79 = scalar_select %p76, %s77, %s78
    %p82 = pneg %p76
    %p83 = scmp.eq.s32.totalorder %s15, 1
    %p84 = por %p82, %p83
    %p85 = scmp.ne.s32.totalorder %s77, %s80
    %p86 = scmp.eq.s32.totalorder %s15, 0
    %p87 = por %p85, %p86
    %p88 = scmp.ne.s32.totalorder %s77, %s80
    %p89 = scmp.eq.s32.totalorder %s20, 1
    %p90 = por %p88, %p89
    %p91 = scmp.ne.s32.totalorder %s80, %s81
    %p92 = scmp.eq.s32.totalorder %s20, 0
    %p93 = por %p91, %p92
    %p94 = scmp.ne.s32.totalorder %s80, %s81
    %p95 = scmp.eq.s32.totalorder %s21, 1
    %p96 = por %p94, %p95
    %p98 = scmp.ne.s32.totalorder %s81, %s97
    %p99 = scmp.eq.s32.totalorder %s21, 0
    %p100 = por %p98, %p99
    %s101 = ssub.s32 %s15, %s22
    %p102 = scmp.eq.s32.totalorder %s101, 0
    %s104 = sadd.s32 %s103, 1
    %s105 = scalar_select %p102, %s103, %s104
    %p108 = pneg %p102
    %p109 = scmp.eq.s32.totalorder %s15, 1
    %p110 = por %p108, %p109
    %p111 = scmp.ne.s32.totalorder %s103, %s106
    %p112 = scmp.eq.s32.totalorder %s15, 0
    %p113 = por %p111, %p112
    %p114 = scmp.ne.s32.totalorder %s103, %s106
    %p115 = scmp.eq.s32.totalorder %s20, 1
    %p116 = por %p114, %p115
    %p117 = scmp.ne.s32.totalorder %s106, %s107
    %p118 = scmp.eq.s32.totalorder %s20, 0
    %p119 = por %p117, %p118
    %p120 = scmp.ne.s32.totalorder %s106, %s107
    %p121 = scmp.eq.s32.totalorder %s21, 1
    %p122 = por %p120, %p121
    %p124 = scmp.ne.s32.totalorder %s107, %s123
    %p125 = scmp.eq.s32.totalorder %s21, 0
    %p126 = por %p124, %p125
    %s127 = ssub.s32 %s15, %s22
    %p128 = scmp.eq.s32.totalorder %s127, 0
    %s130 = sadd.s32 %s129, 1
    %s131 = scalar_select %p128, %s129, %s130
    %p134 = pneg %p128
    %p135 = scmp.eq.s32.totalorder %s15, 1
    %p136 = por %p134, %p135
    %p137 = scmp.ne.s32.totalorder %s129, %s132
    %p138 = scmp.eq.s32.totalorder %s15, 0
    %p139 = por %p137, %p138
    %p140 = scmp.ne.s32.totalorder %s129, %s132
    %p141 = scmp.eq.s32.totalorder %s20, 1
    %p142 = por %p140, %p141
    %p143 = scmp.ne.s32.totalorder %s132, %s133
    %p144 = scmp.eq.s32.totalorder %s20, 0
    %p145 = por %p143, %p144
    %p146 = scmp.ne.s32.totalorder %s132, %s133
    %p147 = scmp.eq.s32.totalorder %s21, 1
    %p148 = por %p146, %p147
    %p150 = scmp.ne.s32.totalorder %s133, %s149
    %p151 = scmp.eq.s32.totalorder %s21, 0
    %p152 = por %p150, %p151
    %s154 = sadd.s32 %s153, 1
    %p157 = scmp.eq.s32.totalorder %s15, 1
    %p158 = scmp.ne.s32.totalorder %s153, %s155
    %p159 = scmp.eq.s32.totalorder %s15, 0
    %p160 = por %p158, %p159
    %p161 = scmp.ne.s32.totalorder %s153, %s155
    %p162 = scmp.eq.s32.totalorder %s20, 1
    %p163 = por %p161, %p162
    %p164 = scmp.ne.s32.totalorder %s155, %s156
    %p165 = scmp.eq.s32.totalorder %s20, 0
    %p166 = por %p164, %p165
    %p167 = scmp.ne.s32.totalorder %s155, %s156
    %p168 = scmp.eq.s32.totalorder %s21, 1
    %p169 = por %p167, %p168
    %p171 = scmp.ne.s32.totalorder %s156, %s170
    %p172 = scmp.eq.s32.totalorder %s21, 0
    %p173 = por %p171, %p172
    %s175 = sadd.s32 %s174, 1
    %p178 = scmp.eq.s32.totalorder %s15, 1
    %p179 = scmp.ne.s32.totalorder %s174, %s176
    %p180 = scmp.eq.s32.totalorder %s15, 0
    %p181 = por %p179, %p180
    %p182 = scmp.ne.s32.totalorder %s174, %s176
    %p183 = scmp.eq.s32.totalorder %s20, 1
    %p184 = por %p182, %p183
    %p185 = scmp.ne.s32.totalorder %s176, %s177
    %p186 = scmp.eq.s32.totalorder %s20, 0
    %p187 = por %p185, %p186
    %p188 = scmp.ne.s32.totalorder %s176, %s177
    %p189 = scmp.eq.s32.totalorder %s21, 1
    %p190 = por %p188, %p189
    %p192 = scmp.ne.s32.totalorder %s177, %s191
    %p193 = scmp.eq.s32.totalorder %s21, 0
    %p194 = por %p192, %p193
    %s196 = sadd.s32 %s195, 1
    %p199 = scmp.eq.s32.totalorder %s15, 1
    %p200 = scmp.ne.s32.totalorder %s195, %s197
    %p201 = scmp.eq.s32.totalorder %s15, 0
    %p202 = por %p200, %p201
    %p203 = scmp.ne.s32.totalorder %s195, %s197
    %p204 = scmp.eq.s32.totalorder %s20, 1
    %p205 = por %p203, %p204
    %p206 = scmp.ne.s32.totalorder %s197, %s198
    %p207 = scmp.eq.s32.totalorder %s20, 0
    %p208 = por %p206, %p207
    %p209 = scmp.ne.s32.totalorder %s197, %s198
    %p210 = scmp.eq.s32.totalorder %s21, 1
    %p211 = por %p209, %p210
    %p213 = scmp.ne.s32.totalorder %s198, %s212
    %p214 = scmp.eq.s32.totalorder %s21, 0
    %p215 = por %p213, %p214
    %s217 = sadd.s32 %s216, 1
    %p220 = scmp.eq.s32.totalorder %s15, 1
    %p221 = scmp.ne.s32.totalorder %s216, %s218
    %p222 = scmp.eq.s32.totalorder %s15, 0
    %p223 = por %p221, %p222
    %p224 = scmp.ne.s32.totalorder %s216, %s218
    %p225 = scmp.eq.s32.totalorder %s20, 1
    %p226 = por %p224, %p225
    %p227 = scmp.ne.s32.totalorder %s218, %s219
    %p228 = scmp.eq.s32.totalorder %s20, 0
    %p229 = por %p227, %p228
    %p230 = scmp.ne.s32.totalorder %s218, %s219
    %p231 = scmp.eq.s32.totalorder %s21, 1
    %p232 = por %p230, %p231
    %p234 = scmp.ne.s32.totalorder %s219, %s233
    %p235 = scmp.eq.s32.totalorder %s21, 0
    %p236 = por %p234, %p235
    %s237 = ssub.s32 %s15, %s22
    %p238 = scmp.eq.s32.totalorder %s237, 0
    %s240 = sadd.s32 %s239, 1
    %s241 = scalar_select %p238, %s239, %s240
    %p244 = pneg %p238
    %p245 = scmp.eq.s32.totalorder %s15, 1
    %p246 = por %p244, %p245
    %p247 = scmp.ne.s32.totalorder %s239, %s242
    %p248 = scmp.eq.s32.totalorder %s15, 0
    %p249 = por %p247, %p248
    %p250 = scmp.ne.s32.totalorder %s239, %s242
    %p251 = scmp.eq.s32.totalorder %s20, 1
    %p252 = por %p250, %p251
    %p253 = scmp.ne.s32.totalorder %s242, %s243
    %p254 = scmp.eq.s32.totalorder %s20, 0
    %p255 = por %p253, %p254
    %p256 = scmp.ne.s32.totalorder %s242, %s243
    %p257 = scmp.eq.s32.totalorder %s21, 1
    %p258 = por %p256, %p257
    %p260 = scmp.ne.s32.totalorder %s243, %s259
    %p261 = scmp.eq.s32.totalorder %s21, 0
    %p262 = por %p260, %p261
    %p263 = scmp.le.s32.totalorder 1, %s15
    %p264 = scmp.lt.s32.totalorder %s15, 3
    %p265 = pnand %p263, %p264
    %p266 = pneg %p265
    // Predicated region
    $region9: #{refiner_forward.5} parent=5 // pred_check
      _
    $region10: #{refiner_forward.5} parent=5 // pred_check_branch
      %268 = sbr.rel (%p265) target = $region12
    $region11: #{refiner_forward.5} parent=5 // pred_region
      %s269 = ssub.s32 %s15, 1
      // Predicated region
      $region13: #{refiner_forward.5} parent=11 // pred_check
        %p270 = pneg %p166
      $region14: #{refiner_forward.5} parent=11 // pred_check_branch
        %272 = sbr.rel (%p270) target = $region16
      $region15: #{refiner_forward.5} parent=11 // pred_region
        _
      $region16: #{refiner_forward.5} parent=11 // pred_fallthru
        _
      // Predicated region
      $region17: #{refiner_forward.5} parent=11 // pred_check
        %p273 = pneg %p187
      $region18: #{refiner_forward.5} parent=11 // pred_check_branch
        %275 = sbr.rel (%p273) target = $region20
      $region19: #{refiner_forward.5} parent=11 // pred_region
        _
      $region20: #{refiner_forward.5} parent=11 // pred_fallthru
        _
      // Predicated region
      $region21: #{refiner_forward.5} parent=11 // pred_check
        %p276 = pneg %p208
      $region22: #{refiner_forward.5} parent=11 // pred_check_branch
        %278 = sbr.rel (%p276) target = $region24
      $region23: #{refiner_forward.5} parent=11 // pred_region
        _
      $region24: #{refiner_forward.5} parent=11 // pred_fallthru
        _
      // Predicated region
      $region25: #{refiner_forward.5} parent=11 // pred_check
        %p279 = pneg %p229
      $region26: #{refiner_forward.5} parent=11 // pred_check_branch
        %281 = sbr.rel (%p279) target = $region28
      $region27: #{refiner_forward.5} parent=11 // pred_region
        _
      $region28: #{refiner_forward.5} parent=11 // pred_fallthru
        _
    $region12: #{refiner_forward.5} parent=5 // pred_fallthru
      _
    %p282 = scmp.lt.s32.totalorder %s15, 2
    // Predicated region
    $region29: #{refiner_forward.5} parent=5 // pred_check
      %p283 = pneg %p282
    $region30: #{refiner_forward.5} parent=5 // pred_check_branch
      %285 = sbr.rel (%p283) target = $region32
    $region31: #{refiner_forward.5} parent=5 // pred_region
      // Predicated region
      $region33: #{refiner_forward.5} parent=31 // pred_check
        %p286 = pneg %p35
      $region34: #{refiner_forward.5} parent=31 // pred_check_branch
        %288 = sbr.rel (%p286) target = $region36
      $region35: #{refiner_forward.5} parent=31 // pred_region
        %s289 = smul.u32 16, %s15
        %p290 = scmp.lt.s32.totalorder %s289, 31
        %s291 = scalar_select %p290, %s289, 31
        %s292 = smul.addr %s291, 8
        %s293 = scalar_lea.vmem %s0, %s292
        %s294 = smul.u32 16, %s15
      $region36: #{refiner_forward.5} parent=31 // pred_fallthru
        _
      // Predicated region
      $region37: #{refiner_forward.5} parent=31 // pred_check
        %p295 = pneg %p61
      $region38: #{refiner_forward.5} parent=31 // pred_check_branch
        %297 = sbr.rel (%p295) target = $region40
      $region39: #{refiner_forward.5} parent=31 // pred_region
        %s298 = smul.u32 16, %s15
        %p299 = scmp.lt.s32.totalorder %s298, 31
        %s300 = scalar_select %p299, %s298, 31
        %s301 = smul.addr %s300, 8
        %s302 = scalar_lea.vmem %s1, %s301
        %s303 = smul.u32 16, %s15
      $region40: #{refiner_forward.5} parent=31 // pred_fallthru
        _
      // Predicated region
      $region41: #{refiner_forward.5} parent=31 // pred_check
        %p304 = pneg %p87
      $region42: #{refiner_forward.5} parent=31 // pred_check_branch
        %306 = sbr.rel (%p304) target = $region44
      $region43: #{refiner_forward.5} parent=31 // pred_region
        %s307 = smul.u32 16, %s15
        %p308 = scmp.lt.s32.totalorder %s307, 31
        %s309 = scalar_select %p308, %s307, 31
        %s310 = smul.addr %s309, 8
        %s311 = scalar_lea.vmem %s2, %s310
        %s312 = smul.u32 16, %s15
      $region44: #{refiner_forward.5} parent=31 // pred_fallthru
        _
      // Predicated region
      $region45: #{refiner_forward.5} parent=31 // pred_check
        %p313 = pneg %p113
      $region46: #{refiner_forward.5} parent=31 // pred_check_branch
        %315 = sbr.rel (%p313) target = $region48
      $region47: #{refiner_forward.5} parent=31 // pred_region
        %s316 = smul.u32 128, %s15
        %p317 = scmp.lt.s32.totalorder %s316, 255
        %s318 = scalar_select %p317, %s316, 255
        %s319 = smul.addr %s318, 4
        %s320 = scalar_lea.vmem %s3, %s319
        %s321 = smul.u32 128, %s15
      $region48: #{refiner_forward.5} parent=31 // pred_fallthru
        _
      // Predicated region
      $region49: #{refiner_forward.5} parent=31 // pred_check
        %p322 = pneg %p139
      $region50: #{refiner_forward.5} parent=31 // pred_check_branch
        %324 = sbr.rel (%p322) target = $region52
      $region51: #{refiner_forward.5} parent=31 // pred_region
        %s325 = smul.u32 128, %s15
        %p326 = scmp.lt.s32.totalorder %s325, 255
        %s327 = scalar_select %p326, %s325, 255
        %s328 = smul.addr %s327, 4
        %s329 = scalar_lea.vmem %s4, %s328
        %s330 = smul.u32 128, %s15
      $region52: #{refiner_forward.5} parent=31 // pred_fallthru
        _
    $region32: #{refiner_forward.5} parent=5 // pred_fallthru
      _
    %p331 = scmp.le.s32.totalorder 1, %s15
    %p332 = scmp.lt.s32.totalorder %s15, 3
    %p333 = pnand %p331, %p332
    %p334 = pneg %p333
    // Predicated region
    $region53: #{refiner_forward.5} parent=5 // pred_check
      _
    $region54: #{refiner_forward.5} parent=5 // pred_check_branch
      %336 = sbr.rel (%p333) target = $region56
    $region55: #{refiner_forward.5} parent=5 // pred_region
      %s337 = ssub.s32 %s15, 1
      %s338 = smul.u32 16, %s20
      %p339 = scmp.lt.s32.totalorder %s338, 31
      %s340 = scalar_select %p339, %s338, 31
      %s341 = smul.addr %s340, 8
      %s342 = scalar_lea.vmem %s0, %s341
      %p343 = pneg %p41
      %p344 = pneg %p38
      %s345 = smul.u32 16, %s20
      %p346 = scmp.lt.s32.totalorder %s345, 31
      %s347 = scalar_select %p346, %s345, 31
      %s348 = smul.addr %s347, 8
      %s349 = scalar_lea.vmem %s1, %s348
      %p350 = pneg %p67
      %p351 = pneg %p64
      %s352 = smul.u32 16, %s20
      %p353 = scmp.lt.s32.totalorder %s352, 31
      %s354 = scalar_select %p353, %s352, 31
      %s355 = smul.addr %s354, 8
      %s356 = scalar_lea.vmem %s2, %s355
      %p357 = pneg %p93
      %p358 = pneg %p90
      %s359 = smul.u32 128, %s20
      %p360 = scmp.lt.s32.totalorder %s359, 255
      %s361 = scalar_select %p360, %s359, 255
      %s362 = smul.addr %s361, 4
      %s363 = scalar_lea.vmem %s3, %s362
      %p364 = pneg %p119
      %p365 = pneg %p116
      %s366 = smul.u32 128, %s20
      %p367 = scmp.lt.s32.totalorder %s366, 255
      %s368 = scalar_select %p367, %s366, 255
      %s369 = smul.addr %s368, 4
      %s370 = scalar_lea.vmem %s4, %s369
      %p371 = pneg %p145
      %p372 = pneg %p142
      %p373 = pneg %p166
      %p374 = pneg %p163
      %p375 = pneg %p187
      %p376 = pneg %p184
      %p377 = pneg %p208
      %p378 = pneg %p205
      %p379 = pneg %p229
      %p380 = pneg %p226
      %p381 = pneg %p255
      %p382 = pneg %p252
      %s383 = smul.u32 16, %s20
      %p384 = scmp.lt.s32.totalorder %s383, 31
      %s385 = scalar_select %p384, %s383, 31
      %s386 = smul.addr %s385, 8
      %s387 = scalar_lea.vmem %s9, %s386
      %s388 = smul.u32 16, %s20
      %p389 = scmp.lt.s32.totalorder %s388, 31
      %s390 = scalar_select %p389, %s388, 31
      %s391 = smul.addr %s390, 8
      %s392 = scalar_lea.vmem %s0, %s391
      %s393 = smul.u32 16, %s20
      %s394 = smul.u32 16, %s20
      %p395 = scmp.lt.s32.totalorder %s394, 31
      %s396 = scalar_select %p395, %s394, 31
      %s397 = smul.addr %s396, 8
      %s398 = scalar_lea.vmem %s1, %s397
      %s399 = smul.u32 16, %s20
      %s400 = smul.u32 16, %s20
      %p401 = scmp.lt.s32.totalorder %s400, 31
      %s402 = scalar_select %p401, %s400, 31
      %s403 = smul.addr %s402, 8
      %s404 = scalar_lea.vmem %s2, %s403
      %s405 = smul.u32 16, %s20
      %s406 = smul.u32 128, %s20
      %p407 = scmp.lt.s32.totalorder %s406, 255
      %s408 = scalar_select %p407, %s406, 255
      %s409 = smul.addr %s408, 4
      %s410 = scalar_lea.vmem %s3, %s409
      %s411 = smul.u32 128, %s20
      %s412 = smul.u32 128, %s20
      %p413 = scmp.lt.s32.totalorder %s412, 255
      %s414 = scalar_select %p413, %s412, 255
      %s415 = smul.addr %s414, 4
      %s416 = scalar_lea.vmem %s4, %s415
      %s417 = smul.u32 128, %s20
      %s418 = smul.u32 16, %s20
      %p419 = scmp.lt.s32.totalorder %s418, 31
      %s420 = scalar_select %p419, %s418, 31
      %s421 = smul.addr %s420, 8
      %s422 = scalar_lea.vmem %s9, %s421
      %s423 = smul.u32 16, %s20
      %v425 = vld [vmem:[%s392] sm:$0xff]
      %v426 = vld [vmem:[%s392 + $0x8] sm:$0xff]
      %v427 = vld [vmem:[%s392 + $0x10] sm:$0xff]
      %v428 = vld [vmem:[%s392 + $0x18] sm:$0xff]
      %v429 = vld [vmem:[%s392 + $0x20] sm:$0xff]
      %v430 = vld [vmem:[%s392 + $0x28] sm:$0xff]
      %v431 = vld [vmem:[%s392 + $0x30] sm:$0xff]
      %v432 = vld [vmem:[%s392 + $0x38] sm:$0xff]
      %v433 = vld [vmem:[%s392 + $0x40] sm:$0xff]
      %v434 = vld [vmem:[%s392 + $0x48] sm:$0xff]
      %v435 = vld [vmem:[%s392 + $0x50] sm:$0xff]
      %v436 = vld [vmem:[%s392 + $0x58] sm:$0xff]
      %v437 = vld [vmem:[%s392 + $0x60] sm:$0xff]
      %v438 = vld [vmem:[%s392 + $0x68] sm:$0xff]
      %v439 = vld [vmem:[%s392 + $0x70] sm:$0xff]
      %v440 = vld [vmem:[%s392 + $0x78] sm:$0xff]
      %v441 = vld [vmem:[%s398] sm:$0xff]
      %v442 = vld [vmem:[%s398 + $0x8] sm:$0xff]
      %v443 = vld [vmem:[%s398 + $0x10] sm:$0xff]
      %v444 = vld [vmem:[%s398 + $0x18] sm:$0xff]
      %v445 = vld [vmem:[%s398 + $0x20] sm:$0xff]
      %v446 = vld [vmem:[%s398 + $0x28] sm:$0xff]
      %v447 = vld [vmem:[%s398 + $0x30] sm:$0xff]
      %v448 = vld [vmem:[%s398 + $0x38] sm:$0xff]
      %v449 = vld [vmem:[%s398 + $0x40] sm:$0xff]
      %v450 = vld [vmem:[%s398 + $0x48] sm:$0xff]
      %v451 = vld [vmem:[%s398 + $0x50] sm:$0xff]
      %v452 = vld [vmem:[%s398 + $0x58] sm:$0xff]
      %v453 = vld [vmem:[%s398 + $0x60] sm:$0xff]
      %v454 = vld [vmem:[%s398 + $0x68] sm:$0xff]
      %v455 = vld [vmem:[%s398 + $0x70] sm:$0xff]
      %v456 = vld [vmem:[%s398 + $0x78] sm:$0xff]
      %v457 = vld [vmem:[%s410] sm:$0xf]
      %v458 = vld [vmem:[%s410 + $0x4] sm:$0xf]
      %v459 = vld [vmem:[%s410 + $0x8] sm:$0xf]
      %v460 = vld [vmem:[%s410 + $0xc] sm:$0xf]
      %v461 = vld [vmem:[%s410 + $0x10] sm:$0xf]
      %v462 = vld [vmem:[%s410 + $0x14] sm:$0xf]
      %v463 = vld [vmem:[%s410 + $0x18] sm:$0xf]
      %v464 = vld [vmem:[%s410 + $0x1c] sm:$0xf]
      %v465 = vld [vmem:[%s410 + $0x20] sm:$0xf]
      %v466 = vld [vmem:[%s410 + $0x24] sm:$0xf]
      %v467 = vld [vmem:[%s410 + $0x28] sm:$0xf]
      %v468 = vld [vmem:[%s410 + $0x2c] sm:$0xf]
      %v469 = vld [vmem:[%s410 + $0x30] sm:$0xf]
      %v470 = vld [vmem:[%s410 + $0x34] sm:$0xf]
      %v471 = vld [vmem:[%s410 + $0x38] sm:$0xf]
      %v472 = vld [vmem:[%s410 + $0x3c] sm:$0xf]
      %v473 = vld [vmem:[%s410 + $0x40] sm:$0xf]
      %v474 = vld [vmem:[%s410 + $0x44] sm:$0xf]
      %v475 = vld [vmem:[%s410 + $0x48] sm:$0xf]
      %v476 = vld [vmem:[%s410 + $0x4c] sm:$0xf]
      %v477 = vld [vmem:[%s410 + $0x50] sm:$0xf]
      %v478 = vld [vmem:[%s410 + $0x54] sm:$0xf]
      %v479 = vld [vmem:[%s410 + $0x58] sm:$0xf]
      %v480 = vld [vmem:[%s410 + $0x5c] sm:$0xf]
      %v481 = vld [vmem:[%s410 + $0x60] sm:$0xf]
      %v482 = vld [vmem:[%s410 + $0x64] sm:$0xf]
      %v483 = vld [vmem:[%s410 + $0x68] sm:$0xf]
      %v484 = vld [vmem:[%s410 + $0x6c] sm:$0xf]
      %v485 = vld [vmem:[%s410 + $0x70] sm:$0xf]
      %v486 = vld [vmem:[%s410 + $0x74] sm:$0xf]
      %v487 = vld [vmem:[%s410 + $0x78] sm:$0xf]
      %v488 = vld [vmem:[%s410 + $0x7c] sm:$0xf]
      %v489 = vld [vmem:[%s410 + $0x80] sm:$0xf]
      %v490 = vld [vmem:[%s410 + $0x84] sm:$0xf]
      %v491 = vld [vmem:[%s410 + $0x88] sm:$0xf]
      %v492 = vld [vmem:[%s410 + $0x8c] sm:$0xf]
      %v493 = vld [vmem:[%s410 + $0x90] sm:$0xf]
      %v494 = vld [vmem:[%s410 + $0x94] sm:$0xf]
      %v495 = vld [vmem:[%s410 + $0x98] sm:$0xf]
      %v496 = vld [vmem:[%s410 + $0x9c] sm:$0xf]
      %v497 = vld [vmem:[%s410 + $0xa0] sm:$0xf]
      %v498 = vld [vmem:[%s410 + $0xa4] sm:$0xf]
      %v499 = vld [vmem:[%s410 + $0xa8] sm:$0xf]
      %v500 = vld [vmem:[%s410 + $0xac] sm:$0xf]
      %v501 = vld [vmem:[%s410 + $0xb0] sm:$0xf]
      %v502 = vld [vmem:[%s410 + $0xb4] sm:$0xf]
      %v503 = vld [vmem:[%s410 + $0xb8] sm:$0xf]
      %v504 = vld [vmem:[%s410 + $0xbc] sm:$0xf]
      %v505 = vld [vmem:[%s410 + $0xc0] sm:$0xf]
      %v506 = vld [vmem:[%s410 + $0xc4] sm:$0xf]
      %v507 = vld [vmem:[%s410 + $0xc8] sm:$0xf]
      %v508 = vld [vmem:[%s410 + $0xcc] sm:$0xf]
      %v509 = vld [vmem:[%s410 + $0xd0] sm:$0xf]
      %v510 = vld [vmem:[%s410 + $0xd4] sm:$0xf]
      %v511 = vld [vmem:[%s410 + $0xd8] sm:$0xf]
      %v512 = vld [vmem:[%s410 + $0xdc] sm:$0xf]
      %v513 = vld [vmem:[%s410 + $0xe0] sm:$0xf]
      %v514 = vld [vmem:[%s410 + $0xe4] sm:$0xf]
      %v515 = vld [vmem:[%s410 + $0xe8] sm:$0xf]
      %v516 = vld [vmem:[%s410 + $0xec] sm:$0xf]
      %v517 = vld [vmem:[%s410 + $0xf0] sm:$0xf]
      %v518 = vld [vmem:[%s410 + $0xf4] sm:$0xf]
      %v519 = vld [vmem:[%s410 + $0xf8] sm:$0xf]
      %v520 = vld [vmem:[%s410 + $0xfc] sm:$0xf]
      %v521 = vld [vmem:[%s410 + $0x100] sm:$0xf]
      %v522 = vld [vmem:[%s410 + $0x104] sm:$0xf]
      %v523 = vld [vmem:[%s410 + $0x108] sm:$0xf]
      %v524 = vld [vmem:[%s410 + $0x10c] sm:$0xf]
      %v525 = vld [vmem:[%s410 + $0x110] sm:$0xf]
      %v526 = vld [vmem:[%s410 + $0x114] sm:$0xf]
      %v527 = vld [vmem:[%s410 + $0x118] sm:$0xf]
      %v528 = vld [vmem:[%s410 + $0x11c] sm:$0xf]
      %v529 = vld [vmem:[%s410 + $0x120] sm:$0xf]
      %v530 = vld [vmem:[%s410 + $0x124] sm:$0xf]
      %v531 = vld [vmem:[%s410 + $0x128] sm:$0xf]
      %v532 = vld [vmem:[%s410 + $0x12c] sm:$0xf]
      %v533 = vld [vmem:[%s410 + $0x130] sm:$0xf]
      %v534 = vld [vmem:[%s410 + $0x134] sm:$0xf]
      %v535 = vld [vmem:[%s410 + $0x138] sm:$0xf]
      %v536 = vld [vmem:[%s410 + $0x13c] sm:$0xf]
      %v537 = vld [vmem:[%s410 + $0x140] sm:$0xf]
      %v538 = vld [vmem:[%s410 + $0x144] sm:$0xf]
      %v539 = vld [vmem:[%s410 + $0x148] sm:$0xf]
      %v540 = vld [vmem:[%s410 + $0x14c] sm:$0xf]
      %v541 = vld [vmem:[%s410 + $0x150] sm:$0xf]
      %v542 = vld [vmem:[%s410 + $0x154] sm:$0xf]
      %v543 = vld [vmem:[%s410 + $0x158] sm:$0xf]
      %v544 = vld [vmem:[%s410 + $0x15c] sm:$0xf]
      %v545 = vld [vmem:[%s410 + $0x160] sm:$0xf]
      %v546 = vld [vmem:[%s410 + $0x164] sm:$0xf]
      %v547 = vld [vmem:[%s410 + $0x168] sm:$0xf]
      %v548 = vld [vmem:[%s410 + $0x16c] sm:$0xf]
      %v549 = vld [vmem:[%s410 + $0x170] sm:$0xf]
      %v550 = vld [vmem:[%s410 + $0x174] sm:$0xf]
      %v551 = vld [vmem:[%s410 + $0x178] sm:$0xf]
      %v552 = vld [vmem:[%s410 + $0x17c] sm:$0xf]
      %v553 = vld [vmem:[%s410 + $0x180] sm:$0xf]
      %v554 = vld [vmem:[%s410 + $0x184] sm:$0xf]
      %v555 = vld [vmem:[%s410 + $0x188] sm:$0xf]
      %v556 = vld [vmem:[%s410 + $0x18c] sm:$0xf]
      %v557 = vld [vmem:[%s410 + $0x190] sm:$0xf]
      %v558 = vld [vmem:[%s410 + $0x194] sm:$0xf]
      %v559 = vld [vmem:[%s410 + $0x198] sm:$0xf]
      %v560 = vld [vmem:[%s410 + $0x19c] sm:$0xf]
      %v561 = vld [vmem:[%s410 + $0x1a0] sm:$0xf]
      %v562 = vld [vmem:[%s410 + $0x1a4] sm:$0xf]
      %v563 = vld [vmem:[%s410 + $0x1a8] sm:$0xf]
      %v564 = vld [vmem:[%s410 + $0x1ac] sm:$0xf]
      %v565 = vld [vmem:[%s410 + $0x1b0] sm:$0xf]
      %v566 = vld [vmem:[%s410 + $0x1b4] sm:$0xf]
      %v567 = vld [vmem:[%s410 + $0x1b8] sm:$0xf]
      %v568 = vld [vmem:[%s410 + $0x1bc] sm:$0xf]
      %v569 = vld [vmem:[%s410 + $0x1c0] sm:$0xf]
      %v570 = vld [vmem:[%s410 + $0x1c4] sm:$0xf]
      %v571 = vld [vmem:[%s410 + $0x1c8] sm:$0xf]
      %v572 = vld [vmem:[%s410 + $0x1cc] sm:$0xf]
      %v573 = vld [vmem:[%s410 + $0x1d0] sm:$0xf]
      %v574 = vld [vmem:[%s410 + $0x1d4] sm:$0xf]
      %v575 = vld [vmem:[%s410 + $0x1d8] sm:$0xf]
      %v576 = vld [vmem:[%s410 + $0x1dc] sm:$0xf]
      %v577 = vld [vmem:[%s410 + $0x1e0] sm:$0xf]
      %v578 = vld [vmem:[%s410 + $0x1e4] sm:$0xf]
      %v579 = vld [vmem:[%s410 + $0x1e8] sm:$0xf]
      %v580 = vld [vmem:[%s410 + $0x1ec] sm:$0xf]
      %v581 = vld [vmem:[%s410 + $0x1f0] sm:$0xf]
      %v582 = vld [vmem:[%s410 + $0x1f4] sm:$0xf]
      %v583 = vld [vmem:[%s410 + $0x1f8] sm:$0xf]
      %v584 = vld [vmem:[%s410 + $0x1fc] sm:$0xf]
      %v585 = vld [vmem:[%s416] sm:$0xf]
      %v586 = vld [vmem:[%s416 + $0x4] sm:$0xf]
      %v587 = vld [vmem:[%s416 + $0x8] sm:$0xf]
      %v588 = vld [vmem:[%s416 + $0xc] sm:$0xf]
      %v589 = vld [vmem:[%s416 + $0x10] sm:$0xf]
      %v590 = vld [vmem:[%s416 + $0x14] sm:$0xf]
      %v591 = vld [vmem:[%s416 + $0x18] sm:$0xf]
      %v592 = vld [vmem:[%s416 + $0x1c] sm:$0xf]
      %v593 = vld [vmem:[%s416 + $0x20] sm:$0xf]
      %v594 = vld [vmem:[%s416 + $0x24] sm:$0xf]
      %v595 = vld [vmem:[%s416 + $0x28] sm:$0xf]
      %v596 = vld [vmem:[%s416 + $0x2c] sm:$0xf]
      %v597 = vld [vmem:[%s416 + $0x30] sm:$0xf]
      %v598 = vld [vmem:[%s416 + $0x34] sm:$0xf]
      %v599 = vld [vmem:[%s416 + $0x38] sm:$0xf]
      %v600 = vld [vmem:[%s416 + $0x3c] sm:$0xf]
      %v601 = vld [vmem:[%s416 + $0x40] sm:$0xf]
      %v602 = vld [vmem:[%s416 + $0x44] sm:$0xf]
      %v603 = vld [vmem:[%s416 + $0x48] sm:$0xf]
      %v604 = vld [vmem:[%s416 + $0x4c] sm:$0xf]
      %v605 = vld [vmem:[%s416 + $0x50] sm:$0xf]
      %v606 = vld [vmem:[%s416 + $0x54] sm:$0xf]
      %v607 = vld [vmem:[%s416 + $0x58] sm:$0xf]
      %v608 = vld [vmem:[%s416 + $0x5c] sm:$0xf]
      %v609 = vld [vmem:[%s416 + $0x60] sm:$0xf]
      %v610 = vld [vmem:[%s416 + $0x64] sm:$0xf]
      %v611 = vld [vmem:[%s416 + $0x68] sm:$0xf]
      %v612 = vld [vmem:[%s416 + $0x6c] sm:$0xf]
      %v613 = vld [vmem:[%s416 + $0x70] sm:$0xf]
      %v614 = vld [vmem:[%s416 + $0x74] sm:$0xf]
      %v615 = vld [vmem:[%s416 + $0x78] sm:$0xf]
      %v616 = vld [vmem:[%s416 + $0x7c] sm:$0xf]
      %v617 = vld [vmem:[%s416 + $0x80] sm:$0xf]
      %v618 = vld [vmem:[%s416 + $0x84] sm:$0xf]
      %v619 = vld [vmem:[%s416 + $0x88] sm:$0xf]
      %v620 = vld [vmem:[%s416 + $0x8c] sm:$0xf]
      %v621 = vld [vmem:[%s416 + $0x90] sm:$0xf]
      %v622 = vld [vmem:[%s416 + $0x94] sm:$0xf]
      %v623 = vld [vmem:[%s416 + $0x98] sm:$0xf]
      %v624 = vld [vmem:[%s416 + $0x9c] sm:$0xf]
      %v625 = vld [vmem:[%s416 + $0xa0] sm:$0xf]
      %v626 = vld [vmem:[%s416 + $0xa4] sm:$0xf]
      %v627 = vld [vmem:[%s416 + $0xa8] sm:$0xf]
      %v628 = vld [vmem:[%s416 + $0xac] sm:$0xf]
      %v629 = vld [vmem:[%s416 + $0xb0] sm:$0xf]
      %v630 = vld [vmem:[%s416 + $0xb4] sm:$0xf]
      %v631 = vld [vmem:[%s416 + $0xb8] sm:$0xf]
      %v632 = vld [vmem:[%s416 + $0xbc] sm:$0xf]
      %v633 = vld [vmem:[%s416 + $0xc0] sm:$0xf]
      %v634 = vld [vmem:[%s416 + $0xc4] sm:$0xf]
      %v635 = vld [vmem:[%s416 + $0xc8] sm:$0xf]
      %v636 = vld [vmem:[%s416 + $0xcc] sm:$0xf]
      %v637 = vld [vmem:[%s416 + $0xd0] sm:$0xf]
      %v638 = vld [vmem:[%s416 + $0xd4] sm:$0xf]
      %v639 = vld [vmem:[%s416 + $0xd8] sm:$0xf]
      %v640 = vld [vmem:[%s416 + $0xdc] sm:$0xf]
      %v641 = vld [vmem:[%s416 + $0xe0] sm:$0xf]
      %v642 = vld [vmem:[%s416 + $0xe4] sm:$0xf]
      %v643 = vld [vmem:[%s416 + $0xe8] sm:$0xf]
      %v644 = vld [vmem:[%s416 + $0xec] sm:$0xf]
      %v645 = vld [vmem:[%s416 + $0xf0] sm:$0xf]
      %v646 = vld [vmem:[%s416 + $0xf4] sm:$0xf]
      %v647 = vld [vmem:[%s416 + $0xf8] sm:$0xf]
      %v648 = vld [vmem:[%s416 + $0xfc] sm:$0xf]
      %v649 = vld [vmem:[%s416 + $0x100] sm:$0xf]
      %v650 = vld [vmem:[%s416 + $0x104] sm:$0xf]
      %v651 = vld [vmem:[%s416 + $0x108] sm:$0xf]
      %v652 = vld [vmem:[%s416 + $0x10c] sm:$0xf]
      %v653 = vld [vmem:[%s416 + $0x110] sm:$0xf]
      %v654 = vld [vmem:[%s416 + $0x114] sm:$0xf]
      %v655 = vld [vmem:[%s416 + $0x118] sm:$0xf]
      %v656 = vld [vmem:[%s416 + $0x11c] sm:$0xf]
      %v657 = vld [vmem:[%s416 + $0x120] sm:$0xf]
      %v658 = vld [vmem:[%s416 + $0x124] sm:$0xf]
      %v659 = vld [vmem:[%s416 + $0x128] sm:$0xf]
      %v660 = vld [vmem:[%s416 + $0x12c] sm:$0xf]
      %v661 = vld [vmem:[%s416 + $0x130] sm:$0xf]
      %v662 = vld [vmem:[%s416 + $0x134] sm:$0xf]
      %v663 = vld [vmem:[%s416 + $0x138] sm:$0xf]
      %v664 = vld [vmem:[%s416 + $0x13c] sm:$0xf]
      %v665 = vld [vmem:[%s416 + $0x140] sm:$0xf]
      %v666 = vld [vmem:[%s416 + $0x144] sm:$0xf]
      %v667 = vld [vmem:[%s416 + $0x148] sm:$0xf]
      %v668 = vld [vmem:[%s416 + $0x14c] sm:$0xf]
      %v669 = vld [vmem:[%s416 + $0x150] sm:$0xf]
      %v670 = vld [vmem:[%s416 + $0x154] sm:$0xf]
      %v671 = vld [vmem:[%s416 + $0x158] sm:$0xf]
      %v672 = vld [vmem:[%s416 + $0x15c] sm:$0xf]
      %v673 = vld [vmem:[%s416 + $0x160] sm:$0xf]
      %v674 = vld [vmem:[%s416 + $0x164] sm:$0xf]
      %v675 = vld [vmem:[%s416 + $0x168] sm:$0xf]
      %v676 = vld [vmem:[%s416 + $0x16c] sm:$0xf]
      %v677 = vld [vmem:[%s416 + $0x170] sm:$0xf]
      %v678 = vld [vmem:[%s416 + $0x174] sm:$0xf]
      %v679 = vld [vmem:[%s416 + $0x178] sm:$0xf]
      %v680 = vld [vmem:[%s416 + $0x17c] sm:$0xf]
      %v681 = vld [vmem:[%s416 + $0x180] sm:$0xf]
      %v682 = vld [vmem:[%s416 + $0x184] sm:$0xf]
      %v683 = vld [vmem:[%s416 + $0x188] sm:$0xf]
      %v684 = vld [vmem:[%s416 + $0x18c] sm:$0xf]
      %v685 = vld [vmem:[%s416 + $0x190] sm:$0xf]
      %v686 = vld [vmem:[%s416 + $0x194] sm:$0xf]
      %v687 = vld [vmem:[%s416 + $0x198] sm:$0xf]
      %v688 = vld [vmem:[%s416 + $0x19c] sm:$0xf]
      %v689 = vld [vmem:[%s416 + $0x1a0] sm:$0xf]
      %v690 = vld [vmem:[%s416 + $0x1a4] sm:$0xf]
      %v691 = vld [vmem:[%s416 + $0x1a8] sm:$0xf]
      %v692 = vld [vmem:[%s416 + $0x1ac] sm:$0xf]
      %v693 = vld [vmem:[%s416 + $0x1b0] sm:$0xf]
      %v694 = vld [vmem:[%s416 + $0x1b4] sm:$0xf]
      %v695 = vld [vmem:[%s416 + $0x1b8] sm:$0xf]
      %v696 = vld [vmem:[%s416 + $0x1bc] sm:$0xf]
      %v697 = vld [vmem:[%s416 + $0x1c0] sm:$0xf]
      %v698 = vld [vmem:[%s416 + $0x1c4] sm:$0xf]
      %v699 = vld [vmem:[%s416 + $0x1c8] sm:$0xf]
      %v700 = vld [vmem:[%s416 + $0x1cc] sm:$0xf]
      %v701 = vld [vmem:[%s416 + $0x1d0] sm:$0xf]
      %v702 = vld [vmem:[%s416 + $0x1d4] sm:$0xf]
      %v703 = vld [vmem:[%s416 + $0x1d8] sm:$0xf]
      %v704 = vld [vmem:[%s416 + $0x1dc] sm:$0xf]
      %v705 = vld [vmem:[%s416 + $0x1e0] sm:$0xf]
      %v706 = vld [vmem:[%s416 + $0x1e4] sm:$0xf]
      %v707 = vld [vmem:[%s416 + $0x1e8] sm:$0xf]
      %v708 = vld [vmem:[%s416 + $0x1ec] sm:$0xf]
      %v709 = vld [vmem:[%s416 + $0x1f0] sm:$0xf]
      %v710 = vld [vmem:[%s416 + $0x1f4] sm:$0xf]
      %v711 = vld [vmem:[%s416 + $0x1f8] sm:$0xf]
      %v712 = vld [vmem:[%s416 + $0x1fc] sm:$0xf]
      %v729 = vcombine.high %v425, %v425
      %v731 = vunpack.c.l.s4 1966171168
      %v732 = vunpack.c.0.s8 %v731
      %v733 = vlaneseq
      %v734 = vshrl.u32 %v733, 7
      %v735 = vsub.s32 %v732, %v734
      %v736 = vrot.slane %v425, %v735
      %v738 = vunpack.c.l.s4 1966171168
      %v739 = vunpack.c.0.s8 %v738
      %v740 = vlaneseq
      %v741 = vshrl.u32 %v740, 7
      %v742 = vsub.s32 %v739, %v741
      %v743 = vrot.slane %v729, %v742
      %v744 = vcombine.high %v736, %v736
      %v745 = vcombine.high %v743, %v743
      %v747 = vunpack.c.l.s4 1966171168
      %v748 = vunpack.c.0.s8 %v747
      %v749 = vlaneseq
      %v750 = vshrl.u32 %v749, 7
      %v751 = vsub.s32 %v748, %v750
      %v752 = vrot.slane %v736, %v751
      %v754 = vunpack.c.l.s4 1966171168
      %v755 = vunpack.c.0.s8 %v754
      %v756 = vlaneseq
      %v757 = vshrl.u32 %v756, 7
      %v758 = vsub.s32 %v755, %v757
      %v759 = vrot.slane %v743, %v758
      %v761 = vunpack.c.l.s4 1966171168
      %v762 = vunpack.c.0.s8 %v761
      %v763 = vlaneseq
      %v764 = vshrl.u32 %v763, 7
      %v765 = vsub.s32 %v762, %v764
      %v766 = vrot.slane %v744, %v765
      %v768 = vunpack.c.l.s4 1966171168
      %v769 = vunpack.c.0.s8 %v768
      %v770 = vlaneseq
      %v771 = vshrl.u32 %v770, 7
      %v772 = vsub.s32 %v769, %v771
      %v773 = vrot.slane %v745, %v772
      %v774 = vcombine.high %v752, %v752
      %v775 = vcombine.high %v759, %v759
      %v776 = vcombine.high %v766, %v766
      %v777 = vcombine.high %v773, %v773
      %v778 = vcombine.high %v426, %v426
      %v780 = vunpack.c.l.s4 1966171168
      %v781 = vunpack.c.0.s8 %v780
      %v782 = vlaneseq
      %v783 = vshrl.u32 %v782, 7
      %v784 = vsub.s32 %v781, %v783
      %v785 = vrot.slane %v426, %v784
      %v787 = vunpack.c.l.s4 1966171168
      %v788 = vunpack.c.0.s8 %v787
      %v789 = vlaneseq
      %v790 = vshrl.u32 %v789, 7
      %v791 = vsub.s32 %v788, %v790
      %v792 = vrot.slane %v778, %v791
      %v793 = vcombine.high %v785, %v785
      %v794 = vcombine.high %v792, %v792
      %v796 = vunpack.c.l.s4 1966171168
      %v797 = vunpack.c.0.s8 %v796
      %v798 = vlaneseq
      %v799 = vshrl.u32 %v798, 7
      %v800 = vsub.s32 %v797, %v799
      %v801 = vrot.slane %v785, %v800
      %v803 = vunpack.c.l.s4 1966171168
      %v804 = vunpack.c.0.s8 %v803
      %v805 = vlaneseq
      %v806 = vshrl.u32 %v805, 7
      %v807 = vsub.s32 %v804, %v806
      %v808 = vrot.slane %v792, %v807
      %v810 = vunpack.c.l.s4 1966171168
      %v811 = vunpack.c.0.s8 %v810
      %v812 = vlaneseq
      %v813 = vshrl.u32 %v812, 7
      %v814 = vsub.s32 %v811, %v813
      %v815 = vrot.slane %v793, %v814
      %v817 = vunpack.c.l.s4 1966171168
      %v818 = vunpack.c.0.s8 %v817
      %v819 = vlaneseq
      %v820 = vshrl.u32 %v819, 7
      %v821 = vsub.s32 %v818, %v820
      %v822 = vrot.slane %v794, %v821
      %v823 = vcombine.high %v801, %v801
      %v824 = vcombine.high %v808, %v808
      %v825 = vcombine.high %v815, %v815
      %v826 = vcombine.high %v822, %v822
      %v827 = vcombine.high %v427, %v427
      %v829 = vunpack.c.l.s4 1966171168
      %v830 = vunpack.c.0.s8 %v829
      %v831 = vlaneseq
      %v832 = vshrl.u32 %v831, 7
      %v833 = vsub.s32 %v830, %v832
      %v834 = vrot.slane %v427, %v833
      %v836 = vunpack.c.l.s4 1966171168
      %v837 = vunpack.c.0.s8 %v836
      %v838 = vlaneseq
      %v839 = vshrl.u32 %v838, 7
      %v840 = vsub.s32 %v837, %v839
      %v841 = vrot.slane %v827, %v840
      %v842 = vcombine.high %v834, %v834
      %v843 = vcombine.high %v841, %v841
      %v845 = vunpack.c.l.s4 1966171168
      %v846 = vunpack.c.0.s8 %v845
      %v847 = vlaneseq
      %v848 = vshrl.u32 %v847, 7
      %v849 = vsub.s32 %v846, %v848
      %v850 = vrot.slane %v834, %v849
      %v852 = vunpack.c.l.s4 1966171168
      %v853 = vunpack.c.0.s8 %v852
      %v854 = vlaneseq
      %v855 = vshrl.u32 %v854, 7
      %v856 = vsub.s32 %v853, %v855
      %v857 = vrot.slane %v841, %v856
      %v859 = vunpack.c.l.s4 1966171168
      %v860 = vunpack.c.0.s8 %v859
      %v861 = vlaneseq
      %v862 = vshrl.u32 %v861, 7
      %v863 = vsub.s32 %v860, %v862
      %v864 = vrot.slane %v842, %v863
      %v866 = vunpack.c.l.s4 1966171168
      %v867 = vunpack.c.0.s8 %v866
      %v868 = vlaneseq
      %v869 = vshrl.u32 %v868, 7
      %v870 = vsub.s32 %v867, %v869
      %v871 = vrot.slane %v843, %v870
      %v872 = vcombine.high %v850, %v850
      %v873 = vcombine.high %v857, %v857
      %v874 = vcombine.high %v864, %v864
      %v875 = vcombine.high %v871, %v871
      %v876 = vcombine.high %v428, %v428
      %v878 = vunpack.c.l.s4 1966171168
      %v879 = vunpack.c.0.s8 %v878
      %v880 = vlaneseq
      %v881 = vshrl.u32 %v880, 7
      %v882 = vsub.s32 %v879, %v881
      %v883 = vrot.slane %v428, %v882
      %v885 = vunpack.c.l.s4 1966171168
      %v886 = vunpack.c.0.s8 %v885
      %v887 = vlaneseq
      %v888 = vshrl.u32 %v887, 7
      %v889 = vsub.s32 %v886, %v888
      %v890 = vrot.slane %v876, %v889
      %v891 = vcombine.high %v883, %v883
      %v892 = vcombine.high %v890, %v890
      %v894 = vunpack.c.l.s4 1966171168
      %v895 = vunpack.c.0.s8 %v894
      %v896 = vlaneseq
      %v897 = vshrl.u32 %v896, 7
      %v898 = vsub.s32 %v895, %v897
      %v899 = vrot.slane %v883, %v898
      %v901 = vunpack.c.l.s4 1966171168
      %v902 = vunpack.c.0.s8 %v901
      %v903 = vlaneseq
      %v904 = vshrl.u32 %v903, 7
      %v905 = vsub.s32 %v902, %v904
      %v906 = vrot.slane %v890, %v905
      %v908 = vunpack.c.l.s4 1966171168
      %v909 = vunpack.c.0.s8 %v908
      %v910 = vlaneseq
      %v911 = vshrl.u32 %v910, 7
      %v912 = vsub.s32 %v909, %v911
      %v913 = vrot.slane %v891, %v912
      %v915 = vunpack.c.l.s4 1966171168
      %v916 = vunpack.c.0.s8 %v915
      %v917 = vlaneseq
      %v918 = vshrl.u32 %v917, 7
      %v919 = vsub.s32 %v916, %v918
      %v920 = vrot.slane %v892, %v919
      %v921 = vcombine.high %v899, %v899
      %v922 = vcombine.high %v906, %v906
      %v923 = vcombine.high %v913, %v913
      %v924 = vcombine.high %v920, %v920
      %v925 = vcombine.high %v429, %v429
      %v927 = vunpack.c.l.s4 1966171168
      %v928 = vunpack.c.0.s8 %v927
      %v929 = vlaneseq
      %v930 = vshrl.u32 %v929, 7
      %v931 = vsub.s32 %v928, %v930
      %v932 = vrot.slane %v429, %v931
      %v934 = vunpack.c.l.s4 1966171168
      %v935 = vunpack.c.0.s8 %v934
      %v936 = vlaneseq
      %v937 = vshrl.u32 %v936, 7
      %v938 = vsub.s32 %v935, %v937
      %v939 = vrot.slane %v925, %v938
      %v940 = vcombine.high %v932, %v932
      %v941 = vcombine.high %v939, %v939
      %v943 = vunpack.c.l.s4 1966171168
      %v944 = vunpack.c.0.s8 %v943
      %v945 = vlaneseq
      %v946 = vshrl.u32 %v945, 7
      %v947 = vsub.s32 %v944, %v946
      %v948 = vrot.slane %v932, %v947
      %v950 = vunpack.c.l.s4 1966171168
      %v951 = vunpack.c.0.s8 %v950
      %v952 = vlaneseq
      %v953 = vshrl.u32 %v952, 7
      %v954 = vsub.s32 %v951, %v953
      %v955 = vrot.slane %v939, %v954
      %v957 = vunpack.c.l.s4 1966171168
      %v958 = vunpack.c.0.s8 %v957
      %v959 = vlaneseq
      %v960 = vshrl.u32 %v959, 7
      %v961 = vsub.s32 %v958, %v960
      %v962 = vrot.slane %v940, %v961
      %v964 = vunpack.c.l.s4 1966171168
      %v965 = vunpack.c.0.s8 %v964
      %v966 = vlaneseq
      %v967 = vshrl.u32 %v966, 7
      %v968 = vsub.s32 %v965, %v967
      %v969 = vrot.slane %v941, %v968
      %v970 = vcombine.high %v948, %v948
      %v971 = vcombine.high %v955, %v955
      %v972 = vcombine.high %v962, %v962
      %v973 = vcombine.high %v969, %v969
      %v974 = vcombine.high %v430, %v430
      %v976 = vunpack.c.l.s4 1966171168
      %v977 = vunpack.c.0.s8 %v976
      %v978 = vlaneseq
      %v979 = vshrl.u32 %v978, 7
      %v980 = vsub.s32 %v977, %v979
      %v981 = vrot.slane %v430, %v980
      %v983 = vunpack.c.l.s4 1966171168
      %v984 = vunpack.c.0.s8 %v983
      %v985 = vlaneseq
      %v986 = vshrl.u32 %v985, 7
      %v987 = vsub.s32 %v984, %v986
      %v988 = vrot.slane %v974, %v987
      %v989 = vcombine.high %v981, %v981
      %v990 = vcombine.high %v988, %v988
      %v992 = vunpack.c.l.s4 1966171168
      %v993 = vunpack.c.0.s8 %v992
      %v994 = vlaneseq
      %v995 = vshrl.u32 %v994, 7
      %v996 = vsub.s32 %v993, %v995
      %v997 = vrot.slane %v981, %v996
      %v999 = vunpack.c.l.s4 1966171168
      %v1000 = vunpack.c.0.s8 %v999
      %v1001 = vlaneseq
      %v1002 = vshrl.u32 %v1001, 7
      %v1003 = vsub.s32 %v1000, %v1002
      %v1004 = vrot.slane %v988, %v1003
      %v1006 = vunpack.c.l.s4 1966171168
      %v1007 = vunpack.c.0.s8 %v1006
      %v1008 = vlaneseq
      %v1009 = vshrl.u32 %v1008, 7
      %v1010 = vsub.s32 %v1007, %v1009
      %v1011 = vrot.slane %v989, %v1010
      %v1013 = vunpack.c.l.s4 1966171168
      %v1014 = vunpack.c.0.s8 %v1013
      %v1015 = vlaneseq
      %v1016 = vshrl.u32 %v1015, 7
      %v1017 = vsub.s32 %v1014, %v1016
      %v1018 = vrot.slane %v990, %v1017
      %v1019 = vcombine.high %v997, %v997
      %v1020 = vcombine.high %v1004, %v1004
      %v1021 = vcombine.high %v1011, %v1011
      %v1022 = vcombine.high %v1018, %v1018
      %v1023 = vcombine.high %v431, %v431
      %v1025 = vunpack.c.l.s4 1966171168
      %v1026 = vunpack.c.0.s8 %v1025
      %v1027 = vlaneseq
      %v1028 = vshrl.u32 %v1027, 7
      %v1029 = vsub.s32 %v1026, %v1028
      %v1030 = vrot.slane %v431, %v1029
      %v1032 = vunpack.c.l.s4 1966171168
      %v1033 = vunpack.c.0.s8 %v1032
      %v1034 = vlaneseq
      %v1035 = vshrl.u32 %v1034, 7
      %v1036 = vsub.s32 %v1033, %v1035
      %v1037 = vrot.slane %v1023, %v1036
      %v1038 = vcombine.high %v1030, %v1030
      %v1039 = vcombine.high %v1037, %v1037
      %v1041 = vunpack.c.l.s4 1966171168
      %v1042 = vunpack.c.0.s8 %v1041
      %v1043 = vlaneseq
      %v1044 = vshrl.u32 %v1043, 7
      %v1045 = vsub.s32 %v1042, %v1044
      %v1046 = vrot.slane %v1030, %v1045
      %v1048 = vunpack.c.l.s4 1966171168
      %v1049 = vunpack.c.0.s8 %v1048
      %v1050 = vlaneseq
      %v1051 = vshrl.u32 %v1050, 7
      %v1052 = vsub.s32 %v1049, %v1051
      %v1053 = vrot.slane %v1037, %v1052
      %v1055 = vunpack.c.l.s4 1966171168
      %v1056 = vunpack.c.0.s8 %v1055
      %v1057 = vlaneseq
      %v1058 = vshrl.u32 %v1057, 7
      %v1059 = vsub.s32 %v1056, %v1058
      %v1060 = vrot.slane %v1038, %v1059
      %v1062 = vunpack.c.l.s4 1966171168
      %v1063 = vunpack.c.0.s8 %v1062
      %v1064 = vlaneseq
      %v1065 = vshrl.u32 %v1064, 7
      %v1066 = vsub.s32 %v1063, %v1065
      %v1067 = vrot.slane %v1039, %v1066
      %v1068 = vcombine.high %v1046, %v1046
      %v1069 = vcombine.high %v1053, %v1053
      %v1070 = vcombine.high %v1060, %v1060
      %v1071 = vcombine.high %v1067, %v1067
      %v1072 = vcombine.high %v432, %v432
      %v1074 = vunpack.c.l.s4 1966171168
      %v1075 = vunpack.c.0.s8 %v1074
      %v1076 = vlaneseq
      %v1077 = vshrl.u32 %v1076, 7
      %v1078 = vsub.s32 %v1075, %v1077
      %v1079 = vrot.slane %v432, %v1078
      %v1081 = vunpack.c.l.s4 1966171168
      %v1082 = vunpack.c.0.s8 %v1081
      %v1083 = vlaneseq
      %v1084 = vshrl.u32 %v1083, 7
      %v1085 = vsub.s32 %v1082, %v1084
      %v1086 = vrot.slane %v1072, %v1085
      %v1087 = vcombine.high %v1079, %v1079
      %v1088 = vcombine.high %v1086, %v1086
      %v1090 = vunpack.c.l.s4 1966171168
      %v1091 = vunpack.c.0.s8 %v1090
      %v1092 = vlaneseq
      %v1093 = vshrl.u32 %v1092, 7
      %v1094 = vsub.s32 %v1091, %v1093
      %v1095 = vrot.slane %v1079, %v1094
      %v1097 = vunpack.c.l.s4 1966171168
      %v1098 = vunpack.c.0.s8 %v1097
      %v1099 = vlaneseq
      %v1100 = vshrl.u32 %v1099, 7
      %v1101 = vsub.s32 %v1098, %v1100
      %v1102 = vrot.slane %v1086, %v1101
      %v1104 = vunpack.c.l.s4 1966171168
      %v1105 = vunpack.c.0.s8 %v1104
      %v1106 = vlaneseq
      %v1107 = vshrl.u32 %v1106, 7
      %v1108 = vsub.s32 %v1105, %v1107
      %v1109 = vrot.slane %v1087, %v1108
      %v1111 = vunpack.c.l.s4 1966171168
      %v1112 = vunpack.c.0.s8 %v1111
      %v1113 = vlaneseq
      %v1114 = vshrl.u32 %v1113, 7
      %v1115 = vsub.s32 %v1112, %v1114
      %v1116 = vrot.slane %v1088, %v1115
      %v1117 = vcombine.high %v1095, %v1095
      %v1118 = vcombine.high %v1102, %v1102
      %v1119 = vcombine.high %v1109, %v1109
      %v1120 = vcombine.high %v1116, %v1116
      %v1121 = vcombine.high %v433, %v433
      %v1123 = vunpack.c.l.s4 1966171168
      %v1124 = vunpack.c.0.s8 %v1123
      %v1125 = vlaneseq
      %v1126 = vshrl.u32 %v1125, 7
      %v1127 = vsub.s32 %v1124, %v1126
      %v1128 = vrot.slane %v433, %v1127
      %v1130 = vunpack.c.l.s4 1966171168
      %v1131 = vunpack.c.0.s8 %v1130
      %v1132 = vlaneseq
      %v1133 = vshrl.u32 %v1132, 7
      %v1134 = vsub.s32 %v1131, %v1133
      %v1135 = vrot.slane %v1121, %v1134
      %v1136 = vcombine.high %v1128, %v1128
      %v1137 = vcombine.high %v1135, %v1135
      %v1139 = vunpack.c.l.s4 1966171168
      %v1140 = vunpack.c.0.s8 %v1139
      %v1141 = vlaneseq
      %v1142 = vshrl.u32 %v1141, 7
      %v1143 = vsub.s32 %v1140, %v1142
      %v1144 = vrot.slane %v1128, %v1143
      %v1146 = vunpack.c.l.s4 1966171168
      %v1147 = vunpack.c.0.s8 %v1146
      %v1148 = vlaneseq
      %v1149 = vshrl.u32 %v1148, 7
      %v1150 = vsub.s32 %v1147, %v1149
      %v1151 = vrot.slane %v1135, %v1150
      %v1153 = vunpack.c.l.s4 1966171168
      %v1154 = vunpack.c.0.s8 %v1153
      %v1155 = vlaneseq
      %v1156 = vshrl.u32 %v1155, 7
      %v1157 = vsub.s32 %v1154, %v1156
      %v1158 = vrot.slane %v1136, %v1157
      %v1160 = vunpack.c.l.s4 1966171168
      %v1161 = vunpack.c.0.s8 %v1160
      %v1162 = vlaneseq
      %v1163 = vshrl.u32 %v1162, 7
      %v1164 = vsub.s32 %v1161, %v1163
      %v1165 = vrot.slane %v1137, %v1164
      %v1166 = vcombine.high %v1144, %v1144
      %v1167 = vcombine.high %v1151, %v1151
      %v1168 = vcombine.high %v1158, %v1158
      %v1169 = vcombine.high %v1165, %v1165
      %v1170 = vcombine.high %v434, %v434
      %v1172 = vunpack.c.l.s4 1966171168
      %v1173 = vunpack.c.0.s8 %v1172
      %v1174 = vlaneseq
      %v1175 = vshrl.u32 %v1174, 7
      %v1176 = vsub.s32 %v1173, %v1175
      %v1177 = vrot.slane %v434, %v1176
      %v1179 = vunpack.c.l.s4 1966171168
      %v1180 = vunpack.c.0.s8 %v1179
      %v1181 = vlaneseq
      %v1182 = vshrl.u32 %v1181, 7
      %v1183 = vsub.s32 %v1180, %v1182
      %v1184 = vrot.slane %v1170, %v1183
      %v1185 = vcombine.high %v1177, %v1177
      %v1186 = vcombine.high %v1184, %v1184
      %v1188 = vunpack.c.l.s4 1966171168
      %v1189 = vunpack.c.0.s8 %v1188
      %v1190 = vlaneseq
      %v1191 = vshrl.u32 %v1190, 7
      %v1192 = vsub.s32 %v1189, %v1191
      %v1193 = vrot.slane %v1177, %v1192
      %v1195 = vunpack.c.l.s4 1966171168
      %v1196 = vunpack.c.0.s8 %v1195
      %v1197 = vlaneseq
      %v1198 = vshrl.u32 %v1197, 7
      %v1199 = vsub.s32 %v1196, %v1198
      %v1200 = vrot.slane %v1184, %v1199
      %v1202 = vunpack.c.l.s4 1966171168
      %v1203 = vunpack.c.0.s8 %v1202
      %v1204 = vlaneseq
      %v1205 = vshrl.u32 %v1204, 7
      %v1206 = vsub.s32 %v1203, %v1205
      %v1207 = vrot.slane %v1185, %v1206
      %v1209 = vunpack.c.l.s4 1966171168
      %v1210 = vunpack.c.0.s8 %v1209
      %v1211 = vlaneseq
      %v1212 = vshrl.u32 %v1211, 7
      %v1213 = vsub.s32 %v1210, %v1212
      %v1214 = vrot.slane %v1186, %v1213
      %v1215 = vcombine.high %v1193, %v1193
      %v1216 = vcombine.high %v1200, %v1200
      %v1217 = vcombine.high %v1207, %v1207
      %v1218 = vcombine.high %v1214, %v1214
      %v1219 = vcombine.high %v435, %v435
      %v1221 = vunpack.c.l.s4 1966171168
      %v1222 = vunpack.c.0.s8 %v1221
      %v1223 = vlaneseq
      %v1224 = vshrl.u32 %v1223, 7
      %v1225 = vsub.s32 %v1222, %v1224
      %v1226 = vrot.slane %v435, %v1225
      %v1228 = vunpack.c.l.s4 1966171168
      %v1229 = vunpack.c.0.s8 %v1228
      %v1230 = vlaneseq
      %v1231 = vshrl.u32 %v1230, 7
      %v1232 = vsub.s32 %v1229, %v1231
      %v1233 = vrot.slane %v1219, %v1232
      %v1234 = vcombine.high %v1226, %v1226
      %v1235 = vcombine.high %v1233, %v1233
      %v1237 = vunpack.c.l.s4 1966171168
      %v1238 = vunpack.c.0.s8 %v1237
      %v1239 = vlaneseq
      %v1240 = vshrl.u32 %v1239, 7
      %v1241 = vsub.s32 %v1238, %v1240
      %v1242 = vrot.slane %v1226, %v1241
      %v1244 = vunpack.c.l.s4 1966171168
      %v1245 = vunpack.c.0.s8 %v1244
      %v1246 = vlaneseq
      %v1247 = vshrl.u32 %v1246, 7
      %v1248 = vsub.s32 %v1245, %v1247
      %v1249 = vrot.slane %v1233, %v1248
      %v1251 = vunpack.c.l.s4 1966171168
      %v1252 = vunpack.c.0.s8 %v1251
      %v1253 = vlaneseq
      %v1254 = vshrl.u32 %v1253, 7
      %v1255 = vsub.s32 %v1252, %v1254
      %v1256 = vrot.slane %v1234, %v1255
      %v1258 = vunpack.c.l.s4 1966171168
      %v1259 = vunpack.c.0.s8 %v1258
      %v1260 = vlaneseq
      %v1261 = vshrl.u32 %v1260, 7
      %v1262 = vsub.s32 %v1259, %v1261
      %v1263 = vrot.slane %v1235, %v1262
      %v1264 = vcombine.high %v1242, %v1242
      %v1265 = vcombine.high %v1249, %v1249
      %v1266 = vcombine.high %v1256, %v1256
      %v1267 = vcombine.high %v1263, %v1263
      %v1268 = vcombine.high %v436, %v436
      %v1270 = vunpack.c.l.s4 1966171168
      %v1271 = vunpack.c.0.s8 %v1270
      %v1272 = vlaneseq
      %v1273 = vshrl.u32 %v1272, 7
      %v1274 = vsub.s32 %v1271, %v1273
      %v1275 = vrot.slane %v436, %v1274
      %v1277 = vunpack.c.l.s4 1966171168
      %v1278 = vunpack.c.0.s8 %v1277
      %v1279 = vlaneseq
      %v1280 = vshrl.u32 %v1279, 7
      %v1281 = vsub.s32 %v1278, %v1280
      %v1282 = vrot.slane %v1268, %v1281
      %v1283 = vcombine.high %v1275, %v1275
      %v1284 = vcombine.high %v1282, %v1282
      %v1286 = vunpack.c.l.s4 1966171168
      %v1287 = vunpack.c.0.s8 %v1286
      %v1288 = vlaneseq
      %v1289 = vshrl.u32 %v1288, 7
      %v1290 = vsub.s32 %v1287, %v1289
      %v1291 = vrot.slane %v1275, %v1290
      %v1293 = vunpack.c.l.s4 1966171168
      %v1294 = vunpack.c.0.s8 %v1293
      %v1295 = vlaneseq
      %v1296 = vshrl.u32 %v1295, 7
      %v1297 = vsub.s32 %v1294, %v1296
      %v1298 = vrot.slane %v1282, %v1297
      %v1300 = vunpack.c.l.s4 1966171168
      %v1301 = vunpack.c.0.s8 %v1300
      %v1302 = vlaneseq
      %v1303 = vshrl.u32 %v1302, 7
      %v1304 = vsub.s32 %v1301, %v1303
      %v1305 = vrot.slane %v1283, %v1304
      %v1307 = vunpack.c.l.s4 1966171168
      %v1308 = vunpack.c.0.s8 %v1307
      %v1309 = vlaneseq
      %v1310 = vshrl.u32 %v1309, 7
      %v1311 = vsub.s32 %v1308, %v1310
      %v1312 = vrot.slane %v1284, %v1311
      %v1313 = vcombine.high %v1291, %v1291
      %v1314 = vcombine.high %v1298, %v1298
      %v1315 = vcombine.high %v1305, %v1305
      %v1316 = vcombine.high %v1312, %v1312
      %v1317 = vcombine.high %v437, %v437
      %v1319 = vunpack.c.l.s4 1966171168
      %v1320 = vunpack.c.0.s8 %v1319
      %v1321 = vlaneseq
      %v1322 = vshrl.u32 %v1321, 7
      %v1323 = vsub.s32 %v1320, %v1322
      %v1324 = vrot.slane %v437, %v1323
      %v1326 = vunpack.c.l.s4 1966171168
      %v1327 = vunpack.c.0.s8 %v1326
      %v1328 = vlaneseq
      %v1329 = vshrl.u32 %v1328, 7
      %v1330 = vsub.s32 %v1327, %v1329
      %v1331 = vrot.slane %v1317, %v1330
      %v1332 = vcombine.high %v1324, %v1324
      %v1333 = vcombine.high %v1331, %v1331
      %v1335 = vunpack.c.l.s4 1966171168
      %v1336 = vunpack.c.0.s8 %v1335
      %v1337 = vlaneseq
      %v1338 = vshrl.u32 %v1337, 7
      %v1339 = vsub.s32 %v1336, %v1338
      %v1340 = vrot.slane %v1324, %v1339
      %v1342 = vunpack.c.l.s4 1966171168
      %v1343 = vunpack.c.0.s8 %v1342
      %v1344 = vlaneseq
      %v1345 = vshrl.u32 %v1344, 7
      %v1346 = vsub.s32 %v1343, %v1345
      %v1347 = vrot.slane %v1331, %v1346
      %v1349 = vunpack.c.l.s4 1966171168
      %v1350 = vunpack.c.0.s8 %v1349
      %v1351 = vlaneseq
      %v1352 = vshrl.u32 %v1351, 7
      %v1353 = vsub.s32 %v1350, %v1352
      %v1354 = vrot.slane %v1332, %v1353
      %v1356 = vunpack.c.l.s4 1966171168
      %v1357 = vunpack.c.0.s8 %v1356
      %v1358 = vlaneseq
      %v1359 = vshrl.u32 %v1358, 7
      %v1360 = vsub.s32 %v1357, %v1359
      %v1361 = vrot.slane %v1333, %v1360
      %v1362 = vcombine.high %v1340, %v1340
      %v1363 = vcombine.high %v1347, %v1347
      %v1364 = vcombine.high %v1354, %v1354
      %v1365 = vcombine.high %v1361, %v1361
      %v1366 = vcombine.high %v438, %v438
      %v1368 = vunpack.c.l.s4 1966171168
      %v1369 = vunpack.c.0.s8 %v1368
      %v1370 = vlaneseq
      %v1371 = vshrl.u32 %v1370, 7
      %v1372 = vsub.s32 %v1369, %v1371
      %v1373 = vrot.slane %v438, %v1372
      %v1375 = vunpack.c.l.s4 1966171168
      %v1376 = vunpack.c.0.s8 %v1375
      %v1377 = vlaneseq
      %v1378 = vshrl.u32 %v1377, 7
      %v1379 = vsub.s32 %v1376, %v1378
      %v1380 = vrot.slane %v1366, %v1379
      %v1381 = vcombine.high %v1373, %v1373
      %v1382 = vcombine.high %v1380, %v1380
      %v1384 = vunpack.c.l.s4 1966171168
      %v1385 = vunpack.c.0.s8 %v1384
      %v1386 = vlaneseq
      %v1387 = vshrl.u32 %v1386, 7
      %v1388 = vsub.s32 %v1385, %v1387
      %v1389 = vrot.slane %v1373, %v1388
      %v1391 = vunpack.c.l.s4 1966171168
      %v1392 = vunpack.c.0.s8 %v1391
      %v1393 = vlaneseq
      %v1394 = vshrl.u32 %v1393, 7
      %v1395 = vsub.s32 %v1392, %v1394
      %v1396 = vrot.slane %v1380, %v1395
      %v1398 = vunpack.c.l.s4 1966171168
      %v1399 = vunpack.c.0.s8 %v1398
      %v1400 = vlaneseq
      %v1401 = vshrl.u32 %v1400, 7
      %v1402 = vsub.s32 %v1399, %v1401
      %v1403 = vrot.slane %v1381, %v1402
      %v1405 = vunpack.c.l.s4 1966171168
      %v1406 = vunpack.c.0.s8 %v1405
      %v1407 = vlaneseq
      %v1408 = vshrl.u32 %v1407, 7
      %v1409 = vsub.s32 %v1406, %v1408
      %v1410 = vrot.slane %v1382, %v1409
      %v1411 = vcombine.high %v1389, %v1389
      %v1412 = vcombine.high %v1396, %v1396
      %v1413 = vcombine.high %v1403, %v1403
      %v1414 = vcombine.high %v1410, %v1410
      %v1415 = vcombine.high %v439, %v439
      %v1417 = vunpack.c.l.s4 1966171168
      %v1418 = vunpack.c.0.s8 %v1417
      %v1419 = vlaneseq
      %v1420 = vshrl.u32 %v1419, 7
      %v1421 = vsub.s32 %v1418, %v1420
      %v1422 = vrot.slane %v439, %v1421
      %v1424 = vunpack.c.l.s4 1966171168
      %v1425 = vunpack.c.0.s8 %v1424
      %v1426 = vlaneseq
      %v1427 = vshrl.u32 %v1426, 7
      %v1428 = vsub.s32 %v1425, %v1427
      %v1429 = vrot.slane %v1415, %v1428
      %v1430 = vcombine.high %v1422, %v1422
      %v1431 = vcombine.high %v1429, %v1429
      %v1433 = vunpack.c.l.s4 1966171168
      %v1434 = vunpack.c.0.s8 %v1433
      %v1435 = vlaneseq
      %v1436 = vshrl.u32 %v1435, 7
      %v1437 = vsub.s32 %v1434, %v1436
      %v1438 = vrot.slane %v1422, %v1437
      %v1440 = vunpack.c.l.s4 1966171168
      %v1441 = vunpack.c.0.s8 %v1440
      %v1442 = vlaneseq
      %v1443 = vshrl.u32 %v1442, 7
      %v1444 = vsub.s32 %v1441, %v1443
      %v1445 = vrot.slane %v1429, %v1444
      %v1447 = vunpack.c.l.s4 1966171168
      %v1448 = vunpack.c.0.s8 %v1447
      %v1449 = vlaneseq
      %v1450 = vshrl.u32 %v1449, 7
      %v1451 = vsub.s32 %v1448, %v1450
      %v1452 = vrot.slane %v1430, %v1451
      %v1454 = vunpack.c.l.s4 1966171168
      %v1455 = vunpack.c.0.s8 %v1454
      %v1456 = vlaneseq
      %v1457 = vshrl.u32 %v1456, 7
      %v1458 = vsub.s32 %v1455, %v1457
      %v1459 = vrot.slane %v1431, %v1458
      %v1460 = vcombine.high %v1438, %v1438
      %v1461 = vcombine.high %v1445, %v1445
      %v1462 = vcombine.high %v1452, %v1452
      %v1463 = vcombine.high %v1459, %v1459
      %v1464 = vcombine.high %v440, %v440
      %v1466 = vunpack.c.l.s4 1966171168
      %v1467 = vunpack.c.0.s8 %v1466
      %v1468 = vlaneseq
      %v1469 = vshrl.u32 %v1468, 7
      %v1470 = vsub.s32 %v1467, %v1469
      %v1471 = vrot.slane %v440, %v1470
      %v1473 = vunpack.c.l.s4 1966171168
      %v1474 = vunpack.c.0.s8 %v1473
      %v1475 = vlaneseq
      %v1476 = vshrl.u32 %v1475, 7
      %v1477 = vsub.s32 %v1474, %v1476
      %v1478 = vrot.slane %v1464, %v1477
      %v1479 = vcombine.high %v1471, %v1471
      %v1480 = vcombine.high %v1478, %v1478
      %v1482 = vunpack.c.l.s4 1966171168
      %v1483 = vunpack.c.0.s8 %v1482
      %v1484 = vlaneseq
      %v1485 = vshrl.u32 %v1484, 7
      %v1486 = vsub.s32 %v1483, %v1485
      %v1487 = vrot.slane %v1471, %v1486
      %v1489 = vunpack.c.l.s4 1966171168
      %v1490 = vunpack.c.0.s8 %v1489
      %v1491 = vlaneseq
      %v1492 = vshrl.u32 %v1491, 7
      %v1493 = vsub.s32 %v1490, %v1492
      %v1494 = vrot.slane %v1478, %v1493
      %v1496 = vunpack.c.l.s4 1966171168
      %v1497 = vunpack.c.0.s8 %v1496
      %v1498 = vlaneseq
      %v1499 = vshrl.u32 %v1498, 7
      %v1500 = vsub.s32 %v1497, %v1499
      %v1501 = vrot.slane %v1479, %v1500
      %v1503 = vunpack.c.l.s4 1966171168
      %v1504 = vunpack.c.0.s8 %v1503
      %v1505 = vlaneseq
      %v1506 = vshrl.u32 %v1505, 7
      %v1507 = vsub.s32 %v1504, %v1506
      %v1508 = vrot.slane %v1480, %v1507
      %v1509 = vcombine.high %v1487, %v1487
      %v1510 = vcombine.high %v1494, %v1494
      %v1511 = vcombine.high %v1501, %v1501
      %v1512 = vcombine.high %v1508, %v1508
      %v1513 = vlaneseq
      %v1514 = vshrl.u32 %v1513, 7
      %v1515 = vsub.s32 0, %v1514
      %v1516 = vrot.slane %v752, %v1515
      %v1517 = vlaneseq
      %v1518 = vshrl.u32 %v1517, 7
      %v1519 = vsub.s32 0, %v1518
      %v1520 = vrot.slane %v766, %v1519
      %v1521 = vlaneseq
      %v1522 = vshrl.u32 %v1521, 7
      %v1523 = vsub.s32 0, %v1522
      %v1524 = vrot.slane %v774, %v1523
      %v1525 = vlaneseq
      %v1526 = vshrl.u32 %v1525, 7
      %v1527 = vsub.s32 0, %v1526
      %v1528 = vrot.slane %v776, %v1527
      %v1529 = vlaneseq
      %v1530 = vshrl.u32 %v1529, 7
      %v1531 = vsub.s32 0, %v1530
      %v1532 = vrot.slane %v759, %v1531
      %v1533 = vlaneseq
      %v1534 = vshrl.u32 %v1533, 7
      %v1535 = vsub.s32 0, %v1534
      %v1536 = vrot.slane %v773, %v1535
      %v1537 = vlaneseq
      %v1538 = vshrl.u32 %v1537, 7
      %v1539 = vsub.s32 0, %v1538
      %v1540 = vrot.slane %v775, %v1539
      %v1541 = vlaneseq
      %v1542 = vshrl.u32 %v1541, 7
      %v1543 = vsub.s32 0, %v1542
      %v1544 = vrot.slane %v777, %v1543
      %v1545 = vlaneseq
      %v1546 = vshrl.u32 %v1545, 7
      %v1547 = vsub.s32 0, %v1546
      %v1548 = vrot.slane %v801, %v1547
      %v1549 = vlaneseq
      %v1550 = vshrl.u32 %v1549, 7
      %v1551 = vsub.s32 0, %v1550
      %v1552 = vrot.slane %v815, %v1551
      %v1553 = vlaneseq
      %v1554 = vshrl.u32 %v1553, 7
      %v1555 = vsub.s32 0, %v1554
      %v1556 = vrot.slane %v823, %v1555
      %v1557 = vlaneseq
      %v1558 = vshrl.u32 %v1557, 7
      %v1559 = vsub.s32 0, %v1558
      %v1560 = vrot.slane %v825, %v1559
      %v1561 = vlaneseq
      %v1562 = vshrl.u32 %v1561, 7
      %v1563 = vsub.s32 0, %v1562
      %v1564 = vrot.slane %v808, %v1563
      %v1565 = vlaneseq
      %v1566 = vshrl.u32 %v1565, 7
      %v1567 = vsub.s32 0, %v1566
      %v1568 = vrot.slane %v822, %v1567
      %v1569 = vlaneseq
      %v1570 = vshrl.u32 %v1569, 7
      %v1571 = vsub.s32 0, %v1570
      %v1572 = vrot.slane %v824, %v1571
      %v1573 = vlaneseq
      %v1574 = vshrl.u32 %v1573, 7
      %v1575 = vsub.s32 0, %v1574
      %v1576 = vrot.slane %v826, %v1575
      %v1577 = vlaneseq
      %v1578 = vshrl.u32 %v1577, 7
      %v1579 = vsub.s32 0, %v1578
      %v1580 = vrot.slane %v850, %v1579
      %v1581 = vlaneseq
      %v1582 = vshrl.u32 %v1581, 7
      %v1583 = vsub.s32 0, %v1582
      %v1584 = vrot.slane %v864, %v1583
      %v1585 = vlaneseq
      %v1586 = vshrl.u32 %v1585, 7
      %v1587 = vsub.s32 0, %v1586
      %v1588 = vrot.slane %v872, %v1587
      %v1589 = vlaneseq
      %v1590 = vshrl.u32 %v1589, 7
      %v1591 = vsub.s32 0, %v1590
      %v1592 = vrot.slane %v874, %v1591
      %v1593 = vlaneseq
      %v1594 = vshrl.u32 %v1593, 7
      %v1595 = vsub.s32 0, %v1594
      %v1596 = vrot.slane %v857, %v1595
      %v1597 = vlaneseq
      %v1598 = vshrl.u32 %v1597, 7
      %v1599 = vsub.s32 0, %v1598
      %v1600 = vrot.slane %v871, %v1599
      %v1601 = vlaneseq
      %v1602 = vshrl.u32 %v1601, 7
      %v1603 = vsub.s32 0, %v1602
      %v1604 = vrot.slane %v873, %v1603
      %v1605 = vlaneseq
      %v1606 = vshrl.u32 %v1605, 7
      %v1607 = vsub.s32 0, %v1606
      %v1608 = vrot.slane %v875, %v1607
      %v1609 = vlaneseq
      %v1610 = vshrl.u32 %v1609, 7
      %v1611 = vsub.s32 0, %v1610
      %v1612 = vrot.slane %v899, %v1611
      %v1613 = vlaneseq
      %v1614 = vshrl.u32 %v1613, 7
      %v1615 = vsub.s32 0, %v1614
      %v1616 = vrot.slane %v913, %v1615
      %v1617 = vlaneseq
      %v1618 = vshrl.u32 %v1617, 7
      %v1619 = vsub.s32 0, %v1618
      %v1620 = vrot.slane %v921, %v1619
      %v1621 = vlaneseq
      %v1622 = vshrl.u32 %v1621, 7
      %v1623 = vsub.s32 0, %v1622
      %v1624 = vrot.slane %v923, %v1623
      %v1625 = vlaneseq
      %v1626 = vshrl.u32 %v1625, 7
      %v1627 = vsub.s32 0, %v1626
      %v1628 = vrot.slane %v906, %v1627
      %v1629 = vlaneseq
      %v1630 = vshrl.u32 %v1629, 7
      %v1631 = vsub.s32 0, %v1630
      %v1632 = vrot.slane %v920, %v1631
      %v1633 = vlaneseq
      %v1634 = vshrl.u32 %v1633, 7
      %v1635 = vsub.s32 0, %v1634
      %v1636 = vrot.slane %v922, %v1635
      %v1637 = vlaneseq
      %v1638 = vshrl.u32 %v1637, 7
      %v1639 = vsub.s32 0, %v1638
      %v1640 = vrot.slane %v924, %v1639
      %v1641 = vlaneseq
      %v1642 = vshrl.u32 %v1641, 7
      %v1643 = vsub.s32 0, %v1642
      %v1644 = vrot.slane %v948, %v1643
      %v1645 = vlaneseq
      %v1646 = vshrl.u32 %v1645, 7
      %v1647 = vsub.s32 0, %v1646
      %v1648 = vrot.slane %v962, %v1647
      %v1649 = vlaneseq
      %v1650 = vshrl.u32 %v1649, 7
      %v1651 = vsub.s32 0, %v1650
      %v1652 = vrot.slane %v970, %v1651
      %v1653 = vlaneseq
      %v1654 = vshrl.u32 %v1653, 7
      %v1655 = vsub.s32 0, %v1654
      %v1656 = vrot.slane %v972, %v1655
      %v1657 = vlaneseq
      %v1658 = vshrl.u32 %v1657, 7
      %v1659 = vsub.s32 0, %v1658
      %v1660 = vrot.slane %v955, %v1659
      %v1661 = vlaneseq
      %v1662 = vshrl.u32 %v1661, 7
      %v1663 = vsub.s32 0, %v1662
      %v1664 = vrot.slane %v969, %v1663
      %v1665 = vlaneseq
      %v1666 = vshrl.u32 %v1665, 7
      %v1667 = vsub.s32 0, %v1666
      %v1668 = vrot.slane %v971, %v1667
      %v1669 = vlaneseq
      %v1670 = vshrl.u32 %v1669, 7
      %v1671 = vsub.s32 0, %v1670
      %v1672 = vrot.slane %v973, %v1671
      %v1673 = vlaneseq
      %v1674 = vshrl.u32 %v1673, 7
      %v1675 = vsub.s32 0, %v1674
      %v1676 = vrot.slane %v997, %v1675
      %v1677 = vlaneseq
      %v1678 = vshrl.u32 %v1677, 7
      %v1679 = vsub.s32 0, %v1678
      %v1680 = vrot.slane %v1011, %v1679
      %v1681 = vlaneseq
      %v1682 = vshrl.u32 %v1681, 7
      %v1683 = vsub.s32 0, %v1682
      %v1684 = vrot.slane %v1019, %v1683
      %v1685 = vlaneseq
      %v1686 = vshrl.u32 %v1685, 7
      %v1687 = vsub.s32 0, %v1686
      %v1688 = vrot.slane %v1021, %v1687
      %v1689 = vlaneseq
      %v1690 = vshrl.u32 %v1689, 7
      %v1691 = vsub.s32 0, %v1690
      %v1692 = vrot.slane %v1004, %v1691
      %v1693 = vlaneseq
      %v1694 = vshrl.u32 %v1693, 7
      %v1695 = vsub.s32 0, %v1694
      %v1696 = vrot.slane %v1018, %v1695
      %v1697 = vlaneseq
      %v1698 = vshrl.u32 %v1697, 7
      %v1699 = vsub.s32 0, %v1698
      %v1700 = vrot.slane %v1020, %v1699
      %v1701 = vlaneseq
      %v1702 = vshrl.u32 %v1701, 7
      %v1703 = vsub.s32 0, %v1702
      %v1704 = vrot.slane %v1022, %v1703
      %v1705 = vlaneseq
      %v1706 = vshrl.u32 %v1705, 7
      %v1707 = vsub.s32 0, %v1706
      %v1708 = vrot.slane %v1046, %v1707
      %v1709 = vlaneseq
      %v1710 = vshrl.u32 %v1709, 7
      %v1711 = vsub.s32 0, %v1710
      %v1712 = vrot.slane %v1060, %v1711
      %v1713 = vlaneseq
      %v1714 = vshrl.u32 %v1713, 7
      %v1715 = vsub.s32 0, %v1714
      %v1716 = vrot.slane %v1068, %v1715
      %v1717 = vlaneseq
      %v1718 = vshrl.u32 %v1717, 7
      %v1719 = vsub.s32 0, %v1718
      %v1720 = vrot.slane %v1070, %v1719
      %v1721 = vlaneseq
      %v1722 = vshrl.u32 %v1721, 7
      %v1723 = vsub.s32 0, %v1722
      %v1724 = vrot.slane %v1053, %v1723
      %v1725 = vlaneseq
      %v1726 = vshrl.u32 %v1725, 7
      %v1727 = vsub.s32 0, %v1726
      %v1728 = vrot.slane %v1067, %v1727
      %v1729 = vlaneseq
      %v1730 = vshrl.u32 %v1729, 7
      %v1731 = vsub.s32 0, %v1730
      %v1732 = vrot.slane %v1069, %v1731
      %v1733 = vlaneseq
      %v1734 = vshrl.u32 %v1733, 7
      %v1735 = vsub.s32 0, %v1734
      %v1736 = vrot.slane %v1071, %v1735
      %v1737 = vlaneseq
      %v1738 = vshrl.u32 %v1737, 7
      %v1739 = vsub.s32 0, %v1738
      %v1740 = vrot.slane %v1095, %v1739
      %v1741 = vlaneseq
      %v1742 = vshrl.u32 %v1741, 7
      %v1743 = vsub.s32 0, %v1742
      %v1744 = vrot.slane %v1109, %v1743
      %v1745 = vlaneseq
      %v1746 = vshrl.u32 %v1745, 7
      %v1747 = vsub.s32 0, %v1746
      %v1748 = vrot.slane %v1117, %v1747
      %v1749 = vlaneseq
      %v1750 = vshrl.u32 %v1749, 7
      %v1751 = vsub.s32 0, %v1750
      %v1752 = vrot.slane %v1119, %v1751
      %v1753 = vlaneseq
      %v1754 = vshrl.u32 %v1753, 7
      %v1755 = vsub.s32 0, %v1754
      %v1756 = vrot.slane %v1102, %v1755
      %v1757 = vlaneseq
      %v1758 = vshrl.u32 %v1757, 7
      %v1759 = vsub.s32 0, %v1758
      %v1760 = vrot.slane %v1116, %v1759
      %v1761 = vlaneseq
      %v1762 = vshrl.u32 %v1761, 7
      %v1763 = vsub.s32 0, %v1762
      %v1764 = vrot.slane %v1118, %v1763
      %v1765 = vlaneseq
      %v1766 = vshrl.u32 %v1765, 7
      %v1767 = vsub.s32 0, %v1766
      %v1768 = vrot.slane %v1120, %v1767
      %v1769 = vlaneseq
      %v1770 = vshrl.u32 %v1769, 7
      %v1771 = vsub.s32 0, %v1770
      %v1772 = vrot.slane %v1144, %v1771
      %v1773 = vlaneseq
      %v1774 = vshrl.u32 %v1773, 7
      %v1775 = vsub.s32 0, %v1774
      %v1776 = vrot.slane %v1158, %v1775
      %v1777 = vlaneseq
      %v1778 = vshrl.u32 %v1777, 7
      %v1779 = vsub.s32 0, %v1778
      %v1780 = vrot.slane %v1166, %v1779
      %v1781 = vlaneseq
      %v1782 = vshrl.u32 %v1781, 7
      %v1783 = vsub.s32 0, %v1782
      %v1784 = vrot.slane %v1168, %v1783
      %v1785 = vlaneseq
      %v1786 = vshrl.u32 %v1785, 7
      %v1787 = vsub.s32 0, %v1786
      %v1788 = vrot.slane %v1151, %v1787
      %v1789 = vlaneseq
      %v1790 = vshrl.u32 %v1789, 7
      %v1791 = vsub.s32 0, %v1790
      %v1792 = vrot.slane %v1165, %v1791
      %v1793 = vlaneseq
      %v1794 = vshrl.u32 %v1793, 7
      %v1795 = vsub.s32 0, %v1794
      %v1796 = vrot.slane %v1167, %v1795
      %v1797 = vlaneseq
      %v1798 = vshrl.u32 %v1797, 7
      %v1799 = vsub.s32 0, %v1798
      %v1800 = vrot.slane %v1169, %v1799
      %v1801 = vlaneseq
      %v1802 = vshrl.u32 %v1801, 7
      %v1803 = vsub.s32 0, %v1802
      %v1804 = vrot.slane %v1193, %v1803
      %v1805 = vlaneseq
      %v1806 = vshrl.u32 %v1805, 7
      %v1807 = vsub.s32 0, %v1806
      %v1808 = vrot.slane %v1207, %v1807
      %v1809 = vlaneseq
      %v1810 = vshrl.u32 %v1809, 7
      %v1811 = vsub.s32 0, %v1810
      %v1812 = vrot.slane %v1215, %v1811
      %v1813 = vlaneseq
      %v1814 = vshrl.u32 %v1813, 7
      %v1815 = vsub.s32 0, %v1814
      %v1816 = vrot.slane %v1217, %v1815
      %v1817 = vlaneseq
      %v1818 = vshrl.u32 %v1817, 7
      %v1819 = vsub.s32 0, %v1818
      %v1820 = vrot.slane %v1200, %v1819
      %v1821 = vlaneseq
      %v1822 = vshrl.u32 %v1821, 7
      %v1823 = vsub.s32 0, %v1822
      %v1824 = vrot.slane %v1214, %v1823
      %v1825 = vlaneseq
      %v1826 = vshrl.u32 %v1825, 7
      %v1827 = vsub.s32 0, %v1826
      %v1828 = vrot.slane %v1216, %v1827
      %v1829 = vlaneseq
      %v1830 = vshrl.u32 %v1829, 7
      %v1831 = vsub.s32 0, %v1830
      %v1832 = vrot.slane %v1218, %v1831
      %v1833 = vlaneseq
      %v1834 = vshrl.u32 %v1833, 7
      %v1835 = vsub.s32 0, %v1834
      %v1836 = vrot.slane %v1242, %v1835
      %v1837 = vlaneseq
      %v1838 = vshrl.u32 %v1837, 7
      %v1839 = vsub.s32 0, %v1838
      %v1840 = vrot.slane %v1256, %v1839
      %v1841 = vlaneseq
      %v1842 = vshrl.u32 %v1841, 7
      %v1843 = vsub.s32 0, %v1842
      %v1844 = vrot.slane %v1264, %v1843
      %v1845 = vlaneseq
      %v1846 = vshrl.u32 %v1845, 7
      %v1847 = vsub.s32 0, %v1846
      %v1848 = vrot.slane %v1266, %v1847
      %v1849 = vlaneseq
      %v1850 = vshrl.u32 %v1849, 7
      %v1851 = vsub.s32 0, %v1850
      %v1852 = vrot.slane %v1249, %v1851
      %v1853 = vlaneseq
      %v1854 = vshrl.u32 %v1853, 7
      %v1855 = vsub.s32 0, %v1854
      %v1856 = vrot.slane %v1263, %v1855
      %v1857 = vlaneseq
      %v1858 = vshrl.u32 %v1857, 7
      %v1859 = vsub.s32 0, %v1858
      %v1860 = vrot.slane %v1265, %v1859
      %v1861 = vlaneseq
      %v1862 = vshrl.u32 %v1861, 7
      %v1863 = vsub.s32 0, %v1862
      %v1864 = vrot.slane %v1267, %v1863
      %v1865 = vlaneseq
      %v1866 = vshrl.u32 %v1865, 7
      %v1867 = vsub.s32 0, %v1866
      %v1868 = vrot.slane %v1291, %v1867
      %v1869 = vlaneseq
      %v1870 = vshrl.u32 %v1869, 7
      %v1871 = vsub.s32 0, %v1870
      %v1872 = vrot.slane %v1305, %v1871
      %v1873 = vlaneseq
      %v1874 = vshrl.u32 %v1873, 7
      %v1875 = vsub.s32 0, %v1874
      %v1876 = vrot.slane %v1313, %v1875
      %v1877 = vlaneseq
      %v1878 = vshrl.u32 %v1877, 7
      %v1879 = vsub.s32 0, %v1878
      %v1880 = vrot.slane %v1315, %v1879
      %v1881 = vlaneseq
      %v1882 = vshrl.u32 %v1881, 7
      %v1883 = vsub.s32 0, %v1882
      %v1884 = vrot.slane %v1298, %v1883
      %v1885 = vlaneseq
      %v1886 = vshrl.u32 %v1885, 7
      %v1887 = vsub.s32 0, %v1886
      %v1888 = vrot.slane %v1312, %v1887
      %v1889 = vlaneseq
      %v1890 = vshrl.u32 %v1889, 7
      %v1891 = vsub.s32 0, %v1890
      %v1892 = vrot.slane %v1314, %v1891
      %v1893 = vlaneseq
      %v1894 = vshrl.u32 %v1893, 7
      %v1895 = vsub.s32 0, %v1894
      %v1896 = vrot.slane %v1316, %v1895
      %v1897 = vlaneseq
      %v1898 = vshrl.u32 %v1897, 7
      %v1899 = vsub.s32 0, %v1898
      %v1900 = vrot.slane %v1340, %v1899
      %v1901 = vlaneseq
      %v1902 = vshrl.u32 %v1901, 7
      %v1903 = vsub.s32 0, %v1902
      %v1904 = vrot.slane %v1354, %v1903
      %v1905 = vlaneseq
      %v1906 = vshrl.u32 %v1905, 7
      %v1907 = vsub.s32 0, %v1906
      %v1908 = vrot.slane %v1362, %v1907
      %v1909 = vlaneseq
      %v1910 = vshrl.u32 %v1909, 7
      %v1911 = vsub.s32 0, %v1910
      %v1912 = vrot.slane %v1364, %v1911
      %v1913 = vlaneseq
      %v1914 = vshrl.u32 %v1913, 7
      %v1915 = vsub.s32 0, %v1914
      %v1916 = vrot.slane %v1347, %v1915
      %v1917 = vlaneseq
      %v1918 = vshrl.u32 %v1917, 7
      %v1919 = vsub.s32 0, %v1918
      %v1920 = vrot.slane %v1361, %v1919
      %v1921 = vlaneseq
      %v1922 = vshrl.u32 %v1921, 7
      %v1923 = vsub.s32 0, %v1922
      %v1924 = vrot.slane %v1363, %v1923
      %v1925 = vlaneseq
      %v1926 = vshrl.u32 %v1925, 7
      %v1927 = vsub.s32 0, %v1926
      %v1928 = vrot.slane %v1365, %v1927
      %v1929 = vlaneseq
      %v1930 = vshrl.u32 %v1929, 7
      %v1931 = vsub.s32 0, %v1930
      %v1932 = vrot.slane %v1389, %v1931
      %v1933 = vlaneseq
      %v1934 = vshrl.u32 %v1933, 7
      %v1935 = vsub.s32 0, %v1934
      %v1936 = vrot.slane %v1403, %v1935
      %v1937 = vlaneseq
      %v1938 = vshrl.u32 %v1937, 7
      %v1939 = vsub.s32 0, %v1938
      %v1940 = vrot.slane %v1411, %v1939
      %v1941 = vlaneseq
      %v1942 = vshrl.u32 %v1941, 7
      %v1943 = vsub.s32 0, %v1942
      %v1944 = vrot.slane %v1413, %v1943
      %v1945 = vlaneseq
      %v1946 = vshrl.u32 %v1945, 7
      %v1947 = vsub.s32 0, %v1946
      %v1948 = vrot.slane %v1396, %v1947
      %v1949 = vlaneseq
      %v1950 = vshrl.u32 %v1949, 7
      %v1951 = vsub.s32 0, %v1950
      %v1952 = vrot.slane %v1410, %v1951
      %v1953 = vlaneseq
      %v1954 = vshrl.u32 %v1953, 7
      %v1955 = vsub.s32 0, %v1954
      %v1956 = vrot.slane %v1412, %v1955
      %v1957 = vlaneseq
      %v1958 = vshrl.u32 %v1957, 7
      %v1959 = vsub.s32 0, %v1958
      %v1960 = vrot.slane %v1414, %v1959
      %v1961 = vlaneseq
      %v1962 = vshrl.u32 %v1961, 7
      %v1963 = vsub.s32 0, %v1962
      %v1964 = vrot.slane %v1438, %v1963
      %v1965 = vlaneseq
      %v1966 = vshrl.u32 %v1965, 7
      %v1967 = vsub.s32 0, %v1966
      %v1968 = vrot.slane %v1452, %v1967
      %v1969 = vlaneseq
      %v1970 = vshrl.u32 %v1969, 7
      %v1971 = vsub.s32 0, %v1970
      %v1972 = vrot.slane %v1460, %v1971
      %v1973 = vlaneseq
      %v1974 = vshrl.u32 %v1973, 7
      %v1975 = vsub.s32 0, %v1974
      %v1976 = vrot.slane %v1462, %v1975
      %v1977 = vlaneseq
      %v1978 = vshrl.u32 %v1977, 7
      %v1979 = vsub.s32 0, %v1978
      %v1980 = vrot.slane %v1445, %v1979
      %v1981 = vlaneseq
      %v1982 = vshrl.u32 %v1981, 7
      %v1983 = vsub.s32 0, %v1982
      %v1984 = vrot.slane %v1459, %v1983
      %v1985 = vlaneseq
      %v1986 = vshrl.u32 %v1985, 7
      %v1987 = vsub.s32 0, %v1986
      %v1988 = vrot.slane %v1461, %v1987
      %v1989 = vlaneseq
      %v1990 = vshrl.u32 %v1989, 7
      %v1991 = vsub.s32 0, %v1990
      %v1992 = vrot.slane %v1463, %v1991
      %v1993 = vlaneseq
      %v1994 = vshrl.u32 %v1993, 7
      %v1995 = vsub.s32 0, %v1994
      %v1996 = vrot.slane %v1487, %v1995
      %v1997 = vlaneseq
      %v1998 = vshrl.u32 %v1997, 7
      %v1999 = vsub.s32 0, %v1998
      %v2000 = vrot.slane %v1501, %v1999
      %v2001 = vlaneseq
      %v2002 = vshrl.u32 %v2001, 7
      %v2003 = vsub.s32 0, %v2002
      %v2004 = vrot.slane %v1509, %v2003
      %v2005 = vlaneseq
      %v2006 = vshrl.u32 %v2005, 7
      %v2007 = vsub.s32 0, %v2006
      %v2008 = vrot.slane %v1511, %v2007
      %v2009 = vlaneseq
      %v2010 = vshrl.u32 %v2009, 7
      %v2011 = vsub.s32 0, %v2010
      %v2012 = vrot.slane %v1494, %v2011
      %v2013 = vlaneseq
      %v2014 = vshrl.u32 %v2013, 7
      %v2015 = vsub.s32 0, %v2014
      %v2016 = vrot.slane %v1508, %v2015
      %v2017 = vlaneseq
      %v2018 = vshrl.u32 %v2017, 7
      %v2019 = vsub.s32 0, %v2018
      %v2020 = vrot.slane %v1510, %v2019
      %v2021 = vlaneseq
      %v2022 = vshrl.u32 %v2021, 7
      %v2023 = vsub.s32 0, %v2022
      %v2024 = vrot.slane %v1512, %v2023
      %v2153 = vsub.f32 %v1516, %v457
      %v2154 = vsub.f32 %v1520, %v458
      %v2155 = vsub.f32 %v1524, %v459
      %v2156 = vsub.f32 %v1528, %v460
      %v2157 = vsub.f32 %v1532, %v461
      %v2158 = vsub.f32 %v1536, %v462
      %v2159 = vsub.f32 %v1540, %v463
      %v2160 = vsub.f32 %v1544, %v464
      %v2161 = vsub.f32 %v1548, %v465
      %v2162 = vsub.f32 %v1552, %v466
      %v2163 = vsub.f32 %v1556, %v467
      %v2164 = vsub.f32 %v1560, %v468
      %v2165 = vsub.f32 %v1564, %v469
      %v2166 = vsub.f32 %v1568, %v470
      %v2167 = vsub.f32 %v1572, %v471
      %v2168 = vsub.f32 %v1576, %v472
      %v2169 = vsub.f32 %v1580, %v473
      %v2170 = vsub.f32 %v1584, %v474
      %v2171 = vsub.f32 %v1588, %v475
      %v2172 = vsub.f32 %v1592, %v476
      %v2173 = vsub.f32 %v1596, %v477
      %v2174 = vsub.f32 %v1600, %v478
      %v2175 = vsub.f32 %v1604, %v479
      %v2176 = vsub.f32 %v1608, %v480
      %v2177 = vsub.f32 %v1612, %v481
      %v2178 = vsub.f32 %v1616, %v482
      %v2179 = vsub.f32 %v1620, %v483
      %v2180 = vsub.f32 %v1624, %v484
      %v2181 = vsub.f32 %v1628, %v485
      %v2182 = vsub.f32 %v1632, %v486
      %v2183 = vsub.f32 %v1636, %v487
      %v2184 = vsub.f32 %v1640, %v488
      %v2185 = vsub.f32 %v1644, %v489
      %v2186 = vsub.f32 %v1648, %v490
      %v2187 = vsub.f32 %v1652, %v491
      %v2188 = vsub.f32 %v1656, %v492
      %v2189 = vsub.f32 %v1660, %v493
      %v2190 = vsub.f32 %v1664, %v494
      %v2191 = vsub.f32 %v1668, %v495
      %v2192 = vsub.f32 %v1672, %v496
      %v2193 = vsub.f32 %v1676, %v497
      %v2194 = vsub.f32 %v1680, %v498
      %v2195 = vsub.f32 %v1684, %v499
      %v2196 = vsub.f32 %v1688, %v500
      %v2197 = vsub.f32 %v1692, %v501
      %v2198 = vsub.f32 %v1696, %v502
      %v2199 = vsub.f32 %v1700, %v503
      %v2200 = vsub.f32 %v1704, %v504
      %v2201 = vsub.f32 %v1708, %v505
      %v2202 = vsub.f32 %v1712, %v506
      %v2203 = vsub.f32 %v1716, %v507
      %v2204 = vsub.f32 %v1720, %v508
      %v2205 = vsub.f32 %v1724, %v509
      %v2206 = vsub.f32 %v1728, %v510
      %v2207 = vsub.f32 %v1732, %v511
      %v2208 = vsub.f32 %v1736, %v512
      %v2209 = vsub.f32 %v1740, %v513
      %v2210 = vsub.f32 %v1744, %v514
      %v2211 = vsub.f32 %v1748, %v515
      %v2212 = vsub.f32 %v1752, %v516
      %v2213 = vsub.f32 %v1756, %v517
      %v2214 = vsub.f32 %v1760, %v518
      %v2215 = vsub.f32 %v1764, %v519
      %v2216 = vsub.f32 %v1768, %v520
      %v2217 = vsub.f32 %v1772, %v521
      %v2218 = vsub.f32 %v1776, %v522
      %v2219 = vsub.f32 %v1780, %v523
      %v2220 = vsub.f32 %v1784, %v524
      %v2221 = vsub.f32 %v1788, %v525
      %v2222 = vsub.f32 %v1792, %v526
      %v2223 = vsub.f32 %v1796, %v527
      %v2224 = vsub.f32 %v1800, %v528
      %v2225 = vsub.f32 %v1804, %v529
      %v2226 = vsub.f32 %v1808, %v530
      %v2227 = vsub.f32 %v1812, %v531
      %v2228 = vsub.f32 %v1816, %v532
      %v2229 = vsub.f32 %v1820, %v533
      %v2230 = vsub.f32 %v1824, %v534
      %v2231 = vsub.f32 %v1828, %v535
      %v2232 = vsub.f32 %v1832, %v536
      %v2233 = vsub.f32 %v1836, %v537
      %v2234 = vsub.f32 %v1840, %v538
      %v2235 = vsub.f32 %v1844, %v539
      %v2236 = vsub.f32 %v1848, %v540
      %v2237 = vsub.f32 %v1852, %v541
      %v2238 = vsub.f32 %v1856, %v542
      %v2239 = vsub.f32 %v1860, %v543
      %v2240 = vsub.f32 %v1864, %v544
      %v2241 = vsub.f32 %v1868, %v545
      %v2242 = vsub.f32 %v1872, %v546
      %v2243 = vsub.f32 %v1876, %v547
      %v2244 = vsub.f32 %v1880, %v548
      %v2245 = vsub.f32 %v1884, %v549
      %v2246 = vsub.f32 %v1888, %v550
      %v2247 = vsub.f32 %v1892, %v551
      %v2248 = vsub.f32 %v1896, %v552
      %v2249 = vsub.f32 %v1900, %v553
      %v2250 = vsub.f32 %v1904, %v554
      %v2251 = vsub.f32 %v1908, %v555
      %v2252 = vsub.f32 %v1912, %v556
      %v2253 = vsub.f32 %v1916, %v557
      %v2254 = vsub.f32 %v1920, %v558
      %v2255 = vsub.f32 %v1924, %v559
      %v2256 = vsub.f32 %v1928, %v560
      %v2257 = vsub.f32 %v1932, %v561
      %v2258 = vsub.f32 %v1936, %v562
      %v2259 = vsub.f32 %v1940, %v563
      %v2260 = vsub.f32 %v1944, %v564
      %v2261 = vsub.f32 %v1948, %v565
      %v2262 = vsub.f32 %v1952, %v566
      %v2263 = vsub.f32 %v1956, %v567
      %v2264 = vsub.f32 %v1960, %v568
      %v2265 = vsub.f32 %v1964, %v569
      %v2266 = vsub.f32 %v1968, %v570
      %v2267 = vsub.f32 %v1972, %v571
      %v2268 = vsub.f32 %v1976, %v572
      %v2269 = vsub.f32 %v1980, %v573
      %v2270 = vsub.f32 %v1984, %v574
      %v2271 = vsub.f32 %v1988, %v575
      %v2272 = vsub.f32 %v1992, %v576
      %v2273 = vsub.f32 %v1996, %v577
      %v2274 = vsub.f32 %v2000, %v578
      %v2275 = vsub.f32 %v2004, %v579
      %v2276 = vsub.f32 %v2008, %v580
      %v2277 = vsub.f32 %v2012, %v581
      %v2278 = vsub.f32 %v2016, %v582
      %v2279 = vsub.f32 %v2020, %v583
      %v2280 = vsub.f32 %v2024, %v584
      %v2297 = vcombine.high %v441, %v441
      %v2299 = vunpack.c.l.s4 1966171168
      %v2300 = vunpack.c.0.s8 %v2299
      %v2301 = vlaneseq
      %v2302 = vshrl.u32 %v2301, 7
      %v2303 = vsub.s32 %v2300, %v2302
      %v2304 = vrot.slane %v441, %v2303
      %v2306 = vunpack.c.l.s4 1966171168
      %v2307 = vunpack.c.0.s8 %v2306
      %v2308 = vlaneseq
      %v2309 = vshrl.u32 %v2308, 7
      %v2310 = vsub.s32 %v2307, %v2309
      %v2311 = vrot.slane %v2297, %v2310
      %v2312 = vcombine.high %v2304, %v2304
      %v2313 = vcombine.high %v2311, %v2311
      %v2315 = vunpack.c.l.s4 1966171168
      %v2316 = vunpack.c.0.s8 %v2315
      %v2317 = vlaneseq
      %v2318 = vshrl.u32 %v2317, 7
      %v2319 = vsub.s32 %v2316, %v2318
      %v2320 = vrot.slane %v2304, %v2319
      %v2322 = vunpack.c.l.s4 1966171168
      %v2323 = vunpack.c.0.s8 %v2322
      %v2324 = vlaneseq
      %v2325 = vshrl.u32 %v2324, 7
      %v2326 = vsub.s32 %v2323, %v2325
      %v2327 = vrot.slane %v2311, %v2326
      %v2329 = vunpack.c.l.s4 1966171168
      %v2330 = vunpack.c.0.s8 %v2329
      %v2331 = vlaneseq
      %v2332 = vshrl.u32 %v2331, 7
      %v2333 = vsub.s32 %v2330, %v2332
      %v2334 = vrot.slane %v2312, %v2333
      %v2336 = vunpack.c.l.s4 1966171168
      %v2337 = vunpack.c.0.s8 %v2336
      %v2338 = vlaneseq
      %v2339 = vshrl.u32 %v2338, 7
      %v2340 = vsub.s32 %v2337, %v2339
      %v2341 = vrot.slane %v2313, %v2340
      %v2342 = vcombine.high %v2320, %v2320
      %v2343 = vcombine.high %v2327, %v2327
      %v2344 = vcombine.high %v2334, %v2334
      %v2345 = vcombine.high %v2341, %v2341
      %v2346 = vcombine.high %v442, %v442
      %v2348 = vunpack.c.l.s4 1966171168
      %v2349 = vunpack.c.0.s8 %v2348
      %v2350 = vlaneseq
      %v2351 = vshrl.u32 %v2350, 7
      %v2352 = vsub.s32 %v2349, %v2351
      %v2353 = vrot.slane %v442, %v2352
      %v2355 = vunpack.c.l.s4 1966171168
      %v2356 = vunpack.c.0.s8 %v2355
      %v2357 = vlaneseq
      %v2358 = vshrl.u32 %v2357, 7
      %v2359 = vsub.s32 %v2356, %v2358
      %v2360 = vrot.slane %v2346, %v2359
      %v2361 = vcombine.high %v2353, %v2353
      %v2362 = vcombine.high %v2360, %v2360
      %v2364 = vunpack.c.l.s4 1966171168
      %v2365 = vunpack.c.0.s8 %v2364
      %v2366 = vlaneseq
      %v2367 = vshrl.u32 %v2366, 7
      %v2368 = vsub.s32 %v2365, %v2367
      %v2369 = vrot.slane %v2353, %v2368
      %v2371 = vunpack.c.l.s4 1966171168
      %v2372 = vunpack.c.0.s8 %v2371
      %v2373 = vlaneseq
      %v2374 = vshrl.u32 %v2373, 7
      %v2375 = vsub.s32 %v2372, %v2374
      %v2376 = vrot.slane %v2360, %v2375
      %v2378 = vunpack.c.l.s4 1966171168
      %v2379 = vunpack.c.0.s8 %v2378
      %v2380 = vlaneseq
      %v2381 = vshrl.u32 %v2380, 7
      %v2382 = vsub.s32 %v2379, %v2381
      %v2383 = vrot.slane %v2361, %v2382
      %v2385 = vunpack.c.l.s4 1966171168
      %v2386 = vunpack.c.0.s8 %v2385
      %v2387 = vlaneseq
      %v2388 = vshrl.u32 %v2387, 7
      %v2389 = vsub.s32 %v2386, %v2388
      %v2390 = vrot.slane %v2362, %v2389
      %v2391 = vcombine.high %v2369, %v2369
      %v2392 = vcombine.high %v2376, %v2376
      %v2393 = vcombine.high %v2383, %v2383
      %v2394 = vcombine.high %v2390, %v2390
      %v2395 = vcombine.high %v443, %v443
      %v2397 = vunpack.c.l.s4 1966171168
      %v2398 = vunpack.c.0.s8 %v2397
      %v2399 = vlaneseq
      %v2400 = vshrl.u32 %v2399, 7
      %v2401 = vsub.s32 %v2398, %v2400
      %v2402 = vrot.slane %v443, %v2401
      %v2404 = vunpack.c.l.s4 1966171168
      %v2405 = vunpack.c.0.s8 %v2404
      %v2406 = vlaneseq
      %v2407 = vshrl.u32 %v2406, 7
      %v2408 = vsub.s32 %v2405, %v2407
      %v2409 = vrot.slane %v2395, %v2408
      %v2410 = vcombine.high %v2402, %v2402
      %v2411 = vcombine.high %v2409, %v2409
      %v2413 = vunpack.c.l.s4 1966171168
      %v2414 = vunpack.c.0.s8 %v2413
      %v2415 = vlaneseq
      %v2416 = vshrl.u32 %v2415, 7
      %v2417 = vsub.s32 %v2414, %v2416
      %v2418 = vrot.slane %v2402, %v2417
      %v2420 = vunpack.c.l.s4 1966171168
      %v2421 = vunpack.c.0.s8 %v2420
      %v2422 = vlaneseq
      %v2423 = vshrl.u32 %v2422, 7
      %v2424 = vsub.s32 %v2421, %v2423
      %v2425 = vrot.slane %v2409, %v2424
      %v2427 = vunpack.c.l.s4 1966171168
      %v2428 = vunpack.c.0.s8 %v2427
      %v2429 = vlaneseq
      %v2430 = vshrl.u32 %v2429, 7
      %v2431 = vsub.s32 %v2428, %v2430
      %v2432 = vrot.slane %v2410, %v2431
      %v2434 = vunpack.c.l.s4 1966171168
      %v2435 = vunpack.c.0.s8 %v2434
      %v2436 = vlaneseq
      %v2437 = vshrl.u32 %v2436, 7
      %v2438 = vsub.s32 %v2435, %v2437
      %v2439 = vrot.slane %v2411, %v2438
      %v2440 = vcombine.high %v2418, %v2418
      %v2441 = vcombine.high %v2425, %v2425
      %v2442 = vcombine.high %v2432, %v2432
      %v2443 = vcombine.high %v2439, %v2439
      %v2444 = vcombine.high %v444, %v444
      %v2446 = vunpack.c.l.s4 1966171168
      %v2447 = vunpack.c.0.s8 %v2446
      %v2448 = vlaneseq
      %v2449 = vshrl.u32 %v2448, 7
      %v2450 = vsub.s32 %v2447, %v2449
      %v2451 = vrot.slane %v444, %v2450
      %v2453 = vunpack.c.l.s4 1966171168
      %v2454 = vunpack.c.0.s8 %v2453
      %v2455 = vlaneseq
      %v2456 = vshrl.u32 %v2455, 7
      %v2457 = vsub.s32 %v2454, %v2456
      %v2458 = vrot.slane %v2444, %v2457
      %v2459 = vcombine.high %v2451, %v2451
      %v2460 = vcombine.high %v2458, %v2458
      %v2462 = vunpack.c.l.s4 1966171168
      %v2463 = vunpack.c.0.s8 %v2462
      %v2464 = vlaneseq
      %v2465 = vshrl.u32 %v2464, 7
      %v2466 = vsub.s32 %v2463, %v2465
      %v2467 = vrot.slane %v2451, %v2466
      %v2469 = vunpack.c.l.s4 1966171168
      %v2470 = vunpack.c.0.s8 %v2469
      %v2471 = vlaneseq
      %v2472 = vshrl.u32 %v2471, 7
      %v2473 = vsub.s32 %v2470, %v2472
      %v2474 = vrot.slane %v2458, %v2473
      %v2476 = vunpack.c.l.s4 1966171168
      %v2477 = vunpack.c.0.s8 %v2476
      %v2478 = vlaneseq
      %v2479 = vshrl.u32 %v2478, 7
      %v2480 = vsub.s32 %v2477, %v2479
      %v2481 = vrot.slane %v2459, %v2480
      %v2483 = vunpack.c.l.s4 1966171168
      %v2484 = vunpack.c.0.s8 %v2483
      %v2485 = vlaneseq
      %v2486 = vshrl.u32 %v2485, 7
      %v2487 = vsub.s32 %v2484, %v2486
      %v2488 = vrot.slane %v2460, %v2487
      %v2489 = vcombine.high %v2467, %v2467
      %v2490 = vcombine.high %v2474, %v2474
      %v2491 = vcombine.high %v2481, %v2481
      %v2492 = vcombine.high %v2488, %v2488
      %v2493 = vcombine.high %v445, %v445
      %v2495 = vunpack.c.l.s4 1966171168
      %v2496 = vunpack.c.0.s8 %v2495
      %v2497 = vlaneseq
      %v2498 = vshrl.u32 %v2497, 7
      %v2499 = vsub.s32 %v2496, %v2498
      %v2500 = vrot.slane %v445, %v2499
      %v2502 = vunpack.c.l.s4 1966171168
      %v2503 = vunpack.c.0.s8 %v2502
      %v2504 = vlaneseq
      %v2505 = vshrl.u32 %v2504, 7
      %v2506 = vsub.s32 %v2503, %v2505
      %v2507 = vrot.slane %v2493, %v2506
      %v2508 = vcombine.high %v2500, %v2500
      %v2509 = vcombine.high %v2507, %v2507
      %v2511 = vunpack.c.l.s4 1966171168
      %v2512 = vunpack.c.0.s8 %v2511
      %v2513 = vlaneseq
      %v2514 = vshrl.u32 %v2513, 7
      %v2515 = vsub.s32 %v2512, %v2514
      %v2516 = vrot.slane %v2500, %v2515
      %v2518 = vunpack.c.l.s4 1966171168
      %v2519 = vunpack.c.0.s8 %v2518
      %v2520 = vlaneseq
      %v2521 = vshrl.u32 %v2520, 7
      %v2522 = vsub.s32 %v2519, %v2521
      %v2523 = vrot.slane %v2507, %v2522
      %v2525 = vunpack.c.l.s4 1966171168
      %v2526 = vunpack.c.0.s8 %v2525
      %v2527 = vlaneseq
      %v2528 = vshrl.u32 %v2527, 7
      %v2529 = vsub.s32 %v2526, %v2528
      %v2530 = vrot.slane %v2508, %v2529
      %v2532 = vunpack.c.l.s4 1966171168
      %v2533 = vunpack.c.0.s8 %v2532
      %v2534 = vlaneseq
      %v2535 = vshrl.u32 %v2534, 7
      %v2536 = vsub.s32 %v2533, %v2535
      %v2537 = vrot.slane %v2509, %v2536
      %v2538 = vcombine.high %v2516, %v2516
      %v2539 = vcombine.high %v2523, %v2523
      %v2540 = vcombine.high %v2530, %v2530
      %v2541 = vcombine.high %v2537, %v2537
      %v2542 = vcombine.high %v446, %v446
      %v2544 = vunpack.c.l.s4 1966171168
      %v2545 = vunpack.c.0.s8 %v2544
      %v2546 = vlaneseq
      %v2547 = vshrl.u32 %v2546, 7
      %v2548 = vsub.s32 %v2545, %v2547
      %v2549 = vrot.slane %v446, %v2548
      %v2551 = vunpack.c.l.s4 1966171168
      %v2552 = vunpack.c.0.s8 %v2551
      %v2553 = vlaneseq
      %v2554 = vshrl.u32 %v2553, 7
      %v2555 = vsub.s32 %v2552, %v2554
      %v2556 = vrot.slane %v2542, %v2555
      %v2557 = vcombine.high %v2549, %v2549
      %v2558 = vcombine.high %v2556, %v2556
      %v2560 = vunpack.c.l.s4 1966171168
      %v2561 = vunpack.c.0.s8 %v2560
      %v2562 = vlaneseq
      %v2563 = vshrl.u32 %v2562, 7
      %v2564 = vsub.s32 %v2561, %v2563
      %v2565 = vrot.slane %v2549, %v2564
      %v2567 = vunpack.c.l.s4 1966171168
      %v2568 = vunpack.c.0.s8 %v2567
      %v2569 = vlaneseq
      %v2570 = vshrl.u32 %v2569, 7
      %v2571 = vsub.s32 %v2568, %v2570
      %v2572 = vrot.slane %v2556, %v2571
      %v2574 = vunpack.c.l.s4 1966171168
      %v2575 = vunpack.c.0.s8 %v2574
      %v2576 = vlaneseq
      %v2577 = vshrl.u32 %v2576, 7
      %v2578 = vsub.s32 %v2575, %v2577
      %v2579 = vrot.slane %v2557, %v2578
      %v2581 = vunpack.c.l.s4 1966171168
      %v2582 = vunpack.c.0.s8 %v2581
      %v2583 = vlaneseq
      %v2584 = vshrl.u32 %v2583, 7
      %v2585 = vsub.s32 %v2582, %v2584
      %v2586 = vrot.slane %v2558, %v2585
      %v2587 = vcombine.high %v2565, %v2565
      %v2588 = vcombine.high %v2572, %v2572
      %v2589 = vcombine.high %v2579, %v2579
      %v2590 = vcombine.high %v2586, %v2586
      %v2591 = vcombine.high %v447, %v447
      %v2593 = vunpack.c.l.s4 1966171168
      %v2594 = vunpack.c.0.s8 %v2593
      %v2595 = vlaneseq
      %v2596 = vshrl.u32 %v2595, 7
      %v2597 = vsub.s32 %v2594, %v2596
      %v2598 = vrot.slane %v447, %v2597
      %v2600 = vunpack.c.l.s4 1966171168
      %v2601 = vunpack.c.0.s8 %v2600
      %v2602 = vlaneseq
      %v2603 = vshrl.u32 %v2602, 7
      %v2604 = vsub.s32 %v2601, %v2603
      %v2605 = vrot.slane %v2591, %v2604
      %v2606 = vcombine.high %v2598, %v2598
      %v2607 = vcombine.high %v2605, %v2605
      %v2609 = vunpack.c.l.s4 1966171168
      %v2610 = vunpack.c.0.s8 %v2609
      %v2611 = vlaneseq
      %v2612 = vshrl.u32 %v2611, 7
      %v2613 = vsub.s32 %v2610, %v2612
      %v2614 = vrot.slane %v2598, %v2613
      %v2616 = vunpack.c.l.s4 1966171168
      %v2617 = vunpack.c.0.s8 %v2616
      %v2618 = vlaneseq
      %v2619 = vshrl.u32 %v2618, 7
      %v2620 = vsub.s32 %v2617, %v2619
      %v2621 = vrot.slane %v2605, %v2620
      %v2623 = vunpack.c.l.s4 1966171168
      %v2624 = vunpack.c.0.s8 %v2623
      %v2625 = vlaneseq
      %v2626 = vshrl.u32 %v2625, 7
      %v2627 = vsub.s32 %v2624, %v2626
      %v2628 = vrot.slane %v2606, %v2627
      %v2630 = vunpack.c.l.s4 1966171168
      %v2631 = vunpack.c.0.s8 %v2630
      %v2632 = vlaneseq
      %v2633 = vshrl.u32 %v2632, 7
      %v2634 = vsub.s32 %v2631, %v2633
      %v2635 = vrot.slane %v2607, %v2634
      %v2636 = vcombine.high %v2614, %v2614
      %v2637 = vcombine.high %v2621, %v2621
      %v2638 = vcombine.high %v2628, %v2628
      %v2639 = vcombine.high %v2635, %v2635
      %v2640 = vcombine.high %v448, %v448
      %v2642 = vunpack.c.l.s4 1966171168
      %v2643 = vunpack.c.0.s8 %v2642
      %v2644 = vlaneseq
      %v2645 = vshrl.u32 %v2644, 7
      %v2646 = vsub.s32 %v2643, %v2645
      %v2647 = vrot.slane %v448, %v2646
      %v2649 = vunpack.c.l.s4 1966171168
      %v2650 = vunpack.c.0.s8 %v2649
      %v2651 = vlaneseq
      %v2652 = vshrl.u32 %v2651, 7
      %v2653 = vsub.s32 %v2650, %v2652
      %v2654 = vrot.slane %v2640, %v2653
      %v2655 = vcombine.high %v2647, %v2647
      %v2656 = vcombine.high %v2654, %v2654
      %v2658 = vunpack.c.l.s4 1966171168
      %v2659 = vunpack.c.0.s8 %v2658
      %v2660 = vlaneseq
      %v2661 = vshrl.u32 %v2660, 7
      %v2662 = vsub.s32 %v2659, %v2661
      %v2663 = vrot.slane %v2647, %v2662
      %v2665 = vunpack.c.l.s4 1966171168
      %v2666 = vunpack.c.0.s8 %v2665
      %v2667 = vlaneseq
      %v2668 = vshrl.u32 %v2667, 7
      %v2669 = vsub.s32 %v2666, %v2668
      %v2670 = vrot.slane %v2654, %v2669
      %v2672 = vunpack.c.l.s4 1966171168
      %v2673 = vunpack.c.0.s8 %v2672
      %v2674 = vlaneseq
      %v2675 = vshrl.u32 %v2674, 7
      %v2676 = vsub.s32 %v2673, %v2675
      %v2677 = vrot.slane %v2655, %v2676
      %v2679 = vunpack.c.l.s4 1966171168
      %v2680 = vunpack.c.0.s8 %v2679
      %v2681 = vlaneseq
      %v2682 = vshrl.u32 %v2681, 7
      %v2683 = vsub.s32 %v2680, %v2682
      %v2684 = vrot.slane %v2656, %v2683
      %v2685 = vcombine.high %v2663, %v2663
      %v2686 = vcombine.high %v2670, %v2670
      %v2687 = vcombine.high %v2677, %v2677
      %v2688 = vcombine.high %v2684, %v2684
      %v2689 = vcombine.high %v449, %v449
      %v2691 = vunpack.c.l.s4 1966171168
      %v2692 = vunpack.c.0.s8 %v2691
      %v2693 = vlaneseq
      %v2694 = vshrl.u32 %v2693, 7
      %v2695 = vsub.s32 %v2692, %v2694
      %v2696 = vrot.slane %v449, %v2695
      %v2698 = vunpack.c.l.s4 1966171168
      %v2699 = vunpack.c.0.s8 %v2698
      %v2700 = vlaneseq
      %v2701 = vshrl.u32 %v2700, 7
      %v2702 = vsub.s32 %v2699, %v2701
      %v2703 = vrot.slane %v2689, %v2702
      %v2704 = vcombine.high %v2696, %v2696
      %v2705 = vcombine.high %v2703, %v2703
      %v2707 = vunpack.c.l.s4 1966171168
      %v2708 = vunpack.c.0.s8 %v2707
      %v2709 = vlaneseq
      %v2710 = vshrl.u32 %v2709, 7
      %v2711 = vsub.s32 %v2708, %v2710
      %v2712 = vrot.slane %v2696, %v2711
      %v2714 = vunpack.c.l.s4 1966171168
      %v2715 = vunpack.c.0.s8 %v2714
      %v2716 = vlaneseq
      %v2717 = vshrl.u32 %v2716, 7
      %v2718 = vsub.s32 %v2715, %v2717
      %v2719 = vrot.slane %v2703, %v2718
      %v2721 = vunpack.c.l.s4 1966171168
      %v2722 = vunpack.c.0.s8 %v2721
      %v2723 = vlaneseq
      %v2724 = vshrl.u32 %v2723, 7
      %v2725 = vsub.s32 %v2722, %v2724
      %v2726 = vrot.slane %v2704, %v2725
      %v2728 = vunpack.c.l.s4 1966171168
      %v2729 = vunpack.c.0.s8 %v2728
      %v2730 = vlaneseq
      %v2731 = vshrl.u32 %v2730, 7
      %v2732 = vsub.s32 %v2729, %v2731
      %v2733 = vrot.slane %v2705, %v2732
      %v2734 = vcombine.high %v2712, %v2712
      %v2735 = vcombine.high %v2719, %v2719
      %v2736 = vcombine.high %v2726, %v2726
      %v2737 = vcombine.high %v2733, %v2733
      %v2738 = vcombine.high %v450, %v450
      %v2740 = vunpack.c.l.s4 1966171168
      %v2741 = vunpack.c.0.s8 %v2740
      %v2742 = vlaneseq
      %v2743 = vshrl.u32 %v2742, 7
      %v2744 = vsub.s32 %v2741, %v2743
      %v2745 = vrot.slane %v450, %v2744
      %v2747 = vunpack.c.l.s4 1966171168
      %v2748 = vunpack.c.0.s8 %v2747
      %v2749 = vlaneseq
      %v2750 = vshrl.u32 %v2749, 7
      %v2751 = vsub.s32 %v2748, %v2750
      %v2752 = vrot.slane %v2738, %v2751
      %v2753 = vcombine.high %v2745, %v2745
      %v2754 = vcombine.high %v2752, %v2752
      %v2756 = vunpack.c.l.s4 1966171168
      %v2757 = vunpack.c.0.s8 %v2756
      %v2758 = vlaneseq
      %v2759 = vshrl.u32 %v2758, 7
      %v2760 = vsub.s32 %v2757, %v2759
      %v2761 = vrot.slane %v2745, %v2760
      %v2763 = vunpack.c.l.s4 1966171168
      %v2764 = vunpack.c.0.s8 %v2763
      %v2765 = vlaneseq
      %v2766 = vshrl.u32 %v2765, 7
      %v2767 = vsub.s32 %v2764, %v2766
      %v2768 = vrot.slane %v2752, %v2767
      %v2770 = vunpack.c.l.s4 1966171168
      %v2771 = vunpack.c.0.s8 %v2770
      %v2772 = vlaneseq
      %v2773 = vshrl.u32 %v2772, 7
      %v2774 = vsub.s32 %v2771, %v2773
      %v2775 = vrot.slane %v2753, %v2774
      %v2777 = vunpack.c.l.s4 1966171168
      %v2778 = vunpack.c.0.s8 %v2777
      %v2779 = vlaneseq
      %v2780 = vshrl.u32 %v2779, 7
      %v2781 = vsub.s32 %v2778, %v2780
      %v2782 = vrot.slane %v2754, %v2781
      %v2783 = vcombine.high %v2761, %v2761
      %v2784 = vcombine.high %v2768, %v2768
      %v2785 = vcombine.high %v2775, %v2775
      %v2786 = vcombine.high %v2782, %v2782
      %v2787 = vcombine.high %v451, %v451
      %v2789 = vunpack.c.l.s4 1966171168
      %v2790 = vunpack.c.0.s8 %v2789
      %v2791 = vlaneseq
      %v2792 = vshrl.u32 %v2791, 7
      %v2793 = vsub.s32 %v2790, %v2792
      %v2794 = vrot.slane %v451, %v2793
      %v2796 = vunpack.c.l.s4 1966171168
      %v2797 = vunpack.c.0.s8 %v2796
      %v2798 = vlaneseq
      %v2799 = vshrl.u32 %v2798, 7
      %v2800 = vsub.s32 %v2797, %v2799
      %v2801 = vrot.slane %v2787, %v2800
      %v2802 = vcombine.high %v2794, %v2794
      %v2803 = vcombine.high %v2801, %v2801
      %v2805 = vunpack.c.l.s4 1966171168
      %v2806 = vunpack.c.0.s8 %v2805
      %v2807 = vlaneseq
      %v2808 = vshrl.u32 %v2807, 7
      %v2809 = vsub.s32 %v2806, %v2808
      %v2810 = vrot.slane %v2794, %v2809
      %v2812 = vunpack.c.l.s4 1966171168
      %v2813 = vunpack.c.0.s8 %v2812
      %v2814 = vlaneseq
      %v2815 = vshrl.u32 %v2814, 7
      %v2816 = vsub.s32 %v2813, %v2815
      %v2817 = vrot.slane %v2801, %v2816
      %v2819 = vunpack.c.l.s4 1966171168
      %v2820 = vunpack.c.0.s8 %v2819
      %v2821 = vlaneseq
      %v2822 = vshrl.u32 %v2821, 7
      %v2823 = vsub.s32 %v2820, %v2822
      %v2824 = vrot.slane %v2802, %v2823
      %v2826 = vunpack.c.l.s4 1966171168
      %v2827 = vunpack.c.0.s8 %v2826
      %v2828 = vlaneseq
      %v2829 = vshrl.u32 %v2828, 7
      %v2830 = vsub.s32 %v2827, %v2829
      %v2831 = vrot.slane %v2803, %v2830
      %v2832 = vcombine.high %v2810, %v2810
      %v2833 = vcombine.high %v2817, %v2817
      %v2834 = vcombine.high %v2824, %v2824
      %v2835 = vcombine.high %v2831, %v2831
      %v2836 = vcombine.high %v452, %v452
      %v2838 = vunpack.c.l.s4 1966171168
      %v2839 = vunpack.c.0.s8 %v2838
      %v2840 = vlaneseq
      %v2841 = vshrl.u32 %v2840, 7
      %v2842 = vsub.s32 %v2839, %v2841
      %v2843 = vrot.slane %v452, %v2842
      %v2845 = vunpack.c.l.s4 1966171168
      %v2846 = vunpack.c.0.s8 %v2845
      %v2847 = vlaneseq
      %v2848 = vshrl.u32 %v2847, 7
      %v2849 = vsub.s32 %v2846, %v2848
      %v2850 = vrot.slane %v2836, %v2849
      %v2851 = vcombine.high %v2843, %v2843
      %v2852 = vcombine.high %v2850, %v2850
      %v2854 = vunpack.c.l.s4 1966171168
      %v2855 = vunpack.c.0.s8 %v2854
      %v2856 = vlaneseq
      %v2857 = vshrl.u32 %v2856, 7
      %v2858 = vsub.s32 %v2855, %v2857
      %v2859 = vrot.slane %v2843, %v2858
      %v2861 = vunpack.c.l.s4 1966171168
      %v2862 = vunpack.c.0.s8 %v2861
      %v2863 = vlaneseq
      %v2864 = vshrl.u32 %v2863, 7
      %v2865 = vsub.s32 %v2862, %v2864
      %v2866 = vrot.slane %v2850, %v2865
      %v2868 = vunpack.c.l.s4 1966171168
      %v2869 = vunpack.c.0.s8 %v2868
      %v2870 = vlaneseq
      %v2871 = vshrl.u32 %v2870, 7
      %v2872 = vsub.s32 %v2869, %v2871
      %v2873 = vrot.slane %v2851, %v2872
      %v2875 = vunpack.c.l.s4 1966171168
      %v2876 = vunpack.c.0.s8 %v2875
      %v2877 = vlaneseq
      %v2878 = vshrl.u32 %v2877, 7
      %v2879 = vsub.s32 %v2876, %v2878
      %v2880 = vrot.slane %v2852, %v2879
      %v2881 = vcombine.high %v2859, %v2859
      %v2882 = vcombine.high %v2866, %v2866
      %v2883 = vcombine.high %v2873, %v2873
      %v2884 = vcombine.high %v2880, %v2880
      %v2885 = vcombine.high %v453, %v453
      %v2887 = vunpack.c.l.s4 1966171168
      %v2888 = vunpack.c.0.s8 %v2887
      %v2889 = vlaneseq
      %v2890 = vshrl.u32 %v2889, 7
      %v2891 = vsub.s32 %v2888, %v2890
      %v2892 = vrot.slane %v453, %v2891
      %v2894 = vunpack.c.l.s4 1966171168
      %v2895 = vunpack.c.0.s8 %v2894
      %v2896 = vlaneseq
      %v2897 = vshrl.u32 %v2896, 7
      %v2898 = vsub.s32 %v2895, %v2897
      %v2899 = vrot.slane %v2885, %v2898
      %v2900 = vcombine.high %v2892, %v2892
      %v2901 = vcombine.high %v2899, %v2899
      %v2903 = vunpack.c.l.s4 1966171168
      %v2904 = vunpack.c.0.s8 %v2903
      %v2905 = vlaneseq
      %v2906 = vshrl.u32 %v2905, 7
      %v2907 = vsub.s32 %v2904, %v2906
      %v2908 = vrot.slane %v2892, %v2907
      %v2910 = vunpack.c.l.s4 1966171168
      %v2911 = vunpack.c.0.s8 %v2910
      %v2912 = vlaneseq
      %v2913 = vshrl.u32 %v2912, 7
      %v2914 = vsub.s32 %v2911, %v2913
      %v2915 = vrot.slane %v2899, %v2914
      %v2917 = vunpack.c.l.s4 1966171168
      %v2918 = vunpack.c.0.s8 %v2917
      %v2919 = vlaneseq
      %v2920 = vshrl.u32 %v2919, 7
      %v2921 = vsub.s32 %v2918, %v2920
      %v2922 = vrot.slane %v2900, %v2921
      %v2924 = vunpack.c.l.s4 1966171168
      %v2925 = vunpack.c.0.s8 %v2924
      %v2926 = vlaneseq
      %v2927 = vshrl.u32 %v2926, 7
      %v2928 = vsub.s32 %v2925, %v2927
      %v2929 = vrot.slane %v2901, %v2928
      %v2930 = vcombine.high %v2908, %v2908
      %v2931 = vcombine.high %v2915, %v2915
      %v2932 = vcombine.high %v2922, %v2922
      %v2933 = vcombine.high %v2929, %v2929
      %v2934 = vcombine.high %v454, %v454
      %v2936 = vunpack.c.l.s4 1966171168
      %v2937 = vunpack.c.0.s8 %v2936
      %v2938 = vlaneseq
      %v2939 = vshrl.u32 %v2938, 7
      %v2940 = vsub.s32 %v2937, %v2939
      %v2941 = vrot.slane %v454, %v2940
      %v2943 = vunpack.c.l.s4 1966171168
      %v2944 = vunpack.c.0.s8 %v2943
      %v2945 = vlaneseq
      %v2946 = vshrl.u32 %v2945, 7
      %v2947 = vsub.s32 %v2944, %v2946
      %v2948 = vrot.slane %v2934, %v2947
      %v2949 = vcombine.high %v2941, %v2941
      %v2950 = vcombine.high %v2948, %v2948
      %v2952 = vunpack.c.l.s4 1966171168
      %v2953 = vunpack.c.0.s8 %v2952
      %v2954 = vlaneseq
      %v2955 = vshrl.u32 %v2954, 7
      %v2956 = vsub.s32 %v2953, %v2955
      %v2957 = vrot.slane %v2941, %v2956
      %v2959 = vunpack.c.l.s4 1966171168
      %v2960 = vunpack.c.0.s8 %v2959
      %v2961 = vlaneseq
      %v2962 = vshrl.u32 %v2961, 7
      %v2963 = vsub.s32 %v2960, %v2962
      %v2964 = vrot.slane %v2948, %v2963
      %v2966 = vunpack.c.l.s4 1966171168
      %v2967 = vunpack.c.0.s8 %v2966
      %v2968 = vlaneseq
      %v2969 = vshrl.u32 %v2968, 7
      %v2970 = vsub.s32 %v2967, %v2969
      %v2971 = vrot.slane %v2949, %v2970
      %v2973 = vunpack.c.l.s4 1966171168
      %v2974 = vunpack.c.0.s8 %v2973
      %v2975 = vlaneseq
      %v2976 = vshrl.u32 %v2975, 7
      %v2977 = vsub.s32 %v2974, %v2976
      %v2978 = vrot.slane %v2950, %v2977
      %v2979 = vcombine.high %v2957, %v2957
      %v2980 = vcombine.high %v2964, %v2964
      %v2981 = vcombine.high %v2971, %v2971
      %v2982 = vcombine.high %v2978, %v2978
      %v2983 = vcombine.high %v455, %v455
      %v2985 = vunpack.c.l.s4 1966171168
      %v2986 = vunpack.c.0.s8 %v2985
      %v2987 = vlaneseq
      %v2988 = vshrl.u32 %v2987, 7
      %v2989 = vsub.s32 %v2986, %v2988
      %v2990 = vrot.slane %v455, %v2989
      %v2992 = vunpack.c.l.s4 1966171168
      %v2993 = vunpack.c.0.s8 %v2992
      %v2994 = vlaneseq
      %v2995 = vshrl.u32 %v2994, 7
      %v2996 = vsub.s32 %v2993, %v2995
      %v2997 = vrot.slane %v2983, %v2996
      %v2998 = vcombine.high %v2990, %v2990
      %v2999 = vcombine.high %v2997, %v2997
      %v3001 = vunpack.c.l.s4 1966171168
      %v3002 = vunpack.c.0.s8 %v3001
      %v3003 = vlaneseq
      %v3004 = vshrl.u32 %v3003, 7
      %v3005 = vsub.s32 %v3002, %v3004
      %v3006 = vrot.slane %v2990, %v3005
      %v3008 = vunpack.c.l.s4 1966171168
      %v3009 = vunpack.c.0.s8 %v3008
      %v3010 = vlaneseq
      %v3011 = vshrl.u32 %v3010, 7
      %v3012 = vsub.s32 %v3009, %v3011
      %v3013 = vrot.slane %v2997, %v3012
      %v3015 = vunpack.c.l.s4 1966171168
      %v3016 = vunpack.c.0.s8 %v3015
      %v3017 = vlaneseq
      %v3018 = vshrl.u32 %v3017, 7
      %v3019 = vsub.s32 %v3016, %v3018
      %v3020 = vrot.slane %v2998, %v3019
      %v3022 = vunpack.c.l.s4 1966171168
      %v3023 = vunpack.c.0.s8 %v3022
      %v3024 = vlaneseq
      %v3025 = vshrl.u32 %v3024, 7
      %v3026 = vsub.s32 %v3023, %v3025
      %v3027 = vrot.slane %v2999, %v3026
      %v3028 = vcombine.high %v3006, %v3006
      %v3029 = vcombine.high %v3013, %v3013
      %v3030 = vcombine.high %v3020, %v3020
      %v3031 = vcombine.high %v3027, %v3027
      %v3032 = vcombine.high %v456, %v456
      %v3034 = vunpack.c.l.s4 1966171168
      %v3035 = vunpack.c.0.s8 %v3034
      %v3036 = vlaneseq
      %v3037 = vshrl.u32 %v3036, 7
      %v3038 = vsub.s32 %v3035, %v3037
      %v3039 = vrot.slane %v456, %v3038
      %v3041 = vunpack.c.l.s4 1966171168
      %v3042 = vunpack.c.0.s8 %v3041
      %v3043 = vlaneseq
      %v3044 = vshrl.u32 %v3043, 7
      %v3045 = vsub.s32 %v3042, %v3044
      %v3046 = vrot.slane %v3032, %v3045
      %v3047 = vcombine.high %v3039, %v3039
      %v3048 = vcombine.high %v3046, %v3046
      %v3050 = vunpack.c.l.s4 1966171168
      %v3051 = vunpack.c.0.s8 %v3050
      %v3052 = vlaneseq
      %v3053 = vshrl.u32 %v3052, 7
      %v3054 = vsub.s32 %v3051, %v3053
      %v3055 = vrot.slane %v3039, %v3054
      %v3057 = vunpack.c.l.s4 1966171168
      %v3058 = vunpack.c.0.s8 %v3057
      %v3059 = vlaneseq
      %v3060 = vshrl.u32 %v3059, 7
      %v3061 = vsub.s32 %v3058, %v3060
      %v3062 = vrot.slane %v3046, %v3061
      %v3064 = vunpack.c.l.s4 1966171168
      %v3065 = vunpack.c.0.s8 %v3064
      %v3066 = vlaneseq
      %v3067 = vshrl.u32 %v3066, 7
      %v3068 = vsub.s32 %v3065, %v3067
      %v3069 = vrot.slane %v3047, %v3068
      %v3071 = vunpack.c.l.s4 1966171168
      %v3072 = vunpack.c.0.s8 %v3071
      %v3073 = vlaneseq
      %v3074 = vshrl.u32 %v3073, 7
      %v3075 = vsub.s32 %v3072, %v3074
      %v3076 = vrot.slane %v3048, %v3075
      %v3077 = vcombine.high %v3055, %v3055
      %v3078 = vcombine.high %v3062, %v3062
      %v3079 = vcombine.high %v3069, %v3069
      %v3080 = vcombine.high %v3076, %v3076
      %v3081 = vlaneseq
      %v3082 = vshrl.u32 %v3081, 7
      %v3083 = vsub.s32 0, %v3082
      %v3084 = vrot.slane %v2320, %v3083
      %v3085 = vlaneseq
      %v3086 = vshrl.u32 %v3085, 7
      %v3087 = vsub.s32 0, %v3086
      %v3088 = vrot.slane %v2334, %v3087
      %v3089 = vlaneseq
      %v3090 = vshrl.u32 %v3089, 7
      %v3091 = vsub.s32 0, %v3090
      %v3092 = vrot.slane %v2342, %v3091
      %v3093 = vlaneseq
      %v3094 = vshrl.u32 %v3093, 7
      %v3095 = vsub.s32 0, %v3094
      %v3096 = vrot.slane %v2344, %v3095
      %v3097 = vlaneseq
      %v3098 = vshrl.u32 %v3097, 7
      %v3099 = vsub.s32 0, %v3098
      %v3100 = vrot.slane %v2327, %v3099
      %v3101 = vlaneseq
      %v3102 = vshrl.u32 %v3101, 7
      %v3103 = vsub.s32 0, %v3102
      %v3104 = vrot.slane %v2341, %v3103
      %v3105 = vlaneseq
      %v3106 = vshrl.u32 %v3105, 7
      %v3107 = vsub.s32 0, %v3106
      %v3108 = vrot.slane %v2343, %v3107
      %v3109 = vlaneseq
      %v3110 = vshrl.u32 %v3109, 7
      %v3111 = vsub.s32 0, %v3110
      %v3112 = vrot.slane %v2345, %v3111
      %v3113 = vlaneseq
      %v3114 = vshrl.u32 %v3113, 7
      %v3115 = vsub.s32 0, %v3114
      %v3116 = vrot.slane %v2369, %v3115
      %v3117 = vlaneseq
      %v3118 = vshrl.u32 %v3117, 7
      %v3119 = vsub.s32 0, %v3118
      %v3120 = vrot.slane %v2383, %v3119
      %v3121 = vlaneseq
      %v3122 = vshrl.u32 %v3121, 7
      %v3123 = vsub.s32 0, %v3122
      %v3124 = vrot.slane %v2391, %v3123
      %v3125 = vlaneseq
      %v3126 = vshrl.u32 %v3125, 7
      %v3127 = vsub.s32 0, %v3126
      %v3128 = vrot.slane %v2393, %v3127
      %v3129 = vlaneseq
      %v3130 = vshrl.u32 %v3129, 7
      %v3131 = vsub.s32 0, %v3130
      %v3132 = vrot.slane %v2376, %v3131
      %v3133 = vlaneseq
      %v3134 = vshrl.u32 %v3133, 7
      %v3135 = vsub.s32 0, %v3134
      %v3136 = vrot.slane %v2390, %v3135
      %v3137 = vlaneseq
      %v3138 = vshrl.u32 %v3137, 7
      %v3139 = vsub.s32 0, %v3138
      %v3140 = vrot.slane %v2392, %v3139
      %v3141 = vlaneseq
      %v3142 = vshrl.u32 %v3141, 7
      %v3143 = vsub.s32 0, %v3142
      %v3144 = vrot.slane %v2394, %v3143
      %v3145 = vlaneseq
      %v3146 = vshrl.u32 %v3145, 7
      %v3147 = vsub.s32 0, %v3146
      %v3148 = vrot.slane %v2418, %v3147
      %v3149 = vlaneseq
      %v3150 = vshrl.u32 %v3149, 7
      %v3151 = vsub.s32 0, %v3150
      %v3152 = vrot.slane %v2432, %v3151
      %v3153 = vlaneseq
      %v3154 = vshrl.u32 %v3153, 7
      %v3155 = vsub.s32 0, %v3154
      %v3156 = vrot.slane %v2440, %v3155
      %v3157 = vlaneseq
      %v3158 = vshrl.u32 %v3157, 7
      %v3159 = vsub.s32 0, %v3158
      %v3160 = vrot.slane %v2442, %v3159
      %v3161 = vlaneseq
      %v3162 = vshrl.u32 %v3161, 7
      %v3163 = vsub.s32 0, %v3162
      %v3164 = vrot.slane %v2425, %v3163
      %v3165 = vlaneseq
      %v3166 = vshrl.u32 %v3165, 7
      %v3167 = vsub.s32 0, %v3166
      %v3168 = vrot.slane %v2439, %v3167
      %v3169 = vlaneseq
      %v3170 = vshrl.u32 %v3169, 7
      %v3171 = vsub.s32 0, %v3170
      %v3172 = vrot.slane %v2441, %v3171
      %v3173 = vlaneseq
      %v3174 = vshrl.u32 %v3173, 7
      %v3175 = vsub.s32 0, %v3174
      %v3176 = vrot.slane %v2443, %v3175
      %v3177 = vlaneseq
      %v3178 = vshrl.u32 %v3177, 7
      %v3179 = vsub.s32 0, %v3178
      %v3180 = vrot.slane %v2467, %v3179
      %v3181 = vlaneseq
      %v3182 = vshrl.u32 %v3181, 7
      %v3183 = vsub.s32 0, %v3182
      %v3184 = vrot.slane %v2481, %v3183
      %v3185 = vlaneseq
      %v3186 = vshrl.u32 %v3185, 7
      %v3187 = vsub.s32 0, %v3186
      %v3188 = vrot.slane %v2489, %v3187
      %v3189 = vlaneseq
      %v3190 = vshrl.u32 %v3189, 7
      %v3191 = vsub.s32 0, %v3190
      %v3192 = vrot.slane %v2491, %v3191
      %v3193 = vlaneseq
      %v3194 = vshrl.u32 %v3193, 7
      %v3195 = vsub.s32 0, %v3194
      %v3196 = vrot.slane %v2474, %v3195
      %v3197 = vlaneseq
      %v3198 = vshrl.u32 %v3197, 7
      %v3199 = vsub.s32 0, %v3198
      %v3200 = vrot.slane %v2488, %v3199
      %v3201 = vlaneseq
      %v3202 = vshrl.u32 %v3201, 7
      %v3203 = vsub.s32 0, %v3202
      %v3204 = vrot.slane %v2490, %v3203
      %v3205 = vlaneseq
      %v3206 = vshrl.u32 %v3205, 7
      %v3207 = vsub.s32 0, %v3206
      %v3208 = vrot.slane %v2492, %v3207
      %v3209 = vlaneseq
      %v3210 = vshrl.u32 %v3209, 7
      %v3211 = vsub.s32 0, %v3210
      %v3212 = vrot.slane %v2516, %v3211
      %v3213 = vlaneseq
      %v3214 = vshrl.u32 %v3213, 7
      %v3215 = vsub.s32 0, %v3214
      %v3216 = vrot.slane %v2530, %v3215
      %v3217 = vlaneseq
      %v3218 = vshrl.u32 %v3217, 7
      %v3219 = vsub.s32 0, %v3218
      %v3220 = vrot.slane %v2538, %v3219
      %v3221 = vlaneseq
      %v3222 = vshrl.u32 %v3221, 7
      %v3223 = vsub.s32 0, %v3222
      %v3224 = vrot.slane %v2540, %v3223
      %v3225 = vlaneseq
      %v3226 = vshrl.u32 %v3225, 7
      %v3227 = vsub.s32 0, %v3226
      %v3228 = vrot.slane %v2523, %v3227
      %v3229 = vlaneseq
      %v3230 = vshrl.u32 %v3229, 7
      %v3231 = vsub.s32 0, %v3230
      %v3232 = vrot.slane %v2537, %v3231
      %v3233 = vlaneseq
      %v3234 = vshrl.u32 %v3233, 7
      %v3235 = vsub.s32 0, %v3234
      %v3236 = vrot.slane %v2539, %v3235
      %v3237 = vlaneseq
      %v3238 = vshrl.u32 %v3237, 7
      %v3239 = vsub.s32 0, %v3238
      %v3240 = vrot.slane %v2541, %v3239
      %v3241 = vlaneseq
      %v3242 = vshrl.u32 %v3241, 7
      %v3243 = vsub.s32 0, %v3242
      %v3244 = vrot.slane %v2565, %v3243
      %v3245 = vlaneseq
      %v3246 = vshrl.u32 %v3245, 7
      %v3247 = vsub.s32 0, %v3246
      %v3248 = vrot.slane %v2579, %v3247
      %v3249 = vlaneseq
      %v3250 = vshrl.u32 %v3249, 7
      %v3251 = vsub.s32 0, %v3250
      %v3252 = vrot.slane %v2587, %v3251
      %v3253 = vlaneseq
      %v3254 = vshrl.u32 %v3253, 7
      %v3255 = vsub.s32 0, %v3254
      %v3256 = vrot.slane %v2589, %v3255
      %v3257 = vlaneseq
      %v3258 = vshrl.u32 %v3257, 7
      %v3259 = vsub.s32 0, %v3258
      %v3260 = vrot.slane %v2572, %v3259
      %v3261 = vlaneseq
      %v3262 = vshrl.u32 %v3261, 7
      %v3263 = vsub.s32 0, %v3262
      %v3264 = vrot.slane %v2586, %v3263
      %v3265 = vlaneseq
      %v3266 = vshrl.u32 %v3265, 7
      %v3267 = vsub.s32 0, %v3266
      %v3268 = vrot.slane %v2588, %v3267
      %v3269 = vlaneseq
      %v3270 = vshrl.u32 %v3269, 7
      %v3271 = vsub.s32 0, %v3270
      %v3272 = vrot.slane %v2590, %v3271
      %v3273 = vlaneseq
      %v3274 = vshrl.u32 %v3273, 7
      %v3275 = vsub.s32 0, %v3274
      %v3276 = vrot.slane %v2614, %v3275
      %v3277 = vlaneseq
      %v3278 = vshrl.u32 %v3277, 7
      %v3279 = vsub.s32 0, %v3278
      %v3280 = vrot.slane %v2628, %v3279
      %v3281 = vlaneseq
      %v3282 = vshrl.u32 %v3281, 7
      %v3283 = vsub.s32 0, %v3282
      %v3284 = vrot.slane %v2636, %v3283
      %v3285 = vlaneseq
      %v3286 = vshrl.u32 %v3285, 7
      %v3287 = vsub.s32 0, %v3286
      %v3288 = vrot.slane %v2638, %v3287
      %v3289 = vlaneseq
      %v3290 = vshrl.u32 %v3289, 7
      %v3291 = vsub.s32 0, %v3290
      %v3292 = vrot.slane %v2621, %v3291
      %v3293 = vlaneseq
      %v3294 = vshrl.u32 %v3293, 7
      %v3295 = vsub.s32 0, %v3294
      %v3296 = vrot.slane %v2635, %v3295
      %v3297 = vlaneseq
      %v3298 = vshrl.u32 %v3297, 7
      %v3299 = vsub.s32 0, %v3298
      %v3300 = vrot.slane %v2637, %v3299
      %v3301 = vlaneseq
      %v3302 = vshrl.u32 %v3301, 7
      %v3303 = vsub.s32 0, %v3302
      %v3304 = vrot.slane %v2639, %v3303
      %v3305 = vlaneseq
      %v3306 = vshrl.u32 %v3305, 7
      %v3307 = vsub.s32 0, %v3306
      %v3308 = vrot.slane %v2663, %v3307
      %v3309 = vlaneseq
      %v3310 = vshrl.u32 %v3309, 7
      %v3311 = vsub.s32 0, %v3310
      %v3312 = vrot.slane %v2677, %v3311
      %v3313 = vlaneseq
      %v3314 = vshrl.u32 %v3313, 7
      %v3315 = vsub.s32 0, %v3314
      %v3316 = vrot.slane %v2685, %v3315
      %v3317 = vlaneseq
      %v3318 = vshrl.u32 %v3317, 7
      %v3319 = vsub.s32 0, %v3318
      %v3320 = vrot.slane %v2687, %v3319
      %v3321 = vlaneseq
      %v3322 = vshrl.u32 %v3321, 7
      %v3323 = vsub.s32 0, %v3322
      %v3324 = vrot.slane %v2670, %v3323
      %v3325 = vlaneseq
      %v3326 = vshrl.u32 %v3325, 7
      %v3327 = vsub.s32 0, %v3326
      %v3328 = vrot.slane %v2684, %v3327
      %v3329 = vlaneseq
      %v3330 = vshrl.u32 %v3329, 7
      %v3331 = vsub.s32 0, %v3330
      %v3332 = vrot.slane %v2686, %v3331
      %v3333 = vlaneseq
      %v3334 = vshrl.u32 %v3333, 7
      %v3335 = vsub.s32 0, %v3334
      %v3336 = vrot.slane %v2688, %v3335
      %v3337 = vlaneseq
      %v3338 = vshrl.u32 %v3337, 7
      %v3339 = vsub.s32 0, %v3338
      %v3340 = vrot.slane %v2712, %v3339
      %v3341 = vlaneseq
      %v3342 = vshrl.u32 %v3341, 7
      %v3343 = vsub.s32 0, %v3342
      %v3344 = vrot.slane %v2726, %v3343
      %v3345 = vlaneseq
      %v3346 = vshrl.u32 %v3345, 7
      %v3347 = vsub.s32 0, %v3346
      %v3348 = vrot.slane %v2734, %v3347
      %v3349 = vlaneseq
      %v3350 = vshrl.u32 %v3349, 7
      %v3351 = vsub.s32 0, %v3350
      %v3352 = vrot.slane %v2736, %v3351
      %v3353 = vlaneseq
      %v3354 = vshrl.u32 %v3353, 7
      %v3355 = vsub.s32 0, %v3354
      %v3356 = vrot.slane %v2719, %v3355
      %v3357 = vlaneseq
      %v3358 = vshrl.u32 %v3357, 7
      %v3359 = vsub.s32 0, %v3358
      %v3360 = vrot.slane %v2733, %v3359
      %v3361 = vlaneseq
      %v3362 = vshrl.u32 %v3361, 7
      %v3363 = vsub.s32 0, %v3362
      %v3364 = vrot.slane %v2735, %v3363
      %v3365 = vlaneseq
      %v3366 = vshrl.u32 %v3365, 7
      %v3367 = vsub.s32 0, %v3366
      %v3368 = vrot.slane %v2737, %v3367
      %v3369 = vlaneseq
      %v3370 = vshrl.u32 %v3369, 7
      %v3371 = vsub.s32 0, %v3370
      %v3372 = vrot.slane %v2761, %v3371
      %v3373 = vlaneseq
      %v3374 = vshrl.u32 %v3373, 7
      %v3375 = vsub.s32 0, %v3374
      %v3376 = vrot.slane %v2775, %v3375
      %v3377 = vlaneseq
      %v3378 = vshrl.u32 %v3377, 7
      %v3379 = vsub.s32 0, %v3378
      %v3380 = vrot.slane %v2783, %v3379
      %v3381 = vlaneseq
      %v3382 = vshrl.u32 %v3381, 7
      %v3383 = vsub.s32 0, %v3382
      %v3384 = vrot.slane %v2785, %v3383
      %v3385 = vlaneseq
      %v3386 = vshrl.u32 %v3385, 7
      %v3387 = vsub.s32 0, %v3386
      %v3388 = vrot.slane %v2768, %v3387
      %v3389 = vlaneseq
      %v3390 = vshrl.u32 %v3389, 7
      %v3391 = vsub.s32 0, %v3390
      %v3392 = vrot.slane %v2782, %v3391
      %v3393 = vlaneseq
      %v3394 = vshrl.u32 %v3393, 7
      %v3395 = vsub.s32 0, %v3394
      %v3396 = vrot.slane %v2784, %v3395
      %v3397 = vlaneseq
      %v3398 = vshrl.u32 %v3397, 7
      %v3399 = vsub.s32 0, %v3398
      %v3400 = vrot.slane %v2786, %v3399
      %v3401 = vlaneseq
      %v3402 = vshrl.u32 %v3401, 7
      %v3403 = vsub.s32 0, %v3402
      %v3404 = vrot.slane %v2810, %v3403
      %v3405 = vlaneseq
      %v3406 = vshrl.u32 %v3405, 7
      %v3407 = vsub.s32 0, %v3406
      %v3408 = vrot.slane %v2824, %v3407
      %v3409 = vlaneseq
      %v3410 = vshrl.u32 %v3409, 7
      %v3411 = vsub.s32 0, %v3410
      %v3412 = vrot.slane %v2832, %v3411
      %v3413 = vlaneseq
      %v3414 = vshrl.u32 %v3413, 7
      %v3415 = vsub.s32 0, %v3414
      %v3416 = vrot.slane %v2834, %v3415
      %v3417 = vlaneseq
      %v3418 = vshrl.u32 %v3417, 7
      %v3419 = vsub.s32 0, %v3418
      %v3420 = vrot.slane %v2817, %v3419
      %v3421 = vlaneseq
      %v3422 = vshrl.u32 %v3421, 7
      %v3423 = vsub.s32 0, %v3422
      %v3424 = vrot.slane %v2831, %v3423
      %v3425 = vlaneseq
      %v3426 = vshrl.u32 %v3425, 7
      %v3427 = vsub.s32 0, %v3426
      %v3428 = vrot.slane %v2833, %v3427
      %v3429 = vlaneseq
      %v3430 = vshrl.u32 %v3429, 7
      %v3431 = vsub.s32 0, %v3430
      %v3432 = vrot.slane %v2835, %v3431
      %v3433 = vlaneseq
      %v3434 = vshrl.u32 %v3433, 7
      %v3435 = vsub.s32 0, %v3434
      %v3436 = vrot.slane %v2859, %v3435
      %v3437 = vlaneseq
      %v3438 = vshrl.u32 %v3437, 7
      %v3439 = vsub.s32 0, %v3438
      %v3440 = vrot.slane %v2873, %v3439
      %v3441 = vlaneseq
      %v3442 = vshrl.u32 %v3441, 7
      %v3443 = vsub.s32 0, %v3442
      %v3444 = vrot.slane %v2881, %v3443
      %v3445 = vlaneseq
      %v3446 = vshrl.u32 %v3445, 7
      %v3447 = vsub.s32 0, %v3446
      %v3448 = vrot.slane %v2883, %v3447
      %v3449 = vlaneseq
      %v3450 = vshrl.u32 %v3449, 7
      %v3451 = vsub.s32 0, %v3450
      %v3452 = vrot.slane %v2866, %v3451
      %v3453 = vlaneseq
      %v3454 = vshrl.u32 %v3453, 7
      %v3455 = vsub.s32 0, %v3454
      %v3456 = vrot.slane %v2880, %v3455
      %v3457 = vlaneseq
      %v3458 = vshrl.u32 %v3457, 7
      %v3459 = vsub.s32 0, %v3458
      %v3460 = vrot.slane %v2882, %v3459
      %v3461 = vlaneseq
      %v3462 = vshrl.u32 %v3461, 7
      %v3463 = vsub.s32 0, %v3462
      %v3464 = vrot.slane %v2884, %v3463
      %v3465 = vlaneseq
      %v3466 = vshrl.u32 %v3465, 7
      %v3467 = vsub.s32 0, %v3466
      %v3468 = vrot.slane %v2908, %v3467
      %v3469 = vlaneseq
      %v3470 = vshrl.u32 %v3469, 7
      %v3471 = vsub.s32 0, %v3470
      %v3472 = vrot.slane %v2922, %v3471
      %v3473 = vlaneseq
      %v3474 = vshrl.u32 %v3473, 7
      %v3475 = vsub.s32 0, %v3474
      %v3476 = vrot.slane %v2930, %v3475
      %v3477 = vlaneseq
      %v3478 = vshrl.u32 %v3477, 7
      %v3479 = vsub.s32 0, %v3478
      %v3480 = vrot.slane %v2932, %v3479
      %v3481 = vlaneseq
      %v3482 = vshrl.u32 %v3481, 7
      %v3483 = vsub.s32 0, %v3482
      %v3484 = vrot.slane %v2915, %v3483
      %v3485 = vlaneseq
      %v3486 = vshrl.u32 %v3485, 7
      %v3487 = vsub.s32 0, %v3486
      %v3488 = vrot.slane %v2929, %v3487
      %v3489 = vlaneseq
      %v3490 = vshrl.u32 %v3489, 7
      %v3491 = vsub.s32 0, %v3490
      %v3492 = vrot.slane %v2931, %v3491
      %v3493 = vlaneseq
      %v3494 = vshrl.u32 %v3493, 7
      %v3495 = vsub.s32 0, %v3494
      %v3496 = vrot.slane %v2933, %v3495
      %v3497 = vlaneseq
      %v3498 = vshrl.u32 %v3497, 7
      %v3499 = vsub.s32 0, %v3498
      %v3500 = vrot.slane %v2957, %v3499
      %v3501 = vlaneseq
      %v3502 = vshrl.u32 %v3501, 7
      %v3503 = vsub.s32 0, %v3502
      %v3504 = vrot.slane %v2971, %v3503
      %v3505 = vlaneseq
      %v3506 = vshrl.u32 %v3505, 7
      %v3507 = vsub.s32 0, %v3506
      %v3508 = vrot.slane %v2979, %v3507
      %v3509 = vlaneseq
      %v3510 = vshrl.u32 %v3509, 7
      %v3511 = vsub.s32 0, %v3510
      %v3512 = vrot.slane %v2981, %v3511
      %v3513 = vlaneseq
      %v3514 = vshrl.u32 %v3513, 7
      %v3515 = vsub.s32 0, %v3514
      %v3516 = vrot.slane %v2964, %v3515
      %v3517 = vlaneseq
      %v3518 = vshrl.u32 %v3517, 7
      %v3519 = vsub.s32 0, %v3518
      %v3520 = vrot.slane %v2978, %v3519
      %v3521 = vlaneseq
      %v3522 = vshrl.u32 %v3521, 7
      %v3523 = vsub.s32 0, %v3522
      %v3524 = vrot.slane %v2980, %v3523
      %v3525 = vlaneseq
      %v3526 = vshrl.u32 %v3525, 7
      %v3527 = vsub.s32 0, %v3526
      %v3528 = vrot.slane %v2982, %v3527
      %v3529 = vlaneseq
      %v3530 = vshrl.u32 %v3529, 7
      %v3531 = vsub.s32 0, %v3530
      %v3532 = vrot.slane %v3006, %v3531
      %v3533 = vlaneseq
      %v3534 = vshrl.u32 %v3533, 7
      %v3535 = vsub.s32 0, %v3534
      %v3536 = vrot.slane %v3020, %v3535
      %v3537 = vlaneseq
      %v3538 = vshrl.u32 %v3537, 7
      %v3539 = vsub.s32 0, %v3538
      %v3540 = vrot.slane %v3028, %v3539
      %v3541 = vlaneseq
      %v3542 = vshrl.u32 %v3541, 7
      %v3543 = vsub.s32 0, %v3542
      %v3544 = vrot.slane %v3030, %v3543
      %v3545 = vlaneseq
      %v3546 = vshrl.u32 %v3545, 7
      %v3547 = vsub.s32 0, %v3546
      %v3548 = vrot.slane %v3013, %v3547
      %v3549 = vlaneseq
      %v3550 = vshrl.u32 %v3549, 7
      %v3551 = vsub.s32 0, %v3550
      %v3552 = vrot.slane %v3027, %v3551
      %v3553 = vlaneseq
      %v3554 = vshrl.u32 %v3553, 7
      %v3555 = vsub.s32 0, %v3554
      %v3556 = vrot.slane %v3029, %v3555
      %v3557 = vlaneseq
      %v3558 = vshrl.u32 %v3557, 7
      %v3559 = vsub.s32 0, %v3558
      %v3560 = vrot.slane %v3031, %v3559
      %v3561 = vlaneseq
      %v3562 = vshrl.u32 %v3561, 7
      %v3563 = vsub.s32 0, %v3562
      %v3564 = vrot.slane %v3055, %v3563
      %v3565 = vlaneseq
      %v3566 = vshrl.u32 %v3565, 7
      %v3567 = vsub.s32 0, %v3566
      %v3568 = vrot.slane %v3069, %v3567
      %v3569 = vlaneseq
      %v3570 = vshrl.u32 %v3569, 7
      %v3571 = vsub.s32 0, %v3570
      %v3572 = vrot.slane %v3077, %v3571
      %v3573 = vlaneseq
      %v3574 = vshrl.u32 %v3573, 7
      %v3575 = vsub.s32 0, %v3574
      %v3576 = vrot.slane %v3079, %v3575
      %v3577 = vlaneseq
      %v3578 = vshrl.u32 %v3577, 7
      %v3579 = vsub.s32 0, %v3578
      %v3580 = vrot.slane %v3062, %v3579
      %v3581 = vlaneseq
      %v3582 = vshrl.u32 %v3581, 7
      %v3583 = vsub.s32 0, %v3582
      %v3584 = vrot.slane %v3076, %v3583
      %v3585 = vlaneseq
      %v3586 = vshrl.u32 %v3585, 7
      %v3587 = vsub.s32 0, %v3586
      %v3588 = vrot.slane %v3078, %v3587
      %v3589 = vlaneseq
      %v3590 = vshrl.u32 %v3589, 7
      %v3591 = vsub.s32 0, %v3590
      %v3592 = vrot.slane %v3080, %v3591
      %v3721 = vsub.f32 %v3084, %v585
      %v3722 = vsub.f32 %v3088, %v586
      %v3723 = vsub.f32 %v3092, %v587
      %v3724 = vsub.f32 %v3096, %v588
      %v3725 = vsub.f32 %v3100, %v589
      %v3726 = vsub.f32 %v3104, %v590
      %v3727 = vsub.f32 %v3108, %v591
      %v3728 = vsub.f32 %v3112, %v592
      %v3729 = vsub.f32 %v3116, %v593
      %v3730 = vsub.f32 %v3120, %v594
      %v3731 = vsub.f32 %v3124, %v595
      %v3732 = vsub.f32 %v3128, %v596
      %v3733 = vsub.f32 %v3132, %v597
      %v3734 = vsub.f32 %v3136, %v598
      %v3735 = vsub.f32 %v3140, %v599
      %v3736 = vsub.f32 %v3144, %v600
      %v3737 = vsub.f32 %v3148, %v601
      %v3738 = vsub.f32 %v3152, %v602
      %v3739 = vsub.f32 %v3156, %v603
      %v3740 = vsub.f32 %v3160, %v604
      %v3741 = vsub.f32 %v3164, %v605
      %v3742 = vsub.f32 %v3168, %v606
      %v3743 = vsub.f32 %v3172, %v607
      %v3744 = vsub.f32 %v3176, %v608
      %v3745 = vsub.f32 %v3180, %v609
      %v3746 = vsub.f32 %v3184, %v610
      %v3747 = vsub.f32 %v3188, %v611
      %v3748 = vsub.f32 %v3192, %v612
      %v3749 = vsub.f32 %v3196, %v613
      %v3750 = vsub.f32 %v3200, %v614
      %v3751 = vsub.f32 %v3204, %v615
      %v3752 = vsub.f32 %v3208, %v616
      %v3753 = vsub.f32 %v3212, %v617
      %v3754 = vsub.f32 %v3216, %v618
      %v3755 = vsub.f32 %v3220, %v619
      %v3756 = vsub.f32 %v3224, %v620
      %v3757 = vsub.f32 %v3228, %v621
      %v3758 = vsub.f32 %v3232, %v622
      %v3759 = vsub.f32 %v3236, %v623
      %v3760 = vsub.f32 %v3240, %v624
      %v3761 = vsub.f32 %v3244, %v625
      %v3762 = vsub.f32 %v3248, %v626
      %v3763 = vsub.f32 %v3252, %v627
      %v3764 = vsub.f32 %v3256, %v628
      %v3765 = vsub.f32 %v3260, %v629
      %v3766 = vsub.f32 %v3264, %v630
      %v3767 = vsub.f32 %v3268, %v631
      %v3768 = vsub.f32 %v3272, %v632
      %v3769 = vsub.f32 %v3276, %v633
      %v3770 = vsub.f32 %v3280, %v634
      %v3771 = vsub.f32 %v3284, %v635
      %v3772 = vsub.f32 %v3288, %v636
      %v3773 = vsub.f32 %v3292, %v637
      %v3774 = vsub.f32 %v3296, %v638
      %v3775 = vsub.f32 %v3300, %v639
      %v3776 = vsub.f32 %v3304, %v640
      %v3777 = vsub.f32 %v3308, %v641
      %v3778 = vsub.f32 %v3312, %v642
      %v3779 = vsub.f32 %v3316, %v643
      %v3780 = vsub.f32 %v3320, %v644
      %v3781 = vsub.f32 %v3324, %v645
      %v3782 = vsub.f32 %v3328, %v646
      %v3783 = vsub.f32 %v3332, %v647
      %v3784 = vsub.f32 %v3336, %v648
      %v3785 = vsub.f32 %v3340, %v649
      %v3786 = vsub.f32 %v3344, %v650
      %v3787 = vsub.f32 %v3348, %v651
      %v3788 = vsub.f32 %v3352, %v652
      %v3789 = vsub.f32 %v3356, %v653
      %v3790 = vsub.f32 %v3360, %v654
      %v3791 = vsub.f32 %v3364, %v655
      %v3792 = vsub.f32 %v3368, %v656
      %v3793 = vsub.f32 %v3372, %v657
      %v3794 = vsub.f32 %v3376, %v658
      %v3795 = vsub.f32 %v3380, %v659
      %v3796 = vsub.f32 %v3384, %v660
      %v3797 = vsub.f32 %v3388, %v661
      %v3798 = vsub.f32 %v3392, %v662
      %v3799 = vsub.f32 %v3396, %v663
      %v3800 = vsub.f32 %v3400, %v664
      %v3801 = vsub.f32 %v3404, %v665
      %v3802 = vsub.f32 %v3408, %v666
      %v3803 = vsub.f32 %v3412, %v667
      %v3804 = vsub.f32 %v3416, %v668
      %v3805 = vsub.f32 %v3420, %v669
      %v3806 = vsub.f32 %v3424, %v670
      %v3807 = vsub.f32 %v3428, %v671
      %v3808 = vsub.f32 %v3432, %v672
      %v3809 = vsub.f32 %v3436, %v673
      %v3810 = vsub.f32 %v3440, %v674
      %v3811 = vsub.f32 %v3444, %v675
      %v3812 = vsub.f32 %v3448, %v676
      %v3813 = vsub.f32 %v3452, %v677
      %v3814 = vsub.f32 %v3456, %v678
      %v3815 = vsub.f32 %v3460, %v679
      %v3816 = vsub.f32 %v3464, %v680
      %v3817 = vsub.f32 %v3468, %v681
      %v3818 = vsub.f32 %v3472, %v682
      %v3819 = vsub.f32 %v3476, %v683
      %v3820 = vsub.f32 %v3480, %v684
      %v3821 = vsub.f32 %v3484, %v685
      %v3822 = vsub.f32 %v3488, %v686
      %v3823 = vsub.f32 %v3492, %v687
      %v3824 = vsub.f32 %v3496, %v688
      %v3825 = vsub.f32 %v3500, %v689
      %v3826 = vsub.f32 %v3504, %v690
      %v3827 = vsub.f32 %v3508, %v691
      %v3828 = vsub.f32 %v3512, %v692
      %v3829 = vsub.f32 %v3516, %v693
      %v3830 = vsub.f32 %v3520, %v694
      %v3831 = vsub.f32 %v3524, %v695
      %v3832 = vsub.f32 %v3528, %v696
      %v3833 = vsub.f32 %v3532, %v697
      %v3834 = vsub.f32 %v3536, %v698
      %v3835 = vsub.f32 %v3540, %v699
      %v3836 = vsub.f32 %v3544, %v700
      %v3837 = vsub.f32 %v3548, %v701
      %v3838 = vsub.f32 %v3552, %v702
      %v3839 = vsub.f32 %v3556, %v703
      %v3840 = vsub.f32 %v3560, %v704
      %v3841 = vsub.f32 %v3564, %v705
      %v3842 = vsub.f32 %v3568, %v706
      %v3843 = vsub.f32 %v3572, %v707
      %v3844 = vsub.f32 %v3576, %v708
      %v3845 = vsub.f32 %v3580, %v709
      %v3846 = vsub.f32 %v3584, %v710
      %v3847 = vsub.f32 %v3588, %v711
      %v3848 = vsub.f32 %v3592, %v712
      %vm3849 = vcmask 519168
      %v3850 = vsel %vm3849, %v2153, -inf
      %v3851 = vrot.slane %v3850, 4
      %v3852 = vmax.f32 %v3850, %v3851
      %v3853 = vrot.slane %v3852, 2
      %v3854 = vmax.f32 %v3852, %v3853
      %v3855 = vrot.slane %v3854, 1
      %v3856 = vmax.f32 %v3854, %v3855
      %v3857 = vsel %vm3849, %v2154, -inf
      %v3858 = vrot.slane %v3857, 4
      %v3859 = vmax.f32 %v3857, %v3858
      %v3860 = vrot.slane %v3859, 2
      %v3861 = vmax.f32 %v3859, %v3860
      %v3862 = vrot.slane %v3861, 1
      %v3863 = vmax.f32 %v3861, %v3862
      %v3864 = vsel %vm3849, %v2155, -inf
      %v3865 = vrot.slane %v3864, 4
      %v3866 = vmax.f32 %v3864, %v3865
      %v3867 = vrot.slane %v3866, 2
      %v3868 = vmax.f32 %v3866, %v3867
      %v3869 = vrot.slane %v3868, 1
      %v3870 = vmax.f32 %v3868, %v3869
      %v3871 = vsel %vm3849, %v2156, -inf
      %v3872 = vrot.slane %v3871, 4
      %v3873 = vmax.f32 %v3871, %v3872
      %v3874 = vrot.slane %v3873, 2
      %v3875 = vmax.f32 %v3873, %v3874
      %v3876 = vrot.slane %v3875, 1
      %v3877 = vmax.f32 %v3875, %v3876
      %v3878 = vsel %vm3849, %v2157, -inf
      %v3879 = vrot.slane %v3878, 4
      %v3880 = vmax.f32 %v3878, %v3879
      %v3881 = vrot.slane %v3880, 2
      %v3882 = vmax.f32 %v3880, %v3881
      %v3883 = vrot.slane %v3882, 1
      %v3884 = vmax.f32 %v3882, %v3883
      %v3885 = vsel %vm3849, %v2158, -inf
      %v3886 = vrot.slane %v3885, 4
      %v3887 = vmax.f32 %v3885, %v3886
      %v3888 = vrot.slane %v3887, 2
      %v3889 = vmax.f32 %v3887, %v3888
      %v3890 = vrot.slane %v3889, 1
      %v3891 = vmax.f32 %v3889, %v3890
      %v3892 = vsel %vm3849, %v2159, -inf
      %v3893 = vrot.slane %v3892, 4
      %v3894 = vmax.f32 %v3892, %v3893
      %v3895 = vrot.slane %v3894, 2
      %v3896 = vmax.f32 %v3894, %v3895
      %v3897 = vrot.slane %v3896, 1
      %v3898 = vmax.f32 %v3896, %v3897
      %v3899 = vsel %vm3849, %v2160, -inf
      %v3900 = vrot.slane %v3899, 4
      %v3901 = vmax.f32 %v3899, %v3900
      %v3902 = vrot.slane %v3901, 2
      %v3903 = vmax.f32 %v3901, %v3902
      %v3904 = vrot.slane %v3903, 1
      %v3905 = vmax.f32 %v3903, %v3904
      %v3906 = vsel %vm3849, %v2161, -inf
      %v3907 = vrot.slane %v3906, 4
      %v3908 = vmax.f32 %v3906, %v3907
      %v3909 = vrot.slane %v3908, 2
      %v3910 = vmax.f32 %v3908, %v3909
      %v3911 = vrot.slane %v3910, 1
      %v3912 = vmax.f32 %v3910, %v3911
      %v3913 = vsel %vm3849, %v2162, -inf
      %v3914 = vrot.slane %v3913, 4
      %v3915 = vmax.f32 %v3913, %v3914
      %v3916 = vrot.slane %v3915, 2
      %v3917 = vmax.f32 %v3915, %v3916
      %v3918 = vrot.slane %v3917, 1
      %v3919 = vmax.f32 %v3917, %v3918
      %v3920 = vsel %vm3849, %v2163, -inf
      %v3921 = vrot.slane %v3920, 4
      %v3922 = vmax.f32 %v3920, %v3921
      %v3923 = vrot.slane %v3922, 2
      %v3924 = vmax.f32 %v3922, %v3923
      %v3925 = vrot.slane %v3924, 1
      %v3926 = vmax.f32 %v3924, %v3925
      %v3927 = vsel %vm3849, %v2164, -inf
      %v3928 = vrot.slane %v3927, 4
      %v3929 = vmax.f32 %v3927, %v3928
      %v3930 = vrot.slane %v3929, 2
      %v3931 = vmax.f32 %v3929, %v3930
      %v3932 = vrot.slane %v3931, 1
      %v3933 = vmax.f32 %v3931, %v3932
      %v3934 = vsel %vm3849, %v2165, -inf
      %v3935 = vrot.slane %v3934, 4
      %v3936 = vmax.f32 %v3934, %v3935
      %v3937 = vrot.slane %v3936, 2
      %v3938 = vmax.f32 %v3936, %v3937
      %v3939 = vrot.slane %v3938, 1
      %v3940 = vmax.f32 %v3938, %v3939
      %v3941 = vsel %vm3849, %v2166, -inf
      %v3942 = vrot.slane %v3941, 4
      %v3943 = vmax.f32 %v3941, %v3942
      %v3944 = vrot.slane %v3943, 2
      %v3945 = vmax.f32 %v3943, %v3944
      %v3946 = vrot.slane %v3945, 1
      %v3947 = vmax.f32 %v3945, %v3946
      %v3948 = vsel %vm3849, %v2167, -inf
      %v3949 = vrot.slane %v3948, 4
      %v3950 = vmax.f32 %v3948, %v3949
      %v3951 = vrot.slane %v3950, 2
      %v3952 = vmax.f32 %v3950, %v3951
      %v3953 = vrot.slane %v3952, 1
      %v3954 = vmax.f32 %v3952, %v3953
      %v3955 = vsel %vm3849, %v2168, -inf
      %v3956 = vrot.slane %v3955, 4
      %v3957 = vmax.f32 %v3955, %v3956
      %v3958 = vrot.slane %v3957, 2
      %v3959 = vmax.f32 %v3957, %v3958
      %v3960 = vrot.slane %v3959, 1
      %v3961 = vmax.f32 %v3959, %v3960
      %v3962 = vsel %vm3849, %v2169, -inf
      %v3963 = vrot.slane %v3962, 4
      %v3964 = vmax.f32 %v3962, %v3963
      %v3965 = vrot.slane %v3964, 2
      %v3966 = vmax.f32 %v3964, %v3965
      %v3967 = vrot.slane %v3966, 1
      %v3968 = vmax.f32 %v3966, %v3967
      %v3969 = vsel %vm3849, %v2170, -inf
      %v3970 = vrot.slane %v3969, 4
      %v3971 = vmax.f32 %v3969, %v3970
      %v3972 = vrot.slane %v3971, 2
      %v3973 = vmax.f32 %v3971, %v3972
      %v3974 = vrot.slane %v3973, 1
      %v3975 = vmax.f32 %v3973, %v3974
      %v3976 = vsel %vm3849, %v2171, -inf
      %v3977 = vrot.slane %v3976, 4
      %v3978 = vmax.f32 %v3976, %v3977
      %v3979 = vrot.slane %v3978, 2
      %v3980 = vmax.f32 %v3978, %v3979
      %v3981 = vrot.slane %v3980, 1
      %v3982 = vmax.f32 %v3980, %v3981
      %v3983 = vsel %vm3849, %v2172, -inf
      %v3984 = vrot.slane %v3983, 4
      %v3985 = vmax.f32 %v3983, %v3984
      %v3986 = vrot.slane %v3985, 2
      %v3987 = vmax.f32 %v3985, %v3986
      %v3988 = vrot.slane %v3987, 1
      %v3989 = vmax.f32 %v3987, %v3988
      %v3990 = vsel %vm3849, %v2173, -inf
      %v3991 = vrot.slane %v3990, 4
      %v3992 = vmax.f32 %v3990, %v3991
      %v3993 = vrot.slane %v3992, 2
      %v3994 = vmax.f32 %v3992, %v3993
      %v3995 = vrot.slane %v3994, 1
      %v3996 = vmax.f32 %v3994, %v3995
      %v3997 = vsel %vm3849, %v2174, -inf
      %v3998 = vrot.slane %v3997, 4
      %v3999 = vmax.f32 %v3997, %v3998
      %v4000 = vrot.slane %v3999, 2
      %v4001 = vmax.f32 %v3999, %v4000
      %v4002 = vrot.slane %v4001, 1
      %v4003 = vmax.f32 %v4001, %v4002
      %v4004 = vsel %vm3849, %v2175, -inf
      %v4005 = vrot.slane %v4004, 4
      %v4006 = vmax.f32 %v4004, %v4005
      %v4007 = vrot.slane %v4006, 2
      %v4008 = vmax.f32 %v4006, %v4007
      %v4009 = vrot.slane %v4008, 1
      %v4010 = vmax.f32 %v4008, %v4009
      %v4011 = vsel %vm3849, %v2176, -inf
      %v4012 = vrot.slane %v4011, 4
      %v4013 = vmax.f32 %v4011, %v4012
      %v4014 = vrot.slane %v4013, 2
      %v4015 = vmax.f32 %v4013, %v4014
      %v4016 = vrot.slane %v4015, 1
      %v4017 = vmax.f32 %v4015, %v4016
      %v4018 = vsel %vm3849, %v2177, -inf
      %v4019 = vrot.slane %v4018, 4
      %v4020 = vmax.f32 %v4018, %v4019
      %v4021 = vrot.slane %v4020, 2
      %v4022 = vmax.f32 %v4020, %v4021
      %v4023 = vrot.slane %v4022, 1
      %v4024 = vmax.f32 %v4022, %v4023
      %v4025 = vsel %vm3849, %v2178, -inf
      %v4026 = vrot.slane %v4025, 4
      %v4027 = vmax.f32 %v4025, %v4026
      %v4028 = vrot.slane %v4027, 2
      %v4029 = vmax.f32 %v4027, %v4028
      %v4030 = vrot.slane %v4029, 1
      %v4031 = vmax.f32 %v4029, %v4030
      %v4032 = vsel %vm3849, %v2179, -inf
      %v4033 = vrot.slane %v4032, 4
      %v4034 = vmax.f32 %v4032, %v4033
      %v4035 = vrot.slane %v4034, 2
      %v4036 = vmax.f32 %v4034, %v4035
      %v4037 = vrot.slane %v4036, 1
      %v4038 = vmax.f32 %v4036, %v4037
      %v4039 = vsel %vm3849, %v2180, -inf
      %v4040 = vrot.slane %v4039, 4
      %v4041 = vmax.f32 %v4039, %v4040
      %v4042 = vrot.slane %v4041, 2
      %v4043 = vmax.f32 %v4041, %v4042
      %v4044 = vrot.slane %v4043, 1
      %v4045 = vmax.f32 %v4043, %v4044
      %v4046 = vsel %vm3849, %v2181, -inf
      %v4047 = vrot.slane %v4046, 4
      %v4048 = vmax.f32 %v4046, %v4047
      %v4049 = vrot.slane %v4048, 2
      %v4050 = vmax.f32 %v4048, %v4049
      %v4051 = vrot.slane %v4050, 1
      %v4052 = vmax.f32 %v4050, %v4051
      %v4053 = vsel %vm3849, %v2182, -inf
      %v4054 = vrot.slane %v4053, 4
      %v4055 = vmax.f32 %v4053, %v4054
      %v4056 = vrot.slane %v4055, 2
      %v4057 = vmax.f32 %v4055, %v4056
      %v4058 = vrot.slane %v4057, 1
      %v4059 = vmax.f32 %v4057, %v4058
      %v4060 = vsel %vm3849, %v2183, -inf
      %v4061 = vrot.slane %v4060, 4
      %v4062 = vmax.f32 %v4060, %v4061
      %v4063 = vrot.slane %v4062, 2
      %v4064 = vmax.f32 %v4062, %v4063
      %v4065 = vrot.slane %v4064, 1
      %v4066 = vmax.f32 %v4064, %v4065
      %v4067 = vsel %vm3849, %v2184, -inf
      %v4068 = vrot.slane %v4067, 4
      %v4069 = vmax.f32 %v4067, %v4068
      %v4070 = vrot.slane %v4069, 2
      %v4071 = vmax.f32 %v4069, %v4070
      %v4072 = vrot.slane %v4071, 1
      %v4073 = vmax.f32 %v4071, %v4072
      %v4074 = vsel %vm3849, %v2185, -inf
      %v4075 = vrot.slane %v4074, 4
      %v4076 = vmax.f32 %v4074, %v4075
      %v4077 = vrot.slane %v4076, 2
      %v4078 = vmax.f32 %v4076, %v4077
      %v4079 = vrot.slane %v4078, 1
      %v4080 = vmax.f32 %v4078, %v4079
      %v4081 = vsel %vm3849, %v2186, -inf
      %v4082 = vrot.slane %v4081, 4
      %v4083 = vmax.f32 %v4081, %v4082
      %v4084 = vrot.slane %v4083, 2
      %v4085 = vmax.f32 %v4083, %v4084
      %v4086 = vrot.slane %v4085, 1
      %v4087 = vmax.f32 %v4085, %v4086
      %v4088 = vsel %vm3849, %v2187, -inf
      %v4089 = vrot.slane %v4088, 4
      %v4090 = vmax.f32 %v4088, %v4089
      %v4091 = vrot.slane %v4090, 2
      %v4092 = vmax.f32 %v4090, %v4091
      %v4093 = vrot.slane %v4092, 1
      %v4094 = vmax.f32 %v4092, %v4093
      %v4095 = vsel %vm3849, %v2188, -inf
      %v4096 = vrot.slane %v4095, 4
      %v4097 = vmax.f32 %v4095, %v4096
      %v4098 = vrot.slane %v4097, 2
      %v4099 = vmax.f32 %v4097, %v4098
      %v4100 = vrot.slane %v4099, 1
      %v4101 = vmax.f32 %v4099, %v4100
      %v4102 = vsel %vm3849, %v2189, -inf
      %v4103 = vrot.slane %v4102, 4
      %v4104 = vmax.f32 %v4102, %v4103
      %v4105 = vrot.slane %v4104, 2
      %v4106 = vmax.f32 %v4104, %v4105
      %v4107 = vrot.slane %v4106, 1
      %v4108 = vmax.f32 %v4106, %v4107
      %v4109 = vsel %vm3849, %v2190, -inf
      %v4110 = vrot.slane %v4109, 4
      %v4111 = vmax.f32 %v4109, %v4110
      %v4112 = vrot.slane %v4111, 2
      %v4113 = vmax.f32 %v4111, %v4112
      %v4114 = vrot.slane %v4113, 1
      %v4115 = vmax.f32 %v4113, %v4114
      %v4116 = vsel %vm3849, %v2191, -inf
      %v4117 = vrot.slane %v4116, 4
      %v4118 = vmax.f32 %v4116, %v4117
      %v4119 = vrot.slane %v4118, 2
      %v4120 = vmax.f32 %v4118, %v4119
      %v4121 = vrot.slane %v4120, 1
      %v4122 = vmax.f32 %v4120, %v4121
      %v4123 = vsel %vm3849, %v2192, -inf
      %v4124 = vrot.slane %v4123, 4
      %v4125 = vmax.f32 %v4123, %v4124
      %v4126 = vrot.slane %v4125, 2
      %v4127 = vmax.f32 %v4125, %v4126
      %v4128 = vrot.slane %v4127, 1
      %v4129 = vmax.f32 %v4127, %v4128
      %v4130 = vsel %vm3849, %v2193, -inf
      %v4131 = vrot.slane %v4130, 4
      %v4132 = vmax.f32 %v4130, %v4131
      %v4133 = vrot.slane %v4132, 2
      %v4134 = vmax.f32 %v4132, %v4133
      %v4135 = vrot.slane %v4134, 1
      %v4136 = vmax.f32 %v4134, %v4135
      %v4137 = vsel %vm3849, %v2194, -inf
      %v4138 = vrot.slane %v4137, 4
      %v4139 = vmax.f32 %v4137, %v4138
      %v4140 = vrot.slane %v4139, 2
      %v4141 = vmax.f32 %v4139, %v4140
      %v4142 = vrot.slane %v4141, 1
      %v4143 = vmax.f32 %v4141, %v4142
      %v4144 = vsel %vm3849, %v2195, -inf
      %v4145 = vrot.slane %v4144, 4
      %v4146 = vmax.f32 %v4144, %v4145
      %v4147 = vrot.slane %v4146, 2
      %v4148 = vmax.f32 %v4146, %v4147
      %v4149 = vrot.slane %v4148, 1
      %v4150 = vmax.f32 %v4148, %v4149
      %v4151 = vsel %vm3849, %v2196, -inf
      %v4152 = vrot.slane %v4151, 4
      %v4153 = vmax.f32 %v4151, %v4152
      %v4154 = vrot.slane %v4153, 2
      %v4155 = vmax.f32 %v4153, %v4154
      %v4156 = vrot.slane %v4155, 1
      %v4157 = vmax.f32 %v4155, %v4156
      %v4158 = vsel %vm3849, %v2197, -inf
      %v4159 = vrot.slane %v4158, 4
      %v4160 = vmax.f32 %v4158, %v4159
      %v4161 = vrot.slane %v4160, 2
      %v4162 = vmax.f32 %v4160, %v4161
      %v4163 = vrot.slane %v4162, 1
      %v4164 = vmax.f32 %v4162, %v4163
      %v4165 = vsel %vm3849, %v2198, -inf
      %v4166 = vrot.slane %v4165, 4
      %v4167 = vmax.f32 %v4165, %v4166
      %v4168 = vrot.slane %v4167, 2
      %v4169 = vmax.f32 %v4167, %v4168
      %v4170 = vrot.slane %v4169, 1
      %v4171 = vmax.f32 %v4169, %v4170
      %v4172 = vsel %vm3849, %v2199, -inf
      %v4173 = vrot.slane %v4172, 4
      %v4174 = vmax.f32 %v4172, %v4173
      %v4175 = vrot.slane %v4174, 2
      %v4176 = vmax.f32 %v4174, %v4175
      %v4177 = vrot.slane %v4176, 1
      %v4178 = vmax.f32 %v4176, %v4177
      %v4179 = vsel %vm3849, %v2200, -inf
      %v4180 = vrot.slane %v4179, 4
      %v4181 = vmax.f32 %v4179, %v4180
      %v4182 = vrot.slane %v4181, 2
      %v4183 = vmax.f32 %v4181, %v4182
      %v4184 = vrot.slane %v4183, 1
      %v4185 = vmax.f32 %v4183, %v4184
      %v4186 = vsel %vm3849, %v2201, -inf
      %v4187 = vrot.slane %v4186, 4
      %v4188 = vmax.f32 %v4186, %v4187
      %v4189 = vrot.slane %v4188, 2
      %v4190 = vmax.f32 %v4188, %v4189
      %v4191 = vrot.slane %v4190, 1
      %v4192 = vmax.f32 %v4190, %v4191
      %v4193 = vsel %vm3849, %v2202, -inf
      %v4194 = vrot.slane %v4193, 4
      %v4195 = vmax.f32 %v4193, %v4194
      %v4196 = vrot.slane %v4195, 2
      %v4197 = vmax.f32 %v4195, %v4196
      %v4198 = vrot.slane %v4197, 1
      %v4199 = vmax.f32 %v4197, %v4198
      %v4200 = vsel %vm3849, %v2203, -inf
      %v4201 = vrot.slane %v4200, 4
      %v4202 = vmax.f32 %v4200, %v4201
      %v4203 = vrot.slane %v4202, 2
      %v4204 = vmax.f32 %v4202, %v4203
      %v4205 = vrot.slane %v4204, 1
      %v4206 = vmax.f32 %v4204, %v4205
      %v4207 = vsel %vm3849, %v2204, -inf
      %v4208 = vrot.slane %v4207, 4
      %v4209 = vmax.f32 %v4207, %v4208
      %v4210 = vrot.slane %v4209, 2
      %v4211 = vmax.f32 %v4209, %v4210
      %v4212 = vrot.slane %v4211, 1
      %v4213 = vmax.f32 %v4211, %v4212
      %v4214 = vsel %vm3849, %v2205, -inf
      %v4215 = vrot.slane %v4214, 4
      %v4216 = vmax.f32 %v4214, %v4215
      %v4217 = vrot.slane %v4216, 2
      %v4218 = vmax.f32 %v4216, %v4217
      %v4219 = vrot.slane %v4218, 1
      %v4220 = vmax.f32 %v4218, %v4219
      %v4221 = vsel %vm3849, %v2206, -inf
      %v4222 = vrot.slane %v4221, 4
      %v4223 = vmax.f32 %v4221, %v4222
      %v4224 = vrot.slane %v4223, 2
      %v4225 = vmax.f32 %v4223, %v4224
      %v4226 = vrot.slane %v4225, 1
      %v4227 = vmax.f32 %v4225, %v4226
      %v4228 = vsel %vm3849, %v2207, -inf
      %v4229 = vrot.slane %v4228, 4
      %v4230 = vmax.f32 %v4228, %v4229
      %v4231 = vrot.slane %v4230, 2
      %v4232 = vmax.f32 %v4230, %v4231
      %v4233 = vrot.slane %v4232, 1
      %v4234 = vmax.f32 %v4232, %v4233
      %v4235 = vsel %vm3849, %v2208, -inf
      %v4236 = vrot.slane %v4235, 4
      %v4237 = vmax.f32 %v4235, %v4236
      %v4238 = vrot.slane %v4237, 2
      %v4239 = vmax.f32 %v4237, %v4238
      %v4240 = vrot.slane %v4239, 1
      %v4241 = vmax.f32 %v4239, %v4240
      %v4242 = vsel %vm3849, %v2209, -inf
      %v4243 = vrot.slane %v4242, 4
      %v4244 = vmax.f32 %v4242, %v4243
      %v4245 = vrot.slane %v4244, 2
      %v4246 = vmax.f32 %v4244, %v4245
      %v4247 = vrot.slane %v4246, 1
      %v4248 = vmax.f32 %v4246, %v4247
      %v4249 = vsel %vm3849, %v2210, -inf
      %v4250 = vrot.slane %v4249, 4
      %v4251 = vmax.f32 %v4249, %v4250
      %v4252 = vrot.slane %v4251, 2
      %v4253 = vmax.f32 %v4251, %v4252
      %v4254 = vrot.slane %v4253, 1
      %v4255 = vmax.f32 %v4253, %v4254
      %v4256 = vsel %vm3849, %v2211, -inf
      %v4257 = vrot.slane %v4256, 4
      %v4258 = vmax.f32 %v4256, %v4257
      %v4259 = vrot.slane %v4258, 2
      %v4260 = vmax.f32 %v4258, %v4259
      %v4261 = vrot.slane %v4260, 1
      %v4262 = vmax.f32 %v4260, %v4261
      %v4263 = vsel %vm3849, %v2212, -inf
      %v4264 = vrot.slane %v4263, 4
      %v4265 = vmax.f32 %v4263, %v4264
      %v4266 = vrot.slane %v4265, 2
      %v4267 = vmax.f32 %v4265, %v4266
      %v4268 = vrot.slane %v4267, 1
      %v4269 = vmax.f32 %v4267, %v4268
      %v4270 = vsel %vm3849, %v2213, -inf
      %v4271 = vrot.slane %v4270, 4
      %v4272 = vmax.f32 %v4270, %v4271
      %v4273 = vrot.slane %v4272, 2
      %v4274 = vmax.f32 %v4272, %v4273
      %v4275 = vrot.slane %v4274, 1
      %v4276 = vmax.f32 %v4274, %v4275
      %v4277 = vsel %vm3849, %v2214, -inf
      %v4278 = vrot.slane %v4277, 4
      %v4279 = vmax.f32 %v4277, %v4278
      %v4280 = vrot.slane %v4279, 2
      %v4281 = vmax.f32 %v4279, %v4280
      %v4282 = vrot.slane %v4281, 1
      %v4283 = vmax.f32 %v4281, %v4282
      %v4284 = vsel %vm3849, %v2215, -inf
      %v4285 = vrot.slane %v4284, 4
      %v4286 = vmax.f32 %v4284, %v4285
      %v4287 = vrot.slane %v4286, 2
      %v4288 = vmax.f32 %v4286, %v4287
      %v4289 = vrot.slane %v4288, 1
      %v4290 = vmax.f32 %v4288, %v4289
      %v4291 = vsel %vm3849, %v2216, -inf
      %v4292 = vrot.slane %v4291, 4
      %v4293 = vmax.f32 %v4291, %v4292
      %v4294 = vrot.slane %v4293, 2
      %v4295 = vmax.f32 %v4293, %v4294
      %v4296 = vrot.slane %v4295, 1
      %v4297 = vmax.f32 %v4295, %v4296
      %v4298 = vsel %vm3849, %v2217, -inf
      %v4299 = vrot.slane %v4298, 4
      %v4300 = vmax.f32 %v4298, %v4299
      %v4301 = vrot.slane %v4300, 2
      %v4302 = vmax.f32 %v4300, %v4301
      %v4303 = vrot.slane %v4302, 1
      %v4304 = vmax.f32 %v4302, %v4303
      %v4305 = vsel %vm3849, %v2218, -inf
      %v4306 = vrot.slane %v4305, 4
      %v4307 = vmax.f32 %v4305, %v4306
      %v4308 = vrot.slane %v4307, 2
      %v4309 = vmax.f32 %v4307, %v4308
      %v4310 = vrot.slane %v4309, 1
      %v4311 = vmax.f32 %v4309, %v4310
      %v4312 = vsel %vm3849, %v2219, -inf
      %v4313 = vrot.slane %v4312, 4
      %v4314 = vmax.f32 %v4312, %v4313
      %v4315 = vrot.slane %v4314, 2
      %v4316 = vmax.f32 %v4314, %v4315
      %v4317 = vrot.slane %v4316, 1
      %v4318 = vmax.f32 %v4316, %v4317
      %v4319 = vsel %vm3849, %v2220, -inf
      %v4320 = vrot.slane %v4319, 4
      %v4321 = vmax.f32 %v4319, %v4320
      %v4322 = vrot.slane %v4321, 2
      %v4323 = vmax.f32 %v4321, %v4322
      %v4324 = vrot.slane %v4323, 1
      %v4325 = vmax.f32 %v4323, %v4324
      %v4326 = vsel %vm3849, %v2221, -inf
      %v4327 = vrot.slane %v4326, 4
      %v4328 = vmax.f32 %v4326, %v4327
      %v4329 = vrot.slane %v4328, 2
      %v4330 = vmax.f32 %v4328, %v4329
      %v4331 = vrot.slane %v4330, 1
      %v4332 = vmax.f32 %v4330, %v4331
      %v4333 = vsel %vm3849, %v2222, -inf
      %v4334 = vrot.slane %v4333, 4
      %v4335 = vmax.f32 %v4333, %v4334
      %v4336 = vrot.slane %v4335, 2
      %v4337 = vmax.f32 %v4335, %v4336
      %v4338 = vrot.slane %v4337, 1
      %v4339 = vmax.f32 %v4337, %v4338
      %v4340 = vsel %vm3849, %v2223, -inf
      %v4341 = vrot.slane %v4340, 4
      %v4342 = vmax.f32 %v4340, %v4341
      %v4343 = vrot.slane %v4342, 2
      %v4344 = vmax.f32 %v4342, %v4343
      %v4345 = vrot.slane %v4344, 1
      %v4346 = vmax.f32 %v4344, %v4345
      %v4347 = vsel %vm3849, %v2224, -inf
      %v4348 = vrot.slane %v4347, 4
      %v4349 = vmax.f32 %v4347, %v4348
      %v4350 = vrot.slane %v4349, 2
      %v4351 = vmax.f32 %v4349, %v4350
      %v4352 = vrot.slane %v4351, 1
      %v4353 = vmax.f32 %v4351, %v4352
      %v4354 = vsel %vm3849, %v2225, -inf
      %v4355 = vrot.slane %v4354, 4
      %v4356 = vmax.f32 %v4354, %v4355
      %v4357 = vrot.slane %v4356, 2
      %v4358 = vmax.f32 %v4356, %v4357
      %v4359 = vrot.slane %v4358, 1
      %v4360 = vmax.f32 %v4358, %v4359
      %v4361 = vsel %vm3849, %v2226, -inf
      %v4362 = vrot.slane %v4361, 4
      %v4363 = vmax.f32 %v4361, %v4362
      %v4364 = vrot.slane %v4363, 2
      %v4365 = vmax.f32 %v4363, %v4364
      %v4366 = vrot.slane %v4365, 1
      %v4367 = vmax.f32 %v4365, %v4366
      %v4368 = vsel %vm3849, %v2227, -inf
      %v4369 = vrot.slane %v4368, 4
      %v4370 = vmax.f32 %v4368, %v4369
      %v4371 = vrot.slane %v4370, 2
      %v4372 = vmax.f32 %v4370, %v4371
      %v4373 = vrot.slane %v4372, 1
      %v4374 = vmax.f32 %v4372, %v4373
      %v4375 = vsel %vm3849, %v2228, -inf
      %v4376 = vrot.slane %v4375, 4
      %v4377 = vmax.f32 %v4375, %v4376
      %v4378 = vrot.slane %v4377, 2
      %v4379 = vmax.f32 %v4377, %v4378
      %v4380 = vrot.slane %v4379, 1
      %v4381 = vmax.f32 %v4379, %v4380
      %v4382 = vsel %vm3849, %v2229, -inf
      %v4383 = vrot.slane %v4382, 4
      %v4384 = vmax.f32 %v4382, %v4383
      %v4385 = vrot.slane %v4384, 2
      %v4386 = vmax.f32 %v4384, %v4385
      %v4387 = vrot.slane %v4386, 1
      %v4388 = vmax.f32 %v4386, %v4387
      %v4389 = vsel %vm3849, %v2230, -inf
      %v4390 = vrot.slane %v4389, 4
      %v4391 = vmax.f32 %v4389, %v4390
      %v4392 = vrot.slane %v4391, 2
      %v4393 = vmax.f32 %v4391, %v4392
      %v4394 = vrot.slane %v4393, 1
      %v4395 = vmax.f32 %v4393, %v4394
      %v4396 = vsel %vm3849, %v2231, -inf
      %v4397 = vrot.slane %v4396, 4
      %v4398 = vmax.f32 %v4396, %v4397
      %v4399 = vrot.slane %v4398, 2
      %v4400 = vmax.f32 %v4398, %v4399
      %v4401 = vrot.slane %v4400, 1
      %v4402 = vmax.f32 %v4400, %v4401
      %v4403 = vsel %vm3849, %v2232, -inf
      %v4404 = vrot.slane %v4403, 4
      %v4405 = vmax.f32 %v4403, %v4404
      %v4406 = vrot.slane %v4405, 2
      %v4407 = vmax.f32 %v4405, %v4406
      %v4408 = vrot.slane %v4407, 1
      %v4409 = vmax.f32 %v4407, %v4408
      %v4410 = vsel %vm3849, %v2233, -inf
      %v4411 = vrot.slane %v4410, 4
      %v4412 = vmax.f32 %v4410, %v4411
      %v4413 = vrot.slane %v4412, 2
      %v4414 = vmax.f32 %v4412, %v4413
      %v4415 = vrot.slane %v4414, 1
      %v4416 = vmax.f32 %v4414, %v4415
      %v4417 = vsel %vm3849, %v2234, -inf
      %v4418 = vrot.slane %v4417, 4
      %v4419 = vmax.f32 %v4417, %v4418
      %v4420 = vrot.slane %v4419, 2
      %v4421 = vmax.f32 %v4419, %v4420
      %v4422 = vrot.slane %v4421, 1
      %v4423 = vmax.f32 %v4421, %v4422
      %v4424 = vsel %vm3849, %v2235, -inf
      %v4425 = vrot.slane %v4424, 4
      %v4426 = vmax.f32 %v4424, %v4425
      %v4427 = vrot.slane %v4426, 2
      %v4428 = vmax.f32 %v4426, %v4427
      %v4429 = vrot.slane %v4428, 1
      %v4430 = vmax.f32 %v4428, %v4429
      %v4431 = vsel %vm3849, %v2236, -inf
      %v4432 = vrot.slane %v4431, 4
      %v4433 = vmax.f32 %v4431, %v4432
      %v4434 = vrot.slane %v4433, 2
      %v4435 = vmax.f32 %v4433, %v4434
      %v4436 = vrot.slane %v4435, 1
      %v4437 = vmax.f32 %v4435, %v4436
      %v4438 = vsel %vm3849, %v2237, -inf
      %v4439 = vrot.slane %v4438, 4
      %v4440 = vmax.f32 %v4438, %v4439
      %v4441 = vrot.slane %v4440, 2
      %v4442 = vmax.f32 %v4440, %v4441
      %v4443 = vrot.slane %v4442, 1
      %v4444 = vmax.f32 %v4442, %v4443
      %v4445 = vsel %vm3849, %v2238, -inf
      %v4446 = vrot.slane %v4445, 4
      %v4447 = vmax.f32 %v4445, %v4446
      %v4448 = vrot.slane %v4447, 2
      %v4449 = vmax.f32 %v4447, %v4448
      %v4450 = vrot.slane %v4449, 1
      %v4451 = vmax.f32 %v4449, %v4450
      %v4452 = vsel %vm3849, %v2239, -inf
      %v4453 = vrot.slane %v4452, 4
      %v4454 = vmax.f32 %v4452, %v4453
      %v4455 = vrot.slane %v4454, 2
      %v4456 = vmax.f32 %v4454, %v4455
      %v4457 = vrot.slane %v4456, 1
      %v4458 = vmax.f32 %v4456, %v4457
      %v4459 = vsel %vm3849, %v2240, -inf
      %v4460 = vrot.slane %v4459, 4
      %v4461 = vmax.f32 %v4459, %v4460
      %v4462 = vrot.slane %v4461, 2
      %v4463 = vmax.f32 %v4461, %v4462
      %v4464 = vrot.slane %v4463, 1
      %v4465 = vmax.f32 %v4463, %v4464
      %v4466 = vsel %vm3849, %v2241, -inf
      %v4467 = vrot.slane %v4466, 4
      %v4468 = vmax.f32 %v4466, %v4467
      %v4469 = vrot.slane %v4468, 2
      %v4470 = vmax.f32 %v4468, %v4469
      %v4471 = vrot.slane %v4470, 1
      %v4472 = vmax.f32 %v4470, %v4471
      %v4473 = vsel %vm3849, %v2242, -inf
      %v4474 = vrot.slane %v4473, 4
      %v4475 = vmax.f32 %v4473, %v4474
      %v4476 = vrot.slane %v4475, 2
      %v4477 = vmax.f32 %v4475, %v4476
      %v4478 = vrot.slane %v4477, 1
      %v4479 = vmax.f32 %v4477, %v4478
      %v4480 = vsel %vm3849, %v2243, -inf
      %v4481 = vrot.slane %v4480, 4
      %v4482 = vmax.f32 %v4480, %v4481
      %v4483 = vrot.slane %v4482, 2
      %v4484 = vmax.f32 %v4482, %v4483
      %v4485 = vrot.slane %v4484, 1
      %v4486 = vmax.f32 %v4484, %v4485
      %v4487 = vsel %vm3849, %v2244, -inf
      %v4488 = vrot.slane %v4487, 4
      %v4489 = vmax.f32 %v4487, %v4488
      %v4490 = vrot.slane %v4489, 2
      %v4491 = vmax.f32 %v4489, %v4490
      %v4492 = vrot.slane %v4491, 1
      %v4493 = vmax.f32 %v4491, %v4492
      %v4494 = vsel %vm3849, %v2245, -inf
      %v4495 = vrot.slane %v4494, 4
      %v4496 = vmax.f32 %v4494, %v4495
      %v4497 = vrot.slane %v4496, 2
      %v4498 = vmax.f32 %v4496, %v4497
      %v4499 = vrot.slane %v4498, 1
      %v4500 = vmax.f32 %v4498, %v4499
      %v4501 = vsel %vm3849, %v2246, -inf
      %v4502 = vrot.slane %v4501, 4
      %v4503 = vmax.f32 %v4501, %v4502
      %v4504 = vrot.slane %v4503, 2
      %v4505 = vmax.f32 %v4503, %v4504
      %v4506 = vrot.slane %v4505, 1
      %v4507 = vmax.f32 %v4505, %v4506
      %v4508 = vsel %vm3849, %v2247, -inf
      %v4509 = vrot.slane %v4508, 4
      %v4510 = vmax.f32 %v4508, %v4509
      %v4511 = vrot.slane %v4510, 2
      %v4512 = vmax.f32 %v4510, %v4511
      %v4513 = vrot.slane %v4512, 1
      %v4514 = vmax.f32 %v4512, %v4513
      %v4515 = vsel %vm3849, %v2248, -inf
      %v4516 = vrot.slane %v4515, 4
      %v4517 = vmax.f32 %v4515, %v4516
      %v4518 = vrot.slane %v4517, 2
      %v4519 = vmax.f32 %v4517, %v4518
      %v4520 = vrot.slane %v4519, 1
      %v4521 = vmax.f32 %v4519, %v4520
      %v4522 = vsel %vm3849, %v2249, -inf
      %v4523 = vrot.slane %v4522, 4
      %v4524 = vmax.f32 %v4522, %v4523
      %v4525 = vrot.slane %v4524, 2
      %v4526 = vmax.f32 %v4524, %v4525
      %v4527 = vrot.slane %v4526, 1
      %v4528 = vmax.f32 %v4526, %v4527
      %v4529 = vsel %vm3849, %v2250, -inf
      %v4530 = vrot.slane %v4529, 4
      %v4531 = vmax.f32 %v4529, %v4530
      %v4532 = vrot.slane %v4531, 2
      %v4533 = vmax.f32 %v4531, %v4532
      %v4534 = vrot.slane %v4533, 1
      %v4535 = vmax.f32 %v4533, %v4534
      %v4536 = vsel %vm3849, %v2251, -inf
      %v4537 = vrot.slane %v4536, 4
      %v4538 = vmax.f32 %v4536, %v4537
      %v4539 = vrot.slane %v4538, 2
      %v4540 = vmax.f32 %v4538, %v4539
      %v4541 = vrot.slane %v4540, 1
      %v4542 = vmax.f32 %v4540, %v4541
      %v4543 = vsel %vm3849, %v2252, -inf
      %v4544 = vrot.slane %v4543, 4
      %v4545 = vmax.f32 %v4543, %v4544
      %v4546 = vrot.slane %v4545, 2
      %v4547 = vmax.f32 %v4545, %v4546
      %v4548 = vrot.slane %v4547, 1
      %v4549 = vmax.f32 %v4547, %v4548
      %v4550 = vsel %vm3849, %v2253, -inf
      %v4551 = vrot.slane %v4550, 4
      %v4552 = vmax.f32 %v4550, %v4551
      %v4553 = vrot.slane %v4552, 2
      %v4554 = vmax.f32 %v4552, %v4553
      %v4555 = vrot.slane %v4554, 1
      %v4556 = vmax.f32 %v4554, %v4555
      %v4557 = vsel %vm3849, %v2254, -inf
      %v4558 = vrot.slane %v4557, 4
      %v4559 = vmax.f32 %v4557, %v4558
      %v4560 = vrot.slane %v4559, 2
      %v4561 = vmax.f32 %v4559, %v4560
      %v4562 = vrot.slane %v4561, 1
      %v4563 = vmax.f32 %v4561, %v4562
      %v4564 = vsel %vm3849, %v2255, -inf
      %v4565 = vrot.slane %v4564, 4
      %v4566 = vmax.f32 %v4564, %v4565
      %v4567 = vrot.slane %v4566, 2
      %v4568 = vmax.f32 %v4566, %v4567
      %v4569 = vrot.slane %v4568, 1
      %v4570 = vmax.f32 %v4568, %v4569
      %v4571 = vsel %vm3849, %v2256, -inf
      %v4572 = vrot.slane %v4571, 4
      %v4573 = vmax.f32 %v4571, %v4572
      %v4574 = vrot.slane %v4573, 2
      %v4575 = vmax.f32 %v4573, %v4574
      %v4576 = vrot.slane %v4575, 1
      %v4577 = vmax.f32 %v4575, %v4576
      %v4578 = vsel %vm3849, %v2257, -inf
      %v4579 = vrot.slane %v4578, 4
      %v4580 = vmax.f32 %v4578, %v4579
      %v4581 = vrot.slane %v4580, 2
      %v4582 = vmax.f32 %v4580, %v4581
      %v4583 = vrot.slane %v4582, 1
      %v4584 = vmax.f32 %v4582, %v4583
      %v4585 = vsel %vm3849, %v2258, -inf
      %v4586 = vrot.slane %v4585, 4
      %v4587 = vmax.f32 %v4585, %v4586
      %v4588 = vrot.slane %v4587, 2
      %v4589 = vmax.f32 %v4587, %v4588
      %v4590 = vrot.slane %v4589, 1
      %v4591 = vmax.f32 %v4589, %v4590
      %v4592 = vsel %vm3849, %v2259, -inf
      %v4593 = vrot.slane %v4592, 4
      %v4594 = vmax.f32 %v4592, %v4593
      %v4595 = vrot.slane %v4594, 2
      %v4596 = vmax.f32 %v4594, %v4595
      %v4597 = vrot.slane %v4596, 1
      %v4598 = vmax.f32 %v4596, %v4597
      %v4599 = vsel %vm3849, %v2260, -inf
      %v4600 = vrot.slane %v4599, 4
      %v4601 = vmax.f32 %v4599, %v4600
      %v4602 = vrot.slane %v4601, 2
      %v4603 = vmax.f32 %v4601, %v4602
      %v4604 = vrot.slane %v4603, 1
      %v4605 = vmax.f32 %v4603, %v4604
      %v4606 = vsel %vm3849, %v2261, -inf
      %v4607 = vrot.slane %v4606, 4
      %v4608 = vmax.f32 %v4606, %v4607
      %v4609 = vrot.slane %v4608, 2
      %v4610 = vmax.f32 %v4608, %v4609
      %v4611 = vrot.slane %v4610, 1
      %v4612 = vmax.f32 %v4610, %v4611
      %v4613 = vsel %vm3849, %v2262, -inf
      %v4614 = vrot.slane %v4613, 4
      %v4615 = vmax.f32 %v4613, %v4614
      %v4616 = vrot.slane %v4615, 2
      %v4617 = vmax.f32 %v4615, %v4616
      %v4618 = vrot.slane %v4617, 1
      %v4619 = vmax.f32 %v4617, %v4618
      %v4620 = vsel %vm3849, %v2263, -inf
      %v4621 = vrot.slane %v4620, 4
      %v4622 = vmax.f32 %v4620, %v4621
      %v4623 = vrot.slane %v4622, 2
      %v4624 = vmax.f32 %v4622, %v4623
      %v4625 = vrot.slane %v4624, 1
      %v4626 = vmax.f32 %v4624, %v4625
      %v4627 = vsel %vm3849, %v2264, -inf
      %v4628 = vrot.slane %v4627, 4
      %v4629 = vmax.f32 %v4627, %v4628
      %v4630 = vrot.slane %v4629, 2
      %v4631 = vmax.f32 %v4629, %v4630
      %v4632 = vrot.slane %v4631, 1
      %v4633 = vmax.f32 %v4631, %v4632
      %v4634 = vsel %vm3849, %v2265, -inf
      %v4635 = vrot.slane %v4634, 4
      %v4636 = vmax.f32 %v4634, %v4635
      %v4637 = vrot.slane %v4636, 2
      %v4638 = vmax.f32 %v4636, %v4637
      %v4639 = vrot.slane %v4638, 1
      %v4640 = vmax.f32 %v4638, %v4639
      %v4641 = vsel %vm3849, %v2266, -inf
      %v4642 = vrot.slane %v4641, 4
      %v4643 = vmax.f32 %v4641, %v4642
      %v4644 = vrot.slane %v4643, 2
      %v4645 = vmax.f32 %v4643, %v4644
      %v4646 = vrot.slane %v4645, 1
      %v4647 = vmax.f32 %v4645, %v4646
      %v4648 = vsel %vm3849, %v2267, -inf
      %v4649 = vrot.slane %v4648, 4
      %v4650 = vmax.f32 %v4648, %v4649
      %v4651 = vrot.slane %v4650, 2
      %v4652 = vmax.f32 %v4650, %v4651
      %v4653 = vrot.slane %v4652, 1
      %v4654 = vmax.f32 %v4652, %v4653
      %v4655 = vsel %vm3849, %v2268, -inf
      %v4656 = vrot.slane %v4655, 4
      %v4657 = vmax.f32 %v4655, %v4656
      %v4658 = vrot.slane %v4657, 2
      %v4659 = vmax.f32 %v4657, %v4658
      %v4660 = vrot.slane %v4659, 1
      %v4661 = vmax.f32 %v4659, %v4660
      %v4662 = vsel %vm3849, %v2269, -inf
      %v4663 = vrot.slane %v4662, 4
      %v4664 = vmax.f32 %v4662, %v4663
      %v4665 = vrot.slane %v4664, 2
      %v4666 = vmax.f32 %v4664, %v4665
      %v4667 = vrot.slane %v4666, 1
      %v4668 = vmax.f32 %v4666, %v4667
      %v4669 = vsel %vm3849, %v2270, -inf
      %v4670 = vrot.slane %v4669, 4
      %v4671 = vmax.f32 %v4669, %v4670
      %v4672 = vrot.slane %v4671, 2
      %v4673 = vmax.f32 %v4671, %v4672
      %v4674 = vrot.slane %v4673, 1
      %v4675 = vmax.f32 %v4673, %v4674
      %v4676 = vsel %vm3849, %v2271, -inf
      %v4677 = vrot.slane %v4676, 4
      %v4678 = vmax.f32 %v4676, %v4677
      %v4679 = vrot.slane %v4678, 2
      %v4680 = vmax.f32 %v4678, %v4679
      %v4681 = vrot.slane %v4680, 1
      %v4682 = vmax.f32 %v4680, %v4681
      %v4683 = vsel %vm3849, %v2272, -inf
      %v4684 = vrot.slane %v4683, 4
      %v4685 = vmax.f32 %v4683, %v4684
      %v4686 = vrot.slane %v4685, 2
      %v4687 = vmax.f32 %v4685, %v4686
      %v4688 = vrot.slane %v4687, 1
      %v4689 = vmax.f32 %v4687, %v4688
      %v4690 = vsel %vm3849, %v2273, -inf
      %v4691 = vrot.slane %v4690, 4
      %v4692 = vmax.f32 %v4690, %v4691
      %v4693 = vrot.slane %v4692, 2
      %v4694 = vmax.f32 %v4692, %v4693
      %v4695 = vrot.slane %v4694, 1
      %v4696 = vmax.f32 %v4694, %v4695
      %v4697 = vsel %vm3849, %v2274, -inf
      %v4698 = vrot.slane %v4697, 4
      %v4699 = vmax.f32 %v4697, %v4698
      %v4700 = vrot.slane %v4699, 2
      %v4701 = vmax.f32 %v4699, %v4700
      %v4702 = vrot.slane %v4701, 1
      %v4703 = vmax.f32 %v4701, %v4702
      %v4704 = vsel %vm3849, %v2275, -inf
      %v4705 = vrot.slane %v4704, 4
      %v4706 = vmax.f32 %v4704, %v4705
      %v4707 = vrot.slane %v4706, 2
      %v4708 = vmax.f32 %v4706, %v4707
      %v4709 = vrot.slane %v4708, 1
      %v4710 = vmax.f32 %v4708, %v4709
      %v4711 = vsel %vm3849, %v2276, -inf
      %v4712 = vrot.slane %v4711, 4
      %v4713 = vmax.f32 %v4711, %v4712
      %v4714 = vrot.slane %v4713, 2
      %v4715 = vmax.f32 %v4713, %v4714
      %v4716 = vrot.slane %v4715, 1
      %v4717 = vmax.f32 %v4715, %v4716
      %v4718 = vsel %vm3849, %v2277, -inf
      %v4719 = vrot.slane %v4718, 4
      %v4720 = vmax.f32 %v4718, %v4719
      %v4721 = vrot.slane %v4720, 2
      %v4722 = vmax.f32 %v4720, %v4721
      %v4723 = vrot.slane %v4722, 1
      %v4724 = vmax.f32 %v4722, %v4723
      %v4725 = vsel %vm3849, %v2278, -inf
      %v4726 = vrot.slane %v4725, 4
      %v4727 = vmax.f32 %v4725, %v4726
      %v4728 = vrot.slane %v4727, 2
      %v4729 = vmax.f32 %v4727, %v4728
      %v4730 = vrot.slane %v4729, 1
      %v4731 = vmax.f32 %v4729, %v4730
      %v4732 = vsel %vm3849, %v2279, -inf
      %v4733 = vrot.slane %v4732, 4
      %v4734 = vmax.f32 %v4732, %v4733
      %v4735 = vrot.slane %v4734, 2
      %v4736 = vmax.f32 %v4734, %v4735
      %v4737 = vrot.slane %v4736, 1
      %v4738 = vmax.f32 %v4736, %v4737
      %v4739 = vsel %vm3849, %v2280, -inf
      %v4740 = vrot.slane %v4739, 4
      %v4741 = vmax.f32 %v4739, %v4740
      %v4742 = vrot.slane %v4741, 2
      %v4743 = vmax.f32 %v4741, %v4742
      %v4744 = vrot.slane %v4743, 1
      %v4745 = vmax.f32 %v4743, %v4744
      %v4746 = vsub.f32 %v2153, %v3856
      %v4747 = vsub.f32 %v2154, %v3863
      %v4748 = vsub.f32 %v2155, %v3870
      %v4749 = vsub.f32 %v2156, %v3877
      %v4750 = vsub.f32 %v2157, %v3884
      %v4751 = vsub.f32 %v2158, %v3891
      %v4752 = vsub.f32 %v2159, %v3898
      %v4753 = vsub.f32 %v2160, %v3905
      %v4754 = vsub.f32 %v2161, %v3912
      %v4755 = vsub.f32 %v2162, %v3919
      %v4756 = vsub.f32 %v2163, %v3926
      %v4757 = vsub.f32 %v2164, %v3933
      %v4758 = vsub.f32 %v2165, %v3940
      %v4759 = vsub.f32 %v2166, %v3947
      %v4760 = vsub.f32 %v2167, %v3954
      %v4761 = vsub.f32 %v2168, %v3961
      %v4762 = vsub.f32 %v2169, %v3968
      %v4763 = vsub.f32 %v2170, %v3975
      %v4764 = vsub.f32 %v2171, %v3982
      %v4765 = vsub.f32 %v2172, %v3989
      %v4766 = vsub.f32 %v2173, %v3996
      %v4767 = vsub.f32 %v2174, %v4003
      %v4768 = vsub.f32 %v2175, %v4010
      %v4769 = vsub.f32 %v2176, %v4017
      %v4770 = vsub.f32 %v2177, %v4024
      %v4771 = vsub.f32 %v2178, %v4031
      %v4772 = vsub.f32 %v2179, %v4038
      %v4773 = vsub.f32 %v2180, %v4045
      %v4774 = vsub.f32 %v2181, %v4052
      %v4775 = vsub.f32 %v2182, %v4059
      %v4776 = vsub.f32 %v2183, %v4066
      %v4777 = vsub.f32 %v2184, %v4073
      %v4778 = vsub.f32 %v2185, %v4080
      %v4779 = vsub.f32 %v2186, %v4087
      %v4780 = vsub.f32 %v2187, %v4094
      %v4781 = vsub.f32 %v2188, %v4101
      %v4782 = vsub.f32 %v2189, %v4108
      %v4783 = vsub.f32 %v2190, %v4115
      %v4784 = vsub.f32 %v2191, %v4122
      %v4785 = vsub.f32 %v2192, %v4129
      %v4786 = vsub.f32 %v2193, %v4136
      %v4787 = vsub.f32 %v2194, %v4143
      %v4788 = vsub.f32 %v2195, %v4150
      %v4789 = vsub.f32 %v2196, %v4157
      %v4790 = vsub.f32 %v2197, %v4164
      %v4791 = vsub.f32 %v2198, %v4171
      %v4792 = vsub.f32 %v2199, %v4178
      %v4793 = vsub.f32 %v2200, %v4185
      %v4794 = vsub.f32 %v2201, %v4192
      %v4795 = vsub.f32 %v2202, %v4199
      %v4796 = vsub.f32 %v2203, %v4206
      %v4797 = vsub.f32 %v2204, %v4213
      %v4798 = vsub.f32 %v2205, %v4220
      %v4799 = vsub.f32 %v2206, %v4227
      %v4800 = vsub.f32 %v2207, %v4234
      %v4801 = vsub.f32 %v2208, %v4241
      %v4802 = vsub.f32 %v2209, %v4248
      %v4803 = vsub.f32 %v2210, %v4255
      %v4804 = vsub.f32 %v2211, %v4262
      %v4805 = vsub.f32 %v2212, %v4269
      %v4806 = vsub.f32 %v2213, %v4276
      %v4807 = vsub.f32 %v2214, %v4283
      %v4808 = vsub.f32 %v2215, %v4290
      %v4809 = vsub.f32 %v2216, %v4297
      %v4810 = vsub.f32 %v2217, %v4304
      %v4811 = vsub.f32 %v2218, %v4311
      %v4812 = vsub.f32 %v2219, %v4318
      %v4813 = vsub.f32 %v2220, %v4325
      %v4814 = vsub.f32 %v2221, %v4332
      %v4815 = vsub.f32 %v2222, %v4339
      %v4816 = vsub.f32 %v2223, %v4346
      %v4817 = vsub.f32 %v2224, %v4353
      %v4818 = vsub.f32 %v2225, %v4360
      %v4819 = vsub.f32 %v2226, %v4367
      %v4820 = vsub.f32 %v2227, %v4374
      %v4821 = vsub.f32 %v2228, %v4381
      %v4822 = vsub.f32 %v2229, %v4388
      %v4823 = vsub.f32 %v2230, %v4395
      %v4824 = vsub.f32 %v2231, %v4402
      %v4825 = vsub.f32 %v2232, %v4409
      %v4826 = vsub.f32 %v2233, %v4416
      %v4827 = vsub.f32 %v2234, %v4423
      %v4828 = vsub.f32 %v2235, %v4430
      %v4829 = vsub.f32 %v2236, %v4437
      %v4830 = vsub.f32 %v2237, %v4444
      %v4831 = vsub.f32 %v2238, %v4451
      %v4832 = vsub.f32 %v2239, %v4458
      %v4833 = vsub.f32 %v2240, %v4465
      %v4834 = vsub.f32 %v2241, %v4472
      %v4835 = vsub.f32 %v2242, %v4479
      %v4836 = vsub.f32 %v2243, %v4486
      %v4837 = vsub.f32 %v2244, %v4493
      %v4838 = vsub.f32 %v2245, %v4500
      %v4839 = vsub.f32 %v2246, %v4507
      %v4840 = vsub.f32 %v2247, %v4514
      %v4841 = vsub.f32 %v2248, %v4521
      %v4842 = vsub.f32 %v2249, %v4528
      %v4843 = vsub.f32 %v2250, %v4535
      %v4844 = vsub.f32 %v2251, %v4542
      %v4845 = vsub.f32 %v2252, %v4549
      %v4846 = vsub.f32 %v2253, %v4556
      %v4847 = vsub.f32 %v2254, %v4563
      %v4848 = vsub.f32 %v2255, %v4570
      %v4849 = vsub.f32 %v2256, %v4577
      %v4850 = vsub.f32 %v2257, %v4584
      %v4851 = vsub.f32 %v2258, %v4591
      %v4852 = vsub.f32 %v2259, %v4598
      %v4853 = vsub.f32 %v2260, %v4605
      %v4854 = vsub.f32 %v2261, %v4612
      %v4855 = vsub.f32 %v2262, %v4619
      %v4856 = vsub.f32 %v2263, %v4626
      %v4857 = vsub.f32 %v2264, %v4633
      %v4858 = vsub.f32 %v2265, %v4640
      %v4859 = vsub.f32 %v2266, %v4647
      %v4860 = vsub.f32 %v2267, %v4654
      %v4861 = vsub.f32 %v2268, %v4661
      %v4862 = vsub.f32 %v2269, %v4668
      %v4863 = vsub.f32 %v2270, %v4675
      %v4864 = vsub.f32 %v2271, %v4682
      %v4865 = vsub.f32 %v2272, %v4689
      %v4866 = vsub.f32 %v2273, %v4696
      %v4867 = vsub.f32 %v2274, %v4703
      %v4868 = vsub.f32 %v2275, %v4710
      %v4869 = vsub.f32 %v2276, %v4717
      %v4870 = vsub.f32 %v2277, %v4724
      %v4871 = vsub.f32 %v2278, %v4731
      %v4872 = vsub.f32 %v2279, %v4738
      %v4873 = vsub.f32 %v2280, %v4745
      %v4874 = vmul.f32 %v4746, 1.442695
      %v4875 = vpow.pop %v4874
      %v4876 = vmul.f32 %v4747, 1.442695
      %v4877 = vpow.pop %v4876
      %v4878 = vmul.f32 %v4748, 1.442695
      %v4879 = vpow.pop %v4878
      %v4880 = vmul.f32 %v4749, 1.442695
      %v4881 = vpow.pop %v4880
      %v4882 = vmul.f32 %v4750, 1.442695
      %v4883 = vpow.pop %v4882
      %v4884 = vmul.f32 %v4751, 1.442695
      %v4885 = vpow.pop %v4884
      %v4886 = vmul.f32 %v4752, 1.442695
      %v4887 = vpow.pop %v4886
      %v4888 = vmul.f32 %v4753, 1.442695
      %v4889 = vpow.pop %v4888
      %v4890 = vmul.f32 %v4754, 1.442695
      %v4891 = vpow.pop %v4890
      %v4892 = vmul.f32 %v4755, 1.442695
      %v4893 = vpow.pop %v4892
      %v4894 = vmul.f32 %v4756, 1.442695
      %v4895 = vpow.pop %v4894
      %v4896 = vmul.f32 %v4757, 1.442695
      %v4897 = vpow.pop %v4896
      %v4898 = vmul.f32 %v4758, 1.442695
      %v4899 = vpow.pop %v4898
      %v4900 = vmul.f32 %v4759, 1.442695
      %v4901 = vpow.pop %v4900
      %v4902 = vmul.f32 %v4760, 1.442695
      %v4903 = vpow.pop %v4902
      %v4904 = vmul.f32 %v4761, 1.442695
      %v4905 = vpow.pop %v4904
      %v4906 = vmul.f32 %v4762, 1.442695
      %v4907 = vpow.pop %v4906
      %v4908 = vmul.f32 %v4763, 1.442695
      %v4909 = vpow.pop %v4908
      %v4910 = vmul.f32 %v4764, 1.442695
      %v4911 = vpow.pop %v4910
      %v4912 = vmul.f32 %v4765, 1.442695
      %v4913 = vpow.pop %v4912
      %v4914 = vmul.f32 %v4766, 1.442695
      %v4915 = vpow.pop %v4914
      %v4916 = vmul.f32 %v4767, 1.442695
      %v4917 = vpow.pop %v4916
      %v4918 = vmul.f32 %v4768, 1.442695
      %v4919 = vpow.pop %v4918
      %v4920 = vmul.f32 %v4769, 1.442695
      %v4921 = vpow.pop %v4920
      %v4922 = vmul.f32 %v4770, 1.442695
      %v4923 = vpow.pop %v4922
      %v4924 = vmul.f32 %v4771, 1.442695
      %v4925 = vpow.pop %v4924
      %v4926 = vmul.f32 %v4772, 1.442695
      %v4927 = vpow.pop %v4926
      %v4928 = vmul.f32 %v4773, 1.442695
      %v4929 = vpow.pop %v4928
      %v4930 = vmul.f32 %v4774, 1.442695
      %v4931 = vpow.pop %v4930
      %v4932 = vmul.f32 %v4775, 1.442695
      %v4933 = vpow.pop %v4932
      %v4934 = vmul.f32 %v4776, 1.442695
      %v4935 = vpow.pop %v4934
      %v4936 = vmul.f32 %v4777, 1.442695
      %v4937 = vpow.pop %v4936
      %v4938 = vmul.f32 %v4778, 1.442695
      %v4939 = vpow.pop %v4938
      %v4940 = vmul.f32 %v4779, 1.442695
      %v4941 = vpow.pop %v4940
      %v4942 = vmul.f32 %v4780, 1.442695
      %v4943 = vpow.pop %v4942
      %v4944 = vmul.f32 %v4781, 1.442695
      %v4945 = vpow.pop %v4944
      %v4946 = vmul.f32 %v4782, 1.442695
      %v4947 = vpow.pop %v4946
      %v4948 = vmul.f32 %v4783, 1.442695
      %v4949 = vpow.pop %v4948
      %v4950 = vmul.f32 %v4784, 1.442695
      %v4951 = vpow.pop %v4950
      %v4952 = vmul.f32 %v4785, 1.442695
      %v4953 = vpow.pop %v4952
      %v4954 = vmul.f32 %v4786, 1.442695
      %v4955 = vpow.pop %v4954
      %v4956 = vmul.f32 %v4787, 1.442695
      %v4957 = vpow.pop %v4956
      %v4958 = vmul.f32 %v4788, 1.442695
      %v4959 = vpow.pop %v4958
      %v4960 = vmul.f32 %v4789, 1.442695
      %v4961 = vpow.pop %v4960
      %v4962 = vmul.f32 %v4790, 1.442695
      %v4963 = vpow.pop %v4962
      %v4964 = vmul.f32 %v4791, 1.442695
      %v4965 = vpow.pop %v4964
      %v4966 = vmul.f32 %v4792, 1.442695
      %v4967 = vpow.pop %v4966
      %v4968 = vmul.f32 %v4793, 1.442695
      %v4969 = vpow.pop %v4968
      %v4970 = vmul.f32 %v4794, 1.442695
      %v4971 = vpow.pop %v4970
      %v4972 = vmul.f32 %v4795, 1.442695
      %v4973 = vpow.pop %v4972
      %v4974 = vmul.f32 %v4796, 1.442695
      %v4975 = vpow.pop %v4974
      %v4976 = vmul.f32 %v4797, 1.442695
      %v4977 = vpow.pop %v4976
      %v4978 = vmul.f32 %v4798, 1.442695
      %v4979 = vpow.pop %v4978
      %v4980 = vmul.f32 %v4799, 1.442695
      %v4981 = vpow.pop %v4980
      %v4982 = vmul.f32 %v4800, 1.442695
      %v4983 = vpow.pop %v4982
      %v4984 = vmul.f32 %v4801, 1.442695
      %v4985 = vpow.pop %v4984
      %v4986 = vmul.f32 %v4802, 1.442695
      %v4987 = vpow.pop %v4986
      %v4988 = vmul.f32 %v4803, 1.442695
      %v4989 = vpow.pop %v4988
      %v4990 = vmul.f32 %v4804, 1.442695
      %v4991 = vpow.pop %v4990
      %v4992 = vmul.f32 %v4805, 1.442695
      %v4993 = vpow.pop %v4992
      %v4994 = vmul.f32 %v4806, 1.442695
      %v4995 = vpow.pop %v4994
      %v4996 = vmul.f32 %v4807, 1.442695
      %v4997 = vpow.pop %v4996
      %v4998 = vmul.f32 %v4808, 1.442695
      %v4999 = vpow.pop %v4998
      %v5000 = vmul.f32 %v4809, 1.442695
      %v5001 = vpow.pop %v5000
      %v5002 = vmul.f32 %v4810, 1.442695
      %v5003 = vpow.pop %v5002
      %v5004 = vmul.f32 %v4811, 1.442695
      %v5005 = vpow.pop %v5004
      %v5006 = vmul.f32 %v4812, 1.442695
      %v5007 = vpow.pop %v5006
      %v5008 = vmul.f32 %v4813, 1.442695
      %v5009 = vpow.pop %v5008
      %v5010 = vmul.f32 %v4814, 1.442695
      %v5011 = vpow.pop %v5010
      %v5012 = vmul.f32 %v4815, 1.442695
      %v5013 = vpow.pop %v5012
      %v5014 = vmul.f32 %v4816, 1.442695
      %v5015 = vpow.pop %v5014
      %v5016 = vmul.f32 %v4817, 1.442695
      %v5017 = vpow.pop %v5016
      %v5018 = vmul.f32 %v4818, 1.442695
      %v5019 = vpow.pop %v5018
      %v5020 = vmul.f32 %v4819, 1.442695
      %v5021 = vpow.pop %v5020
      %v5022 = vmul.f32 %v4820, 1.442695
      %v5023 = vpow.pop %v5022
      %v5024 = vmul.f32 %v4821, 1.442695
      %v5025 = vpow.pop %v5024
      %v5026 = vmul.f32 %v4822, 1.442695
      %v5027 = vpow.pop %v5026
      %v5028 = vmul.f32 %v4823, 1.442695
      %v5029 = vpow.pop %v5028
      %v5030 = vmul.f32 %v4824, 1.442695
      %v5031 = vpow.pop %v5030
      %v5032 = vmul.f32 %v4825, 1.442695
      %v5033 = vpow.pop %v5032
      %v5034 = vmul.f32 %v4826, 1.442695
      %v5035 = vpow.pop %v5034
      %v5036 = vmul.f32 %v4827, 1.442695
      %v5037 = vpow.pop %v5036
      %v5038 = vmul.f32 %v4828, 1.442695
      %v5039 = vpow.pop %v5038
      %v5040 = vmul.f32 %v4829, 1.442695
      %v5041 = vpow.pop %v5040
      %v5042 = vmul.f32 %v4830, 1.442695
      %v5043 = vpow.pop %v5042
      %v5044 = vmul.f32 %v4831, 1.442695
      %v5045 = vpow.pop %v5044
      %v5046 = vmul.f32 %v4832, 1.442695
      %v5047 = vpow.pop %v5046
      %v5048 = vmul.f32 %v4833, 1.442695
      %v5049 = vpow.pop %v5048
      %v5050 = vmul.f32 %v4834, 1.442695
      %v5051 = vpow.pop %v5050
      %v5052 = vmul.f32 %v4835, 1.442695
      %v5053 = vpow.pop %v5052
      %v5054 = vmul.f32 %v4836, 1.442695
      %v5055 = vpow.pop %v5054
      %v5056 = vmul.f32 %v4837, 1.442695
      %v5057 = vpow.pop %v5056
      %v5058 = vmul.f32 %v4838, 1.442695
      %v5059 = vpow.pop %v5058
      %v5060 = vmul.f32 %v4839, 1.442695
      %v5061 = vpow.pop %v5060
      %v5062 = vmul.f32 %v4840, 1.442695
      %v5063 = vpow.pop %v5062
      %v5064 = vmul.f32 %v4841, 1.442695
      %v5065 = vpow.pop %v5064
      %v5066 = vmul.f32 %v4842, 1.442695
      %v5067 = vpow.pop %v5066
      %v5068 = vmul.f32 %v4843, 1.442695
      %v5069 = vpow.pop %v5068
      %v5070 = vmul.f32 %v4844, 1.442695
      %v5071 = vpow.pop %v5070
      %v5072 = vmul.f32 %v4845, 1.442695
      %v5073 = vpow.pop %v5072
      %v5074 = vmul.f32 %v4846, 1.442695
      %v5075 = vpow.pop %v5074
      %v5076 = vmul.f32 %v4847, 1.442695
      %v5077 = vpow.pop %v5076
      %v5078 = vmul.f32 %v4848, 1.442695
      %v5079 = vpow.pop %v5078
      %v5080 = vmul.f32 %v4849, 1.442695
      %v5081 = vpow.pop %v5080
      %v5082 = vmul.f32 %v4850, 1.442695
      %v5083 = vpow.pop %v5082
      %v5084 = vmul.f32 %v4851, 1.442695
      %v5085 = vpow.pop %v5084
      %v5086 = vmul.f32 %v4852, 1.442695
      %v5087 = vpow.pop %v5086
      %v5088 = vmul.f32 %v4853, 1.442695
      %v5089 = vpow.pop %v5088
      %v5090 = vmul.f32 %v4854, 1.442695
      %v5091 = vpow.pop %v5090
      %v5092 = vmul.f32 %v4855, 1.442695
      %v5093 = vpow.pop %v5092
      %v5094 = vmul.f32 %v4856, 1.442695
      %v5095 = vpow.pop %v5094
      %v5096 = vmul.f32 %v4857, 1.442695
      %v5097 = vpow.pop %v5096
      %v5098 = vmul.f32 %v4858, 1.442695
      %v5099 = vpow.pop %v5098
      %v5100 = vmul.f32 %v4859, 1.442695
      %v5101 = vpow.pop %v5100
      %v5102 = vmul.f32 %v4860, 1.442695
      %v5103 = vpow.pop %v5102
      %v5104 = vmul.f32 %v4861, 1.442695
      %v5105 = vpow.pop %v5104
      %v5106 = vmul.f32 %v4862, 1.442695
      %v5107 = vpow.pop %v5106
      %v5108 = vmul.f32 %v4863, 1.442695
      %v5109 = vpow.pop %v5108
      %v5110 = vmul.f32 %v4864, 1.442695
      %v5111 = vpow.pop %v5110
      %v5112 = vmul.f32 %v4865, 1.442695
      %v5113 = vpow.pop %v5112
      %v5114 = vmul.f32 %v4866, 1.442695
      %v5115 = vpow.pop %v5114
      %v5116 = vmul.f32 %v4867, 1.442695
      %v5117 = vpow.pop %v5116
      %v5118 = vmul.f32 %v4868, 1.442695
      %v5119 = vpow.pop %v5118
      %v5120 = vmul.f32 %v4869, 1.442695
      %v5121 = vpow.pop %v5120
      %v5122 = vmul.f32 %v4870, 1.442695
      %v5123 = vpow.pop %v5122
      %v5124 = vmul.f32 %v4871, 1.442695
      %v5125 = vpow.pop %v5124
      %v5126 = vmul.f32 %v4872, 1.442695
      %v5127 = vpow.pop %v5126
      %v5128 = vmul.f32 %v4873, 1.442695
      %v5129 = vpow.pop %v5128
      %v5130 = vsel %vm3849, %v4875, 0.0
      %v5131 = vrot.slane %v5130, 4
      %v5132 = vadd.f32 %v5130, %v5131
      %v5133 = vrot.slane %v5132, 2
      %v5134 = vadd.f32 %v5132, %v5133
      %v5135 = vrot.slane %v5134, 1
      %v5136 = vadd.f32 %v5134, %v5135
      %v5137 = vsel %vm3849, %v4877, 0.0
      %v5138 = vrot.slane %v5137, 4
      %v5139 = vadd.f32 %v5137, %v5138
      %v5140 = vrot.slane %v5139, 2
      %v5141 = vadd.f32 %v5139, %v5140
      %v5142 = vrot.slane %v5141, 1
      %v5143 = vadd.f32 %v5141, %v5142
      %v5144 = vsel %vm3849, %v4879, 0.0
      %v5145 = vrot.slane %v5144, 4
      %v5146 = vadd.f32 %v5144, %v5145
      %v5147 = vrot.slane %v5146, 2
      %v5148 = vadd.f32 %v5146, %v5147
      %v5149 = vrot.slane %v5148, 1
      %v5150 = vadd.f32 %v5148, %v5149
      %v5151 = vsel %vm3849, %v4881, 0.0
      %v5152 = vrot.slane %v5151, 4
      %v5153 = vadd.f32 %v5151, %v5152
      %v5154 = vrot.slane %v5153, 2
      %v5155 = vadd.f32 %v5153, %v5154
      %v5156 = vrot.slane %v5155, 1
      %v5157 = vadd.f32 %v5155, %v5156
      %v5158 = vsel %vm3849, %v4883, 0.0
      %v5159 = vrot.slane %v5158, 4
      %v5160 = vadd.f32 %v5158, %v5159
      %v5161 = vrot.slane %v5160, 2
      %v5162 = vadd.f32 %v5160, %v5161
      %v5163 = vrot.slane %v5162, 1
      %v5164 = vadd.f32 %v5162, %v5163
      %v5165 = vsel %vm3849, %v4885, 0.0
      %v5166 = vrot.slane %v5165, 4
      %v5167 = vadd.f32 %v5165, %v5166
      %v5168 = vrot.slane %v5167, 2
      %v5169 = vadd.f32 %v5167, %v5168
      %v5170 = vrot.slane %v5169, 1
      %v5171 = vadd.f32 %v5169, %v5170
      %v5172 = vsel %vm3849, %v4887, 0.0
      %v5173 = vrot.slane %v5172, 4
      %v5174 = vadd.f32 %v5172, %v5173
      %v5175 = vrot.slane %v5174, 2
      %v5176 = vadd.f32 %v5174, %v5175
      %v5177 = vrot.slane %v5176, 1
      %v5178 = vadd.f32 %v5176, %v5177
      %v5179 = vsel %vm3849, %v4889, 0.0
      %v5180 = vrot.slane %v5179, 4
      %v5181 = vadd.f32 %v5179, %v5180
      %v5182 = vrot.slane %v5181, 2
      %v5183 = vadd.f32 %v5181, %v5182
      %v5184 = vrot.slane %v5183, 1
      %v5185 = vadd.f32 %v5183, %v5184
      %v5186 = vsel %vm3849, %v4891, 0.0
      %v5187 = vrot.slane %v5186, 4
      %v5188 = vadd.f32 %v5186, %v5187
      %v5189 = vrot.slane %v5188, 2
      %v5190 = vadd.f32 %v5188, %v5189
      %v5191 = vrot.slane %v5190, 1
      %v5192 = vadd.f32 %v5190, %v5191
      %v5193 = vsel %vm3849, %v4893, 0.0
      %v5194 = vrot.slane %v5193, 4
      %v5195 = vadd.f32 %v5193, %v5194
      %v5196 = vrot.slane %v5195, 2
      %v5197 = vadd.f32 %v5195, %v5196
      %v5198 = vrot.slane %v5197, 1
      %v5199 = vadd.f32 %v5197, %v5198
      %v5200 = vsel %vm3849, %v4895, 0.0
      %v5201 = vrot.slane %v5200, 4
      %v5202 = vadd.f32 %v5200, %v5201
      %v5203 = vrot.slane %v5202, 2
      %v5204 = vadd.f32 %v5202, %v5203
      %v5205 = vrot.slane %v5204, 1
      %v5206 = vadd.f32 %v5204, %v5205
      %v5207 = vsel %vm3849, %v4897, 0.0
      %v5208 = vrot.slane %v5207, 4
      %v5209 = vadd.f32 %v5207, %v5208
      %v5210 = vrot.slane %v5209, 2
      %v5211 = vadd.f32 %v5209, %v5210
      %v5212 = vrot.slane %v5211, 1
      %v5213 = vadd.f32 %v5211, %v5212
      %v5214 = vsel %vm3849, %v4899, 0.0
      %v5215 = vrot.slane %v5214, 4
      %v5216 = vadd.f32 %v5214, %v5215
      %v5217 = vrot.slane %v5216, 2
      %v5218 = vadd.f32 %v5216, %v5217
      %v5219 = vrot.slane %v5218, 1
      %v5220 = vadd.f32 %v5218, %v5219
      %v5221 = vsel %vm3849, %v4901, 0.0
      %v5222 = vrot.slane %v5221, 4
      %v5223 = vadd.f32 %v5221, %v5222
      %v5224 = vrot.slane %v5223, 2
      %v5225 = vadd.f32 %v5223, %v5224
      %v5226 = vrot.slane %v5225, 1
      %v5227 = vadd.f32 %v5225, %v5226
      %v5228 = vsel %vm3849, %v4903, 0.0
      %v5229 = vrot.slane %v5228, 4
      %v5230 = vadd.f32 %v5228, %v5229
      %v5231 = vrot.slane %v5230, 2
      %v5232 = vadd.f32 %v5230, %v5231
      %v5233 = vrot.slane %v5232, 1
      %v5234 = vadd.f32 %v5232, %v5233
      %v5235 = vsel %vm3849, %v4905, 0.0
      %v5236 = vrot.slane %v5235, 4
      %v5237 = vadd.f32 %v5235, %v5236
      %v5238 = vrot.slane %v5237, 2
      %v5239 = vadd.f32 %v5237, %v5238
      %v5240 = vrot.slane %v5239, 1
      %v5241 = vadd.f32 %v5239, %v5240
      %v5242 = vsel %vm3849, %v4907, 0.0
      %v5243 = vrot.slane %v5242, 4
      %v5244 = vadd.f32 %v5242, %v5243
      %v5245 = vrot.slane %v5244, 2
      %v5246 = vadd.f32 %v5244, %v5245
      %v5247 = vrot.slane %v5246, 1
      %v5248 = vadd.f32 %v5246, %v5247
      %v5249 = vsel %vm3849, %v4909, 0.0
      %v5250 = vrot.slane %v5249, 4
      %v5251 = vadd.f32 %v5249, %v5250
      %v5252 = vrot.slane %v5251, 2
      %v5253 = vadd.f32 %v5251, %v5252
      %v5254 = vrot.slane %v5253, 1
      %v5255 = vadd.f32 %v5253, %v5254
      %v5256 = vsel %vm3849, %v4911, 0.0
      %v5257 = vrot.slane %v5256, 4
      %v5258 = vadd.f32 %v5256, %v5257
      %v5259 = vrot.slane %v5258, 2
      %v5260 = vadd.f32 %v5258, %v5259
      %v5261 = vrot.slane %v5260, 1
      %v5262 = vadd.f32 %v5260, %v5261
      %v5263 = vsel %vm3849, %v4913, 0.0
      %v5264 = vrot.slane %v5263, 4
      %v5265 = vadd.f32 %v5263, %v5264
      %v5266 = vrot.slane %v5265, 2
      %v5267 = vadd.f32 %v5265, %v5266
      %v5268 = vrot.slane %v5267, 1
      %v5269 = vadd.f32 %v5267, %v5268
      %v5270 = vsel %vm3849, %v4915, 0.0
      %v5271 = vrot.slane %v5270, 4
      %v5272 = vadd.f32 %v5270, %v5271
      %v5273 = vrot.slane %v5272, 2
      %v5274 = vadd.f32 %v5272, %v5273
      %v5275 = vrot.slane %v5274, 1
      %v5276 = vadd.f32 %v5274, %v5275
      %v5277 = vsel %vm3849, %v4917, 0.0
      %v5278 = vrot.slane %v5277, 4
      %v5279 = vadd.f32 %v5277, %v5278
      %v5280 = vrot.slane %v5279, 2
      %v5281 = vadd.f32 %v5279, %v5280
      %v5282 = vrot.slane %v5281, 1
      %v5283 = vadd.f32 %v5281, %v5282
      %v5284 = vsel %vm3849, %v4919, 0.0
      %v5285 = vrot.slane %v5284, 4
      %v5286 = vadd.f32 %v5284, %v5285
      %v5287 = vrot.slane %v5286, 2
      %v5288 = vadd.f32 %v5286, %v5287
      %v5289 = vrot.slane %v5288, 1
      %v5290 = vadd.f32 %v5288, %v5289
      %v5291 = vsel %vm3849, %v4921, 0.0
      %v5292 = vrot.slane %v5291, 4
      %v5293 = vadd.f32 %v5291, %v5292
      %v5294 = vrot.slane %v5293, 2
      %v5295 = vadd.f32 %v5293, %v5294
      %v5296 = vrot.slane %v5295, 1
      %v5297 = vadd.f32 %v5295, %v5296
      %v5298 = vsel %vm3849, %v4923, 0.0
      %v5299 = vrot.slane %v5298, 4
      %v5300 = vadd.f32 %v5298, %v5299
      %v5301 = vrot.slane %v5300, 2
      %v5302 = vadd.f32 %v5300, %v5301
      %v5303 = vrot.slane %v5302, 1
      %v5304 = vadd.f32 %v5302, %v5303
      %v5305 = vsel %vm3849, %v4925, 0.0
      %v5306 = vrot.slane %v5305, 4
      %v5307 = vadd.f32 %v5305, %v5306
      %v5308 = vrot.slane %v5307, 2
      %v5309 = vadd.f32 %v5307, %v5308
      %v5310 = vrot.slane %v5309, 1
      %v5311 = vadd.f32 %v5309, %v5310
      %v5312 = vsel %vm3849, %v4927, 0.0
      %v5313 = vrot.slane %v5312, 4
      %v5314 = vadd.f32 %v5312, %v5313
      %v5315 = vrot.slane %v5314, 2
      %v5316 = vadd.f32 %v5314, %v5315
      %v5317 = vrot.slane %v5316, 1
      %v5318 = vadd.f32 %v5316, %v5317
      %v5319 = vsel %vm3849, %v4929, 0.0
      %v5320 = vrot.slane %v5319, 4
      %v5321 = vadd.f32 %v5319, %v5320
      %v5322 = vrot.slane %v5321, 2
      %v5323 = vadd.f32 %v5321, %v5322
      %v5324 = vrot.slane %v5323, 1
      %v5325 = vadd.f32 %v5323, %v5324
      %v5326 = vsel %vm3849, %v4931, 0.0
      %v5327 = vrot.slane %v5326, 4
      %v5328 = vadd.f32 %v5326, %v5327
      %v5329 = vrot.slane %v5328, 2
      %v5330 = vadd.f32 %v5328, %v5329
      %v5331 = vrot.slane %v5330, 1
      %v5332 = vadd.f32 %v5330, %v5331
      %v5333 = vsel %vm3849, %v4933, 0.0
      %v5334 = vrot.slane %v5333, 4
      %v5335 = vadd.f32 %v5333, %v5334
      %v5336 = vrot.slane %v5335, 2
      %v5337 = vadd.f32 %v5335, %v5336
      %v5338 = vrot.slane %v5337, 1
      %v5339 = vadd.f32 %v5337, %v5338
      %v5340 = vsel %vm3849, %v4935, 0.0
      %v5341 = vrot.slane %v5340, 4
      %v5342 = vadd.f32 %v5340, %v5341
      %v5343 = vrot.slane %v5342, 2
      %v5344 = vadd.f32 %v5342, %v5343
      %v5345 = vrot.slane %v5344, 1
      %v5346 = vadd.f32 %v5344, %v5345
      %v5347 = vsel %vm3849, %v4937, 0.0
      %v5348 = vrot.slane %v5347, 4
      %v5349 = vadd.f32 %v5347, %v5348
      %v5350 = vrot.slane %v5349, 2
      %v5351 = vadd.f32 %v5349, %v5350
      %v5352 = vrot.slane %v5351, 1
      %v5353 = vadd.f32 %v5351, %v5352
      %v5354 = vsel %vm3849, %v4939, 0.0
      %v5355 = vrot.slane %v5354, 4
      %v5356 = vadd.f32 %v5354, %v5355
      %v5357 = vrot.slane %v5356, 2
      %v5358 = vadd.f32 %v5356, %v5357
      %v5359 = vrot.slane %v5358, 1
      %v5360 = vadd.f32 %v5358, %v5359
      %v5361 = vsel %vm3849, %v4941, 0.0
      %v5362 = vrot.slane %v5361, 4
      %v5363 = vadd.f32 %v5361, %v5362
      %v5364 = vrot.slane %v5363, 2
      %v5365 = vadd.f32 %v5363, %v5364
      %v5366 = vrot.slane %v5365, 1
      %v5367 = vadd.f32 %v5365, %v5366
      %v5368 = vsel %vm3849, %v4943, 0.0
      %v5369 = vrot.slane %v5368, 4
      %v5370 = vadd.f32 %v5368, %v5369
      %v5371 = vrot.slane %v5370, 2
      %v5372 = vadd.f32 %v5370, %v5371
      %v5373 = vrot.slane %v5372, 1
      %v5374 = vadd.f32 %v5372, %v5373
      %v5375 = vsel %vm3849, %v4945, 0.0
      %v5376 = vrot.slane %v5375, 4
      %v5377 = vadd.f32 %v5375, %v5376
      %v5378 = vrot.slane %v5377, 2
      %v5379 = vadd.f32 %v5377, %v5378
      %v5380 = vrot.slane %v5379, 1
      %v5381 = vadd.f32 %v5379, %v5380
      %v5382 = vsel %vm3849, %v4947, 0.0
      %v5383 = vrot.slane %v5382, 4
      %v5384 = vadd.f32 %v5382, %v5383
      %v5385 = vrot.slane %v5384, 2
      %v5386 = vadd.f32 %v5384, %v5385
      %v5387 = vrot.slane %v5386, 1
      %v5388 = vadd.f32 %v5386, %v5387
      %v5389 = vsel %vm3849, %v4949, 0.0
      %v5390 = vrot.slane %v5389, 4
      %v5391 = vadd.f32 %v5389, %v5390
      %v5392 = vrot.slane %v5391, 2
      %v5393 = vadd.f32 %v5391, %v5392
      %v5394 = vrot.slane %v5393, 1
      %v5395 = vadd.f32 %v5393, %v5394
      %v5396 = vsel %vm3849, %v4951, 0.0
      %v5397 = vrot.slane %v5396, 4
      %v5398 = vadd.f32 %v5396, %v5397
      %v5399 = vrot.slane %v5398, 2
      %v5400 = vadd.f32 %v5398, %v5399
      %v5401 = vrot.slane %v5400, 1
      %v5402 = vadd.f32 %v5400, %v5401
      %v5403 = vsel %vm3849, %v4953, 0.0
      %v5404 = vrot.slane %v5403, 4
      %v5405 = vadd.f32 %v5403, %v5404
      %v5406 = vrot.slane %v5405, 2
      %v5407 = vadd.f32 %v5405, %v5406
      %v5408 = vrot.slane %v5407, 1
      %v5409 = vadd.f32 %v5407, %v5408
      %v5410 = vsel %vm3849, %v4955, 0.0
      %v5411 = vrot.slane %v5410, 4
      %v5412 = vadd.f32 %v5410, %v5411
      %v5413 = vrot.slane %v5412, 2
      %v5414 = vadd.f32 %v5412, %v5413
      %v5415 = vrot.slane %v5414, 1
      %v5416 = vadd.f32 %v5414, %v5415
      %v5417 = vsel %vm3849, %v4957, 0.0
      %v5418 = vrot.slane %v5417, 4
      %v5419 = vadd.f32 %v5417, %v5418
      %v5420 = vrot.slane %v5419, 2
      %v5421 = vadd.f32 %v5419, %v5420
      %v5422 = vrot.slane %v5421, 1
      %v5423 = vadd.f32 %v5421, %v5422
      %v5424 = vsel %vm3849, %v4959, 0.0
      %v5425 = vrot.slane %v5424, 4
      %v5426 = vadd.f32 %v5424, %v5425
      %v5427 = vrot.slane %v5426, 2
      %v5428 = vadd.f32 %v5426, %v5427
      %v5429 = vrot.slane %v5428, 1
      %v5430 = vadd.f32 %v5428, %v5429
      %v5431 = vsel %vm3849, %v4961, 0.0
      %v5432 = vrot.slane %v5431, 4
      %v5433 = vadd.f32 %v5431, %v5432
      %v5434 = vrot.slane %v5433, 2
      %v5435 = vadd.f32 %v5433, %v5434
      %v5436 = vrot.slane %v5435, 1
      %v5437 = vadd.f32 %v5435, %v5436
      %v5438 = vsel %vm3849, %v4963, 0.0
      %v5439 = vrot.slane %v5438, 4
      %v5440 = vadd.f32 %v5438, %v5439
      %v5441 = vrot.slane %v5440, 2
      %v5442 = vadd.f32 %v5440, %v5441
      %v5443 = vrot.slane %v5442, 1
      %v5444 = vadd.f32 %v5442, %v5443
      %v5445 = vsel %vm3849, %v4965, 0.0
      %v5446 = vrot.slane %v5445, 4
      %v5447 = vadd.f32 %v5445, %v5446
      %v5448 = vrot.slane %v5447, 2
      %v5449 = vadd.f32 %v5447, %v5448
      %v5450 = vrot.slane %v5449, 1
      %v5451 = vadd.f32 %v5449, %v5450
      %v5452 = vsel %vm3849, %v4967, 0.0
      %v5453 = vrot.slane %v5452, 4
      %v5454 = vadd.f32 %v5452, %v5453
      %v5455 = vrot.slane %v5454, 2
      %v5456 = vadd.f32 %v5454, %v5455
      %v5457 = vrot.slane %v5456, 1
      %v5458 = vadd.f32 %v5456, %v5457
      %v5459 = vsel %vm3849, %v4969, 0.0
      %v5460 = vrot.slane %v5459, 4
      %v5461 = vadd.f32 %v5459, %v5460
      %v5462 = vrot.slane %v5461, 2
      %v5463 = vadd.f32 %v5461, %v5462
      %v5464 = vrot.slane %v5463, 1
      %v5465 = vadd.f32 %v5463, %v5464
      %v5466 = vsel %vm3849, %v4971, 0.0
      %v5467 = vrot.slane %v5466, 4
      %v5468 = vadd.f32 %v5466, %v5467
      %v5469 = vrot.slane %v5468, 2
      %v5470 = vadd.f32 %v5468, %v5469
      %v5471 = vrot.slane %v5470, 1
      %v5472 = vadd.f32 %v5470, %v5471
      %v5473 = vsel %vm3849, %v4973, 0.0
      %v5474 = vrot.slane %v5473, 4
      %v5475 = vadd.f32 %v5473, %v5474
      %v5476 = vrot.slane %v5475, 2
      %v5477 = vadd.f32 %v5475, %v5476
      %v5478 = vrot.slane %v5477, 1
      %v5479 = vadd.f32 %v5477, %v5478
      %v5480 = vsel %vm3849, %v4975, 0.0
      %v5481 = vrot.slane %v5480, 4
      %v5482 = vadd.f32 %v5480, %v5481
      %v5483 = vrot.slane %v5482, 2
      %v5484 = vadd.f32 %v5482, %v5483
      %v5485 = vrot.slane %v5484, 1
      %v5486 = vadd.f32 %v5484, %v5485
      %v5487 = vsel %vm3849, %v4977, 0.0
      %v5488 = vrot.slane %v5487, 4
      %v5489 = vadd.f32 %v5487, %v5488
      %v5490 = vrot.slane %v5489, 2
      %v5491 = vadd.f32 %v5489, %v5490
      %v5492 = vrot.slane %v5491, 1
      %v5493 = vadd.f32 %v5491, %v5492
      %v5494 = vsel %vm3849, %v4979, 0.0
      %v5495 = vrot.slane %v5494, 4
      %v5496 = vadd.f32 %v5494, %v5495
      %v5497 = vrot.slane %v5496, 2
      %v5498 = vadd.f32 %v5496, %v5497
      %v5499 = vrot.slane %v5498, 1
      %v5500 = vadd.f32 %v5498, %v5499
      %v5501 = vsel %vm3849, %v4981, 0.0
      %v5502 = vrot.slane %v5501, 4
      %v5503 = vadd.f32 %v5501, %v5502
      %v5504 = vrot.slane %v5503, 2
      %v5505 = vadd.f32 %v5503, %v5504
      %v5506 = vrot.slane %v5505, 1
      %v5507 = vadd.f32 %v5505, %v5506
      %v5508 = vsel %vm3849, %v4983, 0.0
      %v5509 = vrot.slane %v5508, 4
      %v5510 = vadd.f32 %v5508, %v5509
      %v5511 = vrot.slane %v5510, 2
      %v5512 = vadd.f32 %v5510, %v5511
      %v5513 = vrot.slane %v5512, 1
      %v5514 = vadd.f32 %v5512, %v5513
      %v5515 = vsel %vm3849, %v4985, 0.0
      %v5516 = vrot.slane %v5515, 4
      %v5517 = vadd.f32 %v5515, %v5516
      %v5518 = vrot.slane %v5517, 2
      %v5519 = vadd.f32 %v5517, %v5518
      %v5520 = vrot.slane %v5519, 1
      %v5521 = vadd.f32 %v5519, %v5520
      %v5522 = vsel %vm3849, %v4987, 0.0
      %v5523 = vrot.slane %v5522, 4
      %v5524 = vadd.f32 %v5522, %v5523
      %v5525 = vrot.slane %v5524, 2
      %v5526 = vadd.f32 %v5524, %v5525
      %v5527 = vrot.slane %v5526, 1
      %v5528 = vadd.f32 %v5526, %v5527
      %v5529 = vsel %vm3849, %v4989, 0.0
      %v5530 = vrot.slane %v5529, 4
      %v5531 = vadd.f32 %v5529, %v5530
      %v5532 = vrot.slane %v5531, 2
      %v5533 = vadd.f32 %v5531, %v5532
      %v5534 = vrot.slane %v5533, 1
      %v5535 = vadd.f32 %v5533, %v5534
      %v5536 = vsel %vm3849, %v4991, 0.0
      %v5537 = vrot.slane %v5536, 4
      %v5538 = vadd.f32 %v5536, %v5537
      %v5539 = vrot.slane %v5538, 2
      %v5540 = vadd.f32 %v5538, %v5539
      %v5541 = vrot.slane %v5540, 1
      %v5542 = vadd.f32 %v5540, %v5541
      %v5543 = vsel %vm3849, %v4993, 0.0
      %v5544 = vrot.slane %v5543, 4
      %v5545 = vadd.f32 %v5543, %v5544
      %v5546 = vrot.slane %v5545, 2
      %v5547 = vadd.f32 %v5545, %v5546
      %v5548 = vrot.slane %v5547, 1
      %v5549 = vadd.f32 %v5547, %v5548
      %v5550 = vsel %vm3849, %v4995, 0.0
      %v5551 = vrot.slane %v5550, 4
      %v5552 = vadd.f32 %v5550, %v5551
      %v5553 = vrot.slane %v5552, 2
      %v5554 = vadd.f32 %v5552, %v5553
      %v5555 = vrot.slane %v5554, 1
      %v5556 = vadd.f32 %v5554, %v5555
      %v5557 = vsel %vm3849, %v4997, 0.0
      %v5558 = vrot.slane %v5557, 4
      %v5559 = vadd.f32 %v5557, %v5558
      %v5560 = vrot.slane %v5559, 2
      %v5561 = vadd.f32 %v5559, %v5560
      %v5562 = vrot.slane %v5561, 1
      %v5563 = vadd.f32 %v5561, %v5562
      %v5564 = vsel %vm3849, %v4999, 0.0
      %v5565 = vrot.slane %v5564, 4
      %v5566 = vadd.f32 %v5564, %v5565
      %v5567 = vrot.slane %v5566, 2
      %v5568 = vadd.f32 %v5566, %v5567
      %v5569 = vrot.slane %v5568, 1
      %v5570 = vadd.f32 %v5568, %v5569
      %v5571 = vsel %vm3849, %v5001, 0.0
      %v5572 = vrot.slane %v5571, 4
      %v5573 = vadd.f32 %v5571, %v5572
      %v5574 = vrot.slane %v5573, 2
      %v5575 = vadd.f32 %v5573, %v5574
      %v5576 = vrot.slane %v5575, 1
      %v5577 = vadd.f32 %v5575, %v5576
      %v5578 = vsel %vm3849, %v5003, 0.0
      %v5579 = vrot.slane %v5578, 4
      %v5580 = vadd.f32 %v5578, %v5579
      %v5581 = vrot.slane %v5580, 2
      %v5582 = vadd.f32 %v5580, %v5581
      %v5583 = vrot.slane %v5582, 1
      %v5584 = vadd.f32 %v5582, %v5583
      %v5585 = vsel %vm3849, %v5005, 0.0
      %v5586 = vrot.slane %v5585, 4
      %v5587 = vadd.f32 %v5585, %v5586
      %v5588 = vrot.slane %v5587, 2
      %v5589 = vadd.f32 %v5587, %v5588
      %v5590 = vrot.slane %v5589, 1
      %v5591 = vadd.f32 %v5589, %v5590
      %v5592 = vsel %vm3849, %v5007, 0.0
      %v5593 = vrot.slane %v5592, 4
      %v5594 = vadd.f32 %v5592, %v5593
      %v5595 = vrot.slane %v5594, 2
      %v5596 = vadd.f32 %v5594, %v5595
      %v5597 = vrot.slane %v5596, 1
      %v5598 = vadd.f32 %v5596, %v5597
      %v5599 = vsel %vm3849, %v5009, 0.0
      %v5600 = vrot.slane %v5599, 4
      %v5601 = vadd.f32 %v5599, %v5600
      %v5602 = vrot.slane %v5601, 2
      %v5603 = vadd.f32 %v5601, %v5602
      %v5604 = vrot.slane %v5603, 1
      %v5605 = vadd.f32 %v5603, %v5604
      %v5606 = vsel %vm3849, %v5011, 0.0
      %v5607 = vrot.slane %v5606, 4
      %v5608 = vadd.f32 %v5606, %v5607
      %v5609 = vrot.slane %v5608, 2
      %v5610 = vadd.f32 %v5608, %v5609
      %v5611 = vrot.slane %v5610, 1
      %v5612 = vadd.f32 %v5610, %v5611
      %v5613 = vsel %vm3849, %v5013, 0.0
      %v5614 = vrot.slane %v5613, 4
      %v5615 = vadd.f32 %v5613, %v5614
      %v5616 = vrot.slane %v5615, 2
      %v5617 = vadd.f32 %v5615, %v5616
      %v5618 = vrot.slane %v5617, 1
      %v5619 = vadd.f32 %v5617, %v5618
      %v5620 = vsel %vm3849, %v5015, 0.0
      %v5621 = vrot.slane %v5620, 4
      %v5622 = vadd.f32 %v5620, %v5621
      %v5623 = vrot.slane %v5622, 2
      %v5624 = vadd.f32 %v5622, %v5623
      %v5625 = vrot.slane %v5624, 1
      %v5626 = vadd.f32 %v5624, %v5625
      %v5627 = vsel %vm3849, %v5017, 0.0
      %v5628 = vrot.slane %v5627, 4
      %v5629 = vadd.f32 %v5627, %v5628
      %v5630 = vrot.slane %v5629, 2
      %v5631 = vadd.f32 %v5629, %v5630
      %v5632 = vrot.slane %v5631, 1
      %v5633 = vadd.f32 %v5631, %v5632
      %v5634 = vsel %vm3849, %v5019, 0.0
      %v5635 = vrot.slane %v5634, 4
      %v5636 = vadd.f32 %v5634, %v5635
      %v5637 = vrot.slane %v5636, 2
      %v5638 = vadd.f32 %v5636, %v5637
      %v5639 = vrot.slane %v5638, 1
      %v5640 = vadd.f32 %v5638, %v5639
      %v5641 = vsel %vm3849, %v5021, 0.0
      %v5642 = vrot.slane %v5641, 4
      %v5643 = vadd.f32 %v5641, %v5642
      %v5644 = vrot.slane %v5643, 2
      %v5645 = vadd.f32 %v5643, %v5644
      %v5646 = vrot.slane %v5645, 1
      %v5647 = vadd.f32 %v5645, %v5646
      %v5648 = vsel %vm3849, %v5023, 0.0
      %v5649 = vrot.slane %v5648, 4
      %v5650 = vadd.f32 %v5648, %v5649
      %v5651 = vrot.slane %v5650, 2
      %v5652 = vadd.f32 %v5650, %v5651
      %v5653 = vrot.slane %v5652, 1
      %v5654 = vadd.f32 %v5652, %v5653
      %v5655 = vsel %vm3849, %v5025, 0.0
      %v5656 = vrot.slane %v5655, 4
      %v5657 = vadd.f32 %v5655, %v5656
      %v5658 = vrot.slane %v5657, 2
      %v5659 = vadd.f32 %v5657, %v5658
      %v5660 = vrot.slane %v5659, 1
      %v5661 = vadd.f32 %v5659, %v5660
      %v5662 = vsel %vm3849, %v5027, 0.0
      %v5663 = vrot.slane %v5662, 4
      %v5664 = vadd.f32 %v5662, %v5663
      %v5665 = vrot.slane %v5664, 2
      %v5666 = vadd.f32 %v5664, %v5665
      %v5667 = vrot.slane %v5666, 1
      %v5668 = vadd.f32 %v5666, %v5667
      %v5669 = vsel %vm3849, %v5029, 0.0
      %v5670 = vrot.slane %v5669, 4
      %v5671 = vadd.f32 %v5669, %v5670
      %v5672 = vrot.slane %v5671, 2
      %v5673 = vadd.f32 %v5671, %v5672
      %v5674 = vrot.slane %v5673, 1
      %v5675 = vadd.f32 %v5673, %v5674
      %v5676 = vsel %vm3849, %v5031, 0.0
      %v5677 = vrot.slane %v5676, 4
      %v5678 = vadd.f32 %v5676, %v5677
      %v5679 = vrot.slane %v5678, 2
      %v5680 = vadd.f32 %v5678, %v5679
      %v5681 = vrot.slane %v5680, 1
      %v5682 = vadd.f32 %v5680, %v5681
      %v5683 = vsel %vm3849, %v5033, 0.0
      %v5684 = vrot.slane %v5683, 4
      %v5685 = vadd.f32 %v5683, %v5684
      %v5686 = vrot.slane %v5685, 2
      %v5687 = vadd.f32 %v5685, %v5686
      %v5688 = vrot.slane %v5687, 1
      %v5689 = vadd.f32 %v5687, %v5688
      %v5690 = vsel %vm3849, %v5035, 0.0
      %v5691 = vrot.slane %v5690, 4
      %v5692 = vadd.f32 %v5690, %v5691
      %v5693 = vrot.slane %v5692, 2
      %v5694 = vadd.f32 %v5692, %v5693
      %v5695 = vrot.slane %v5694, 1
      %v5696 = vadd.f32 %v5694, %v5695
      %v5697 = vsel %vm3849, %v5037, 0.0
      %v5698 = vrot.slane %v5697, 4
      %v5699 = vadd.f32 %v5697, %v5698
      %v5700 = vrot.slane %v5699, 2
      %v5701 = vadd.f32 %v5699, %v5700
      %v5702 = vrot.slane %v5701, 1
      %v5703 = vadd.f32 %v5701, %v5702
      %v5704 = vsel %vm3849, %v5039, 0.0
      %v5705 = vrot.slane %v5704, 4
      %v5706 = vadd.f32 %v5704, %v5705
      %v5707 = vrot.slane %v5706, 2
      %v5708 = vadd.f32 %v5706, %v5707
      %v5709 = vrot.slane %v5708, 1
      %v5710 = vadd.f32 %v5708, %v5709
      %v5711 = vsel %vm3849, %v5041, 0.0
      %v5712 = vrot.slane %v5711, 4
      %v5713 = vadd.f32 %v5711, %v5712
      %v5714 = vrot.slane %v5713, 2
      %v5715 = vadd.f32 %v5713, %v5714
      %v5716 = vrot.slane %v5715, 1
      %v5717 = vadd.f32 %v5715, %v5716
      %v5718 = vsel %vm3849, %v5043, 0.0
      %v5719 = vrot.slane %v5718, 4
      %v5720 = vadd.f32 %v5718, %v5719
      %v5721 = vrot.slane %v5720, 2
      %v5722 = vadd.f32 %v5720, %v5721
      %v5723 = vrot.slane %v5722, 1
      %v5724 = vadd.f32 %v5722, %v5723
      %v5725 = vsel %vm3849, %v5045, 0.0
      %v5726 = vrot.slane %v5725, 4
      %v5727 = vadd.f32 %v5725, %v5726
      %v5728 = vrot.slane %v5727, 2
      %v5729 = vadd.f32 %v5727, %v5728
      %v5730 = vrot.slane %v5729, 1
      %v5731 = vadd.f32 %v5729, %v5730
      %v5732 = vsel %vm3849, %v5047, 0.0
      %v5733 = vrot.slane %v5732, 4
      %v5734 = vadd.f32 %v5732, %v5733
      %v5735 = vrot.slane %v5734, 2
      %v5736 = vadd.f32 %v5734, %v5735
      %v5737 = vrot.slane %v5736, 1
      %v5738 = vadd.f32 %v5736, %v5737
      %v5739 = vsel %vm3849, %v5049, 0.0
      %v5740 = vrot.slane %v5739, 4
      %v5741 = vadd.f32 %v5739, %v5740
      %v5742 = vrot.slane %v5741, 2
      %v5743 = vadd.f32 %v5741, %v5742
      %v5744 = vrot.slane %v5743, 1
      %v5745 = vadd.f32 %v5743, %v5744
      %v5746 = vsel %vm3849, %v5051, 0.0
      %v5747 = vrot.slane %v5746, 4
      %v5748 = vadd.f32 %v5746, %v5747
      %v5749 = vrot.slane %v5748, 2
      %v5750 = vadd.f32 %v5748, %v5749
      %v5751 = vrot.slane %v5750, 1
      %v5752 = vadd.f32 %v5750, %v5751
      %v5753 = vsel %vm3849, %v5053, 0.0
      %v5754 = vrot.slane %v5753, 4
      %v5755 = vadd.f32 %v5753, %v5754
      %v5756 = vrot.slane %v5755, 2
      %v5757 = vadd.f32 %v5755, %v5756
      %v5758 = vrot.slane %v5757, 1
      %v5759 = vadd.f32 %v5757, %v5758
      %v5760 = vsel %vm3849, %v5055, 0.0
      %v5761 = vrot.slane %v5760, 4
      %v5762 = vadd.f32 %v5760, %v5761
      %v5763 = vrot.slane %v5762, 2
      %v5764 = vadd.f32 %v5762, %v5763
      %v5765 = vrot.slane %v5764, 1
      %v5766 = vadd.f32 %v5764, %v5765
      %v5767 = vsel %vm3849, %v5057, 0.0
      %v5768 = vrot.slane %v5767, 4
      %v5769 = vadd.f32 %v5767, %v5768
      %v5770 = vrot.slane %v5769, 2
      %v5771 = vadd.f32 %v5769, %v5770
      %v5772 = vrot.slane %v5771, 1
      %v5773 = vadd.f32 %v5771, %v5772
      %v5774 = vsel %vm3849, %v5059, 0.0
      %v5775 = vrot.slane %v5774, 4
      %v5776 = vadd.f32 %v5774, %v5775
      %v5777 = vrot.slane %v5776, 2
      %v5778 = vadd.f32 %v5776, %v5777
      %v5779 = vrot.slane %v5778, 1
      %v5780 = vadd.f32 %v5778, %v5779
      %v5781 = vsel %vm3849, %v5061, 0.0
      %v5782 = vrot.slane %v5781, 4
      %v5783 = vadd.f32 %v5781, %v5782
      %v5784 = vrot.slane %v5783, 2
      %v5785 = vadd.f32 %v5783, %v5784
      %v5786 = vrot.slane %v5785, 1
      %v5787 = vadd.f32 %v5785, %v5786
      %v5788 = vsel %vm3849, %v5063, 0.0
      %v5789 = vrot.slane %v5788, 4
      %v5790 = vadd.f32 %v5788, %v5789
      %v5791 = vrot.slane %v5790, 2
      %v5792 = vadd.f32 %v5790, %v5791
      %v5793 = vrot.slane %v5792, 1
      %v5794 = vadd.f32 %v5792, %v5793
      %v5795 = vsel %vm3849, %v5065, 0.0
      %v5796 = vrot.slane %v5795, 4
      %v5797 = vadd.f32 %v5795, %v5796
      %v5798 = vrot.slane %v5797, 2
      %v5799 = vadd.f32 %v5797, %v5798
      %v5800 = vrot.slane %v5799, 1
      %v5801 = vadd.f32 %v5799, %v5800
      %v5802 = vsel %vm3849, %v5067, 0.0
      %v5803 = vrot.slane %v5802, 4
      %v5804 = vadd.f32 %v5802, %v5803
      %v5805 = vrot.slane %v5804, 2
      %v5806 = vadd.f32 %v5804, %v5805
      %v5807 = vrot.slane %v5806, 1
      %v5808 = vadd.f32 %v5806, %v5807
      %v5809 = vsel %vm3849, %v5069, 0.0
      %v5810 = vrot.slane %v5809, 4
      %v5811 = vadd.f32 %v5809, %v5810
      %v5812 = vrot.slane %v5811, 2
      %v5813 = vadd.f32 %v5811, %v5812
      %v5814 = vrot.slane %v5813, 1
      %v5815 = vadd.f32 %v5813, %v5814
      %v5816 = vsel %vm3849, %v5071, 0.0
      %v5817 = vrot.slane %v5816, 4
      %v5818 = vadd.f32 %v5816, %v5817
      %v5819 = vrot.slane %v5818, 2
      %v5820 = vadd.f32 %v5818, %v5819
      %v5821 = vrot.slane %v5820, 1
      %v5822 = vadd.f32 %v5820, %v5821
      %v5823 = vsel %vm3849, %v5073, 0.0
      %v5824 = vrot.slane %v5823, 4
      %v5825 = vadd.f32 %v5823, %v5824
      %v5826 = vrot.slane %v5825, 2
      %v5827 = vadd.f32 %v5825, %v5826
      %v5828 = vrot.slane %v5827, 1
      %v5829 = vadd.f32 %v5827, %v5828
      %v5830 = vsel %vm3849, %v5075, 0.0
      %v5831 = vrot.slane %v5830, 4
      %v5832 = vadd.f32 %v5830, %v5831
      %v5833 = vrot.slane %v5832, 2
      %v5834 = vadd.f32 %v5832, %v5833
      %v5835 = vrot.slane %v5834, 1
      %v5836 = vadd.f32 %v5834, %v5835
      %v5837 = vsel %vm3849, %v5077, 0.0
      %v5838 = vrot.slane %v5837, 4
      %v5839 = vadd.f32 %v5837, %v5838
      %v5840 = vrot.slane %v5839, 2
      %v5841 = vadd.f32 %v5839, %v5840
      %v5842 = vrot.slane %v5841, 1
      %v5843 = vadd.f32 %v5841, %v5842
      %v5844 = vsel %vm3849, %v5079, 0.0
      %v5845 = vrot.slane %v5844, 4
      %v5846 = vadd.f32 %v5844, %v5845
      %v5847 = vrot.slane %v5846, 2
      %v5848 = vadd.f32 %v5846, %v5847
      %v5849 = vrot.slane %v5848, 1
      %v5850 = vadd.f32 %v5848, %v5849
      %v5851 = vsel %vm3849, %v5081, 0.0
      %v5852 = vrot.slane %v5851, 4
      %v5853 = vadd.f32 %v5851, %v5852
      %v5854 = vrot.slane %v5853, 2
      %v5855 = vadd.f32 %v5853, %v5854
      %v5856 = vrot.slane %v5855, 1
      %v5857 = vadd.f32 %v5855, %v5856
      %v5858 = vsel %vm3849, %v5083, 0.0
      %v5859 = vrot.slane %v5858, 4
      %v5860 = vadd.f32 %v5858, %v5859
      %v5861 = vrot.slane %v5860, 2
      %v5862 = vadd.f32 %v5860, %v5861
      %v5863 = vrot.slane %v5862, 1
      %v5864 = vadd.f32 %v5862, %v5863
      %v5865 = vsel %vm3849, %v5085, 0.0
      %v5866 = vrot.slane %v5865, 4
      %v5867 = vadd.f32 %v5865, %v5866
      %v5868 = vrot.slane %v5867, 2
      %v5869 = vadd.f32 %v5867, %v5868
      %v5870 = vrot.slane %v5869, 1
      %v5871 = vadd.f32 %v5869, %v5870
      %v5872 = vsel %vm3849, %v5087, 0.0
      %v5873 = vrot.slane %v5872, 4
      %v5874 = vadd.f32 %v5872, %v5873
      %v5875 = vrot.slane %v5874, 2
      %v5876 = vadd.f32 %v5874, %v5875
      %v5877 = vrot.slane %v5876, 1
      %v5878 = vadd.f32 %v5876, %v5877
      %v5879 = vsel %vm3849, %v5089, 0.0
      %v5880 = vrot.slane %v5879, 4
      %v5881 = vadd.f32 %v5879, %v5880
      %v5882 = vrot.slane %v5881, 2
      %v5883 = vadd.f32 %v5881, %v5882
      %v5884 = vrot.slane %v5883, 1
      %v5885 = vadd.f32 %v5883, %v5884
      %v5886 = vsel %vm3849, %v5091, 0.0
      %v5887 = vrot.slane %v5886, 4
      %v5888 = vadd.f32 %v5886, %v5887
      %v5889 = vrot.slane %v5888, 2
      %v5890 = vadd.f32 %v5888, %v5889
      %v5891 = vrot.slane %v5890, 1
      %v5892 = vadd.f32 %v5890, %v5891
      %v5893 = vsel %vm3849, %v5093, 0.0
      %v5894 = vrot.slane %v5893, 4
      %v5895 = vadd.f32 %v5893, %v5894
      %v5896 = vrot.slane %v5895, 2
      %v5897 = vadd.f32 %v5895, %v5896
      %v5898 = vrot.slane %v5897, 1
      %v5899 = vadd.f32 %v5897, %v5898
      %v5900 = vsel %vm3849, %v5095, 0.0
      %v5901 = vrot.slane %v5900, 4
      %v5902 = vadd.f32 %v5900, %v5901
      %v5903 = vrot.slane %v5902, 2
      %v5904 = vadd.f32 %v5902, %v5903
      %v5905 = vrot.slane %v5904, 1
      %v5906 = vadd.f32 %v5904, %v5905
      %v5907 = vsel %vm3849, %v5097, 0.0
      %v5908 = vrot.slane %v5907, 4
      %v5909 = vadd.f32 %v5907, %v5908
      %v5910 = vrot.slane %v5909, 2
      %v5911 = vadd.f32 %v5909, %v5910
      %v5912 = vrot.slane %v5911, 1
      %v5913 = vadd.f32 %v5911, %v5912
      %v5914 = vsel %vm3849, %v5099, 0.0
      %v5915 = vrot.slane %v5914, 4
      %v5916 = vadd.f32 %v5914, %v5915
      %v5917 = vrot.slane %v5916, 2
      %v5918 = vadd.f32 %v5916, %v5917
      %v5919 = vrot.slane %v5918, 1
      %v5920 = vadd.f32 %v5918, %v5919
      %v5921 = vsel %vm3849, %v5101, 0.0
      %v5922 = vrot.slane %v5921, 4
      %v5923 = vadd.f32 %v5921, %v5922
      %v5924 = vrot.slane %v5923, 2
      %v5925 = vadd.f32 %v5923, %v5924
      %v5926 = vrot.slane %v5925, 1
      %v5927 = vadd.f32 %v5925, %v5926
      %v5928 = vsel %vm3849, %v5103, 0.0
      %v5929 = vrot.slane %v5928, 4
      %v5930 = vadd.f32 %v5928, %v5929
      %v5931 = vrot.slane %v5930, 2
      %v5932 = vadd.f32 %v5930, %v5931
      %v5933 = vrot.slane %v5932, 1
      %v5934 = vadd.f32 %v5932, %v5933
      %v5935 = vsel %vm3849, %v5105, 0.0
      %v5936 = vrot.slane %v5935, 4
      %v5937 = vadd.f32 %v5935, %v5936
      %v5938 = vrot.slane %v5937, 2
      %v5939 = vadd.f32 %v5937, %v5938
      %v5940 = vrot.slane %v5939, 1
      %v5941 = vadd.f32 %v5939, %v5940
      %v5942 = vsel %vm3849, %v5107, 0.0
      %v5943 = vrot.slane %v5942, 4
      %v5944 = vadd.f32 %v5942, %v5943
      %v5945 = vrot.slane %v5944, 2
      %v5946 = vadd.f32 %v5944, %v5945
      %v5947 = vrot.slane %v5946, 1
      %v5948 = vadd.f32 %v5946, %v5947
      %v5949 = vsel %vm3849, %v5109, 0.0
      %v5950 = vrot.slane %v5949, 4
      %v5951 = vadd.f32 %v5949, %v5950
      %v5952 = vrot.slane %v5951, 2
      %v5953 = vadd.f32 %v5951, %v5952
      %v5954 = vrot.slane %v5953, 1
      %v5955 = vadd.f32 %v5953, %v5954
      %v5956 = vsel %vm3849, %v5111, 0.0
      %v5957 = vrot.slane %v5956, 4
      %v5958 = vadd.f32 %v5956, %v5957
      %v5959 = vrot.slane %v5958, 2
      %v5960 = vadd.f32 %v5958, %v5959
      %v5961 = vrot.slane %v5960, 1
      %v5962 = vadd.f32 %v5960, %v5961
      %v5963 = vsel %vm3849, %v5113, 0.0
      %v5964 = vrot.slane %v5963, 4
      %v5965 = vadd.f32 %v5963, %v5964
      %v5966 = vrot.slane %v5965, 2
      %v5967 = vadd.f32 %v5965, %v5966
      %v5968 = vrot.slane %v5967, 1
      %v5969 = vadd.f32 %v5967, %v5968
      %v5970 = vsel %vm3849, %v5115, 0.0
      %v5971 = vrot.slane %v5970, 4
      %v5972 = vadd.f32 %v5970, %v5971
      %v5973 = vrot.slane %v5972, 2
      %v5974 = vadd.f32 %v5972, %v5973
      %v5975 = vrot.slane %v5974, 1
      %v5976 = vadd.f32 %v5974, %v5975
      %v5977 = vsel %vm3849, %v5117, 0.0
      %v5978 = vrot.slane %v5977, 4
      %v5979 = vadd.f32 %v5977, %v5978
      %v5980 = vrot.slane %v5979, 2
      %v5981 = vadd.f32 %v5979, %v5980
      %v5982 = vrot.slane %v5981, 1
      %v5983 = vadd.f32 %v5981, %v5982
      %v5984 = vsel %vm3849, %v5119, 0.0
      %v5985 = vrot.slane %v5984, 4
      %v5986 = vadd.f32 %v5984, %v5985
      %v5987 = vrot.slane %v5986, 2
      %v5988 = vadd.f32 %v5986, %v5987
      %v5989 = vrot.slane %v5988, 1
      %v5990 = vadd.f32 %v5988, %v5989
      %v5991 = vsel %vm3849, %v5121, 0.0
      %v5992 = vrot.slane %v5991, 4
      %v5993 = vadd.f32 %v5991, %v5992
      %v5994 = vrot.slane %v5993, 2
      %v5995 = vadd.f32 %v5993, %v5994
      %v5996 = vrot.slane %v5995, 1
      %v5997 = vadd.f32 %v5995, %v5996
      %v5998 = vsel %vm3849, %v5123, 0.0
      %v5999 = vrot.slane %v5998, 4
      %v6000 = vadd.f32 %v5998, %v5999
      %v6001 = vrot.slane %v6000, 2
      %v6002 = vadd.f32 %v6000, %v6001
      %v6003 = vrot.slane %v6002, 1
      %v6004 = vadd.f32 %v6002, %v6003
      %v6005 = vsel %vm3849, %v5125, 0.0
      %v6006 = vrot.slane %v6005, 4
      %v6007 = vadd.f32 %v6005, %v6006
      %v6008 = vrot.slane %v6007, 2
      %v6009 = vadd.f32 %v6007, %v6008
      %v6010 = vrot.slane %v6009, 1
      %v6011 = vadd.f32 %v6009, %v6010
      %v6012 = vsel %vm3849, %v5127, 0.0
      %v6013 = vrot.slane %v6012, 4
      %v6014 = vadd.f32 %v6012, %v6013
      %v6015 = vrot.slane %v6014, 2
      %v6016 = vadd.f32 %v6014, %v6015
      %v6017 = vrot.slane %v6016, 1
      %v6018 = vadd.f32 %v6016, %v6017
      %v6019 = vsel %vm3849, %v5129, 0.0
      %v6020 = vrot.slane %v6019, 4
      %v6021 = vadd.f32 %v6019, %v6020
      %v6022 = vrot.slane %v6021, 2
      %v6023 = vadd.f32 %v6021, %v6022
      %v6024 = vrot.slane %v6023, 1
      %v6025 = vadd.f32 %v6023, %v6024
      %v6026 = vrcp.pop %v5136
      %v6027 = vrcp.pop %v5143
      %v6028 = vrcp.pop %v5150
      %v6029 = vrcp.pop %v5157
      %v6030 = vrcp.pop %v5164
      %v6031 = vrcp.pop %v5171
      %v6032 = vrcp.pop %v5178
      %v6033 = vrcp.pop %v5185
      %v6034 = vrcp.pop %v5192
      %v6035 = vrcp.pop %v5199
      %v6036 = vrcp.pop %v5206
      %v6037 = vrcp.pop %v5213
      %v6038 = vrcp.pop %v5220
      %v6039 = vrcp.pop %v5227
      %v6040 = vrcp.pop %v5234
      %v6041 = vrcp.pop %v5241
      %v6042 = vrcp.pop %v5248
      %v6043 = vrcp.pop %v5255
      %v6044 = vrcp.pop %v5262
      %v6045 = vrcp.pop %v5269
      %v6046 = vrcp.pop %v5276
      %v6047 = vrcp.pop %v5283
      %v6048 = vrcp.pop %v5290
      %v6049 = vrcp.pop %v5297
      %v6050 = vrcp.pop %v5304
      %v6051 = vrcp.pop %v5311
      %v6052 = vrcp.pop %v5318
      %v6053 = vrcp.pop %v5325
      %v6054 = vrcp.pop %v5332
      %v6055 = vrcp.pop %v5339
      %v6056 = vrcp.pop %v5346
      %v6057 = vrcp.pop %v5353
      %v6058 = vrcp.pop %v5360
      %v6059 = vrcp.pop %v5367
      %v6060 = vrcp.pop %v5374
      %v6061 = vrcp.pop %v5381
      %v6062 = vrcp.pop %v5388
      %v6063 = vrcp.pop %v5395
      %v6064 = vrcp.pop %v5402
      %v6065 = vrcp.pop %v5409
      %v6066 = vrcp.pop %v5416
      %v6067 = vrcp.pop %v5423
      %v6068 = vrcp.pop %v5430
      %v6069 = vrcp.pop %v5437
      %v6070 = vrcp.pop %v5444
      %v6071 = vrcp.pop %v5451
      %v6072 = vrcp.pop %v5458
      %v6073 = vrcp.pop %v5465
      %v6074 = vrcp.pop %v5472
      %v6075 = vrcp.pop %v5479
      %v6076 = vrcp.pop %v5486
      %v6077 = vrcp.pop %v5493
      %v6078 = vrcp.pop %v5500
      %v6079 = vrcp.pop %v5507
      %v6080 = vrcp.pop %v5514
      %v6081 = vrcp.pop %v5521
      %v6082 = vrcp.pop %v5528
      %v6083 = vrcp.pop %v5535
      %v6084 = vrcp.pop %v5542
      %v6085 = vrcp.pop %v5549
      %v6086 = vrcp.pop %v5556
      %v6087 = vrcp.pop %v5563
      %v6088 = vrcp.pop %v5570
      %v6089 = vrcp.pop %v5577
      %v6090 = vrcp.pop %v5584
      %v6091 = vrcp.pop %v5591
      %v6092 = vrcp.pop %v5598
      %v6093 = vrcp.pop %v5605
      %v6094 = vrcp.pop %v5612
      %v6095 = vrcp.pop %v5619
      %v6096 = vrcp.pop %v5626
      %v6097 = vrcp.pop %v5633
      %v6098 = vrcp.pop %v5640
      %v6099 = vrcp.pop %v5647
      %v6100 = vrcp.pop %v5654
      %v6101 = vrcp.pop %v5661
      %v6102 = vrcp.pop %v5668
      %v6103 = vrcp.pop %v5675
      %v6104 = vrcp.pop %v5682
      %v6105 = vrcp.pop %v5689
      %v6106 = vrcp.pop %v5696
      %v6107 = vrcp.pop %v5703
      %v6108 = vrcp.pop %v5710
      %v6109 = vrcp.pop %v5717
      %v6110 = vrcp.pop %v5724
      %v6111 = vrcp.pop %v5731
      %v6112 = vrcp.pop %v5738
      %v6113 = vrcp.pop %v5745
      %v6114 = vrcp.pop %v5752
      %v6115 = vrcp.pop %v5759
      %v6116 = vrcp.pop %v5766
      %v6117 = vrcp.pop %v5773
      %v6118 = vrcp.pop %v5780
      %v6119 = vrcp.pop %v5787
      %v6120 = vrcp.pop %v5794
      %v6121 = vrcp.pop %v5801
      %v6122 = vrcp.pop %v5808
      %v6123 = vrcp.pop %v5815
      %v6124 = vrcp.pop %v5822
      %v6125 = vrcp.pop %v5829
      %v6126 = vrcp.pop %v5836
      %v6127 = vrcp.pop %v5843
      %v6128 = vrcp.pop %v5850
      %v6129 = vrcp.pop %v5857
      %v6130 = vrcp.pop %v5864
      %v6131 = vrcp.pop %v5871
      %v6132 = vrcp.pop %v5878
      %v6133 = vrcp.pop %v5885
      %v6134 = vrcp.pop %v5892
      %v6135 = vrcp.pop %v5899
      %v6136 = vrcp.pop %v5906
      %v6137 = vrcp.pop %v5913
      %v6138 = vrcp.pop %v5920
      %v6139 = vrcp.pop %v5927
      %v6140 = vrcp.pop %v5934
      %v6141 = vrcp.pop %v5941
      %v6142 = vrcp.pop %v5948
      %v6143 = vrcp.pop %v5955
      %v6144 = vrcp.pop %v5962
      %v6145 = vrcp.pop %v5969
      %v6146 = vrcp.pop %v5976
      %v6147 = vrcp.pop %v5983
      %v6148 = vrcp.pop %v5990
      %v6149 = vrcp.pop %v5997
      %v6150 = vrcp.pop %v6004
      %v6151 = vrcp.pop %v6011
      %v6152 = vrcp.pop %v6018
      %v6153 = vrcp.pop %v6025
      %v6154 = vmul.f32 %v4875, %v6026
      %v6155 = vmul.f32 %v4877, %v6027
      %v6156 = vmul.f32 %v4879, %v6028
      %v6157 = vmul.f32 %v4881, %v6029
      %v6158 = vmul.f32 %v4883, %v6030
      %v6159 = vmul.f32 %v4885, %v6031
      %v6160 = vmul.f32 %v4887, %v6032
      %v6161 = vmul.f32 %v4889, %v6033
      %v6162 = vmul.f32 %v4891, %v6034
      %v6163 = vmul.f32 %v4893, %v6035
      %v6164 = vmul.f32 %v4895, %v6036
      %v6165 = vmul.f32 %v4897, %v6037
      %v6166 = vmul.f32 %v4899, %v6038
      %v6167 = vmul.f32 %v4901, %v6039
      %v6168 = vmul.f32 %v4903, %v6040
      %v6169 = vmul.f32 %v4905, %v6041
      %v6170 = vmul.f32 %v4907, %v6042
      %v6171 = vmul.f32 %v4909, %v6043
      %v6172 = vmul.f32 %v4911, %v6044
      %v6173 = vmul.f32 %v4913, %v6045
      %v6174 = vmul.f32 %v4915, %v6046
      %v6175 = vmul.f32 %v4917, %v6047
      %v6176 = vmul.f32 %v4919, %v6048
      %v6177 = vmul.f32 %v4921, %v6049
      %v6178 = vmul.f32 %v4923, %v6050
      %v6179 = vmul.f32 %v4925, %v6051
      %v6180 = vmul.f32 %v4927, %v6052
      %v6181 = vmul.f32 %v4929, %v6053
      %v6182 = vmul.f32 %v4931, %v6054
      %v6183 = vmul.f32 %v4933, %v6055
      %v6184 = vmul.f32 %v4935, %v6056
      %v6185 = vmul.f32 %v4937, %v6057
      %v6186 = vmul.f32 %v4939, %v6058
      %v6187 = vmul.f32 %v4941, %v6059
      %v6188 = vmul.f32 %v4943, %v6060
      %v6189 = vmul.f32 %v4945, %v6061
      %v6190 = vmul.f32 %v4947, %v6062
      %v6191 = vmul.f32 %v4949, %v6063
      %v6192 = vmul.f32 %v4951, %v6064
      %v6193 = vmul.f32 %v4953, %v6065
      %v6194 = vmul.f32 %v4955, %v6066
      %v6195 = vmul.f32 %v4957, %v6067
      %v6196 = vmul.f32 %v4959, %v6068
      %v6197 = vmul.f32 %v4961, %v6069
      %v6198 = vmul.f32 %v4963, %v6070
      %v6199 = vmul.f32 %v4965, %v6071
      %v6200 = vmul.f32 %v4967, %v6072
      %v6201 = vmul.f32 %v4969, %v6073
      %v6202 = vmul.f32 %v4971, %v6074
      %v6203 = vmul.f32 %v4973, %v6075
      %v6204 = vmul.f32 %v4975, %v6076
      %v6205 = vmul.f32 %v4977, %v6077
      %v6206 = vmul.f32 %v4979, %v6078
      %v6207 = vmul.f32 %v4981, %v6079
      %v6208 = vmul.f32 %v4983, %v6080
      %v6209 = vmul.f32 %v4985, %v6081
      %v6210 = vmul.f32 %v4987, %v6082
      %v6211 = vmul.f32 %v4989, %v6083
      %v6212 = vmul.f32 %v4991, %v6084
      %v6213 = vmul.f32 %v4993, %v6085
      %v6214 = vmul.f32 %v4995, %v6086
      %v6215 = vmul.f32 %v4997, %v6087
      %v6216 = vmul.f32 %v4999, %v6088
      %v6217 = vmul.f32 %v5001, %v6089
      %v6218 = vmul.f32 %v5003, %v6090
      %v6219 = vmul.f32 %v5005, %v6091
      %v6220 = vmul.f32 %v5007, %v6092
      %v6221 = vmul.f32 %v5009, %v6093
      %v6222 = vmul.f32 %v5011, %v6094
      %v6223 = vmul.f32 %v5013, %v6095
      %v6224 = vmul.f32 %v5015, %v6096
      %v6225 = vmul.f32 %v5017, %v6097
      %v6226 = vmul.f32 %v5019, %v6098
      %v6227 = vmul.f32 %v5021, %v6099
      %v6228 = vmul.f32 %v5023, %v6100
      %v6229 = vmul.f32 %v5025, %v6101
      %v6230 = vmul.f32 %v5027, %v6102
      %v6231 = vmul.f32 %v5029, %v6103
      %v6232 = vmul.f32 %v5031, %v6104
      %v6233 = vmul.f32 %v5033, %v6105
      %v6234 = vmul.f32 %v5035, %v6106
      %v6235 = vmul.f32 %v5037, %v6107
      %v6236 = vmul.f32 %v5039, %v6108
      %v6237 = vmul.f32 %v5041, %v6109
      %v6238 = vmul.f32 %v5043, %v6110
      %v6239 = vmul.f32 %v5045, %v6111
      %v6240 = vmul.f32 %v5047, %v6112
      %v6241 = vmul.f32 %v5049, %v6113
      %v6242 = vmul.f32 %v5051, %v6114
      %v6243 = vmul.f32 %v5053, %v6115
      %v6244 = vmul.f32 %v5055, %v6116
      %v6245 = vmul.f32 %v5057, %v6117
      %v6246 = vmul.f32 %v5059, %v6118
      %v6247 = vmul.f32 %v5061, %v6119
      %v6248 = vmul.f32 %v5063, %v6120
      %v6249 = vmul.f32 %v5065, %v6121
      %v6250 = vmul.f32 %v5067, %v6122
      %v6251 = vmul.f32 %v5069, %v6123
      %v6252 = vmul.f32 %v5071, %v6124
      %v6253 = vmul.f32 %v5073, %v6125
      %v6254 = vmul.f32 %v5075, %v6126
      %v6255 = vmul.f32 %v5077, %v6127
      %v6256 = vmul.f32 %v5079, %v6128
      %v6257 = vmul.f32 %v5081, %v6129
      %v6258 = vmul.f32 %v5083, %v6130
      %v6259 = vmul.f32 %v5085, %v6131
      %v6260 = vmul.f32 %v5087, %v6132
      %v6261 = vmul.f32 %v5089, %v6133
      %v6262 = vmul.f32 %v5091, %v6134
      %v6263 = vmul.f32 %v5093, %v6135
      %v6264 = vmul.f32 %v5095, %v6136
      %v6265 = vmul.f32 %v5097, %v6137
      %v6266 = vmul.f32 %v5099, %v6138
      %v6267 = vmul.f32 %v5101, %v6139
      %v6268 = vmul.f32 %v5103, %v6140
      %v6269 = vmul.f32 %v5105, %v6141
      %v6270 = vmul.f32 %v5107, %v6142
      %v6271 = vmul.f32 %v5109, %v6143
      %v6272 = vmul.f32 %v5111, %v6144
      %v6273 = vmul.f32 %v5113, %v6145
      %v6274 = vmul.f32 %v5115, %v6146
      %v6275 = vmul.f32 %v5117, %v6147
      %v6276 = vmul.f32 %v5119, %v6148
      %v6277 = vmul.f32 %v5121, %v6149
      %v6278 = vmul.f32 %v5123, %v6150
      %v6279 = vmul.f32 %v5125, %v6151
      %v6280 = vmul.f32 %v5127, %v6152
      %v6281 = vmul.f32 %v5129, %v6153
      %v6282 = vmul.f32 %v6154, %v3721
      %v6283 = vmul.f32 %v6155, %v3722
      %v6284 = vmul.f32 %v6156, %v3723
      %v6285 = vmul.f32 %v6157, %v3724
      %v6286 = vmul.f32 %v6158, %v3725
      %v6287 = vmul.f32 %v6159, %v3726
      %v6288 = vmul.f32 %v6160, %v3727
      %v6289 = vmul.f32 %v6161, %v3728
      %v6290 = vmul.f32 %v6162, %v3729
      %v6291 = vmul.f32 %v6163, %v3730
      %v6292 = vmul.f32 %v6164, %v3731
      %v6293 = vmul.f32 %v6165, %v3732
      %v6294 = vmul.f32 %v6166, %v3733
      %v6295 = vmul.f32 %v6167, %v3734
      %v6296 = vmul.f32 %v6168, %v3735
      %v6297 = vmul.f32 %v6169, %v3736
      %v6298 = vmul.f32 %v6170, %v3737
      %v6299 = vmul.f32 %v6171, %v3738
      %v6300 = vmul.f32 %v6172, %v3739
      %v6301 = vmul.f32 %v6173, %v3740
      %v6302 = vmul.f32 %v6174, %v3741
      %v6303 = vmul.f32 %v6175, %v3742
      %v6304 = vmul.f32 %v6176, %v3743
      %v6305 = vmul.f32 %v6177, %v3744
      %v6306 = vmul.f32 %v6178, %v3745
      %v6307 = vmul.f32 %v6179, %v3746
      %v6308 = vmul.f32 %v6180, %v3747
      %v6309 = vmul.f32 %v6181, %v3748
      %v6310 = vmul.f32 %v6182, %v3749
      %v6311 = vmul.f32 %v6183, %v3750
      %v6312 = vmul.f32 %v6184, %v3751
      %v6313 = vmul.f32 %v6185, %v3752
      %v6314 = vmul.f32 %v6186, %v3753
      %v6315 = vmul.f32 %v6187, %v3754
      %v6316 = vmul.f32 %v6188, %v3755
      %v6317 = vmul.f32 %v6189, %v3756
      %v6318 = vmul.f32 %v6190, %v3757
      %v6319 = vmul.f32 %v6191, %v3758
      %v6320 = vmul.f32 %v6192, %v3759
      %v6321 = vmul.f32 %v6193, %v3760
      %v6322 = vmul.f32 %v6194, %v3761
      %v6323 = vmul.f32 %v6195, %v3762
      %v6324 = vmul.f32 %v6196, %v3763
      %v6325 = vmul.f32 %v6197, %v3764
      %v6326 = vmul.f32 %v6198, %v3765
      %v6327 = vmul.f32 %v6199, %v3766
      %v6328 = vmul.f32 %v6200, %v3767
      %v6329 = vmul.f32 %v6201, %v3768
      %v6330 = vmul.f32 %v6202, %v3769
      %v6331 = vmul.f32 %v6203, %v3770
      %v6332 = vmul.f32 %v6204, %v3771
      %v6333 = vmul.f32 %v6205, %v3772
      %v6334 = vmul.f32 %v6206, %v3773
      %v6335 = vmul.f32 %v6207, %v3774
      %v6336 = vmul.f32 %v6208, %v3775
      %v6337 = vmul.f32 %v6209, %v3776
      %v6338 = vmul.f32 %v6210, %v3777
      %v6339 = vmul.f32 %v6211, %v3778
      %v6340 = vmul.f32 %v6212, %v3779
      %v6341 = vmul.f32 %v6213, %v3780
      %v6342 = vmul.f32 %v6214, %v3781
      %v6343 = vmul.f32 %v6215, %v3782
      %v6344 = vmul.f32 %v6216, %v3783
      %v6345 = vmul.f32 %v6217, %v3784
      %v6346 = vmul.f32 %v6218, %v3785
      %v6347 = vmul.f32 %v6219, %v3786
      %v6348 = vmul.f32 %v6220, %v3787
      %v6349 = vmul.f32 %v6221, %v3788
      %v6350 = vmul.f32 %v6222, %v3789
      %v6351 = vmul.f32 %v6223, %v3790
      %v6352 = vmul.f32 %v6224, %v3791
      %v6353 = vmul.f32 %v6225, %v3792
      %v6354 = vmul.f32 %v6226, %v3793
      %v6355 = vmul.f32 %v6227, %v3794
      %v6356 = vmul.f32 %v6228, %v3795
      %v6357 = vmul.f32 %v6229, %v3796
      %v6358 = vmul.f32 %v6230, %v3797
      %v6359 = vmul.f32 %v6231, %v3798
      %v6360 = vmul.f32 %v6232, %v3799
      %v6361 = vmul.f32 %v6233, %v3800
      %v6362 = vmul.f32 %v6234, %v3801
      %v6363 = vmul.f32 %v6235, %v3802
      %v6364 = vmul.f32 %v6236, %v3803
      %v6365 = vmul.f32 %v6237, %v3804
      %v6366 = vmul.f32 %v6238, %v3805
      %v6367 = vmul.f32 %v6239, %v3806
      %v6368 = vmul.f32 %v6240, %v3807
      %v6369 = vmul.f32 %v6241, %v3808
      %v6370 = vmul.f32 %v6242, %v3809
      %v6371 = vmul.f32 %v6243, %v3810
      %v6372 = vmul.f32 %v6244, %v3811
      %v6373 = vmul.f32 %v6245, %v3812
      %v6374 = vmul.f32 %v6246, %v3813
      %v6375 = vmul.f32 %v6247, %v3814
      %v6376 = vmul.f32 %v6248, %v3815
      %v6377 = vmul.f32 %v6249, %v3816
      %v6378 = vmul.f32 %v6250, %v3817
      %v6379 = vmul.f32 %v6251, %v3818
      %v6380 = vmul.f32 %v6252, %v3819
      %v6381 = vmul.f32 %v6253, %v3820
      %v6382 = vmul.f32 %v6254, %v3821
      %v6383 = vmul.f32 %v6255, %v3822
      %v6384 = vmul.f32 %v6256, %v3823
      %v6385 = vmul.f32 %v6257, %v3824
      %v6386 = vmul.f32 %v6258, %v3825
      %v6387 = vmul.f32 %v6259, %v3826
      %v6388 = vmul.f32 %v6260, %v3827
      %v6389 = vmul.f32 %v6261, %v3828
      %v6390 = vmul.f32 %v6262, %v3829
      %v6391 = vmul.f32 %v6263, %v3830
      %v6392 = vmul.f32 %v6264, %v3831
      %v6393 = vmul.f32 %v6265, %v3832
      %v6394 = vmul.f32 %v6266, %v3833
      %v6395 = vmul.f32 %v6267, %v3834
      %v6396 = vmul.f32 %v6268, %v3835
      %v6397 = vmul.f32 %v6269, %v3836
      %v6398 = vmul.f32 %v6270, %v3837
      %v6399 = vmul.f32 %v6271, %v3838
      %v6400 = vmul.f32 %v6272, %v3839
      %v6401 = vmul.f32 %v6273, %v3840
      %v6402 = vmul.f32 %v6274, %v3841
      %v6403 = vmul.f32 %v6275, %v3842
      %v6404 = vmul.f32 %v6276, %v3843
      %v6405 = vmul.f32 %v6277, %v3844
      %v6406 = vmul.f32 %v6278, %v3845
      %v6407 = vmul.f32 %v6279, %v3846
      %v6408 = vmul.f32 %v6280, %v3847
      %v6409 = vmul.f32 %v6281, %v3848
      %v6410 = vsel %vm3849, %v6282, 0.0
      %v6411 = vrot.slane %v6410, 4
      %v6412 = vadd.f32 %v6410, %v6411
      %v6413 = vrot.slane %v6412, 2
      %v6414 = vadd.f32 %v6412, %v6413
      %v6415 = vrot.slane %v6414, 1
      %v6416 = vadd.f32 %v6414, %v6415
      %v6417 = vsel %vm3849, %v6283, 0.0
      %v6418 = vrot.slane %v6417, 4
      %v6419 = vadd.f32 %v6417, %v6418
      %v6420 = vrot.slane %v6419, 2
      %v6421 = vadd.f32 %v6419, %v6420
      %v6422 = vrot.slane %v6421, 1
      %v6423 = vadd.f32 %v6421, %v6422
      %v6424 = vsel %vm3849, %v6284, 0.0
      %v6425 = vrot.slane %v6424, 4
      %v6426 = vadd.f32 %v6424, %v6425
      %v6427 = vrot.slane %v6426, 2
      %v6428 = vadd.f32 %v6426, %v6427
      %v6429 = vrot.slane %v6428, 1
      %v6430 = vadd.f32 %v6428, %v6429
      %v6431 = vsel %vm3849, %v6285, 0.0
      %v6432 = vrot.slane %v6431, 4
      %v6433 = vadd.f32 %v6431, %v6432
      %v6434 = vrot.slane %v6433, 2
      %v6435 = vadd.f32 %v6433, %v6434
      %v6436 = vrot.slane %v6435, 1
      %v6437 = vadd.f32 %v6435, %v6436
      %v6438 = vsel %vm3849, %v6286, 0.0
      %v6439 = vrot.slane %v6438, 4
      %v6440 = vadd.f32 %v6438, %v6439
      %v6441 = vrot.slane %v6440, 2
      %v6442 = vadd.f32 %v6440, %v6441
      %v6443 = vrot.slane %v6442, 1
      %v6444 = vadd.f32 %v6442, %v6443
      %v6445 = vsel %vm3849, %v6287, 0.0
      %v6446 = vrot.slane %v6445, 4
      %v6447 = vadd.f32 %v6445, %v6446
      %v6448 = vrot.slane %v6447, 2
      %v6449 = vadd.f32 %v6447, %v6448
      %v6450 = vrot.slane %v6449, 1
      %v6451 = vadd.f32 %v6449, %v6450
      %v6452 = vsel %vm3849, %v6288, 0.0
      %v6453 = vrot.slane %v6452, 4
      %v6454 = vadd.f32 %v6452, %v6453
      %v6455 = vrot.slane %v6454, 2
      %v6456 = vadd.f32 %v6454, %v6455
      %v6457 = vrot.slane %v6456, 1
      %v6458 = vadd.f32 %v6456, %v6457
      %v6459 = vsel %vm3849, %v6289, 0.0
      %v6460 = vrot.slane %v6459, 4
      %v6461 = vadd.f32 %v6459, %v6460
      %v6462 = vrot.slane %v6461, 2
      %v6463 = vadd.f32 %v6461, %v6462
      %v6464 = vrot.slane %v6463, 1
      %v6465 = vadd.f32 %v6463, %v6464
      %v6466 = vsel %vm3849, %v6290, 0.0
      %v6467 = vrot.slane %v6466, 4
      %v6468 = vadd.f32 %v6466, %v6467
      %v6469 = vrot.slane %v6468, 2
      %v6470 = vadd.f32 %v6468, %v6469
      %v6471 = vrot.slane %v6470, 1
      %v6472 = vadd.f32 %v6470, %v6471
      %v6473 = vsel %vm3849, %v6291, 0.0
      %v6474 = vrot.slane %v6473, 4
      %v6475 = vadd.f32 %v6473, %v6474
      %v6476 = vrot.slane %v6475, 2
      %v6477 = vadd.f32 %v6475, %v6476
      %v6478 = vrot.slane %v6477, 1
      %v6479 = vadd.f32 %v6477, %v6478
      %v6480 = vsel %vm3849, %v6292, 0.0
      %v6481 = vrot.slane %v6480, 4
      %v6482 = vadd.f32 %v6480, %v6481
      %v6483 = vrot.slane %v6482, 2
      %v6484 = vadd.f32 %v6482, %v6483
      %v6485 = vrot.slane %v6484, 1
      %v6486 = vadd.f32 %v6484, %v6485
      %v6487 = vsel %vm3849, %v6293, 0.0
      %v6488 = vrot.slane %v6487, 4
      %v6489 = vadd.f32 %v6487, %v6488
      %v6490 = vrot.slane %v6489, 2
      %v6491 = vadd.f32 %v6489, %v6490
      %v6492 = vrot.slane %v6491, 1
      %v6493 = vadd.f32 %v6491, %v6492
      %v6494 = vsel %vm3849, %v6294, 0.0
      %v6495 = vrot.slane %v6494, 4
      %v6496 = vadd.f32 %v6494, %v6495
      %v6497 = vrot.slane %v6496, 2
      %v6498 = vadd.f32 %v6496, %v6497
      %v6499 = vrot.slane %v6498, 1
      %v6500 = vadd.f32 %v6498, %v6499
      %v6501 = vsel %vm3849, %v6295, 0.0
      %v6502 = vrot.slane %v6501, 4
      %v6503 = vadd.f32 %v6501, %v6502
      %v6504 = vrot.slane %v6503, 2
      %v6505 = vadd.f32 %v6503, %v6504
      %v6506 = vrot.slane %v6505, 1
      %v6507 = vadd.f32 %v6505, %v6506
      %v6508 = vsel %vm3849, %v6296, 0.0
      %v6509 = vrot.slane %v6508, 4
      %v6510 = vadd.f32 %v6508, %v6509
      %v6511 = vrot.slane %v6510, 2
      %v6512 = vadd.f32 %v6510, %v6511
      %v6513 = vrot.slane %v6512, 1
      %v6514 = vadd.f32 %v6512, %v6513
      %v6515 = vsel %vm3849, %v6297, 0.0
      %v6516 = vrot.slane %v6515, 4
      %v6517 = vadd.f32 %v6515, %v6516
      %v6518 = vrot.slane %v6517, 2
      %v6519 = vadd.f32 %v6517, %v6518
      %v6520 = vrot.slane %v6519, 1
      %v6521 = vadd.f32 %v6519, %v6520
      %v6522 = vsel %vm3849, %v6298, 0.0
      %v6523 = vrot.slane %v6522, 4
      %v6524 = vadd.f32 %v6522, %v6523
      %v6525 = vrot.slane %v6524, 2
      %v6526 = vadd.f32 %v6524, %v6525
      %v6527 = vrot.slane %v6526, 1
      %v6528 = vadd.f32 %v6526, %v6527
      %v6529 = vsel %vm3849, %v6299, 0.0
      %v6530 = vrot.slane %v6529, 4
      %v6531 = vadd.f32 %v6529, %v6530
      %v6532 = vrot.slane %v6531, 2
      %v6533 = vadd.f32 %v6531, %v6532
      %v6534 = vrot.slane %v6533, 1
      %v6535 = vadd.f32 %v6533, %v6534
      %v6536 = vsel %vm3849, %v6300, 0.0
      %v6537 = vrot.slane %v6536, 4
      %v6538 = vadd.f32 %v6536, %v6537
      %v6539 = vrot.slane %v6538, 2
      %v6540 = vadd.f32 %v6538, %v6539
      %v6541 = vrot.slane %v6540, 1
      %v6542 = vadd.f32 %v6540, %v6541
      %v6543 = vsel %vm3849, %v6301, 0.0
      %v6544 = vrot.slane %v6543, 4
      %v6545 = vadd.f32 %v6543, %v6544
      %v6546 = vrot.slane %v6545, 2
      %v6547 = vadd.f32 %v6545, %v6546
      %v6548 = vrot.slane %v6547, 1
      %v6549 = vadd.f32 %v6547, %v6548
      %v6550 = vsel %vm3849, %v6302, 0.0
      %v6551 = vrot.slane %v6550, 4
      %v6552 = vadd.f32 %v6550, %v6551
      %v6553 = vrot.slane %v6552, 2
      %v6554 = vadd.f32 %v6552, %v6553
      %v6555 = vrot.slane %v6554, 1
      %v6556 = vadd.f32 %v6554, %v6555
      %v6557 = vsel %vm3849, %v6303, 0.0
      %v6558 = vrot.slane %v6557, 4
      %v6559 = vadd.f32 %v6557, %v6558
      %v6560 = vrot.slane %v6559, 2
      %v6561 = vadd.f32 %v6559, %v6560
      %v6562 = vrot.slane %v6561, 1
      %v6563 = vadd.f32 %v6561, %v6562
      %v6564 = vsel %vm3849, %v6304, 0.0
      %v6565 = vrot.slane %v6564, 4
      %v6566 = vadd.f32 %v6564, %v6565
      %v6567 = vrot.slane %v6566, 2
      %v6568 = vadd.f32 %v6566, %v6567
      %v6569 = vrot.slane %v6568, 1
      %v6570 = vadd.f32 %v6568, %v6569
      %v6571 = vsel %vm3849, %v6305, 0.0
      %v6572 = vrot.slane %v6571, 4
      %v6573 = vadd.f32 %v6571, %v6572
      %v6574 = vrot.slane %v6573, 2
      %v6575 = vadd.f32 %v6573, %v6574
      %v6576 = vrot.slane %v6575, 1
      %v6577 = vadd.f32 %v6575, %v6576
      %v6578 = vsel %vm3849, %v6306, 0.0
      %v6579 = vrot.slane %v6578, 4
      %v6580 = vadd.f32 %v6578, %v6579
      %v6581 = vrot.slane %v6580, 2
      %v6582 = vadd.f32 %v6580, %v6581
      %v6583 = vrot.slane %v6582, 1
      %v6584 = vadd.f32 %v6582, %v6583
      %v6585 = vsel %vm3849, %v6307, 0.0
      %v6586 = vrot.slane %v6585, 4
      %v6587 = vadd.f32 %v6585, %v6586
      %v6588 = vrot.slane %v6587, 2
      %v6589 = vadd.f32 %v6587, %v6588
      %v6590 = vrot.slane %v6589, 1
      %v6591 = vadd.f32 %v6589, %v6590
      %v6592 = vsel %vm3849, %v6308, 0.0
      %v6593 = vrot.slane %v6592, 4
      %v6594 = vadd.f32 %v6592, %v6593
      %v6595 = vrot.slane %v6594, 2
      %v6596 = vadd.f32 %v6594, %v6595
      %v6597 = vrot.slane %v6596, 1
      %v6598 = vadd.f32 %v6596, %v6597
      %v6599 = vsel %vm3849, %v6309, 0.0
      %v6600 = vrot.slane %v6599, 4
      %v6601 = vadd.f32 %v6599, %v6600
      %v6602 = vrot.slane %v6601, 2
      %v6603 = vadd.f32 %v6601, %v6602
      %v6604 = vrot.slane %v6603, 1
      %v6605 = vadd.f32 %v6603, %v6604
      %v6606 = vsel %vm3849, %v6310, 0.0
      %v6607 = vrot.slane %v6606, 4
      %v6608 = vadd.f32 %v6606, %v6607
      %v6609 = vrot.slane %v6608, 2
      %v6610 = vadd.f32 %v6608, %v6609
      %v6611 = vrot.slane %v6610, 1
      %v6612 = vadd.f32 %v6610, %v6611
      %v6613 = vsel %vm3849, %v6311, 0.0
      %v6614 = vrot.slane %v6613, 4
      %v6615 = vadd.f32 %v6613, %v6614
      %v6616 = vrot.slane %v6615, 2
      %v6617 = vadd.f32 %v6615, %v6616
      %v6618 = vrot.slane %v6617, 1
      %v6619 = vadd.f32 %v6617, %v6618
      %v6620 = vsel %vm3849, %v6312, 0.0
      %v6621 = vrot.slane %v6620, 4
      %v6622 = vadd.f32 %v6620, %v6621
      %v6623 = vrot.slane %v6622, 2
      %v6624 = vadd.f32 %v6622, %v6623
      %v6625 = vrot.slane %v6624, 1
      %v6626 = vadd.f32 %v6624, %v6625
      %v6627 = vsel %vm3849, %v6313, 0.0
      %v6628 = vrot.slane %v6627, 4
      %v6629 = vadd.f32 %v6627, %v6628
      %v6630 = vrot.slane %v6629, 2
      %v6631 = vadd.f32 %v6629, %v6630
      %v6632 = vrot.slane %v6631, 1
      %v6633 = vadd.f32 %v6631, %v6632
      %v6634 = vsel %vm3849, %v6314, 0.0
      %v6635 = vrot.slane %v6634, 4
      %v6636 = vadd.f32 %v6634, %v6635
      %v6637 = vrot.slane %v6636, 2
      %v6638 = vadd.f32 %v6636, %v6637
      %v6639 = vrot.slane %v6638, 1
      %v6640 = vadd.f32 %v6638, %v6639
      %v6641 = vsel %vm3849, %v6315, 0.0
      %v6642 = vrot.slane %v6641, 4
      %v6643 = vadd.f32 %v6641, %v6642
      %v6644 = vrot.slane %v6643, 2
      %v6645 = vadd.f32 %v6643, %v6644
      %v6646 = vrot.slane %v6645, 1
      %v6647 = vadd.f32 %v6645, %v6646
      %v6648 = vsel %vm3849, %v6316, 0.0
      %v6649 = vrot.slane %v6648, 4
      %v6650 = vadd.f32 %v6648, %v6649
      %v6651 = vrot.slane %v6650, 2
      %v6652 = vadd.f32 %v6650, %v6651
      %v6653 = vrot.slane %v6652, 1
      %v6654 = vadd.f32 %v6652, %v6653
      %v6655 = vsel %vm3849, %v6317, 0.0
      %v6656 = vrot.slane %v6655, 4
      %v6657 = vadd.f32 %v6655, %v6656
      %v6658 = vrot.slane %v6657, 2
      %v6659 = vadd.f32 %v6657, %v6658
      %v6660 = vrot.slane %v6659, 1
      %v6661 = vadd.f32 %v6659, %v6660
      %v6662 = vsel %vm3849, %v6318, 0.0
      %v6663 = vrot.slane %v6662, 4
      %v6664 = vadd.f32 %v6662, %v6663
      %v6665 = vrot.slane %v6664, 2
      %v6666 = vadd.f32 %v6664, %v6665
      %v6667 = vrot.slane %v6666, 1
      %v6668 = vadd.f32 %v6666, %v6667
      %v6669 = vsel %vm3849, %v6319, 0.0
      %v6670 = vrot.slane %v6669, 4
      %v6671 = vadd.f32 %v6669, %v6670
      %v6672 = vrot.slane %v6671, 2
      %v6673 = vadd.f32 %v6671, %v6672
      %v6674 = vrot.slane %v6673, 1
      %v6675 = vadd.f32 %v6673, %v6674
      %v6676 = vsel %vm3849, %v6320, 0.0
      %v6677 = vrot.slane %v6676, 4
      %v6678 = vadd.f32 %v6676, %v6677
      %v6679 = vrot.slane %v6678, 2
      %v6680 = vadd.f32 %v6678, %v6679
      %v6681 = vrot.slane %v6680, 1
      %v6682 = vadd.f32 %v6680, %v6681
      %v6683 = vsel %vm3849, %v6321, 0.0
      %v6684 = vrot.slane %v6683, 4
      %v6685 = vadd.f32 %v6683, %v6684
      %v6686 = vrot.slane %v6685, 2
      %v6687 = vadd.f32 %v6685, %v6686
      %v6688 = vrot.slane %v6687, 1
      %v6689 = vadd.f32 %v6687, %v6688
      %v6690 = vsel %vm3849, %v6322, 0.0
      %v6691 = vrot.slane %v6690, 4
      %v6692 = vadd.f32 %v6690, %v6691
      %v6693 = vrot.slane %v6692, 2
      %v6694 = vadd.f32 %v6692, %v6693
      %v6695 = vrot.slane %v6694, 1
      %v6696 = vadd.f32 %v6694, %v6695
      %v6697 = vsel %vm3849, %v6323, 0.0
      %v6698 = vrot.slane %v6697, 4
      %v6699 = vadd.f32 %v6697, %v6698
      %v6700 = vrot.slane %v6699, 2
      %v6701 = vadd.f32 %v6699, %v6700
      %v6702 = vrot.slane %v6701, 1
      %v6703 = vadd.f32 %v6701, %v6702
      %v6704 = vsel %vm3849, %v6324, 0.0
      %v6705 = vrot.slane %v6704, 4
      %v6706 = vadd.f32 %v6704, %v6705
      %v6707 = vrot.slane %v6706, 2
      %v6708 = vadd.f32 %v6706, %v6707
      %v6709 = vrot.slane %v6708, 1
      %v6710 = vadd.f32 %v6708, %v6709
      %v6711 = vsel %vm3849, %v6325, 0.0
      %v6712 = vrot.slane %v6711, 4
      %v6713 = vadd.f32 %v6711, %v6712
      %v6714 = vrot.slane %v6713, 2
      %v6715 = vadd.f32 %v6713, %v6714
      %v6716 = vrot.slane %v6715, 1
      %v6717 = vadd.f32 %v6715, %v6716
      %v6718 = vsel %vm3849, %v6326, 0.0
      %v6719 = vrot.slane %v6718, 4
      %v6720 = vadd.f32 %v6718, %v6719
      %v6721 = vrot.slane %v6720, 2
      %v6722 = vadd.f32 %v6720, %v6721
      %v6723 = vrot.slane %v6722, 1
      %v6724 = vadd.f32 %v6722, %v6723
      %v6725 = vsel %vm3849, %v6327, 0.0
      %v6726 = vrot.slane %v6725, 4
      %v6727 = vadd.f32 %v6725, %v6726
      %v6728 = vrot.slane %v6727, 2
      %v6729 = vadd.f32 %v6727, %v6728
      %v6730 = vrot.slane %v6729, 1
      %v6731 = vadd.f32 %v6729, %v6730
      %v6732 = vsel %vm3849, %v6328, 0.0
      %v6733 = vrot.slane %v6732, 4
      %v6734 = vadd.f32 %v6732, %v6733
      %v6735 = vrot.slane %v6734, 2
      %v6736 = vadd.f32 %v6734, %v6735
      %v6737 = vrot.slane %v6736, 1
      %v6738 = vadd.f32 %v6736, %v6737
      %v6739 = vsel %vm3849, %v6329, 0.0
      %v6740 = vrot.slane %v6739, 4
      %v6741 = vadd.f32 %v6739, %v6740
      %v6742 = vrot.slane %v6741, 2
      %v6743 = vadd.f32 %v6741, %v6742
      %v6744 = vrot.slane %v6743, 1
      %v6745 = vadd.f32 %v6743, %v6744
      %v6746 = vsel %vm3849, %v6330, 0.0
      %v6747 = vrot.slane %v6746, 4
      %v6748 = vadd.f32 %v6746, %v6747
      %v6749 = vrot.slane %v6748, 2
      %v6750 = vadd.f32 %v6748, %v6749
      %v6751 = vrot.slane %v6750, 1
      %v6752 = vadd.f32 %v6750, %v6751
      %v6753 = vsel %vm3849, %v6331, 0.0
      %v6754 = vrot.slane %v6753, 4
      %v6755 = vadd.f32 %v6753, %v6754
      %v6756 = vrot.slane %v6755, 2
      %v6757 = vadd.f32 %v6755, %v6756
      %v6758 = vrot.slane %v6757, 1
      %v6759 = vadd.f32 %v6757, %v6758
      %v6760 = vsel %vm3849, %v6332, 0.0
      %v6761 = vrot.slane %v6760, 4
      %v6762 = vadd.f32 %v6760, %v6761
      %v6763 = vrot.slane %v6762, 2
      %v6764 = vadd.f32 %v6762, %v6763
      %v6765 = vrot.slane %v6764, 1
      %v6766 = vadd.f32 %v6764, %v6765
      %v6767 = vsel %vm3849, %v6333, 0.0
      %v6768 = vrot.slane %v6767, 4
      %v6769 = vadd.f32 %v6767, %v6768
      %v6770 = vrot.slane %v6769, 2
      %v6771 = vadd.f32 %v6769, %v6770
      %v6772 = vrot.slane %v6771, 1
      %v6773 = vadd.f32 %v6771, %v6772
      %v6774 = vsel %vm3849, %v6334, 0.0
      %v6775 = vrot.slane %v6774, 4
      %v6776 = vadd.f32 %v6774, %v6775
      %v6777 = vrot.slane %v6776, 2
      %v6778 = vadd.f32 %v6776, %v6777
      %v6779 = vrot.slane %v6778, 1
      %v6780 = vadd.f32 %v6778, %v6779
      %v6781 = vsel %vm3849, %v6335, 0.0
      %v6782 = vrot.slane %v6781, 4
      %v6783 = vadd.f32 %v6781, %v6782
      %v6784 = vrot.slane %v6783, 2
      %v6785 = vadd.f32 %v6783, %v6784
      %v6786 = vrot.slane %v6785, 1
      %v6787 = vadd.f32 %v6785, %v6786
      %v6788 = vsel %vm3849, %v6336, 0.0
      %v6789 = vrot.slane %v6788, 4
      %v6790 = vadd.f32 %v6788, %v6789
      %v6791 = vrot.slane %v6790, 2
      %v6792 = vadd.f32 %v6790, %v6791
      %v6793 = vrot.slane %v6792, 1
      %v6794 = vadd.f32 %v6792, %v6793
      %v6795 = vsel %vm3849, %v6337, 0.0
      %v6796 = vrot.slane %v6795, 4
      %v6797 = vadd.f32 %v6795, %v6796
      %v6798 = vrot.slane %v6797, 2
      %v6799 = vadd.f32 %v6797, %v6798
      %v6800 = vrot.slane %v6799, 1
      %v6801 = vadd.f32 %v6799, %v6800
      %v6802 = vsel %vm3849, %v6338, 0.0
      %v6803 = vrot.slane %v6802, 4
      %v6804 = vadd.f32 %v6802, %v6803
      %v6805 = vrot.slane %v6804, 2
      %v6806 = vadd.f32 %v6804, %v6805
      %v6807 = vrot.slane %v6806, 1
      %v6808 = vadd.f32 %v6806, %v6807
      %v6809 = vsel %vm3849, %v6339, 0.0
      %v6810 = vrot.slane %v6809, 4
      %v6811 = vadd.f32 %v6809, %v6810
      %v6812 = vrot.slane %v6811, 2
      %v6813 = vadd.f32 %v6811, %v6812
      %v6814 = vrot.slane %v6813, 1
      %v6815 = vadd.f32 %v6813, %v6814
      %v6816 = vsel %vm3849, %v6340, 0.0
      %v6817 = vrot.slane %v6816, 4
      %v6818 = vadd.f32 %v6816, %v6817
      %v6819 = vrot.slane %v6818, 2
      %v6820 = vadd.f32 %v6818, %v6819
      %v6821 = vrot.slane %v6820, 1
      %v6822 = vadd.f32 %v6820, %v6821
      %v6823 = vsel %vm3849, %v6341, 0.0
      %v6824 = vrot.slane %v6823, 4
      %v6825 = vadd.f32 %v6823, %v6824
      %v6826 = vrot.slane %v6825, 2
      %v6827 = vadd.f32 %v6825, %v6826
      %v6828 = vrot.slane %v6827, 1
      %v6829 = vadd.f32 %v6827, %v6828
      %v6830 = vsel %vm3849, %v6342, 0.0
      %v6831 = vrot.slane %v6830, 4
      %v6832 = vadd.f32 %v6830, %v6831
      %v6833 = vrot.slane %v6832, 2
      %v6834 = vadd.f32 %v6832, %v6833
      %v6835 = vrot.slane %v6834, 1
      %v6836 = vadd.f32 %v6834, %v6835
      %v6837 = vsel %vm3849, %v6343, 0.0
      %v6838 = vrot.slane %v6837, 4
      %v6839 = vadd.f32 %v6837, %v6838
      %v6840 = vrot.slane %v6839, 2
      %v6841 = vadd.f32 %v6839, %v6840
      %v6842 = vrot.slane %v6841, 1
      %v6843 = vadd.f32 %v6841, %v6842
      %v6844 = vsel %vm3849, %v6344, 0.0
      %v6845 = vrot.slane %v6844, 4
      %v6846 = vadd.f32 %v6844, %v6845
      %v6847 = vrot.slane %v6846, 2
      %v6848 = vadd.f32 %v6846, %v6847
      %v6849 = vrot.slane %v6848, 1
      %v6850 = vadd.f32 %v6848, %v6849
      %v6851 = vsel %vm3849, %v6345, 0.0
      %v6852 = vrot.slane %v6851, 4
      %v6853 = vadd.f32 %v6851, %v6852
      %v6854 = vrot.slane %v6853, 2
      %v6855 = vadd.f32 %v6853, %v6854
      %v6856 = vrot.slane %v6855, 1
      %v6857 = vadd.f32 %v6855, %v6856
      %v6858 = vsel %vm3849, %v6346, 0.0
      %v6859 = vrot.slane %v6858, 4
      %v6860 = vadd.f32 %v6858, %v6859
      %v6861 = vrot.slane %v6860, 2
      %v6862 = vadd.f32 %v6860, %v6861
      %v6863 = vrot.slane %v6862, 1
      %v6864 = vadd.f32 %v6862, %v6863
      %v6865 = vsel %vm3849, %v6347, 0.0
      %v6866 = vrot.slane %v6865, 4
      %v6867 = vadd.f32 %v6865, %v6866
      %v6868 = vrot.slane %v6867, 2
      %v6869 = vadd.f32 %v6867, %v6868
      %v6870 = vrot.slane %v6869, 1
      %v6871 = vadd.f32 %v6869, %v6870
      %v6872 = vsel %vm3849, %v6348, 0.0
      %v6873 = vrot.slane %v6872, 4
      %v6874 = vadd.f32 %v6872, %v6873
      %v6875 = vrot.slane %v6874, 2
      %v6876 = vadd.f32 %v6874, %v6875
      %v6877 = vrot.slane %v6876, 1
      %v6878 = vadd.f32 %v6876, %v6877
      %v6879 = vsel %vm3849, %v6349, 0.0
      %v6880 = vrot.slane %v6879, 4
      %v6881 = vadd.f32 %v6879, %v6880
      %v6882 = vrot.slane %v6881, 2
      %v6883 = vadd.f32 %v6881, %v6882
      %v6884 = vrot.slane %v6883, 1
      %v6885 = vadd.f32 %v6883, %v6884
      %v6886 = vsel %vm3849, %v6350, 0.0
      %v6887 = vrot.slane %v6886, 4
      %v6888 = vadd.f32 %v6886, %v6887
      %v6889 = vrot.slane %v6888, 2
      %v6890 = vadd.f32 %v6888, %v6889
      %v6891 = vrot.slane %v6890, 1
      %v6892 = vadd.f32 %v6890, %v6891
      %v6893 = vsel %vm3849, %v6351, 0.0
      %v6894 = vrot.slane %v6893, 4
      %v6895 = vadd.f32 %v6893, %v6894
      %v6896 = vrot.slane %v6895, 2
      %v6897 = vadd.f32 %v6895, %v6896
      %v6898 = vrot.slane %v6897, 1
      %v6899 = vadd.f32 %v6897, %v6898
      %v6900 = vsel %vm3849, %v6352, 0.0
      %v6901 = vrot.slane %v6900, 4
      %v6902 = vadd.f32 %v6900, %v6901
      %v6903 = vrot.slane %v6902, 2
      %v6904 = vadd.f32 %v6902, %v6903
      %v6905 = vrot.slane %v6904, 1
      %v6906 = vadd.f32 %v6904, %v6905
      %v6907 = vsel %vm3849, %v6353, 0.0
      %v6908 = vrot.slane %v6907, 4
      %v6909 = vadd.f32 %v6907, %v6908
      %v6910 = vrot.slane %v6909, 2
      %v6911 = vadd.f32 %v6909, %v6910
      %v6912 = vrot.slane %v6911, 1
      %v6913 = vadd.f32 %v6911, %v6912
      %v6914 = vsel %vm3849, %v6354, 0.0
      %v6915 = vrot.slane %v6914, 4
      %v6916 = vadd.f32 %v6914, %v6915
      %v6917 = vrot.slane %v6916, 2
      %v6918 = vadd.f32 %v6916, %v6917
      %v6919 = vrot.slane %v6918, 1
      %v6920 = vadd.f32 %v6918, %v6919
      %v6921 = vsel %vm3849, %v6355, 0.0
      %v6922 = vrot.slane %v6921, 4
      %v6923 = vadd.f32 %v6921, %v6922
      %v6924 = vrot.slane %v6923, 2
      %v6925 = vadd.f32 %v6923, %v6924
      %v6926 = vrot.slane %v6925, 1
      %v6927 = vadd.f32 %v6925, %v6926
      %v6928 = vsel %vm3849, %v6356, 0.0
      %v6929 = vrot.slane %v6928, 4
      %v6930 = vadd.f32 %v6928, %v6929
      %v6931 = vrot.slane %v6930, 2
      %v6932 = vadd.f32 %v6930, %v6931
      %v6933 = vrot.slane %v6932, 1
      %v6934 = vadd.f32 %v6932, %v6933
      %v6935 = vsel %vm3849, %v6357, 0.0
      %v6936 = vrot.slane %v6935, 4
      %v6937 = vadd.f32 %v6935, %v6936
      %v6938 = vrot.slane %v6937, 2
      %v6939 = vadd.f32 %v6937, %v6938
      %v6940 = vrot.slane %v6939, 1
      %v6941 = vadd.f32 %v6939, %v6940
      %v6942 = vsel %vm3849, %v6358, 0.0
      %v6943 = vrot.slane %v6942, 4
      %v6944 = vadd.f32 %v6942, %v6943
      %v6945 = vrot.slane %v6944, 2
      %v6946 = vadd.f32 %v6944, %v6945
      %v6947 = vrot.slane %v6946, 1
      %v6948 = vadd.f32 %v6946, %v6947
      %v6949 = vsel %vm3849, %v6359, 0.0
      %v6950 = vrot.slane %v6949, 4
      %v6951 = vadd.f32 %v6949, %v6950
      %v6952 = vrot.slane %v6951, 2
      %v6953 = vadd.f32 %v6951, %v6952
      %v6954 = vrot.slane %v6953, 1
      %v6955 = vadd.f32 %v6953, %v6954
      %v6956 = vsel %vm3849, %v6360, 0.0
      %v6957 = vrot.slane %v6956, 4
      %v6958 = vadd.f32 %v6956, %v6957
      %v6959 = vrot.slane %v6958, 2
      %v6960 = vadd.f32 %v6958, %v6959
      %v6961 = vrot.slane %v6960, 1
      %v6962 = vadd.f32 %v6960, %v6961
      %v6963 = vsel %vm3849, %v6361, 0.0
      %v6964 = vrot.slane %v6963, 4
      %v6965 = vadd.f32 %v6963, %v6964
      %v6966 = vrot.slane %v6965, 2
      %v6967 = vadd.f32 %v6965, %v6966
      %v6968 = vrot.slane %v6967, 1
      %v6969 = vadd.f32 %v6967, %v6968
      %v6970 = vsel %vm3849, %v6362, 0.0
      %v6971 = vrot.slane %v6970, 4
      %v6972 = vadd.f32 %v6970, %v6971
      %v6973 = vrot.slane %v6972, 2
      %v6974 = vadd.f32 %v6972, %v6973
      %v6975 = vrot.slane %v6974, 1
      %v6976 = vadd.f32 %v6974, %v6975
      %v6977 = vsel %vm3849, %v6363, 0.0
      %v6978 = vrot.slane %v6977, 4
      %v6979 = vadd.f32 %v6977, %v6978
      %v6980 = vrot.slane %v6979, 2
      %v6981 = vadd.f32 %v6979, %v6980
      %v6982 = vrot.slane %v6981, 1
      %v6983 = vadd.f32 %v6981, %v6982
      %v6984 = vsel %vm3849, %v6364, 0.0
      %v6985 = vrot.slane %v6984, 4
      %v6986 = vadd.f32 %v6984, %v6985
      %v6987 = vrot.slane %v6986, 2
      %v6988 = vadd.f32 %v6986, %v6987
      %v6989 = vrot.slane %v6988, 1
      %v6990 = vadd.f32 %v6988, %v6989
      %v6991 = vsel %vm3849, %v6365, 0.0
      %v6992 = vrot.slane %v6991, 4
      %v6993 = vadd.f32 %v6991, %v6992
      %v6994 = vrot.slane %v6993, 2
      %v6995 = vadd.f32 %v6993, %v6994
      %v6996 = vrot.slane %v6995, 1
      %v6997 = vadd.f32 %v6995, %v6996
      %v6998 = vsel %vm3849, %v6366, 0.0
      %v6999 = vrot.slane %v6998, 4
      %v7000 = vadd.f32 %v6998, %v6999
      %v7001 = vrot.slane %v7000, 2
      %v7002 = vadd.f32 %v7000, %v7001
      %v7003 = vrot.slane %v7002, 1
      %v7004 = vadd.f32 %v7002, %v7003
      %v7005 = vsel %vm3849, %v6367, 0.0
      %v7006 = vrot.slane %v7005, 4
      %v7007 = vadd.f32 %v7005, %v7006
      %v7008 = vrot.slane %v7007, 2
      %v7009 = vadd.f32 %v7007, %v7008
      %v7010 = vrot.slane %v7009, 1
      %v7011 = vadd.f32 %v7009, %v7010
      %v7012 = vsel %vm3849, %v6368, 0.0
      %v7013 = vrot.slane %v7012, 4
      %v7014 = vadd.f32 %v7012, %v7013
      %v7015 = vrot.slane %v7014, 2
      %v7016 = vadd.f32 %v7014, %v7015
      %v7017 = vrot.slane %v7016, 1
      %v7018 = vadd.f32 %v7016, %v7017
      %v7019 = vsel %vm3849, %v6369, 0.0
      %v7020 = vrot.slane %v7019, 4
      %v7021 = vadd.f32 %v7019, %v7020
      %v7022 = vrot.slane %v7021, 2
      %v7023 = vadd.f32 %v7021, %v7022
      %v7024 = vrot.slane %v7023, 1
      %v7025 = vadd.f32 %v7023, %v7024
      %v7026 = vsel %vm3849, %v6370, 0.0
      %v7027 = vrot.slane %v7026, 4
      %v7028 = vadd.f32 %v7026, %v7027
      %v7029 = vrot.slane %v7028, 2
      %v7030 = vadd.f32 %v7028, %v7029
      %v7031 = vrot.slane %v7030, 1
      %v7032 = vadd.f32 %v7030, %v7031
      %v7033 = vsel %vm3849, %v6371, 0.0
      %v7034 = vrot.slane %v7033, 4
      %v7035 = vadd.f32 %v7033, %v7034
      %v7036 = vrot.slane %v7035, 2
      %v7037 = vadd.f32 %v7035, %v7036
      %v7038 = vrot.slane %v7037, 1
      %v7039 = vadd.f32 %v7037, %v7038
      %v7040 = vsel %vm3849, %v6372, 0.0
      %v7041 = vrot.slane %v7040, 4
      %v7042 = vadd.f32 %v7040, %v7041
      %v7043 = vrot.slane %v7042, 2
      %v7044 = vadd.f32 %v7042, %v7043
      %v7045 = vrot.slane %v7044, 1
      %v7046 = vadd.f32 %v7044, %v7045
      %v7047 = vsel %vm3849, %v6373, 0.0
      %v7048 = vrot.slane %v7047, 4
      %v7049 = vadd.f32 %v7047, %v7048
      %v7050 = vrot.slane %v7049, 2
      %v7051 = vadd.f32 %v7049, %v7050
      %v7052 = vrot.slane %v7051, 1
      %v7053 = vadd.f32 %v7051, %v7052
      %v7054 = vsel %vm3849, %v6374, 0.0
      %v7055 = vrot.slane %v7054, 4
      %v7056 = vadd.f32 %v7054, %v7055
      %v7057 = vrot.slane %v7056, 2
      %v7058 = vadd.f32 %v7056, %v7057
      %v7059 = vrot.slane %v7058, 1
      %v7060 = vadd.f32 %v7058, %v7059
      %v7061 = vsel %vm3849, %v6375, 0.0
      %v7062 = vrot.slane %v7061, 4
      %v7063 = vadd.f32 %v7061, %v7062
      %v7064 = vrot.slane %v7063, 2
      %v7065 = vadd.f32 %v7063, %v7064
      %v7066 = vrot.slane %v7065, 1
      %v7067 = vadd.f32 %v7065, %v7066
      %v7068 = vsel %vm3849, %v6376, 0.0
      %v7069 = vrot.slane %v7068, 4
      %v7070 = vadd.f32 %v7068, %v7069
      %v7071 = vrot.slane %v7070, 2
      %v7072 = vadd.f32 %v7070, %v7071
      %v7073 = vrot.slane %v7072, 1
      %v7074 = vadd.f32 %v7072, %v7073
      %v7075 = vsel %vm3849, %v6377, 0.0
      %v7076 = vrot.slane %v7075, 4
      %v7077 = vadd.f32 %v7075, %v7076
      %v7078 = vrot.slane %v7077, 2
      %v7079 = vadd.f32 %v7077, %v7078
      %v7080 = vrot.slane %v7079, 1
      %v7081 = vadd.f32 %v7079, %v7080
      %v7082 = vsel %vm3849, %v6378, 0.0
      %v7083 = vrot.slane %v7082, 4
      %v7084 = vadd.f32 %v7082, %v7083
      %v7085 = vrot.slane %v7084, 2
      %v7086 = vadd.f32 %v7084, %v7085
      %v7087 = vrot.slane %v7086, 1
      %v7088 = vadd.f32 %v7086, %v7087
      %v7089 = vsel %vm3849, %v6379, 0.0
      %v7090 = vrot.slane %v7089, 4
      %v7091 = vadd.f32 %v7089, %v7090
      %v7092 = vrot.slane %v7091, 2
      %v7093 = vadd.f32 %v7091, %v7092
      %v7094 = vrot.slane %v7093, 1
      %v7095 = vadd.f32 %v7093, %v7094
      %v7096 = vsel %vm3849, %v6380, 0.0
      %v7097 = vrot.slane %v7096, 4
      %v7098 = vadd.f32 %v7096, %v7097
      %v7099 = vrot.slane %v7098, 2
      %v7100 = vadd.f32 %v7098, %v7099
      %v7101 = vrot.slane %v7100, 1
      %v7102 = vadd.f32 %v7100, %v7101
      %v7103 = vsel %vm3849, %v6381, 0.0
      %v7104 = vrot.slane %v7103, 4
      %v7105 = vadd.f32 %v7103, %v7104
      %v7106 = vrot.slane %v7105, 2
      %v7107 = vadd.f32 %v7105, %v7106
      %v7108 = vrot.slane %v7107, 1
      %v7109 = vadd.f32 %v7107, %v7108
      %v7110 = vsel %vm3849, %v6382, 0.0
      %v7111 = vrot.slane %v7110, 4
      %v7112 = vadd.f32 %v7110, %v7111
      %v7113 = vrot.slane %v7112, 2
      %v7114 = vadd.f32 %v7112, %v7113
      %v7115 = vrot.slane %v7114, 1
      %v7116 = vadd.f32 %v7114, %v7115
      %v7117 = vsel %vm3849, %v6383, 0.0
      %v7118 = vrot.slane %v7117, 4
      %v7119 = vadd.f32 %v7117, %v7118
      %v7120 = vrot.slane %v7119, 2
      %v7121 = vadd.f32 %v7119, %v7120
      %v7122 = vrot.slane %v7121, 1
      %v7123 = vadd.f32 %v7121, %v7122
      %v7124 = vsel %vm3849, %v6384, 0.0
      %v7125 = vrot.slane %v7124, 4
      %v7126 = vadd.f32 %v7124, %v7125
      %v7127 = vrot.slane %v7126, 2
      %v7128 = vadd.f32 %v7126, %v7127
      %v7129 = vrot.slane %v7128, 1
      %v7130 = vadd.f32 %v7128, %v7129
      %v7131 = vsel %vm3849, %v6385, 0.0
      %v7132 = vrot.slane %v7131, 4
      %v7133 = vadd.f32 %v7131, %v7132
      %v7134 = vrot.slane %v7133, 2
      %v7135 = vadd.f32 %v7133, %v7134
      %v7136 = vrot.slane %v7135, 1
      %v7137 = vadd.f32 %v7135, %v7136
      %v7138 = vsel %vm3849, %v6386, 0.0
      %v7139 = vrot.slane %v7138, 4
      %v7140 = vadd.f32 %v7138, %v7139
      %v7141 = vrot.slane %v7140, 2
      %v7142 = vadd.f32 %v7140, %v7141
      %v7143 = vrot.slane %v7142, 1
      %v7144 = vadd.f32 %v7142, %v7143
      %v7145 = vsel %vm3849, %v6387, 0.0
      %v7146 = vrot.slane %v7145, 4
      %v7147 = vadd.f32 %v7145, %v7146
      %v7148 = vrot.slane %v7147, 2
      %v7149 = vadd.f32 %v7147, %v7148
      %v7150 = vrot.slane %v7149, 1
      %v7151 = vadd.f32 %v7149, %v7150
      %v7152 = vsel %vm3849, %v6388, 0.0
      %v7153 = vrot.slane %v7152, 4
      %v7154 = vadd.f32 %v7152, %v7153
      %v7155 = vrot.slane %v7154, 2
      %v7156 = vadd.f32 %v7154, %v7155
      %v7157 = vrot.slane %v7156, 1
      %v7158 = vadd.f32 %v7156, %v7157
      %v7159 = vsel %vm3849, %v6389, 0.0
      %v7160 = vrot.slane %v7159, 4
      %v7161 = vadd.f32 %v7159, %v7160
      %v7162 = vrot.slane %v7161, 2
      %v7163 = vadd.f32 %v7161, %v7162
      %v7164 = vrot.slane %v7163, 1
      %v7165 = vadd.f32 %v7163, %v7164
      %v7166 = vsel %vm3849, %v6390, 0.0
      %v7167 = vrot.slane %v7166, 4
      %v7168 = vadd.f32 %v7166, %v7167
      %v7169 = vrot.slane %v7168, 2
      %v7170 = vadd.f32 %v7168, %v7169
      %v7171 = vrot.slane %v7170, 1
      %v7172 = vadd.f32 %v7170, %v7171
      %v7173 = vsel %vm3849, %v6391, 0.0
      %v7174 = vrot.slane %v7173, 4
      %v7175 = vadd.f32 %v7173, %v7174
      %v7176 = vrot.slane %v7175, 2
      %v7177 = vadd.f32 %v7175, %v7176
      %v7178 = vrot.slane %v7177, 1
      %v7179 = vadd.f32 %v7177, %v7178
      %v7180 = vsel %vm3849, %v6392, 0.0
      %v7181 = vrot.slane %v7180, 4
      %v7182 = vadd.f32 %v7180, %v7181
      %v7183 = vrot.slane %v7182, 2
      %v7184 = vadd.f32 %v7182, %v7183
      %v7185 = vrot.slane %v7184, 1
      %v7186 = vadd.f32 %v7184, %v7185
      %v7187 = vsel %vm3849, %v6393, 0.0
      %v7188 = vrot.slane %v7187, 4
      %v7189 = vadd.f32 %v7187, %v7188
      %v7190 = vrot.slane %v7189, 2
      %v7191 = vadd.f32 %v7189, %v7190
      %v7192 = vrot.slane %v7191, 1
      %v7193 = vadd.f32 %v7191, %v7192
      %v7194 = vsel %vm3849, %v6394, 0.0
      %v7195 = vrot.slane %v7194, 4
      %v7196 = vadd.f32 %v7194, %v7195
      %v7197 = vrot.slane %v7196, 2
      %v7198 = vadd.f32 %v7196, %v7197
      %v7199 = vrot.slane %v7198, 1
      %v7200 = vadd.f32 %v7198, %v7199
      %v7201 = vsel %vm3849, %v6395, 0.0
      %v7202 = vrot.slane %v7201, 4
      %v7203 = vadd.f32 %v7201, %v7202
      %v7204 = vrot.slane %v7203, 2
      %v7205 = vadd.f32 %v7203, %v7204
      %v7206 = vrot.slane %v7205, 1
      %v7207 = vadd.f32 %v7205, %v7206
      %v7208 = vsel %vm3849, %v6396, 0.0
      %v7209 = vrot.slane %v7208, 4
      %v7210 = vadd.f32 %v7208, %v7209
      %v7211 = vrot.slane %v7210, 2
      %v7212 = vadd.f32 %v7210, %v7211
      %v7213 = vrot.slane %v7212, 1
      %v7214 = vadd.f32 %v7212, %v7213
      %v7215 = vsel %vm3849, %v6397, 0.0
      %v7216 = vrot.slane %v7215, 4
      %v7217 = vadd.f32 %v7215, %v7216
      %v7218 = vrot.slane %v7217, 2
      %v7219 = vadd.f32 %v7217, %v7218
      %v7220 = vrot.slane %v7219, 1
      %v7221 = vadd.f32 %v7219, %v7220
      %v7222 = vsel %vm3849, %v6398, 0.0
      %v7223 = vrot.slane %v7222, 4
      %v7224 = vadd.f32 %v7222, %v7223
      %v7225 = vrot.slane %v7224, 2
      %v7226 = vadd.f32 %v7224, %v7225
      %v7227 = vrot.slane %v7226, 1
      %v7228 = vadd.f32 %v7226, %v7227
      %v7229 = vsel %vm3849, %v6399, 0.0
      %v7230 = vrot.slane %v7229, 4
      %v7231 = vadd.f32 %v7229, %v7230
      %v7232 = vrot.slane %v7231, 2
      %v7233 = vadd.f32 %v7231, %v7232
      %v7234 = vrot.slane %v7233, 1
      %v7235 = vadd.f32 %v7233, %v7234
      %v7236 = vsel %vm3849, %v6400, 0.0
      %v7237 = vrot.slane %v7236, 4
      %v7238 = vadd.f32 %v7236, %v7237
      %v7239 = vrot.slane %v7238, 2
      %v7240 = vadd.f32 %v7238, %v7239
      %v7241 = vrot.slane %v7240, 1
      %v7242 = vadd.f32 %v7240, %v7241
      %v7243 = vsel %vm3849, %v6401, 0.0
      %v7244 = vrot.slane %v7243, 4
      %v7245 = vadd.f32 %v7243, %v7244
      %v7246 = vrot.slane %v7245, 2
      %v7247 = vadd.f32 %v7245, %v7246
      %v7248 = vrot.slane %v7247, 1
      %v7249 = vadd.f32 %v7247, %v7248
      %v7250 = vsel %vm3849, %v6402, 0.0
      %v7251 = vrot.slane %v7250, 4
      %v7252 = vadd.f32 %v7250, %v7251
      %v7253 = vrot.slane %v7252, 2
      %v7254 = vadd.f32 %v7252, %v7253
      %v7255 = vrot.slane %v7254, 1
      %v7256 = vadd.f32 %v7254, %v7255
      %v7257 = vsel %vm3849, %v6403, 0.0
      %v7258 = vrot.slane %v7257, 4
      %v7259 = vadd.f32 %v7257, %v7258
      %v7260 = vrot.slane %v7259, 2
      %v7261 = vadd.f32 %v7259, %v7260
      %v7262 = vrot.slane %v7261, 1
      %v7263 = vadd.f32 %v7261, %v7262
      %v7264 = vsel %vm3849, %v6404, 0.0
      %v7265 = vrot.slane %v7264, 4
      %v7266 = vadd.f32 %v7264, %v7265
      %v7267 = vrot.slane %v7266, 2
      %v7268 = vadd.f32 %v7266, %v7267
      %v7269 = vrot.slane %v7268, 1
      %v7270 = vadd.f32 %v7268, %v7269
      %v7271 = vsel %vm3849, %v6405, 0.0
      %v7272 = vrot.slane %v7271, 4
      %v7273 = vadd.f32 %v7271, %v7272
      %v7274 = vrot.slane %v7273, 2
      %v7275 = vadd.f32 %v7273, %v7274
      %v7276 = vrot.slane %v7275, 1
      %v7277 = vadd.f32 %v7275, %v7276
      %v7278 = vsel %vm3849, %v6406, 0.0
      %v7279 = vrot.slane %v7278, 4
      %v7280 = vadd.f32 %v7278, %v7279
      %v7281 = vrot.slane %v7280, 2
      %v7282 = vadd.f32 %v7280, %v7281
      %v7283 = vrot.slane %v7282, 1
      %v7284 = vadd.f32 %v7282, %v7283
      %v7285 = vsel %vm3849, %v6407, 0.0
      %v7286 = vrot.slane %v7285, 4
      %v7287 = vadd.f32 %v7285, %v7286
      %v7288 = vrot.slane %v7287, 2
      %v7289 = vadd.f32 %v7287, %v7288
      %v7290 = vrot.slane %v7289, 1
      %v7291 = vadd.f32 %v7289, %v7290
      %v7292 = vsel %vm3849, %v6408, 0.0
      %v7293 = vrot.slane %v7292, 4
      %v7294 = vadd.f32 %v7292, %v7293
      %v7295 = vrot.slane %v7294, 2
      %v7296 = vadd.f32 %v7294, %v7295
      %v7297 = vrot.slane %v7296, 1
      %v7298 = vadd.f32 %v7296, %v7297
      %v7299 = vsel %vm3849, %v6409, 0.0
      %v7300 = vrot.slane %v7299, 4
      %v7301 = vadd.f32 %v7299, %v7300
      %v7302 = vrot.slane %v7301, 2
      %v7303 = vadd.f32 %v7301, %v7302
      %v7304 = vrot.slane %v7303, 1
      %v7305 = vadd.f32 %v7303, %v7304
      %7434 = vrot.lane.b32.xlu0 %v6416, 96
      %v7435 = vpop.permute.xlu0 %7434
      %7436 = vrot.lane.b32.xlu0 %v6423, 96
      %v7437 = vpop.permute.xlu0 %7436
      %7438 = vrot.lane.b32.xlu0 %v6430, 96
      %v7439 = vpop.permute.xlu0 %7438
      %7440 = vrot.lane.b32.xlu0 %v6437, 96
      %v7441 = vpop.permute.xlu0 %7440
      %7442 = vrot.lane.b32.xlu0 %v6444, 96
      %v7443 = vpop.permute.xlu0 %7442
      %7444 = vrot.lane.b32.xlu0 %v6451, 96
      %v7445 = vpop.permute.xlu0 %7444
      %7446 = vrot.lane.b32.xlu0 %v6458, 96
      %v7447 = vpop.permute.xlu0 %7446
      %7448 = vrot.lane.b32.xlu0 %v6465, 96
      %v7449 = vpop.permute.xlu0 %7448
      %7450 = vrot.lane.b32.xlu0 %v6472, 96
      %v7451 = vpop.permute.xlu0 %7450
      %7452 = vrot.lane.b32.xlu0 %v6479, 96
      %v7453 = vpop.permute.xlu0 %7452
      %7454 = vrot.lane.b32.xlu0 %v6486, 96
      %v7455 = vpop.permute.xlu0 %7454
      %7456 = vrot.lane.b32.xlu0 %v6493, 96
      %v7457 = vpop.permute.xlu0 %7456
      %7458 = vrot.lane.b32.xlu0 %v6500, 96
      %v7459 = vpop.permute.xlu0 %7458
      %7460 = vrot.lane.b32.xlu0 %v6507, 96
      %v7461 = vpop.permute.xlu0 %7460
      %7462 = vrot.lane.b32.xlu0 %v6514, 96
      %v7463 = vpop.permute.xlu0 %7462
      %7464 = vrot.lane.b32.xlu0 %v6521, 96
      %v7465 = vpop.permute.xlu0 %7464
      %7466 = vrot.lane.b32.xlu0 %v6528, 96
      %v7467 = vpop.permute.xlu0 %7466
      %7468 = vrot.lane.b32.xlu0 %v6535, 96
      %v7469 = vpop.permute.xlu0 %7468
      %7470 = vrot.lane.b32.xlu0 %v6542, 96
      %v7471 = vpop.permute.xlu0 %7470
      %7472 = vrot.lane.b32.xlu0 %v6549, 96
      %v7473 = vpop.permute.xlu0 %7472
      %7474 = vrot.lane.b32.xlu0 %v6556, 96
      %v7475 = vpop.permute.xlu0 %7474
      %7476 = vrot.lane.b32.xlu0 %v6563, 96
      %v7477 = vpop.permute.xlu0 %7476
      %7478 = vrot.lane.b32.xlu0 %v6570, 96
      %v7479 = vpop.permute.xlu0 %7478
      %7480 = vrot.lane.b32.xlu0 %v6577, 96
      %v7481 = vpop.permute.xlu0 %7480
      %7482 = vrot.lane.b32.xlu0 %v6584, 96
      %v7483 = vpop.permute.xlu0 %7482
      %7484 = vrot.lane.b32.xlu0 %v6591, 96
      %v7485 = vpop.permute.xlu0 %7484
      %7486 = vrot.lane.b32.xlu0 %v6598, 96
      %v7487 = vpop.permute.xlu0 %7486
      %7488 = vrot.lane.b32.xlu0 %v6605, 96
      %v7489 = vpop.permute.xlu0 %7488
      %7490 = vrot.lane.b32.xlu0 %v6612, 96
      %v7491 = vpop.permute.xlu0 %7490
      %7492 = vrot.lane.b32.xlu0 %v6619, 96
      %v7493 = vpop.permute.xlu0 %7492
      %7494 = vrot.lane.b32.xlu0 %v6626, 96
      %v7495 = vpop.permute.xlu0 %7494
      %7496 = vrot.lane.b32.xlu0 %v6633, 96
      %v7497 = vpop.permute.xlu0 %7496
      %7498 = vrot.lane.b32.xlu0 %v6640, 96
      %v7499 = vpop.permute.xlu0 %7498
      %7500 = vrot.lane.b32.xlu0 %v6647, 96
      %v7501 = vpop.permute.xlu0 %7500
      %7502 = vrot.lane.b32.xlu0 %v6654, 96
      %v7503 = vpop.permute.xlu0 %7502
      %7504 = vrot.lane.b32.xlu0 %v6661, 96
      %v7505 = vpop.permute.xlu0 %7504
      %7506 = vrot.lane.b32.xlu0 %v6668, 96
      %v7507 = vpop.permute.xlu0 %7506
      %7508 = vrot.lane.b32.xlu0 %v6675, 96
      %v7509 = vpop.permute.xlu0 %7508
      %7510 = vrot.lane.b32.xlu0 %v6682, 96
      %v7511 = vpop.permute.xlu0 %7510
      %7512 = vrot.lane.b32.xlu0 %v6689, 96
      %v7513 = vpop.permute.xlu0 %7512
      %7514 = vrot.lane.b32.xlu0 %v6696, 96
      %v7515 = vpop.permute.xlu0 %7514
      %7516 = vrot.lane.b32.xlu0 %v6703, 96
      %v7517 = vpop.permute.xlu0 %7516
      %7518 = vrot.lane.b32.xlu0 %v6710, 96
      %v7519 = vpop.permute.xlu0 %7518
      %7520 = vrot.lane.b32.xlu0 %v6717, 96
      %v7521 = vpop.permute.xlu0 %7520
      %7522 = vrot.lane.b32.xlu0 %v6724, 96
      %v7523 = vpop.permute.xlu0 %7522
      %7524 = vrot.lane.b32.xlu0 %v6731, 96
      %v7525 = vpop.permute.xlu0 %7524
      %7526 = vrot.lane.b32.xlu0 %v6738, 96
      %v7527 = vpop.permute.xlu0 %7526
      %7528 = vrot.lane.b32.xlu0 %v6745, 96
      %v7529 = vpop.permute.xlu0 %7528
      %7530 = vrot.lane.b32.xlu0 %v6752, 96
      %v7531 = vpop.permute.xlu0 %7530
      %7532 = vrot.lane.b32.xlu0 %v6759, 96
      %v7533 = vpop.permute.xlu0 %7532
      %7534 = vrot.lane.b32.xlu0 %v6766, 96
      %v7535 = vpop.permute.xlu0 %7534
      %7536 = vrot.lane.b32.xlu0 %v6773, 96
      %v7537 = vpop.permute.xlu0 %7536
      %7538 = vrot.lane.b32.xlu0 %v6780, 96
      %v7539 = vpop.permute.xlu0 %7538
      %7540 = vrot.lane.b32.xlu0 %v6787, 96
      %v7541 = vpop.permute.xlu0 %7540
      %7542 = vrot.lane.b32.xlu0 %v6794, 96
      %v7543 = vpop.permute.xlu0 %7542
      %7544 = vrot.lane.b32.xlu0 %v6801, 96
      %v7545 = vpop.permute.xlu0 %7544
      %7546 = vrot.lane.b32.xlu0 %v6808, 96
      %v7547 = vpop.permute.xlu0 %7546
      %7548 = vrot.lane.b32.xlu0 %v6815, 96
      %v7549 = vpop.permute.xlu0 %7548
      %7550 = vrot.lane.b32.xlu0 %v6822, 96
      %v7551 = vpop.permute.xlu0 %7550
      %7552 = vrot.lane.b32.xlu0 %v6829, 96
      %v7553 = vpop.permute.xlu0 %7552
      %7554 = vrot.lane.b32.xlu0 %v6836, 96
      %v7555 = vpop.permute.xlu0 %7554
      %7556 = vrot.lane.b32.xlu0 %v6843, 96
      %v7557 = vpop.permute.xlu0 %7556
      %7558 = vrot.lane.b32.xlu0 %v6850, 96
      %v7559 = vpop.permute.xlu0 %7558
      %7560 = vrot.lane.b32.xlu0 %v6857, 96
      %v7561 = vpop.permute.xlu0 %7560
      %7562 = vrot.lane.b32.xlu0 %v6864, 96
      %v7563 = vpop.permute.xlu0 %7562
      %7564 = vrot.lane.b32.xlu0 %v6871, 96
      %v7565 = vpop.permute.xlu0 %7564
      %7566 = vrot.lane.b32.xlu0 %v6878, 96
      %v7567 = vpop.permute.xlu0 %7566
      %7568 = vrot.lane.b32.xlu0 %v6885, 96
      %v7569 = vpop.permute.xlu0 %7568
      %7570 = vrot.lane.b32.xlu0 %v6892, 96
      %v7571 = vpop.permute.xlu0 %7570
      %7572 = vrot.lane.b32.xlu0 %v6899, 96
      %v7573 = vpop.permute.xlu0 %7572
      %7574 = vrot.lane.b32.xlu0 %v6906, 96
      %v7575 = vpop.permute.xlu0 %7574
      %7576 = vrot.lane.b32.xlu0 %v6913, 96
      %v7577 = vpop.permute.xlu0 %7576
      %7578 = vrot.lane.b32.xlu0 %v6920, 96
      %v7579 = vpop.permute.xlu0 %7578
      %7580 = vrot.lane.b32.xlu0 %v6927, 96
      %v7581 = vpop.permute.xlu0 %7580
      %7582 = vrot.lane.b32.xlu0 %v6934, 96
      %v7583 = vpop.permute.xlu0 %7582
      %7584 = vrot.lane.b32.xlu0 %v6941, 96
      %v7585 = vpop.permute.xlu0 %7584
      %7586 = vrot.lane.b32.xlu0 %v6948, 96
      %v7587 = vpop.permute.xlu0 %7586
      %7588 = vrot.lane.b32.xlu0 %v6955, 96
      %v7589 = vpop.permute.xlu0 %7588
      %7590 = vrot.lane.b32.xlu0 %v6962, 96
      %v7591 = vpop.permute.xlu0 %7590
      %7592 = vrot.lane.b32.xlu0 %v6969, 96
      %v7593 = vpop.permute.xlu0 %7592
      %7594 = vrot.lane.b32.xlu0 %v6976, 96
      %v7595 = vpop.permute.xlu0 %7594
      %7596 = vrot.lane.b32.xlu0 %v6983, 96
      %v7597 = vpop.permute.xlu0 %7596
      %7598 = vrot.lane.b32.xlu0 %v6990, 96
      %v7599 = vpop.permute.xlu0 %7598
      %7600 = vrot.lane.b32.xlu0 %v6997, 96
      %v7601 = vpop.permute.xlu0 %7600
      %7602 = vrot.lane.b32.xlu0 %v7004, 96
      %v7603 = vpop.permute.xlu0 %7602
      %7604 = vrot.lane.b32.xlu0 %v7011, 96
      %v7605 = vpop.permute.xlu0 %7604
      %7606 = vrot.lane.b32.xlu0 %v7018, 96
      %v7607 = vpop.permute.xlu0 %7606
      %7608 = vrot.lane.b32.xlu0 %v7025, 96
      %v7609 = vpop.permute.xlu0 %7608
      %7610 = vrot.lane.b32.xlu0 %v7032, 96
      %v7611 = vpop.permute.xlu0 %7610
      %7612 = vrot.lane.b32.xlu0 %v7039, 96
      %v7613 = vpop.permute.xlu0 %7612
      %7614 = vrot.lane.b32.xlu0 %v7046, 96
      %v7615 = vpop.permute.xlu0 %7614
      %7616 = vrot.lane.b32.xlu0 %v7053, 96
      %v7617 = vpop.permute.xlu0 %7616
      %7618 = vrot.lane.b32.xlu0 %v7060, 96
      %v7619 = vpop.permute.xlu0 %7618
      %7620 = vrot.lane.b32.xlu0 %v7067, 96
      %v7621 = vpop.permute.xlu0 %7620
      %7622 = vrot.lane.b32.xlu0 %v7074, 96
      %v7623 = vpop.permute.xlu0 %7622
      %7624 = vrot.lane.b32.xlu0 %v7081, 96
      %v7625 = vpop.permute.xlu0 %7624
      %7626 = vrot.lane.b32.xlu0 %v7088, 96
      %v7627 = vpop.permute.xlu0 %7626
      %7628 = vrot.lane.b32.xlu0 %v7095, 96
      %v7629 = vpop.permute.xlu0 %7628
      %7630 = vrot.lane.b32.xlu0 %v7102, 96
      %v7631 = vpop.permute.xlu0 %7630
      %7632 = vrot.lane.b32.xlu0 %v7109, 96
      %v7633 = vpop.permute.xlu0 %7632
      %7634 = vrot.lane.b32.xlu0 %v7116, 96
      %v7635 = vpop.permute.xlu0 %7634
      %7636 = vrot.lane.b32.xlu0 %v7123, 96
      %v7637 = vpop.permute.xlu0 %7636
      %7638 = vrot.lane.b32.xlu0 %v7130, 96
      %v7639 = vpop.permute.xlu0 %7638
      %7640 = vrot.lane.b32.xlu0 %v7137, 96
      %v7641 = vpop.permute.xlu0 %7640
      %7642 = vrot.lane.b32.xlu0 %v7144, 96
      %v7643 = vpop.permute.xlu0 %7642
      %7644 = vrot.lane.b32.xlu0 %v7151, 96
      %v7645 = vpop.permute.xlu0 %7644
      %7646 = vrot.lane.b32.xlu0 %v7158, 96
      %v7647 = vpop.permute.xlu0 %7646
      %7648 = vrot.lane.b32.xlu0 %v7165, 96
      %v7649 = vpop.permute.xlu0 %7648
      %7650 = vrot.lane.b32.xlu0 %v7172, 96
      %v7651 = vpop.permute.xlu0 %7650
      %7652 = vrot.lane.b32.xlu0 %v7179, 96
      %v7653 = vpop.permute.xlu0 %7652
      %7654 = vrot.lane.b32.xlu0 %v7186, 96
      %v7655 = vpop.permute.xlu0 %7654
      %7656 = vrot.lane.b32.xlu0 %v7193, 96
      %v7657 = vpop.permute.xlu0 %7656
      %7658 = vrot.lane.b32.xlu0 %v7200, 96
      %v7659 = vpop.permute.xlu0 %7658
      %7660 = vrot.lane.b32.xlu0 %v7207, 96
      %v7661 = vpop.permute.xlu0 %7660
      %7662 = vrot.lane.b32.xlu0 %v7214, 96
      %v7663 = vpop.permute.xlu0 %7662
      %7664 = vrot.lane.b32.xlu0 %v7221, 96
      %v7665 = vpop.permute.xlu0 %7664
      %7666 = vrot.lane.b32.xlu0 %v7228, 96
      %v7667 = vpop.permute.xlu0 %7666
      %7668 = vrot.lane.b32.xlu0 %v7235, 96
      %v7669 = vpop.permute.xlu0 %7668
      %7670 = vrot.lane.b32.xlu0 %v7242, 96
      %v7671 = vpop.permute.xlu0 %7670
      %7672 = vrot.lane.b32.xlu0 %v7249, 96
      %v7673 = vpop.permute.xlu0 %7672
      %7674 = vrot.lane.b32.xlu0 %v7256, 96
      %v7675 = vpop.permute.xlu0 %7674
      %7676 = vrot.lane.b32.xlu0 %v7263, 96
      %v7677 = vpop.permute.xlu0 %7676
      %7678 = vrot.lane.b32.xlu0 %v7270, 96
      %v7679 = vpop.permute.xlu0 %7678
      %7680 = vrot.lane.b32.xlu0 %v7277, 96
      %v7681 = vpop.permute.xlu0 %7680
      %7682 = vrot.lane.b32.xlu0 %v7284, 96
      %v7683 = vpop.permute.xlu0 %7682
      %7684 = vrot.lane.b32.xlu0 %v7291, 96
      %v7685 = vpop.permute.xlu0 %7684
      %7686 = vrot.lane.b32.xlu0 %v7298, 96
      %v7687 = vpop.permute.xlu0 %7686
      %7688 = vrot.lane.b32.xlu0 %v7305, 96
      %v7689 = vpop.permute.xlu0 %7688
      %v7818 = vadd.f32 %v6416, %v7435
      %v7819 = vadd.f32 %v6423, %v7437
      %v7820 = vadd.f32 %v6430, %v7439
      %v7821 = vadd.f32 %v6437, %v7441
      %v7822 = vadd.f32 %v6444, %v7443
      %v7823 = vadd.f32 %v6451, %v7445
      %v7824 = vadd.f32 %v6458, %v7447
      %v7825 = vadd.f32 %v6465, %v7449
      %v7826 = vadd.f32 %v6472, %v7451
      %v7827 = vadd.f32 %v6479, %v7453
      %v7828 = vadd.f32 %v6486, %v7455
      %v7829 = vadd.f32 %v6493, %v7457
      %v7830 = vadd.f32 %v6500, %v7459
      %v7831 = vadd.f32 %v6507, %v7461
      %v7832 = vadd.f32 %v6514, %v7463
      %v7833 = vadd.f32 %v6521, %v7465
      %v7834 = vadd.f32 %v6528, %v7467
      %v7835 = vadd.f32 %v6535, %v7469
      %v7836 = vadd.f32 %v6542, %v7471
      %v7837 = vadd.f32 %v6549, %v7473
      %v7838 = vadd.f32 %v6556, %v7475
      %v7839 = vadd.f32 %v6563, %v7477
      %v7840 = vadd.f32 %v6570, %v7479
      %v7841 = vadd.f32 %v6577, %v7481
      %v7842 = vadd.f32 %v6584, %v7483
      %v7843 = vadd.f32 %v6591, %v7485
      %v7844 = vadd.f32 %v6598, %v7487
      %v7845 = vadd.f32 %v6605, %v7489
      %v7846 = vadd.f32 %v6612, %v7491
      %v7847 = vadd.f32 %v6619, %v7493
      %v7848 = vadd.f32 %v6626, %v7495
      %v7849 = vadd.f32 %v6633, %v7497
      %v7850 = vadd.f32 %v6640, %v7499
      %v7851 = vadd.f32 %v6647, %v7501
      %v7852 = vadd.f32 %v6654, %v7503
      %v7853 = vadd.f32 %v6661, %v7505
      %v7854 = vadd.f32 %v6668, %v7507
      %v7855 = vadd.f32 %v6675, %v7509
      %v7856 = vadd.f32 %v6682, %v7511
      %v7857 = vadd.f32 %v6689, %v7513
      %v7858 = vadd.f32 %v6696, %v7515
      %v7859 = vadd.f32 %v6703, %v7517
      %v7860 = vadd.f32 %v6710, %v7519
      %v7861 = vadd.f32 %v6717, %v7521
      %v7862 = vadd.f32 %v6724, %v7523
      %v7863 = vadd.f32 %v6731, %v7525
      %v7864 = vadd.f32 %v6738, %v7527
      %v7865 = vadd.f32 %v6745, %v7529
      %v7866 = vadd.f32 %v6752, %v7531
      %v7867 = vadd.f32 %v6759, %v7533
      %v7868 = vadd.f32 %v6766, %v7535
      %v7869 = vadd.f32 %v6773, %v7537
      %v7870 = vadd.f32 %v6780, %v7539
      %v7871 = vadd.f32 %v6787, %v7541
      %v7872 = vadd.f32 %v6794, %v7543
      %v7873 = vadd.f32 %v6801, %v7545
      %v7874 = vadd.f32 %v6808, %v7547
      %v7875 = vadd.f32 %v6815, %v7549
      %v7876 = vadd.f32 %v6822, %v7551
      %v7877 = vadd.f32 %v6829, %v7553
      %v7878 = vadd.f32 %v6836, %v7555
      %v7879 = vadd.f32 %v6843, %v7557
      %v7880 = vadd.f32 %v6850, %v7559
      %v7881 = vadd.f32 %v6857, %v7561
      %v7882 = vadd.f32 %v6864, %v7563
      %v7883 = vadd.f32 %v6871, %v7565
      %v7884 = vadd.f32 %v6878, %v7567
      %v7885 = vadd.f32 %v6885, %v7569
      %v7886 = vadd.f32 %v6892, %v7571
      %v7887 = vadd.f32 %v6899, %v7573
      %v7888 = vadd.f32 %v6906, %v7575
      %v7889 = vadd.f32 %v6913, %v7577
      %v7890 = vadd.f32 %v6920, %v7579
      %v7891 = vadd.f32 %v6927, %v7581
      %v7892 = vadd.f32 %v6934, %v7583
      %v7893 = vadd.f32 %v6941, %v7585
      %v7894 = vadd.f32 %v6948, %v7587
      %v7895 = vadd.f32 %v6955, %v7589
      %v7896 = vadd.f32 %v6962, %v7591
      %v7897 = vadd.f32 %v6969, %v7593
      %v7898 = vadd.f32 %v6976, %v7595
      %v7899 = vadd.f32 %v6983, %v7597
      %v7900 = vadd.f32 %v6990, %v7599
      %v7901 = vadd.f32 %v6997, %v7601
      %v7902 = vadd.f32 %v7004, %v7603
      %v7903 = vadd.f32 %v7011, %v7605
      %v7904 = vadd.f32 %v7018, %v7607
      %v7905 = vadd.f32 %v7025, %v7609
      %v7906 = vadd.f32 %v7032, %v7611
      %v7907 = vadd.f32 %v7039, %v7613
      %v7908 = vadd.f32 %v7046, %v7615
      %v7909 = vadd.f32 %v7053, %v7617
      %v7910 = vadd.f32 %v7060, %v7619
      %v7911 = vadd.f32 %v7067, %v7621
      %v7912 = vadd.f32 %v7074, %v7623
      %v7913 = vadd.f32 %v7081, %v7625
      %v7914 = vadd.f32 %v7088, %v7627
      %v7915 = vadd.f32 %v7095, %v7629
      %v7916 = vadd.f32 %v7102, %v7631
      %v7917 = vadd.f32 %v7109, %v7633
      %v7918 = vadd.f32 %v7116, %v7635
      %v7919 = vadd.f32 %v7123, %v7637
      %v7920 = vadd.f32 %v7130, %v7639
      %v7921 = vadd.f32 %v7137, %v7641
      %v7922 = vadd.f32 %v7144, %v7643
      %v7923 = vadd.f32 %v7151, %v7645
      %v7924 = vadd.f32 %v7158, %v7647
      %v7925 = vadd.f32 %v7165, %v7649
      %v7926 = vadd.f32 %v7172, %v7651
      %v7927 = vadd.f32 %v7179, %v7653
      %v7928 = vadd.f32 %v7186, %v7655
      %v7929 = vadd.f32 %v7193, %v7657
      %v7930 = vadd.f32 %v7200, %v7659
      %v7931 = vadd.f32 %v7207, %v7661
      %v7932 = vadd.f32 %v7214, %v7663
      %v7933 = vadd.f32 %v7221, %v7665
      %v7934 = vadd.f32 %v7228, %v7667
      %v7935 = vadd.f32 %v7235, %v7669
      %v7936 = vadd.f32 %v7242, %v7671
      %v7937 = vadd.f32 %v7249, %v7673
      %v7938 = vadd.f32 %v7256, %v7675
      %v7939 = vadd.f32 %v7263, %v7677
      %v7940 = vadd.f32 %v7270, %v7679
      %v7941 = vadd.f32 %v7277, %v7681
      %v7942 = vadd.f32 %v7284, %v7683
      %v7943 = vadd.f32 %v7291, %v7685
      %v7944 = vadd.f32 %v7298, %v7687
      %v7945 = vadd.f32 %v7305, %v7689
      %v7946 = vld [vmem:[%s404] sm:$0xff]
      %v7947 = vld [vmem:[%s404 + $0x8] sm:$0xff]
      %v7948 = vld [vmem:[%s404 + $0x10] sm:$0xff]
      %v7949 = vld [vmem:[%s404 + $0x18] sm:$0xff]
      %v7950 = vld [vmem:[%s404 + $0x20] sm:$0xff]
      %v7951 = vld [vmem:[%s404 + $0x28] sm:$0xff]
      %v7952 = vld [vmem:[%s404 + $0x30] sm:$0xff]
      %v7953 = vld [vmem:[%s404 + $0x38] sm:$0xff]
      %v7954 = vld [vmem:[%s404 + $0x40] sm:$0xff]
      %v7955 = vld [vmem:[%s404 + $0x48] sm:$0xff]
      %v7956 = vld [vmem:[%s404 + $0x50] sm:$0xff]
      %v7957 = vld [vmem:[%s404 + $0x58] sm:$0xff]
      %v7958 = vld [vmem:[%s404 + $0x60] sm:$0xff]
      %v7959 = vld [vmem:[%s404 + $0x68] sm:$0xff]
      %v7960 = vld [vmem:[%s404 + $0x70] sm:$0xff]
      %v7961 = vld [vmem:[%s404 + $0x78] sm:$0xff]
      %vm7962 = vcmp.ge.f32.partialorder %v7946, 0.0
      %vm7963 = vcmp.ge.f32.partialorder %v7947, 0.0
      %vm7964 = vcmp.ge.f32.partialorder %v7948, 0.0
      %vm7965 = vcmp.ge.f32.partialorder %v7949, 0.0
      %vm7966 = vcmp.ge.f32.partialorder %v7950, 0.0
      %vm7967 = vcmp.ge.f32.partialorder %v7951, 0.0
      %vm7968 = vcmp.ge.f32.partialorder %v7952, 0.0
      %vm7969 = vcmp.ge.f32.partialorder %v7953, 0.0
      %vm7970 = vcmp.ge.f32.partialorder %v7954, 0.0
      %vm7971 = vcmp.ge.f32.partialorder %v7955, 0.0
      %vm7972 = vcmp.ge.f32.partialorder %v7956, 0.0
      %vm7973 = vcmp.ge.f32.partialorder %v7957, 0.0
      %vm7974 = vcmp.ge.f32.partialorder %v7958, 0.0
      %vm7975 = vcmp.ge.f32.partialorder %v7959, 0.0
      %vm7976 = vcmp.ge.f32.partialorder %v7960, 0.0
      %vm7977 = vcmp.ge.f32.partialorder %v7961, 0.0
      %v7978 = vmul.f32 %v7946, 0.2
      %v7979 = vmul.f32 %v7947, 0.2
      %v7980 = vmul.f32 %v7948, 0.2
      %v7981 = vmul.f32 %v7949, 0.2
      %v7982 = vmul.f32 %v7950, 0.2
      %v7983 = vmul.f32 %v7951, 0.2
      %v7984 = vmul.f32 %v7952, 0.2
      %v7985 = vmul.f32 %v7953, 0.2
      %v7986 = vmul.f32 %v7954, 0.2
      %v7987 = vmul.f32 %v7955, 0.2
      %v7988 = vmul.f32 %v7956, 0.2
      %v7989 = vmul.f32 %v7957, 0.2
      %v7990 = vmul.f32 %v7958, 0.2
      %v7991 = vmul.f32 %v7959, 0.2
      %v7992 = vmul.f32 %v7960, 0.2
      %v7993 = vmul.f32 %v7961, 0.2
      %v7994 = vsel %vm7962, %v7946, %v7978
      %v7995 = vsel %vm7963, %v7947, %v7979
      %v7996 = vsel %vm7964, %v7948, %v7980
      %v7997 = vsel %vm7965, %v7949, %v7981
      %v7998 = vsel %vm7966, %v7950, %v7982
      %v7999 = vsel %vm7967, %v7951, %v7983
      %v8000 = vsel %vm7968, %v7952, %v7984
      %v8001 = vsel %vm7969, %v7953, %v7985
      %v8002 = vsel %vm7970, %v7954, %v7986
      %v8003 = vsel %vm7971, %v7955, %v7987
      %v8004 = vsel %vm7972, %v7956, %v7988
      %v8005 = vsel %vm7973, %v7957, %v7989
      %v8006 = vsel %vm7974, %v7958, %v7990
      %v8007 = vsel %vm7975, %v7959, %v7991
      %v8008 = vsel %vm7976, %v7960, %v7992
      %v8009 = vsel %vm7977, %v7961, %v7993
      %v8026 = vrot.slane %v7994, 1
      %v8027 = vrot.slane %v7994, 2
      %v8028 = vrot.slane %v7994, 3
      %v8029 = vrot.slane %v7994, 4
      %v8030 = vrot.slane %v7994, 5
      %v8031 = vrot.slane %v7994, 6
      %v8032 = vrot.slane %v7994, 7
      %v8033 = vrot.slane %v7995, 1
      %v8034 = vrot.slane %v7995, 2
      %v8035 = vrot.slane %v7995, 3
      %v8036 = vrot.slane %v7995, 4
      %v8037 = vrot.slane %v7995, 5
      %v8038 = vrot.slane %v7995, 6
      %v8039 = vrot.slane %v7995, 7
      %v8040 = vrot.slane %v7996, 1
      %v8041 = vrot.slane %v7996, 2
      %v8042 = vrot.slane %v7996, 3
      %v8043 = vrot.slane %v7996, 4
      %v8044 = vrot.slane %v7996, 5
      %v8045 = vrot.slane %v7996, 6
      %v8046 = vrot.slane %v7996, 7
      %v8047 = vrot.slane %v7997, 1
      %v8048 = vrot.slane %v7997, 2
      %v8049 = vrot.slane %v7997, 3
      %v8050 = vrot.slane %v7997, 4
      %v8051 = vrot.slane %v7997, 5
      %v8052 = vrot.slane %v7997, 6
      %v8053 = vrot.slane %v7997, 7
      %v8054 = vrot.slane %v7998, 1
      %v8055 = vrot.slane %v7998, 2
      %v8056 = vrot.slane %v7998, 3
      %v8057 = vrot.slane %v7998, 4
      %v8058 = vrot.slane %v7998, 5
      %v8059 = vrot.slane %v7998, 6
      %v8060 = vrot.slane %v7998, 7
      %v8061 = vrot.slane %v7999, 1
      %v8062 = vrot.slane %v7999, 2
      %v8063 = vrot.slane %v7999, 3
      %v8064 = vrot.slane %v7999, 4
      %v8065 = vrot.slane %v7999, 5
      %v8066 = vrot.slane %v7999, 6
      %v8067 = vrot.slane %v7999, 7
      %v8068 = vrot.slane %v8000, 1
      %v8069 = vrot.slane %v8000, 2
      %v8070 = vrot.slane %v8000, 3
      %v8071 = vrot.slane %v8000, 4
      %v8072 = vrot.slane %v8000, 5
      %v8073 = vrot.slane %v8000, 6
      %v8074 = vrot.slane %v8000, 7
      %v8075 = vrot.slane %v8001, 1
      %v8076 = vrot.slane %v8001, 2
      %v8077 = vrot.slane %v8001, 3
      %v8078 = vrot.slane %v8001, 4
      %v8079 = vrot.slane %v8001, 5
      %v8080 = vrot.slane %v8001, 6
      %v8081 = vrot.slane %v8001, 7
      %v8082 = vrot.slane %v8002, 1
      %v8083 = vrot.slane %v8002, 2
      %v8084 = vrot.slane %v8002, 3
      %v8085 = vrot.slane %v8002, 4
      %v8086 = vrot.slane %v8002, 5
      %v8087 = vrot.slane %v8002, 6
      %v8088 = vrot.slane %v8002, 7
      %v8089 = vrot.slane %v8003, 1
      %v8090 = vrot.slane %v8003, 2
      %v8091 = vrot.slane %v8003, 3
      %v8092 = vrot.slane %v8003, 4
      %v8093 = vrot.slane %v8003, 5
      %v8094 = vrot.slane %v8003, 6
      %v8095 = vrot.slane %v8003, 7
      %v8096 = vrot.slane %v8004, 1
      %v8097 = vrot.slane %v8004, 2
      %v8098 = vrot.slane %v8004, 3
      %v8099 = vrot.slane %v8004, 4
      %v8100 = vrot.slane %v8004, 5
      %v8101 = vrot.slane %v8004, 6
      %v8102 = vrot.slane %v8004, 7
      %v8103 = vrot.slane %v8005, 1
      %v8104 = vrot.slane %v8005, 2
      %v8105 = vrot.slane %v8005, 3
      %v8106 = vrot.slane %v8005, 4
      %v8107 = vrot.slane %v8005, 5
      %v8108 = vrot.slane %v8005, 6
      %v8109 = vrot.slane %v8005, 7
      %v8110 = vrot.slane %v8006, 1
      %v8111 = vrot.slane %v8006, 2
      %v8112 = vrot.slane %v8006, 3
      %v8113 = vrot.slane %v8006, 4
      %v8114 = vrot.slane %v8006, 5
      %v8115 = vrot.slane %v8006, 6
      %v8116 = vrot.slane %v8006, 7
      %v8117 = vrot.slane %v8007, 1
      %v8118 = vrot.slane %v8007, 2
      %v8119 = vrot.slane %v8007, 3
      %v8120 = vrot.slane %v8007, 4
      %v8121 = vrot.slane %v8007, 5
      %v8122 = vrot.slane %v8007, 6
      %v8123 = vrot.slane %v8007, 7
      %v8124 = vrot.slane %v8008, 1
      %v8125 = vrot.slane %v8008, 2
      %v8126 = vrot.slane %v8008, 3
      %v8127 = vrot.slane %v8008, 4
      %v8128 = vrot.slane %v8008, 5
      %v8129 = vrot.slane %v8008, 6
      %v8130 = vrot.slane %v8008, 7
      %v8131 = vrot.slane %v8009, 1
      %v8132 = vrot.slane %v8009, 2
      %v8133 = vrot.slane %v8009, 3
      %v8134 = vrot.slane %v8009, 4
      %v8135 = vrot.slane %v8009, 5
      %v8136 = vrot.slane %v8009, 6
      %v8137 = vrot.slane %v8009, 7
      %v8266 = vadd.f32 %v7818, %v7994
      %v8267 = vadd.f32 %v7819, %v8026
      %v8268 = vadd.f32 %v7820, %v8027
      %v8269 = vadd.f32 %v7821, %v8028
      %v8270 = vadd.f32 %v7822, %v8029
      %v8271 = vadd.f32 %v7823, %v8030
      %v8272 = vadd.f32 %v7824, %v8031
      %v8273 = vadd.f32 %v7825, %v8032
      %v8274 = vadd.f32 %v7826, %v7995
      %v8275 = vadd.f32 %v7827, %v8033
      %v8276 = vadd.f32 %v7828, %v8034
      %v8277 = vadd.f32 %v7829, %v8035
      %v8278 = vadd.f32 %v7830, %v8036
      %v8279 = vadd.f32 %v7831, %v8037
      %v8280 = vadd.f32 %v7832, %v8038
      %v8281 = vadd.f32 %v7833, %v8039
      %v8282 = vadd.f32 %v7834, %v7996
      %v8283 = vadd.f32 %v7835, %v8040
      %v8284 = vadd.f32 %v7836, %v8041
      %v8285 = vadd.f32 %v7837, %v8042
      %v8286 = vadd.f32 %v7838, %v8043
      %v8287 = vadd.f32 %v7839, %v8044
      %v8288 = vadd.f32 %v7840, %v8045
      %v8289 = vadd.f32 %v7841, %v8046
      %v8290 = vadd.f32 %v7842, %v7997
      %v8291 = vadd.f32 %v7843, %v8047
      %v8292 = vadd.f32 %v7844, %v8048
      %v8293 = vadd.f32 %v7845, %v8049
      %v8294 = vadd.f32 %v7846, %v8050
      %v8295 = vadd.f32 %v7847, %v8051
      %v8296 = vadd.f32 %v7848, %v8052
      %v8297 = vadd.f32 %v7849, %v8053
      %v8298 = vadd.f32 %v7850, %v7998
      %v8299 = vadd.f32 %v7851, %v8054
      %v8300 = vadd.f32 %v7852, %v8055
      %v8301 = vadd.f32 %v7853, %v8056
      %v8302 = vadd.f32 %v7854, %v8057
      %v8303 = vadd.f32 %v7855, %v8058
      %v8304 = vadd.f32 %v7856, %v8059
      %v8305 = vadd.f32 %v7857, %v8060
      %v8306 = vadd.f32 %v7858, %v7999
      %v8307 = vadd.f32 %v7859, %v8061
      %v8308 = vadd.f32 %v7860, %v8062
      %v8309 = vadd.f32 %v7861, %v8063
      %v8310 = vadd.f32 %v7862, %v8064
      %v8311 = vadd.f32 %v7863, %v8065
      %v8312 = vadd.f32 %v7864, %v8066
      %v8313 = vadd.f32 %v7865, %v8067
      %v8314 = vadd.f32 %v7866, %v8000
      %v8315 = vadd.f32 %v7867, %v8068
      %v8316 = vadd.f32 %v7868, %v8069
      %v8317 = vadd.f32 %v7869, %v8070
      %v8318 = vadd.f32 %v7870, %v8071
      %v8319 = vadd.f32 %v7871, %v8072
      %v8320 = vadd.f32 %v7872, %v8073
      %v8321 = vadd.f32 %v7873, %v8074
      %v8322 = vadd.f32 %v7874, %v8001
      %v8323 = vadd.f32 %v7875, %v8075
      %v8324 = vadd.f32 %v7876, %v8076
      %v8325 = vadd.f32 %v7877, %v8077
      %v8326 = vadd.f32 %v7878, %v8078
      %v8327 = vadd.f32 %v7879, %v8079
      %v8328 = vadd.f32 %v7880, %v8080
      %v8329 = vadd.f32 %v7881, %v8081
      %v8330 = vadd.f32 %v7882, %v8002
      %v8331 = vadd.f32 %v7883, %v8082
      %v8332 = vadd.f32 %v7884, %v8083
      %v8333 = vadd.f32 %v7885, %v8084
      %v8334 = vadd.f32 %v7886, %v8085
      %v8335 = vadd.f32 %v7887, %v8086
      %v8336 = vadd.f32 %v7888, %v8087
      %v8337 = vadd.f32 %v7889, %v8088
      %v8338 = vadd.f32 %v7890, %v8003
      %v8339 = vadd.f32 %v7891, %v8089
      %v8340 = vadd.f32 %v7892, %v8090
      %v8341 = vadd.f32 %v7893, %v8091
      %v8342 = vadd.f32 %v7894, %v8092
      %v8343 = vadd.f32 %v7895, %v8093
      %v8344 = vadd.f32 %v7896, %v8094
      %v8345 = vadd.f32 %v7897, %v8095
      %v8346 = vadd.f32 %v7898, %v8004
      %v8347 = vadd.f32 %v7899, %v8096
      %v8348 = vadd.f32 %v7900, %v8097
      %v8349 = vadd.f32 %v7901, %v8098
      %v8350 = vadd.f32 %v7902, %v8099
      %v8351 = vadd.f32 %v7903, %v8100
      %v8352 = vadd.f32 %v7904, %v8101
      %v8353 = vadd.f32 %v7905, %v8102
      %v8354 = vadd.f32 %v7906, %v8005
      %v8355 = vadd.f32 %v7907, %v8103
      %v8356 = vadd.f32 %v7908, %v8104
      %v8357 = vadd.f32 %v7909, %v8105
      %v8358 = vadd.f32 %v7910, %v8106
      %v8359 = vadd.f32 %v7911, %v8107
      %v8360 = vadd.f32 %v7912, %v8108
      %v8361 = vadd.f32 %v7913, %v8109
      %v8362 = vadd.f32 %v7914, %v8006
      %v8363 = vadd.f32 %v7915, %v8110
      %v8364 = vadd.f32 %v7916, %v8111
      %v8365 = vadd.f32 %v7917, %v8112
      %v8366 = vadd.f32 %v7918, %v8113
      %v8367 = vadd.f32 %v7919, %v8114
      %v8368 = vadd.f32 %v7920, %v8115
      %v8369 = vadd.f32 %v7921, %v8116
      %v8370 = vadd.f32 %v7922, %v8007
      %v8371 = vadd.f32 %v7923, %v8117
      %v8372 = vadd.f32 %v7924, %v8118
      %v8373 = vadd.f32 %v7925, %v8119
      %v8374 = vadd.f32 %v7926, %v8120
      %v8375 = vadd.f32 %v7927, %v8121
      %v8376 = vadd.f32 %v7928, %v8122
      %v8377 = vadd.f32 %v7929, %v8123
      %v8378 = vadd.f32 %v7930, %v8008
      %v8379 = vadd.f32 %v7931, %v8124
      %v8380 = vadd.f32 %v7932, %v8125
      %v8381 = vadd.f32 %v7933, %v8126
      %v8382 = vadd.f32 %v7934, %v8127
      %v8383 = vadd.f32 %v7935, %v8128
      %v8384 = vadd.f32 %v7936, %v8129
      %v8385 = vadd.f32 %v7937, %v8130
      %v8386 = vadd.f32 %v7938, %v8009
      %v8387 = vadd.f32 %v7939, %v8131
      %v8388 = vadd.f32 %v7940, %v8132
      %v8389 = vadd.f32 %v7941, %v8133
      %v8390 = vadd.f32 %v7942, %v8134
      %v8391 = vadd.f32 %v7943, %v8135
      %v8392 = vadd.f32 %v7944, %v8136
      %v8393 = vadd.f32 %v7945, %v8137
      %v8394 = vpack.c.bf16 %v8266, %v8266
      %v8395 = vpack.c.bf16 %v8267, %v8267
      %v8396 = vpack.c.bf16 %v8268, %v8268
      %v8397 = vpack.c.bf16 %v8269, %v8269
      %v8398 = vpack.c.bf16 %v8270, %v8270
      %v8399 = vpack.c.bf16 %v8271, %v8271
      %v8400 = vpack.c.bf16 %v8272, %v8272
      %v8401 = vpack.c.bf16 %v8273, %v8273
      %v8402 = vpack.c.bf16 %v8274, %v8274
      %v8403 = vpack.c.bf16 %v8275, %v8275
      %v8404 = vpack.c.bf16 %v8276, %v8276
      %v8405 = vpack.c.bf16 %v8277, %v8277
      %v8406 = vpack.c.bf16 %v8278, %v8278
      %v8407 = vpack.c.bf16 %v8279, %v8279
      %v8408 = vpack.c.bf16 %v8280, %v8280
      %v8409 = vpack.c.bf16 %v8281, %v8281
      %v8410 = vpack.c.bf16 %v8282, %v8282
      %v8411 = vpack.c.bf16 %v8283, %v8283
      %v8412 = vpack.c.bf16 %v8284, %v8284
      %v8413 = vpack.c.bf16 %v8285, %v8285
      %v8414 = vpack.c.bf16 %v8286, %v8286
      %v8415 = vpack.c.bf16 %v8287, %v8287
      %v8416 = vpack.c.bf16 %v8288, %v8288
      %v8417 = vpack.c.bf16 %v8289, %v8289
      %v8418 = vpack.c.bf16 %v8290, %v8290
      %v8419 = vpack.c.bf16 %v8291, %v8291
      %v8420 = vpack.c.bf16 %v8292, %v8292
      %v8421 = vpack.c.bf16 %v8293, %v8293
      %v8422 = vpack.c.bf16 %v8294, %v8294
      %v8423 = vpack.c.bf16 %v8295, %v8295
      %v8424 = vpack.c.bf16 %v8296, %v8296
      %v8425 = vpack.c.bf16 %v8297, %v8297
      %v8426 = vpack.c.bf16 %v8298, %v8298
      %v8427 = vpack.c.bf16 %v8299, %v8299
      %v8428 = vpack.c.bf16 %v8300, %v8300
      %v8429 = vpack.c.bf16 %v8301, %v8301
      %v8430 = vpack.c.bf16 %v8302, %v8302
      %v8431 = vpack.c.bf16 %v8303, %v8303
      %v8432 = vpack.c.bf16 %v8304, %v8304
      %v8433 = vpack.c.bf16 %v8305, %v8305
      %v8434 = vpack.c.bf16 %v8306, %v8306
      %v8435 = vpack.c.bf16 %v8307, %v8307
      %v8436 = vpack.c.bf16 %v8308, %v8308
      %v8437 = vpack.c.bf16 %v8309, %v8309
      %v8438 = vpack.c.bf16 %v8310, %v8310
      %v8439 = vpack.c.bf16 %v8311, %v8311
      %v8440 = vpack.c.bf16 %v8312, %v8312
      %v8441 = vpack.c.bf16 %v8313, %v8313
      %v8442 = vpack.c.bf16 %v8314, %v8314
      %v8443 = vpack.c.bf16 %v8315, %v8315
      %v8444 = vpack.c.bf16 %v8316, %v8316
      %v8445 = vpack.c.bf16 %v8317, %v8317
      %v8446 = vpack.c.bf16 %v8318, %v8318
      %v8447 = vpack.c.bf16 %v8319, %v8319
      %v8448 = vpack.c.bf16 %v8320, %v8320
      %v8449 = vpack.c.bf16 %v8321, %v8321
      %v8450 = vpack.c.bf16 %v8322, %v8322
      %v8451 = vpack.c.bf16 %v8323, %v8323
      %v8452 = vpack.c.bf16 %v8324, %v8324
      %v8453 = vpack.c.bf16 %v8325, %v8325
      %v8454 = vpack.c.bf16 %v8326, %v8326
      %v8455 = vpack.c.bf16 %v8327, %v8327
      %v8456 = vpack.c.bf16 %v8328, %v8328
      %v8457 = vpack.c.bf16 %v8329, %v8329
      %v8458 = vpack.c.bf16 %v8330, %v8330
      %v8459 = vpack.c.bf16 %v8331, %v8331
      %v8460 = vpack.c.bf16 %v8332, %v8332
      %v8461 = vpack.c.bf16 %v8333, %v8333
      %v8462 = vpack.c.bf16 %v8334, %v8334
      %v8463 = vpack.c.bf16 %v8335, %v8335
      %v8464 = vpack.c.bf16 %v8336, %v8336
      %v8465 = vpack.c.bf16 %v8337, %v8337
      %v8466 = vpack.c.bf16 %v8338, %v8338
      %v8467 = vpack.c.bf16 %v8339, %v8339
      %v8468 = vpack.c.bf16 %v8340, %v8340
      %v8469 = vpack.c.bf16 %v8341, %v8341
      %v8470 = vpack.c.bf16 %v8342, %v8342
      %v8471 = vpack.c.bf16 %v8343, %v8343
      %v8472 = vpack.c.bf16 %v8344, %v8344
      %v8473 = vpack.c.bf16 %v8345, %v8345
      %v8474 = vpack.c.bf16 %v8346, %v8346
      %v8475 = vpack.c.bf16 %v8347, %v8347
      %v8476 = vpack.c.bf16 %v8348, %v8348
      %v8477 = vpack.c.bf16 %v8349, %v8349
      %v8478 = vpack.c.bf16 %v8350, %v8350
      %v8479 = vpack.c.bf16 %v8351, %v8351
      %v8480 = vpack.c.bf16 %v8352, %v8352
      %v8481 = vpack.c.bf16 %v8353, %v8353
      %v8482 = vpack.c.bf16 %v8354, %v8354
      %v8483 = vpack.c.bf16 %v8355, %v8355
      %v8484 = vpack.c.bf16 %v8356, %v8356
      %v8485 = vpack.c.bf16 %v8357, %v8357
      %v8486 = vpack.c.bf16 %v8358, %v8358
      %v8487 = vpack.c.bf16 %v8359, %v8359
      %v8488 = vpack.c.bf16 %v8360, %v8360
      %v8489 = vpack.c.bf16 %v8361, %v8361
      %v8490 = vpack.c.bf16 %v8362, %v8362
      %v8491 = vpack.c.bf16 %v8363, %v8363
      %v8492 = vpack.c.bf16 %v8364, %v8364
      %v8493 = vpack.c.bf16 %v8365, %v8365
      %v8494 = vpack.c.bf16 %v8366, %v8366
      %v8495 = vpack.c.bf16 %v8367, %v8367
      %v8496 = vpack.c.bf16 %v8368, %v8368
      %v8497 = vpack.c.bf16 %v8369, %v8369
      %v8498 = vpack.c.bf16 %v8370, %v8370
      %v8499 = vpack.c.bf16 %v8371, %v8371
      %v8500 = vpack.c.bf16 %v8372, %v8372
      %v8501 = vpack.c.bf16 %v8373, %v8373
      %v8502 = vpack.c.bf16 %v8374, %v8374
      %v8503 = vpack.c.bf16 %v8375, %v8375
      %v8504 = vpack.c.bf16 %v8376, %v8376
      %v8505 = vpack.c.bf16 %v8377, %v8377
      %v8506 = vpack.c.bf16 %v8378, %v8378
      %v8507 = vpack.c.bf16 %v8379, %v8379
      %v8508 = vpack.c.bf16 %v8380, %v8380
      %v8509 = vpack.c.bf16 %v8381, %v8381
      %v8510 = vpack.c.bf16 %v8382, %v8382
      %v8511 = vpack.c.bf16 %v8383, %v8383
      %v8512 = vpack.c.bf16 %v8384, %v8384
      %v8513 = vpack.c.bf16 %v8385, %v8385
      %v8514 = vpack.c.bf16 %v8386, %v8386
      %v8515 = vpack.c.bf16 %v8387, %v8387
      %v8516 = vpack.c.bf16 %v8388, %v8388
      %v8517 = vpack.c.bf16 %v8389, %v8389
      %v8518 = vpack.c.bf16 %v8390, %v8390
      %v8519 = vpack.c.bf16 %v8391, %v8391
      %v8520 = vpack.c.bf16 %v8392, %v8392
      %v8521 = vpack.c.bf16 %v8393, %v8393
      %v8522 = vld [vmem:[%s5] sm:$0xf]
      %v8523 = vld [vmem:[%s5 + $0x4] sm:$0xf]
      %v8524 = vld [vmem:[%s5 + $0x8] sm:$0xf]
      %v8525 = vld [vmem:[%s5 + $0xc] sm:$0xf]
      %v8526 = vld [vmem:[%s6] sm:$0x1]
      %v8528 = vlaneseq
      %v8529 = vshrl.u32 %v8528, 7
      %v8530 = vsub.s32 0, %v8529
      %v8531 = vrot.slane %v8526, %v8530
      %v8661 = vunpack.c.l.b16 %v8394
      %v8662 = vunpack.c.l.b16 %v8395
      %v8663 = vunpack.c.l.b16 %v8396
      %v8664 = vunpack.c.l.b16 %v8397
      %v8665 = vunpack.c.l.b16 %v8398
      %v8666 = vunpack.c.l.b16 %v8399
      %v8667 = vunpack.c.l.b16 %v8400
      %v8668 = vunpack.c.l.b16 %v8401
      %v8669 = vunpack.c.l.b16 %v8402
      %v8670 = vunpack.c.l.b16 %v8403
      %v8671 = vunpack.c.l.b16 %v8404
      %v8672 = vunpack.c.l.b16 %v8405
      %v8673 = vunpack.c.l.b16 %v8406
      %v8674 = vunpack.c.l.b16 %v8407
      %v8675 = vunpack.c.l.b16 %v8408
      %v8676 = vunpack.c.l.b16 %v8409
      %v8677 = vunpack.c.l.b16 %v8410
      %v8678 = vunpack.c.l.b16 %v8411
      %v8679 = vunpack.c.l.b16 %v8412
      %v8680 = vunpack.c.l.b16 %v8413
      %v8681 = vunpack.c.l.b16 %v8414
      %v8682 = vunpack.c.l.b16 %v8415
      %v8683 = vunpack.c.l.b16 %v8416
      %v8684 = vunpack.c.l.b16 %v8417
      %v8685 = vunpack.c.l.b16 %v8418
      %v8686 = vunpack.c.l.b16 %v8419
      %v8687 = vunpack.c.l.b16 %v8420
      %v8688 = vunpack.c.l.b16 %v8421
      %v8689 = vunpack.c.l.b16 %v8422
      %v8690 = vunpack.c.l.b16 %v8423
      %v8691 = vunpack.c.l.b16 %v8424
      %v8692 = vunpack.c.l.b16 %v8425
      %v8693 = vunpack.c.l.b16 %v8426
      %v8694 = vunpack.c.l.b16 %v8427
      %v8695 = vunpack.c.l.b16 %v8428
      %v8696 = vunpack.c.l.b16 %v8429
      %v8697 = vunpack.c.l.b16 %v8430
      %v8698 = vunpack.c.l.b16 %v8431
      %v8699 = vunpack.c.l.b16 %v8432
      %v8700 = vunpack.c.l.b16 %v8433
      %v8701 = vunpack.c.l.b16 %v8434
      %v8702 = vunpack.c.l.b16 %v8435
      %v8703 = vunpack.c.l.b16 %v8436
      %v8704 = vunpack.c.l.b16 %v8437
      %v8705 = vunpack.c.l.b16 %v8438
      %v8706 = vunpack.c.l.b16 %v8439
      %v8707 = vunpack.c.l.b16 %v8440
      %v8708 = vunpack.c.l.b16 %v8441
      %v8709 = vunpack.c.l.b16 %v8442
      %v8710 = vunpack.c.l.b16 %v8443
      %v8711 = vunpack.c.l.b16 %v8444
      %v8712 = vunpack.c.l.b16 %v8445
      %v8713 = vunpack.c.l.b16 %v8446
      %v8714 = vunpack.c.l.b16 %v8447
      %v8715 = vunpack.c.l.b16 %v8448
      %v8716 = vunpack.c.l.b16 %v8449
      %v8717 = vunpack.c.l.b16 %v8450
      %v8718 = vunpack.c.l.b16 %v8451
      %v8719 = vunpack.c.l.b16 %v8452
      %v8720 = vunpack.c.l.b16 %v8453
      %v8721 = vunpack.c.l.b16 %v8454
      %v8722 = vunpack.c.l.b16 %v8455
      %v8723 = vunpack.c.l.b16 %v8456
      %v8724 = vunpack.c.l.b16 %v8457
      %v8725 = vunpack.c.l.b16 %v8458
      %v8726 = vunpack.c.l.b16 %v8459
      %v8727 = vunpack.c.l.b16 %v8460
      %v8728 = vunpack.c.l.b16 %v8461
      %v8729 = vunpack.c.l.b16 %v8462
      %v8730 = vunpack.c.l.b16 %v8463
      %v8731 = vunpack.c.l.b16 %v8464
      %v8732 = vunpack.c.l.b16 %v8465
      %v8733 = vunpack.c.l.b16 %v8466
      %v8734 = vunpack.c.l.b16 %v8467
      %v8735 = vunpack.c.l.b16 %v8468
      %v8736 = vunpack.c.l.b16 %v8469
      %v8737 = vunpack.c.l.b16 %v8470
      %v8738 = vunpack.c.l.b16 %v8471
      %v8739 = vunpack.c.l.b16 %v8472
      %v8740 = vunpack.c.l.b16 %v8473
      %v8741 = vunpack.c.l.b16 %v8474
      %v8742 = vunpack.c.l.b16 %v8475
      %v8743 = vunpack.c.l.b16 %v8476
      %v8744 = vunpack.c.l.b16 %v8477
      %v8745 = vunpack.c.l.b16 %v8478
      %v8746 = vunpack.c.l.b16 %v8479
      %v8747 = vunpack.c.l.b16 %v8480
      %v8748 = vunpack.c.l.b16 %v8481
      %v8749 = vunpack.c.l.b16 %v8482
      %v8750 = vunpack.c.l.b16 %v8483
      %v8751 = vunpack.c.l.b16 %v8484
      %v8752 = vunpack.c.l.b16 %v8485
      %v8753 = vunpack.c.l.b16 %v8486
      %v8754 = vunpack.c.l.b16 %v8487
      %v8755 = vunpack.c.l.b16 %v8488
      %v8756 = vunpack.c.l.b16 %v8489
      %v8757 = vunpack.c.l.b16 %v8490
      %v8758 = vunpack.c.l.b16 %v8491
      %v8759 = vunpack.c.l.b16 %v8492
      %v8760 = vunpack.c.l.b16 %v8493
      %v8761 = vunpack.c.l.b16 %v8494
      %v8762 = vunpack.c.l.b16 %v8495
      %v8763 = vunpack.c.l.b16 %v8496
      %v8764 = vunpack.c.l.b16 %v8497
      %v8765 = vunpack.c.l.b16 %v8498
      %v8766 = vunpack.c.l.b16 %v8499
      %v8767 = vunpack.c.l.b16 %v8500
      %v8768 = vunpack.c.l.b16 %v8501
      %v8769 = vunpack.c.l.b16 %v8502
      %v8770 = vunpack.c.l.b16 %v8503
      %v8771 = vunpack.c.l.b16 %v8504
      %v8772 = vunpack.c.l.b16 %v8505
      %v8773 = vunpack.c.l.b16 %v8506
      %v8774 = vunpack.c.l.b16 %v8507
      %v8775 = vunpack.c.l.b16 %v8508
      %v8776 = vunpack.c.l.b16 %v8509
      %v8777 = vunpack.c.l.b16 %v8510
      %v8778 = vunpack.c.l.b16 %v8511
      %v8779 = vunpack.c.l.b16 %v8512
      %v8780 = vunpack.c.l.b16 %v8513
      %v8781 = vunpack.c.l.b16 %v8514
      %v8782 = vunpack.c.l.b16 %v8515
      %v8783 = vunpack.c.l.b16 %v8516
      %v8784 = vunpack.c.l.b16 %v8517
      %v8785 = vunpack.c.l.b16 %v8518
      %v8786 = vunpack.c.l.b16 %v8519
      %v8787 = vunpack.c.l.b16 %v8520
      %v8788 = vunpack.c.l.b16 %v8521
      %v8789 = vrot.slane %v8662, 7
      %vm8790 = vcmask 1041409
      %v8791 = vsel %vm8790, %v8789, %v8661
      %v8792 = vrot.slane %v8663, 6
      %vm8793 = vcmask 1042434
      %v8794 = vsel %vm8793, %v8792, %v8791
      %v8795 = vrot.slane %v8664, 5
      %vm8796 = vcmask 1043459
      %v8797 = vsel %vm8796, %v8795, %v8794
      %v8798 = vrot.slane %v8665, 4
      %vm8799 = vcmask 1044484
      %v8800 = vsel %vm8799, %v8798, %v8797
      %v8801 = vrot.slane %v8666, 3
      %vm8802 = vcmask 1045509
      %v8803 = vsel %vm8802, %v8801, %v8800
      %v8804 = vrot.slane %v8667, 2
      %vm8805 = vcmask 1046534
      %v8806 = vsel %vm8805, %v8804, %v8803
      %v8807 = vrot.slane %v8668, 1
      %vm8808 = vcmask 1047559
      %v8809 = vsel %vm8808, %v8807, %v8806
      %v8810 = vrot.slane %v8670, 7
      %v8811 = vsel %vm8790, %v8810, %v8669
      %v8812 = vrot.slane %v8671, 6
      %v8813 = vsel %vm8793, %v8812, %v8811
      %v8814 = vrot.slane %v8672, 5
      %v8815 = vsel %vm8796, %v8814, %v8813
      %v8816 = vrot.slane %v8673, 4
      %v8817 = vsel %vm8799, %v8816, %v8815
      %v8818 = vrot.slane %v8674, 3
      %v8819 = vsel %vm8802, %v8818, %v8817
      %v8820 = vrot.slane %v8675, 2
      %v8821 = vsel %vm8805, %v8820, %v8819
      %v8822 = vrot.slane %v8676, 1
      %v8823 = vsel %vm8808, %v8822, %v8821
      %v8824 = vrot.slane %v8678, 7
      %v8825 = vsel %vm8790, %v8824, %v8677
      %v8826 = vrot.slane %v8679, 6
      %v8827 = vsel %vm8793, %v8826, %v8825
      %v8828 = vrot.slane %v8680, 5
      %v8829 = vsel %vm8796, %v8828, %v8827
      %v8830 = vrot.slane %v8681, 4
      %v8831 = vsel %vm8799, %v8830, %v8829
      %v8832 = vrot.slane %v8682, 3
      %v8833 = vsel %vm8802, %v8832, %v8831
      %v8834 = vrot.slane %v8683, 2
      %v8835 = vsel %vm8805, %v8834, %v8833
      %v8836 = vrot.slane %v8684, 1
      %v8837 = vsel %vm8808, %v8836, %v8835
      %v8838 = vrot.slane %v8686, 7
      %v8839 = vsel %vm8790, %v8838, %v8685
      %v8840 = vrot.slane %v8687, 6
      %v8841 = vsel %vm8793, %v8840, %v8839
      %v8842 = vrot.slane %v8688, 5
      %v8843 = vsel %vm8796, %v8842, %v8841
      %v8844 = vrot.slane %v8689, 4
      %v8845 = vsel %vm8799, %v8844, %v8843
      %v8846 = vrot.slane %v8690, 3
      %v8847 = vsel %vm8802, %v8846, %v8845
      %v8848 = vrot.slane %v8691, 2
      %v8849 = vsel %vm8805, %v8848, %v8847
      %v8850 = vrot.slane %v8692, 1
      %v8851 = vsel %vm8808, %v8850, %v8849
      %v8852 = vrot.slane %v8694, 7
      %v8853 = vsel %vm8790, %v8852, %v8693
      %v8854 = vrot.slane %v8695, 6
      %v8855 = vsel %vm8793, %v8854, %v8853
      %v8856 = vrot.slane %v8696, 5
      %v8857 = vsel %vm8796, %v8856, %v8855
      %v8858 = vrot.slane %v8697, 4
      %v8859 = vsel %vm8799, %v8858, %v8857
      %v8860 = vrot.slane %v8698, 3
      %v8861 = vsel %vm8802, %v8860, %v8859
      %v8862 = vrot.slane %v8699, 2
      %v8863 = vsel %vm8805, %v8862, %v8861
      %v8864 = vrot.slane %v8700, 1
      %v8865 = vsel %vm8808, %v8864, %v8863
      %v8866 = vrot.slane %v8702, 7
      %v8867 = vsel %vm8790, %v8866, %v8701
      %v8868 = vrot.slane %v8703, 6
      %v8869 = vsel %vm8793, %v8868, %v8867
      %v8870 = vrot.slane %v8704, 5
      %v8871 = vsel %vm8796, %v8870, %v8869
      %v8872 = vrot.slane %v8705, 4
      %v8873 = vsel %vm8799, %v8872, %v8871
      %v8874 = vrot.slane %v8706, 3
      %v8875 = vsel %vm8802, %v8874, %v8873
      %v8876 = vrot.slane %v8707, 2
      %v8877 = vsel %vm8805, %v8876, %v8875
      %v8878 = vrot.slane %v8708, 1
      %v8879 = vsel %vm8808, %v8878, %v8877
      %v8880 = vrot.slane %v8710, 7
      %v8881 = vsel %vm8790, %v8880, %v8709
      %v8882 = vrot.slane %v8711, 6
      %v8883 = vsel %vm8793, %v8882, %v8881
      %v8884 = vrot.slane %v8712, 5
      %v8885 = vsel %vm8796, %v8884, %v8883
      %v8886 = vrot.slane %v8713, 4
      %v8887 = vsel %vm8799, %v8886, %v8885
      %v8888 = vrot.slane %v8714, 3
      %v8889 = vsel %vm8802, %v8888, %v8887
      %v8890 = vrot.slane %v8715, 2
      %v8891 = vsel %vm8805, %v8890, %v8889
      %v8892 = vrot.slane %v8716, 1
      %v8893 = vsel %vm8808, %v8892, %v8891
      %v8894 = vrot.slane %v8718, 7
      %v8895 = vsel %vm8790, %v8894, %v8717
      %v8896 = vrot.slane %v8719, 6
      %v8897 = vsel %vm8793, %v8896, %v8895
      %v8898 = vrot.slane %v8720, 5
      %v8899 = vsel %vm8796, %v8898, %v8897
      %v8900 = vrot.slane %v8721, 4
      %v8901 = vsel %vm8799, %v8900, %v8899
      %v8902 = vrot.slane %v8722, 3
      %v8903 = vsel %vm8802, %v8902, %v8901
      %v8904 = vrot.slane %v8723, 2
      %v8905 = vsel %vm8805, %v8904, %v8903
      %v8906 = vrot.slane %v8724, 1
      %v8907 = vsel %vm8808, %v8906, %v8905
      %v8908 = vrot.slane %v8726, 7
      %v8909 = vsel %vm8790, %v8908, %v8725
      %v8910 = vrot.slane %v8727, 6
      %v8911 = vsel %vm8793, %v8910, %v8909
      %v8912 = vrot.slane %v8728, 5
      %v8913 = vsel %vm8796, %v8912, %v8911
      %v8914 = vrot.slane %v8729, 4
      %v8915 = vsel %vm8799, %v8914, %v8913
      %v8916 = vrot.slane %v8730, 3
      %v8917 = vsel %vm8802, %v8916, %v8915
      %v8918 = vrot.slane %v8731, 2
      %v8919 = vsel %vm8805, %v8918, %v8917
      %v8920 = vrot.slane %v8732, 1
      %v8921 = vsel %vm8808, %v8920, %v8919
      %v8922 = vrot.slane %v8734, 7
      %v8923 = vsel %vm8790, %v8922, %v8733
      %v8924 = vrot.slane %v8735, 6
      %v8925 = vsel %vm8793, %v8924, %v8923
      %v8926 = vrot.slane %v8736, 5
      %v8927 = vsel %vm8796, %v8926, %v8925
      %v8928 = vrot.slane %v8737, 4
      %v8929 = vsel %vm8799, %v8928, %v8927
      %v8930 = vrot.slane %v8738, 3
      %v8931 = vsel %vm8802, %v8930, %v8929
      %v8932 = vrot.slane %v8739, 2
      %v8933 = vsel %vm8805, %v8932, %v8931
      %v8934 = vrot.slane %v8740, 1
      %v8935 = vsel %vm8808, %v8934, %v8933
      %v8936 = vrot.slane %v8742, 7
      %v8937 = vsel %vm8790, %v8936, %v8741
      %v8938 = vrot.slane %v8743, 6
      %v8939 = vsel %vm8793, %v8938, %v8937
      %v8940 = vrot.slane %v8744, 5
      %v8941 = vsel %vm8796, %v8940, %v8939
      %v8942 = vrot.slane %v8745, 4
      %v8943 = vsel %vm8799, %v8942, %v8941
      %v8944 = vrot.slane %v8746, 3
      %v8945 = vsel %vm8802, %v8944, %v8943
      %v8946 = vrot.slane %v8747, 2
      %v8947 = vsel %vm8805, %v8946, %v8945
      %v8948 = vrot.slane %v8748, 1
      %v8949 = vsel %vm8808, %v8948, %v8947
      %v8950 = vrot.slane %v8750, 7
      %v8951 = vsel %vm8790, %v8950, %v8749
      %v8952 = vrot.slane %v8751, 6
      %v8953 = vsel %vm8793, %v8952, %v8951
      %v8954 = vrot.slane %v8752, 5
      %v8955 = vsel %vm8796, %v8954, %v8953
      %v8956 = vrot.slane %v8753, 4
      %v8957 = vsel %vm8799, %v8956, %v8955
      %v8958 = vrot.slane %v8754, 3
      %v8959 = vsel %vm8802, %v8958, %v8957
      %v8960 = vrot.slane %v8755, 2
      %v8961 = vsel %vm8805, %v8960, %v8959
      %v8962 = vrot.slane %v8756, 1
      %v8963 = vsel %vm8808, %v8962, %v8961
      %v8964 = vrot.slane %v8758, 7
      %v8965 = vsel %vm8790, %v8964, %v8757
      %v8966 = vrot.slane %v8759, 6
      %v8967 = vsel %vm8793, %v8966, %v8965
      %v8968 = vrot.slane %v8760, 5
      %v8969 = vsel %vm8796, %v8968, %v8967
      %v8970 = vrot.slane %v8761, 4
      %v8971 = vsel %vm8799, %v8970, %v8969
      %v8972 = vrot.slane %v8762, 3
      %v8973 = vsel %vm8802, %v8972, %v8971
      %v8974 = vrot.slane %v8763, 2
      %v8975 = vsel %vm8805, %v8974, %v8973
      %v8976 = vrot.slane %v8764, 1
      %v8977 = vsel %vm8808, %v8976, %v8975
      %v8978 = vrot.slane %v8766, 7
      %v8979 = vsel %vm8790, %v8978, %v8765
      %v8980 = vrot.slane %v8767, 6
      %v8981 = vsel %vm8793, %v8980, %v8979
      %v8982 = vrot.slane %v8768, 5
      %v8983 = vsel %vm8796, %v8982, %v8981
      %v8984 = vrot.slane %v8769, 4
      %v8985 = vsel %vm8799, %v8984, %v8983
      %v8986 = vrot.slane %v8770, 3
      %v8987 = vsel %vm8802, %v8986, %v8985
      %v8988 = vrot.slane %v8771, 2
      %v8989 = vsel %vm8805, %v8988, %v8987
      %v8990 = vrot.slane %v8772, 1
      %v8991 = vsel %vm8808, %v8990, %v8989
      %v8992 = vrot.slane %v8774, 7
      %v8993 = vsel %vm8790, %v8992, %v8773
      %v8994 = vrot.slane %v8775, 6
      %v8995 = vsel %vm8793, %v8994, %v8993
      %v8996 = vrot.slane %v8776, 5
      %v8997 = vsel %vm8796, %v8996, %v8995
      %v8998 = vrot.slane %v8777, 4
      %v8999 = vsel %vm8799, %v8998, %v8997
      %v9000 = vrot.slane %v8778, 3
      %v9001 = vsel %vm8802, %v9000, %v8999
      %v9002 = vrot.slane %v8779, 2
      %v9003 = vsel %vm8805, %v9002, %v9001
      %v9004 = vrot.slane %v8780, 1
      %v9005 = vsel %vm8808, %v9004, %v9003
      %v9006 = vrot.slane %v8782, 7
      %v9007 = vsel %vm8790, %v9006, %v8781
      %v9008 = vrot.slane %v8783, 6
      %v9009 = vsel %vm8793, %v9008, %v9007
      %v9010 = vrot.slane %v8784, 5
      %v9011 = vsel %vm8796, %v9010, %v9009
      %v9012 = vrot.slane %v8785, 4
      %v9013 = vsel %vm8799, %v9012, %v9011
      %v9014 = vrot.slane %v8786, 3
      %v9015 = vsel %vm8802, %v9014, %v9013
      %v9016 = vrot.slane %v8787, 2
      %v9017 = vsel %vm8805, %v9016, %v9015
      %v9018 = vrot.slane %v8788, 1
      %v9019 = vsel %vm8808, %v9018, %v9017
      %v9020 = vpack.c.b16 %v8823, %v8809
      %v9021 = vpack.c.b16 %v8851, %v8837
      %v9022 = vpack.c.b16 %v8879, %v8865
      %v9023 = vpack.c.b16 %v8907, %v8893
      %v9024 = vpack.c.b16 %v8935, %v8921
      %v9025 = vpack.c.b16 %v8963, %v8949
      %v9026 = vpack.c.b16 %v8991, %v8977
      %v9027 = vpack.c.b16 %v9019, %v9005
      %v9032 = vunpack.c.l.b16 %v8522
      %v9033 = vunpack.c.l.b16 %v8523
      %v9034 = vunpack.c.l.b16 %v8524
      %v9035 = vunpack.c.l.b16 %v8525
      %v9036 = vpack.c.b16 %v9033, %v9032
      %v9037 = vpack.c.b16 %v9035, %v9034
      %vm9040 = vcmask 261120
      %v9042 = vsel %vm9040, %v9020, 0
      %v9045 = vsel %vm9040, %v9021, 0
      %v9048 = vsel %vm9040, %v9022, 0
      %v9051 = vsel %vm9040, %v9023, 0
      %v9054 = vsel %vm9040, %v9024, 0
      %v9057 = vsel %vm9040, %v9025, 0
      %v9060 = vsel %vm9040, %v9026, 0
      %v9063 = vsel %vm9040, %v9027, 0
      %9065 = vmatprep.subr.bf16.mxu0 0
      %9066 = vmatpush1.bf16.msra.mxu0 %v9036
      %9067 = vmatprep.subr.bf16.mxu0 0
      %9068 = vmatpush1.bf16.msra.mxu0 %v9037
      %9069 = vmatprep.subr.bf16.mxu0 0
      %9070 = vmatpush1.bf16.msra.mxu0 0
      %9071 = vmatprep.subr.bf16.mxu0 0
      %9072 = vmatpush1.bf16.msra.mxu0 0
      %9073 = vmatprep.subr.bf16.mxu0 0
      %9074 = vmatpush1.bf16.msra.mxu0 0
      %9075 = vmatprep.subr.bf16.mxu0 0
      %9076 = vmatpush1.bf16.msra.mxu0 0
      %9077 = vmatprep.subr.bf16.mxu0 0
      %9078 = vmatpush1.bf16.msra.mxu0 0
      %9079 = vmatprep.subr.bf16.mxu0 0
      %9080 = vmatpush1.bf16.msra.mxu0 0
      %9081 = vmatprep.subr.bf16.mxu0 0
      %9082 = vmatpush1.bf16.msra.mxu0 0
      %9083 = vmatprep.subr.bf16.mxu0 0
      %9084 = vmatpush1.bf16.msra.mxu0 0
      %9085 = vmatprep.subr.bf16.mxu0 0
      %9086 = vmatpush1.bf16.msra.mxu0 0
      %9087 = vmatprep.subr.bf16.mxu0 0
      %9088 = vmatpush1.bf16.msra.mxu0 0
      %9089 = vmatprep.subr.bf16.mxu0 0
      %9090 = vmatpush1.bf16.msra.mxu0 0
      %9091 = vmatprep.subr.bf16.mxu0 0
      %9092 = vmatpush1.bf16.msra.mxu0 0
      %9093 = vmatprep.subr.bf16.mxu0 0
      %9094 = vmatpush1.bf16.msra.mxu0 0
      %9095 = vmatprep.subr.bf16.mxu0 0
      %9096 = vmatpush1.bf16.msra.mxu0 0
      %9097 = vmatprep.mubr.bf16.mxu0 0
      %9098 = vmatmul.mubr.bf16.gmra.mrb[0].mxu0 %v9042
      %v9099 = vpop.f32.mrb[0].mxu0
      %v9100 = vadd.f32 %v8531, %v9099
      %v9101 = vpop.f32.mrb[0].mxu0
      %v9102 = vpop.f32.mrb[0].mxu0
      %v9103 = vadd.f32 %v8531, %v9102
      %v9104 = vpop.f32.mrb[0].mxu0
      %9105 = vmatprep.mubr.bf16.mxu0 0
      %9106 = vmatmul.mubr.bf16.gmra.mrb[0].mxu0 %v9045
      %v9107 = vpop.f32.mrb[0].mxu0
      %v9108 = vadd.f32 %v8531, %v9107
      %v9109 = vpop.f32.mrb[0].mxu0
      %v9110 = vpop.f32.mrb[0].mxu0
      %v9111 = vadd.f32 %v8531, %v9110
      %v9112 = vpop.f32.mrb[0].mxu0
      %9113 = vmatprep.mubr.bf16.mxu0 0
      %9114 = vmatmul.mubr.bf16.gmra.mrb[0].mxu0 %v9048
      %v9115 = vpop.f32.mrb[0].mxu0
      %v9116 = vadd.f32 %v8531, %v9115
      %v9117 = vpop.f32.mrb[0].mxu0
      %v9118 = vpop.f32.mrb[0].mxu0
      %v9119 = vadd.f32 %v8531, %v9118
      %v9120 = vpop.f32.mrb[0].mxu0
      %9121 = vmatprep.mubr.bf16.mxu0 0
      %9122 = vmatmul.mubr.bf16.gmra.mrb[0].mxu0 %v9051
      %v9123 = vpop.f32.mrb[0].mxu0
      %v9124 = vadd.f32 %v8531, %v9123
      %v9125 = vpop.f32.mrb[0].mxu0
      %v9126 = vpop.f32.mrb[0].mxu0
      %v9127 = vadd.f32 %v8531, %v9126
      %v9128 = vpop.f32.mrb[0].mxu0
      %9129 = vmatprep.mubr.bf16.mxu0 0
      %9130 = vmatmul.mubr.bf16.gmra.mrb[0].mxu0 %v9054
      %v9131 = vpop.f32.mrb[0].mxu0
      %v9132 = vadd.f32 %v8531, %v9131
      %v9133 = vpop.f32.mrb[0].mxu0
      %v9134 = vpop.f32.mrb[0].mxu0
      %v9135 = vadd.f32 %v8531, %v9134
      %v9136 = vpop.f32.mrb[0].mxu0
      %9137 = vmatprep.mubr.bf16.mxu0 0
      %9138 = vmatmul.mubr.bf16.gmra.mrb[0].mxu0 %v9057
      %v9139 = vpop.f32.mrb[0].mxu0
      %v9140 = vadd.f32 %v8531, %v9139
      %v9141 = vpop.f32.mrb[0].mxu0
      %v9142 = vpop.f32.mrb[0].mxu0
      %v9143 = vadd.f32 %v8531, %v9142
      %v9144 = vpop.f32.mrb[0].mxu0
      %9145 = vmatprep.mubr.bf16.mxu0 0
      %9146 = vmatmul.mubr.bf16.gmra.mrb[0].mxu0 %v9060
      %v9147 = vpop.f32.mrb[0].mxu0
      %v9148 = vadd.f32 %v8531, %v9147
      %v9149 = vpop.f32.mrb[0].mxu0
      %v9150 = vpop.f32.mrb[0].mxu0
      %v9151 = vadd.f32 %v8531, %v9150
      %v9152 = vpop.f32.mrb[0].mxu0
      %9153 = vmatprep.mubr.bf16.mxu0 0
      %9154 = vmatmul.mubr.bf16.gmra.mrb[0].mxu0 %v9063
      %v9155 = vpop.f32.mrb[0].mxu0
      %v9156 = vadd.f32 %v8531, %v9155
      %v9157 = vpop.f32.mrb[0].mxu0
      %v9158 = vpop.f32.mrb[0].mxu0
      %v9159 = vadd.f32 %v8531, %v9158
      %v9160 = vpop.f32.mrb[0].mxu0
      %9161 = vdwg.mxu0
      %vm9162 = vcmp.ge.f32.partialorder %v9100, 0.0
      %vm9163 = vcmp.ge.f32.partialorder %v9103, 0.0
      %vm9164 = vcmp.ge.f32.partialorder %v9108, 0.0
      %vm9165 = vcmp.ge.f32.partialorder %v9111, 0.0
      %vm9166 = vcmp.ge.f32.partialorder %v9116, 0.0
      %vm9167 = vcmp.ge.f32.partialorder %v9119, 0.0
      %vm9168 = vcmp.ge.f32.partialorder %v9124, 0.0
      %vm9169 = vcmp.ge.f32.partialorder %v9127, 0.0
      %vm9170 = vcmp.ge.f32.partialorder %v9132, 0.0
      %vm9171 = vcmp.ge.f32.partialorder %v9135, 0.0
      %vm9172 = vcmp.ge.f32.partialorder %v9140, 0.0
      %vm9173 = vcmp.ge.f32.partialorder %v9143, 0.0
      %vm9174 = vcmp.ge.f32.partialorder %v9148, 0.0
      %vm9175 = vcmp.ge.f32.partialorder %v9151, 0.0
      %vm9176 = vcmp.ge.f32.partialorder %v9156, 0.0
      %vm9177 = vcmp.ge.f32.partialorder %v9159, 0.0
      %v9178 = vmul.f32 %v9100, 0.2
      %v9179 = vmul.f32 %v9103, 0.2
      %v9180 = vmul.f32 %v9108, 0.2
      %v9181 = vmul.f32 %v9111, 0.2
      %v9182 = vmul.f32 %v9116, 0.2
      %v9183 = vmul.f32 %v9119, 0.2
      %v9184 = vmul.f32 %v9124, 0.2
      %v9185 = vmul.f32 %v9127, 0.2
      %v9186 = vmul.f32 %v9132, 0.2
      %v9187 = vmul.f32 %v9135, 0.2
      %v9188 = vmul.f32 %v9140, 0.2
      %v9189 = vmul.f32 %v9143, 0.2
      %v9190 = vmul.f32 %v9148, 0.2
      %v9191 = vmul.f32 %v9151, 0.2
      %v9192 = vmul.f32 %v9156, 0.2
      %v9193 = vmul.f32 %v9159, 0.2
      %v9194 = vsel %vm9162, %v9100, %v9178
      %v9195 = vsel %vm9163, %v9103, %v9179
      %v9196 = vsel %vm9164, %v9108, %v9180
      %v9197 = vsel %vm9165, %v9111, %v9181
      %v9198 = vsel %vm9166, %v9116, %v9182
      %v9199 = vsel %vm9167, %v9119, %v9183
      %v9200 = vsel %vm9168, %v9124, %v9184
      %v9201 = vsel %vm9169, %v9127, %v9185
      %v9202 = vsel %vm9170, %v9132, %v9186
      %v9203 = vsel %vm9171, %v9135, %v9187
      %v9204 = vsel %vm9172, %v9140, %v9188
      %v9205 = vsel %vm9173, %v9143, %v9189
      %v9206 = vsel %vm9174, %v9148, %v9190
      %v9207 = vsel %vm9175, %v9151, %v9191
      %v9208 = vsel %vm9176, %v9156, %v9192
      %v9209 = vsel %vm9177, %v9159, %v9193
      %v9210 = vpack.c.bf16 %v9195, %v9194
      %v9211 = vpack.c.bf16 %v9197, %v9196
      %v9212 = vpack.c.bf16 %v9199, %v9198
      %v9213 = vpack.c.bf16 %v9201, %v9200
      %v9214 = vpack.c.bf16 %v9203, %v9202
      %v9215 = vpack.c.bf16 %v9205, %v9204
      %v9216 = vpack.c.bf16 %v9207, %v9206
      %v9217 = vpack.c.bf16 %v9209, %v9208
      %v9218 = vld [vmem:[%s7] sm:$0xf]
      %v9219 = vld [vmem:[%s7 + $0x4] sm:$0xf]
      %v9220 = vld [vmem:[%s7 + $0x8] sm:$0xf]
      %v9221 = vld [vmem:[%s7 + $0xc] sm:$0xf]
      %v9222 = vld [vmem:[%s8] sm:$0x1]
      %v9224 = vlaneseq
      %v9225 = vshrl.u32 %v9224, 7
      %v9226 = vsub.s32 0, %v9225
      %v9227 = vrot.slane %v9222, %v9226
      %v9233 = vunpack.c.l.b16 %v9218
      %v9234 = vunpack.c.l.b16 %v9219
      %v9235 = vunpack.c.l.b16 %v9220
      %v9236 = vunpack.c.l.b16 %v9221
      %v9237 = vpack.c.b16 %v9234, %v9233
      %v9238 = vpack.c.b16 %v9236, %v9235
      %v9242 = vsel %vm9040, %v9210, 0
      %v9245 = vsel %vm9040, %v9211, 0
      %v9248 = vsel %vm9040, %v9212, 0
      %v9251 = vsel %vm9040, %v9213, 0
      %v9254 = vsel %vm9040, %v9214, 0
      %v9257 = vsel %vm9040, %v9215, 0
      %v9260 = vsel %vm9040, %v9216, 0
      %v9263 = vsel %vm9040, %v9217, 0
      %9265 = vmatprep.subr.bf16.mxu0 0
      %9266 = vmatpush1.bf16.msra.mxu0 %v9237
      %9267 = vmatprep.subr.bf16.mxu0 0
      %9268 = vmatpush1.bf16.msra.mxu0 %v9238
      %9269 = vmatprep.subr.bf16.mxu0 0
      %9270 = vmatpush1.bf16.msra.mxu0 0
      %9271 = vmatprep.subr.bf16.mxu0 0
      %9272 = vmatpush1.bf16.msra.mxu0 0
      %9273 = vmatprep.subr.bf16.mxu0 0
      %9274 = vmatpush1.bf16.msra.mxu0 0
      %9275 = vmatprep.subr.bf16.mxu0 0
      %9276 = vmatpush1.bf16.msra.mxu0 0
      %9277 = vmatprep.subr.bf16.mxu0 0
      %9278 = vmatpush1.bf16.msra.mxu0 0
      %9279 = vmatprep.subr.bf16.mxu0 0
      %9280 = vmatpush1.bf16.msra.mxu0 0
      %9281 = vmatprep.subr.bf16.mxu0 0
      %9282 = vmatpush1.bf16.msra.mxu0 0
      %9283 = vmatprep.subr.bf16.mxu0 0
      %9284 = vmatpush1.bf16.msra.mxu0 0
      %9285 = vmatprep.subr.bf16.mxu0 0
      %9286 = vmatpush1.bf16.msra.mxu0 0
      %9287 = vmatprep.subr.bf16.mxu0 0
      %9288 = vmatpush1.bf16.msra.mxu0 0
      %9289 = vmatprep.subr.bf16.mxu0 0
      %9290 = vmatpush1.bf16.msra.mxu0 0
      %9291 = vmatprep.subr.bf16.mxu0 0
      %9292 = vmatpush1.bf16.msra.mxu0 0
      %9293 = vmatprep.subr.bf16.mxu0 0
      %9294 = vmatpush1.bf16.msra.mxu0 0
      %9295 = vmatprep.subr.bf16.mxu0 0
      %9296 = vmatpush1.bf16.msra.mxu0 0
      %9297 = vmatprep.mubr.bf16.mxu0 0
      %9298 = vmatmul.mubr.bf16.gmra.mrb[0].mxu0 %v9242
      %v9299 = vpop.f32.mrb[0].mxu0
      %v9300 = vadd.f32 %v9227, %v9299
      %v9301 = vpop.f32.mrb[0].mxu0
      %v9302 = vpop.f32.mrb[0].mxu0
      %v9303 = vadd.f32 %v9227, %v9302
      %v9304 = vpop.f32.mrb[0].mxu0
      %9305 = vmatprep.mubr.bf16.mxu0 0
      %9306 = vmatmul.mubr.bf16.gmra.mrb[0].mxu0 %v9245
      %v9307 = vpop.f32.mrb[0].mxu0
      %v9308 = vadd.f32 %v9227, %v9307
      %v9309 = vpop.f32.mrb[0].mxu0
      %v9310 = vpop.f32.mrb[0].mxu0
      %v9311 = vadd.f32 %v9227, %v9310
      %v9312 = vpop.f32.mrb[0].mxu0
      %9313 = vmatprep.mubr.bf16.mxu0 0
      %9314 = vmatmul.mubr.bf16.gmra.mrb[0].mxu0 %v9248
      %v9315 = vpop.f32.mrb[0].mxu0
      %v9316 = vadd.f32 %v9227, %v9315
      %v9317 = vpop.f32.mrb[0].mxu0
      %v9318 = vpop.f32.mrb[0].mxu0
      %v9319 = vadd.f32 %v9227, %v9318
      %v9320 = vpop.f32.mrb[0].mxu0
      %9321 = vmatprep.mubr.bf16.mxu0 0
      %9322 = vmatmul.mubr.bf16.gmra.mrb[0].mxu0 %v9251
      %v9323 = vpop.f32.mrb[0].mxu0
      %v9324 = vadd.f32 %v9227, %v9323
      %v9325 = vpop.f32.mrb[0].mxu0
      %v9326 = vpop.f32.mrb[0].mxu0
      %v9327 = vadd.f32 %v9227, %v9326
      %v9328 = vpop.f32.mrb[0].mxu0
      %9329 = vmatprep.mubr.bf16.mxu0 0
      %9330 = vmatmul.mubr.bf16.gmra.mrb[0].mxu0 %v9254
      %v9331 = vpop.f32.mrb[0].mxu0
      %v9332 = vadd.f32 %v9227, %v9331
      %v9333 = vpop.f32.mrb[0].mxu0
      %v9334 = vpop.f32.mrb[0].mxu0
      %v9335 = vadd.f32 %v9227, %v9334
      %v9336 = vpop.f32.mrb[0].mxu0
      %9337 = vmatprep.mubr.bf16.mxu0 0
      %9338 = vmatmul.mubr.bf16.gmra.mrb[0].mxu0 %v9257
      %v9339 = vpop.f32.mrb[0].mxu0
      %v9340 = vadd.f32 %v9227, %v9339
      %v9341 = vpop.f32.mrb[0].mxu0
      %v9342 = vpop.f32.mrb[0].mxu0
      %v9343 = vadd.f32 %v9227, %v9342
      %v9344 = vpop.f32.mrb[0].mxu0
      %9345 = vmatprep.mubr.bf16.mxu0 0
      %9346 = vmatmul.mubr.bf16.gmra.mrb[0].mxu0 %v9260
      %v9347 = vpop.f32.mrb[0].mxu0
      %v9348 = vadd.f32 %v9227, %v9347
      %v9349 = vpop.f32.mrb[0].mxu0
      %v9350 = vpop.f32.mrb[0].mxu0
      %v9351 = vadd.f32 %v9227, %v9350
      %v9352 = vpop.f32.mrb[0].mxu0
      %9353 = vmatprep.mubr.bf16.mxu0 0
      %9354 = vmatmul.mubr.bf16.gmra.mrb[0].mxu0 %v9263
      %v9355 = vpop.f32.mrb[0].mxu0
      %v9356 = vadd.f32 %v9227, %v9355
      %v9357 = vpop.f32.mrb[0].mxu0
      %v9358 = vpop.f32.mrb[0].mxu0
      %v9359 = vadd.f32 %v9227, %v9358
      %v9360 = vpop.f32.mrb[0].mxu0
      %9361 = vdwg.mxu0
      %9362 = vst [vmem:[%s422] sm:$0xff] %v9300
      %9363 = vst [vmem:[%s422 + $0x8] sm:$0xff] %v9303
      %9364 = vst [vmem:[%s422 + $0x10] sm:$0xff] %v9308
      %9365 = vst [vmem:[%s422 + $0x18] sm:$0xff] %v9311
      %9366 = vst [vmem:[%s422 + $0x20] sm:$0xff] %v9316
      %9367 = vst [vmem:[%s422 + $0x28] sm:$0xff] %v9319
      %9368 = vst [vmem:[%s422 + $0x30] sm:$0xff] %v9324
      %9369 = vst [vmem:[%s422 + $0x38] sm:$0xff] %v9327
      %9370 = vst [vmem:[%s422 + $0x40] sm:$0xff] %v9332
      %9371 = vst [vmem:[%s422 + $0x48] sm:$0xff] %v9335
      %9372 = vst [vmem:[%s422 + $0x50] sm:$0xff] %v9340
      %9373 = vst [vmem:[%s422 + $0x58] sm:$0xff] %v9343
      %9374 = vst [vmem:[%s422 + $0x60] sm:$0xff] %v9348
      %9375 = vst [vmem:[%s422 + $0x68] sm:$0xff] %v9351
      %9376 = vst [vmem:[%s422 + $0x70] sm:$0xff] %v9356
      %9377 = vst [vmem:[%s422 + $0x78] sm:$0xff] %v9359
      %s9378 = smul.u32 16, %s20
      %p9379 = scmp.lt.s32.totalorder %s9378, 31
      %s9380 = scalar_select %p9379, %s9378, 31
      %s9381 = smul.addr %s9380, 8
      %s9382 = scalar_lea.vmem %s9, %s9381
      // Predicated region
      $region57: #{refiner_forward.5} parent=55 // pred_check
        %p9383 = pneg %p252
      $region58: #{refiner_forward.5} parent=55 // pred_check_branch
        %9385 = sbr.rel (%p9383) target = $region60
      $region59: #{refiner_forward.5} parent=55 // pred_region
        %s9386 = smul.u32 16, %s20
      $region60: #{refiner_forward.5} parent=55 // pred_fallthru
        _
    $region56: #{refiner_forward.5} parent=5 // pred_fallthru
      _
    %p9387 = scmp.le.s32.totalorder 2, %s15
    // Predicated region
    $region61: #{refiner_forward.5} parent=5 // pred_check
      %p9388 = pneg %p9387
    $region62: #{refiner_forward.5} parent=5 // pred_check_branch
      %9390 = sbr.rel (%p9388) target = $region64
    $region63: #{refiner_forward.5} parent=5 // pred_region
      %s9391 = ssub.s32 %s15, 2
      // Predicated region
      $region65: #{refiner_forward.5} parent=63 // pred_check
        %p9392 = pneg %p258
      $region66: #{refiner_forward.5} parent=63 // pred_check_branch
        %9394 = sbr.rel (%p9392) target = $region68
      $region67: #{refiner_forward.5} parent=63 // pred_region
        %s9395 = smul.u32 16, %s21
        %p9396 = scmp.lt.s32.totalorder %s9395, 31
        %s9397 = scalar_select %p9396, %s9395, 31
        %s9398 = smul.addr %s9397, 8
        %s9399 = scalar_lea.vmem %s9, %s9398
      $region68: #{refiner_forward.5} parent=63 // pred_fallthru
        _
    $region64: #{refiner_forward.5} parent=5 // pred_fallthru
      _
  $region6: #{refiner_forward.5} parent=0 // loop_footer
    %s19 = sadd.s32 1, %s15
  $region7: #{refiner_forward.5} parent=0 // loop_footer_branch
    %14 = sbr.rel target = $region3
  $region8: #{refiner_forward.5} parent=0 // loop_exit
    _

</llo_original>
